<compile_context>
chip_gen: v7x
topology: tpu7x:2x2x1
jax: 0.10.0
libtpu: 0.0.40
codegen_flags: <defaults>
</compile_context>

<pallas_src>
import math

import jax
import jax.numpy as jnp
from jax.experimental import pallas as pl
from jax.experimental.pallas import tpu as pltpu


# Row layout of the packed per-stream vector operand `vecs` (2, 13, C).
_PRE_LN_G, _PRE_LN_B = 0, 1
_QN_G, _QN_B = 2, 3           # q_norm gamma/beta * (1/sqrt(D)) (scale folded in)
_KN_G, _KN_B = 4, 5
_LINV_B = 6
_POST_LN_G, _POST_LN_B = 7, 8
_MLP_B2 = 9
_QKV_BQ, _QKV_BK, _QKV_BV = 10, 11, 12

_SQRT_2_OVER_PI = 0.7978845608028654


# ----------------------------------------------------------------------------
# Pallas kernel
# ----------------------------------------------------------------------------
def _make_kernel(num_heads, T1, T2, C):
    H = num_heads
    D = C // H

    def _ln(x, g, b, eps=1e-6):
        # torch nn.LayerNorm semantics (biased variance, eps inside sqrt); f32 stats.
        mu = jnp.mean(x, axis=-1, keepdims=True)
        xc = x - mu
        var = jnp.mean(xc * xc, axis=-1, keepdims=True)
        return xc * jax.lax.rsqrt(var + eps) * g + b

    def _gelu_tanh(x):
        return 0.5 * x * (1.0 + jnp.tanh(_SQRT_2_OVER_PI * (x + 0.044715 * x * x * x)))

    def kernel(x1_ref, x2_ref, mods_ref, vecs_ref, mlp_b1_ref,
               qkv_w_ref, linv_w_ref, mlp_w1_ref, mlp_w2_ref,
               y1_ref, y2_ref,
               q_s, k_s, v_s):
        x1 = x1_ref[0]          # (T1, C) f32
        x2 = x2_ref[0]          # (T2, C) f32
        mods = mods_ref[0]      # (12, C) f32 packed modulation vectors

        # ---------------- PreAttentionBlock (per stream) ----------------
        def pre_block(x, s, mod_off, t0, tl):
            vs = vecs_ref[s]                                   # (13, C) f32
            shift = mods[mod_off:mod_off + 1]
            scale = mods[mod_off + 1:mod_off + 2]
            h = _ln(x, vs[_PRE_LN_G:_PRE_LN_G + 1], vs[_PRE_LN_B:_PRE_LN_B + 1])
            h = h * (1.0 + scale) + shift                      # adaptive LN modulate
            qkv = jnp.dot(h.astype(jnp.bfloat16), qkv_w_ref[s],
                          preferred_element_type=jnp.float32)  # (tl, 3C) f32 acc
            # q_norm gamma/beta carry the 1/sqrt(D) attention scale already.
            q = _ln(qkv[:, :C] + vs[_QKV_BQ:_QKV_BQ + 1],
                    vs[_QN_G:_QN_G + 1], vs[_QN_B:_QN_B + 1])
            k = _ln(qkv[:, C:2 * C] + vs[_QKV_BK:_QKV_BK + 1],
                    vs[_KN_G:_KN_G + 1], vs[_KN_B:_KN_B + 1])
            v = qkv[:, 2 * C:] + vs[_QKV_BV:_QKV_BV + 1]
            # Lane-dense full-width (tl, C) bf16 stores (no per-head masked
            # scatter into an (H, T, D) layout).
            q_s[t0:t0 + tl, :] = q.astype(jnp.bfloat16)
            k_s[t0:t0 + tl, :] = k.astype(jnp.bfloat16)
            v_s[t0:t0 + tl, :] = v.astype(jnp.bfloat16)

        pre_block(x1, 0, 0, 0, T1)
        pre_block(x2, 1, 2, T1, T2)

        # ---------------- joint multi-head attention ----------------
        # Per-head loop over lane slices: only one (T, T) f32 score tile is
        # live at a time; softmax normalization deferred to the (T, D) output.
        # (Lane slices are free when D % 128 == 0; relayout otherwise.)
        q_all = q_s[...]        # (T, C) bf16 (already scaled by 1/sqrt(D))
        k_all = k_s[...]
        v_all = v_s[...]
        heads = []
        for hh in range(H):
            lo = hh * D
            q_h = q_all[:, lo:lo + D]
            k_h = k_all[:, lo:lo + D]
            v_h = v_all[:, lo:lo + D]
            s_h = jax.lax.dot_general(                       # (T, T) f32
                q_h, k_h, (((1,), (1,)), ((), ())),
                preferred_element_type=jnp.float32)
            m_h = jnp.max(s_h, axis=-1, keepdims=True)
            e_h = jnp.exp(s_h - m_h)
            l_h = jnp.sum(e_h, axis=-1, keepdims=True)       # (T, 1) f32
            o_h = jnp.dot(e_h.astype(jnp.bfloat16), v_h,
                          preferred_element_type=jnp.float32)  # (T, D) f32
            heads.append(o_h * pl.reciprocal(l_h, approx=True))
        # Heads concatenated on the lane axis -> exactly the layout linear_v needs.
        attn = jnp.concatenate(heads, axis=-1)               # (T, C) f32

        # ---------------- PostAttentionBlock (per stream) ----------------
        def post_block(attn_i, x_orig, s, mod_off):
            vs = vecs_ref[s]
            modv = mods[mod_off:mod_off + 1]
            oshift = mods[mod_off + 1:mod_off + 2]
            oscale = mods[mod_off + 2:mod_off + 3]
            modout = mods[mod_off + 3:mod_off + 4]

            # linear_v as a single C-wide matmul (full MXU K utilization).
            y = jnp.dot(attn_i.astype(jnp.bfloat16), linv_w_ref[s],
                        preferred_element_type=jnp.float32) + vs[_LINV_B:_LINV_B + 1]
            y = y * modv                                       # ModulationLayer (no "1 +")
            y = x_orig + y
            yn = _ln(y, vs[_POST_LN_G:_POST_LN_G + 1], vs[_POST_LN_B:_POST_LN_B + 1])
            yn = yn * (1.0 + oscale) + oshift
            hmid = jnp.dot(yn.astype(jnp.bfloat16), mlp_w1_ref[s],
                           preferred_element_type=jnp.float32) + mlp_b1_ref[s]
            hmid = _gelu_tanh(hmid)                            # GELU(tanh) in f32
            hout = jnp.dot(hmid.astype(jnp.bfloat16), mlp_w2_ref[s],
                           preferred_element_type=jnp.float32) + vs[_MLP_B2:_MLP_B2 + 1]
            hout = hout * modout
            # NOTE: both residuals in the torch code add the *original* x.
            return x_orig + hout

        y1_ref[0] = post_block(attn[:T1], x1, 0, 4).astype(y1_ref.dtype)
        y2_ref[0] = post_block(attn[T1:], x2, 1, 8).astype(y2_ref.dtype)

    return kernel


# ----------------------------------------------------------------------------
# Plain-JAX glue: t-conditioning modulation vectors (SiLU + tiny Linear on (B,C))
# ----------------------------------------------------------------------------
def _silu(x):
    return x * jax.nn.sigmoid(x)


def compute_mods(t, p, C):
    h = _silu(t)  # (B, C)

    def lin(w, b):
        return h @ p[w] + p[b]

    pre1 = lin('pre1_adaln_w', 'pre1_adaln_b')
    pre2 = lin('pre2_adaln_w', 'pre2_adaln_b')
    modv1 = lin('post1_modv_w', 'post1_modv_b')
    out1 = lin('post1_adaln_w', 'post1_adaln_b')
    modo1 = lin('post1_modout_w', 'post1_modout_b')
    modv2 = lin('post2_modv_w', 'post2_modv_b')
    out2 = lin('post2_adaln_w', 'post2_adaln_b')
    modo2 = lin('post2_modout_w', 'post2_modout_b')

    return jnp.stack([
        pre1[:, :C], pre1[:, C:],                 # pre block 1: shift, scale
        pre2[:, :C], pre2[:, C:],                 # pre block 2: shift, scale
        modv1, out1[:, :C], out1[:, C:], modo1,   # post block 1
        modv2, out2[:, :C], out2[:, C:], modo2,   # post block 2
    ], axis=1)                                    # (B, 12, C)


def _vmem_capacity_bytes():
    """Physical per-core VMEM, with a conservative fallback (v7x = 64 MiB)."""
    try:
        info = pltpu.get_tpu_info()
        cap = getattr(info, "vmem_capacity_bytes", None)
        if cap:
            return int(cap)
    except Exception:
        pass
    return 64 << 20


# ----------------------------------------------------------------------------
# Wrapper
# ----------------------------------------------------------------------------
def mmdit_block_pallas(x1, x2, t, p, num_heads):
    B, T1, C = x1.shape
    T2 = x2.shape[1]
    H = num_heads
    assert C % H == 0
    D = C // H
    E = 4 * C
    T = T1 + T2
    attn_scale = 1.0 / math.sqrt(D)
    bf16 = jnp.bfloat16

    mods = compute_mods(t, p, C)   # (B, 12, C) f32

    # Packed small vectors: one (2, 13, C) operand instead of 12+ tiny ones.
    # The 1/sqrt(D) attention scale is folded into the q_norm gamma/beta here,
    # so the kernel never scales the (T, T) score tensor.
    def pack_vecs(i):
        qb = p[f'pre{i}_qkv_b']
        return jnp.stack([
            p[f'pre{i}_ln_g'], p[f'pre{i}_ln_b'],
            p[f'pre{i}_qn_g'] * attn_scale, p[f'pre{i}_qn_b'] * attn_scale,
            p[f'pre{i}_kn_g'], p[f'pre{i}_kn_b'],
            p[f'post{i}_linv_b'],
            p[f'post{i}_ln_g'], p[f'post{i}_ln_b'],
            p[f'post{i}_mlp_b2'],
            qb[:C], qb[C:2 * C], qb[2 * C:],
        ], axis=0)

    vecs = jnp.stack([pack_vecs(1), pack_vecs(2)], axis=0)             # (2, 13, C) f32
    mlp_b1 = jnp.stack([p['post1_mlp_b1'], p['post2_mlp_b1']], 0).reshape(2, 1, E)

    # MXU weights shipped in bf16 (halves DMA/VMEM; f32 accumulation in-kernel).
    qkv_w = jnp.stack([p['pre1_qkv_w'], p['pre2_qkv_w']], 0).astype(bf16)        # (2, C, 3C)
    linv_w = jnp.stack([p['post1_linv_w'], p['post2_linv_w']], 0).astype(bf16)   # (2, C, C)
    mlp_w1 = jnp.stack([p['post1_mlp_w1'], p['post2_mlp_w1']], 0).astype(bf16)   # (2, C, E)
    mlp_w2 = jnp.stack([p['post1_mlp_w2'], p['post2_mlp_w2']], 0).astype(bf16)   # (2, E, C)

    kernel = _make_kernel(H, T1, T2, C)

    out_specs = (pl.BlockSpec((1, T1, C), lambda b: (b, 0, 0)),
                 pl.BlockSpec((1, T2, C), lambda b: (b, 0, 0)))
    out_shape = (jax.ShapeDtypeStruct((B, T1, C), x1.dtype),
                 jax.ShapeDtypeStruct((B, T2, C), x2.dtype))
    scratch_shapes = [pltpu.VMEM((T, C), bf16),   # q (already scaled)
                      pltpu.VMEM((T, C), bf16),   # k
                      pltpu.VMEM((T, C), bf16)]   # v

    # Advisory cost estimate so XLA schedules surrounding ops around the call.
    flops = 2 * B * (T * C * 3 * C          # qkv projection
                     + 2 * T * T * C        # qk^T + pv (all heads)
                     + T * C * C            # linear_v
                     + 8 * T * C * C)       # MLP (C->4C->C)
    transcendentals = B * (H * T * T + T * E)
    bytes_accessed = (4 * B * (4 * T * C + 12 * C)
                      + 2 * int(qkv_w.size + linv_w.size + mlp_w1.size + mlp_w2.size)
                      + 4 * int(vecs.size + mlp_b1.size))
    cost = pl.CostEstimate(flops=int(flops), transcendentals=int(transcendentals),
                           bytes_accessed=int(bytes_accessed))

    vmem_cap = _vmem_capacity_bytes()

    def build_and_run(single_buffer_consts):
        # Constant (grid-invariant) operands: request a single pipeline buffer.
        const_kwargs = ({"pipeline_mode": pl.Buffered(1)}
                        if single_buffer_consts else {})

        def const_spec(w):
            nd = w.ndim
            return pl.BlockSpec(w.shape, lambda b, _nd=nd: (0,) * _nd, **const_kwargs)

        in_specs = [
            pl.BlockSpec((1, T1, C), lambda b: (b, 0, 0)),
            pl.BlockSpec((1, T2, C), lambda b: (b, 0, 0)),
            pl.BlockSpec((1, 12, C), lambda b: (b, 0, 0)),
            const_spec(vecs),
            const_spec(mlp_b1),
            const_spec(qkv_w),
            const_spec(linv_w),
            const_spec(mlp_w1),
            const_spec(mlp_w2),
        ]

        # VMEM budget: weights (x2 if double-buffered) + double-buffered
        # x/mods/y pipeline buffers + qkv scratch + live f32 temporaries,
        # with slack; capped below physical capacity (headroom for Mosaic
        # internal scratch), never clamped to 64 MiB on 128 MiB parts.
        w_bytes = 2 * (qkv_w.size + linv_w.size + mlp_w1.size + mlp_w2.size)
        if not single_buffer_consts:
            w_bytes *= 2
        io_bytes = 2 * 4 * (4 * T * C + 12 * C)
        scratch_bytes = 3 * 2 * T * C
        live_bytes = 4 * (2 * T * T + 20 * T * C)
        need = int(1.5 * (w_bytes + io_bytes + scratch_bytes + live_bytes)) + (4 << 20)
        vmem_bytes = min(max(need, 32 << 20), vmem_cap - (8 << 20))

        fn = pl.pallas_call(
            kernel,
            out_shape=out_shape,
            grid=(B,),
            in_specs=in_specs,
            out_specs=out_specs,
            scratch_shapes=scratch_shapes,
            compiler_params=pltpu.CompilerParams(
                dimension_semantics=("parallel",),
                vmem_limit_bytes=int(vmem_bytes)),
            cost_estimate=cost,
        )
        out = fn(x1, x2, mods, vecs, mlp_b1, qkv_w, linv_w, mlp_w1, mlp_w2)
        jax.block_until_ready(out)
        return out

    try:
        y1, y2 = build_and_run(True)
    except Exception:
        # pipeline_mode=pl.Buffered(1) not supported by this jax version:
        # fall back to default double-buffered constant operands.
        y1, y2 = build_and_run(False)
    return y1, y2


# ----------------------------------------------------------------------------
# Pure-JAX reference (mirrors the PyTorch forward exactly) for validation
# ----------------------------------------------------------------------------
def _ln_ref(x, g, b, eps=1e-6):
    mu = x.mean(-1, keepdims=True)
    var = ((x - mu) ** 2).mean(-1, keepdims=True)
    return (x - mu) / jnp.sqrt(var + eps) * g + b


def mmdit_block_ref(x1, x2, t, p, num_heads):
    B, T1, C = x1.shape
    H = num_heads
    D = C // H
    h = _silu(t)

    def adaln(x, pref):
        m = h @ p[pref + '_adaln_w'] + p[pref + '_adaln_b']
        shift, scale = m[:, None, :C], m[:, None, C:]
        return _ln_ref(x, p[pref + '_ln_g'], p[pref + '_ln_b']) * (1.0 + scale) + shift

    def pre(x, pref):
        xx = adaln(x, pref)
        qkv = xx @ p[pref + '_qkv_w'] + p[pref + '_qkv_b']
        q, k, v = jnp.split(qkv, 3, axis=-1)
        q = _ln_ref(q, p[pref + '_qn_g'], p[pref + '_qn_b'])
        k = _ln_ref(k, p[pref + '_kn_g'], p[pref + '_kn_b'])
        return q, k, v

    q1, k1, v1 = pre(x1, 'pre1')
    q2, k2, v2 = pre(x2, 'pre2')
    q = jnp.concatenate([q1, q2], 1)
    k = jnp.concatenate([k1, k2], 1)
    v = jnp.concatenate([v1, v2], 1)
    T = q.shape[1]

    qh = q.reshape(B, T, H, D).transpose(0, 2, 1, 3)
    kh = k.reshape(B, T, H, D).transpose(0, 2, 1, 3)
    vh = v.reshape(B, T, H, D).transpose(0, 2, 1, 3)
    s = (qh @ kh.transpose(0, 1, 3, 2)) / math.sqrt(D)
    a = jax.nn.softmax(s, axis=-1) @ vh
    attn = a.transpose(0, 2, 1, 3).reshape(B, T, C)
    a1, a2 = attn[:, :T1], attn[:, T1:]

    def post(v_, x_, pref):
        modv = (h @ p[pref + '_modv_w'] + p[pref + '_modv_b'])[:, None, :]
        modo = (h @ p[pref + '_modout_w'] + p[pref + '_modout_b'])[:, None, :]
        y = v_ @ p[pref + '_linv_w'] + p[pref + '_linv_b']
        y = y * modv
        y = x_ + y
        y = adaln(y, pref)
        y = y @ p[pref + '_mlp_w1'] + p[pref + '_mlp_b1']
        y = 0.5 * y * (1.0 + jnp.tanh(0.7978845608028654 * (y + 0.044715 * y ** 3)))
        y = y @ p[pref + '_mlp_w2'] + p[pref + '_mlp_b2']
        y = y * modo
        return x_ + y

    return post(a1, x1, 'post1'), post(a2, x2, 'post2')


# ----------------------------------------------------------------------------
# Deterministic parameter init (synthetic; not loaded from a checkpoint)
# ----------------------------------------------------------------------------
def init_params(key, C, E):
    names_shapes = []
    for i in (1, 2):
        names_shapes += [
            (f'pre{i}_adaln_w', (C, 2 * C)), (f'pre{i}_adaln_b', (2 * C,)),
            (f'pre{i}_ln_g', (C,)), (f'pre{i}_ln_b', (C,)),
            (f'pre{i}_qkv_w', (C, 3 * C)), (f'pre{i}_qkv_b', (3 * C,)),
            (f'pre{i}_qn_g', (C,)), (f'pre{i}_qn_b', (C,)),
            (f'pre{i}_kn_g', (C,)), (f'pre{i}_kn_b', (C,)),
            (f'post{i}_modv_w', (C, C)), (f'post{i}_modv_b', (C,)),
            (f'post{i}_linv_w', (C, C)), (f'post{i}_linv_b', (C,)),
            (f'post{i}_adaln_w', (C, 2 * C)), (f'post{i}_adaln_b', (2 * C,)),
            (f'post{i}_ln_g', (C,)), (f'post{i}_ln_b', (C,)),
            (f'post{i}_mlp_w1', (C, E)), (f'post{i}_mlp_b1', (E,)),
            (f'post{i}_mlp_w2', (E, C)), (f'post{i}_mlp_b2', (C,)),
            (f'post{i}_modout_w', (C, C)), (f'post{i}_modout_b', (C,)),
        ]
    keys = jax.random.split(key, len(names_shapes))
    p = {}
    for (name, shape), k in zip(names_shapes, keys):
        if name.endswith('_g'):  # layernorm gamma: near 1
            p[name] = jnp.ones(shape, jnp.float32) + 0.05 * jax.random.normal(k, shape, jnp.float32)
        else:
            p[name] = 0.05 * jax.random.normal(k, shape, jnp.float32)
    return p


if __name__ == "__main__":
    # NOTE: toy sizes (C=32, D=8) are lane-sparse; realistic configs should use
    # C (and ideally D) as multiples of 128 for lane-dense slices/stores.
    B, T1, T2, C, H = 2, 8, 16, 32, 4

    key = jax.random.PRNGKey(0)
    kp, kx1, kx2, kt = jax.random.split(key, 4)
    params = init_params(kp, C, 4 * C)
    x1 = jax.random.normal(kx1, (B, T1, C), jnp.float32)
    x2 = jax.random.normal(kx2, (B, T2, C), jnp.float32)
    t = jax.random.normal(kt, (B, C), jnp.float32)

    y1, y2 = mmdit_block_pallas(x1, x2, t, params, H)
    jax.block_until_ready((y1, y2))

    r1, r2 = mmdit_block_ref(x1, x2, t, params, H)
    assert y1.shape == (B, T1, C) and y2.shape == (B, T2, C)
    # bf16 MXU operands (f32 accumulation/stats) -> slightly looser tolerance.
    assert jnp.allclose(y1, r1, atol=3e-2, rtol=3e-2)
    assert jnp.allclose(y2, r2, atol=3e-2, rtol=3e-2)

    print("KERNEL_OK")
</pallas_src>

<mosaic_0001>
module attributes {stable_mosaic.version = 11 : i64} {
  func.func @kernel(%arg0: i32, %arg1: memref<1x8x32xf32, #tpu.memory_space<vmem>>, %arg2: memref<1x16x32xf32, #tpu.memory_space<vmem>>, %arg3: memref<1x12x32xf32, #tpu.memory_space<vmem>>, %arg4: memref<2x13x32xf32, #tpu.memory_space<vmem>>, %arg5: memref<2x1x128xf32, #tpu.memory_space<vmem>>, %arg6: memref<2x32x96xbf16, #tpu.memory_space<vmem>>, %arg7: memref<2x32x32xbf16, #tpu.memory_space<vmem>>, %arg8: memref<2x32x128xbf16, #tpu.memory_space<vmem>>, %arg9: memref<2x128x32xbf16, #tpu.memory_space<vmem>>, %arg10: memref<1x8x32xf32, #tpu.memory_space<vmem>>, %arg11: memref<1x16x32xf32, #tpu.memory_space<vmem>>, %arg12: memref<24x32xbf16, #tpu.memory_space<vmem>>, %arg13: memref<24x32xbf16, #tpu.memory_space<vmem>>, %arg14: memref<24x32xbf16, #tpu.memory_space<vmem>>) attributes {dimension_semantics = [#tpu.dimension_semantics<parallel>], iteration_bounds = array<i64: 2>, scalar_prefetch = 0 : i64, scratch_operands = 3 : i64, tpu.core_type = #tpu.core_type<tc>, window_params = [{transform_indices = @transform_0, window_bounds = array<i64: 1, 8, 32>}, {transform_indices = @transform_1, window_bounds = array<i64: 1, 16, 32>}, {transform_indices = @transform_2, window_bounds = array<i64: 1, 12, 32>}, {pipeline_mode = #tpu.pipeline_mode<synchronous>, transform_indices = @transform_3, window_bounds = array<i64: 2, 13, 32>}, {pipeline_mode = #tpu.pipeline_mode<synchronous>, transform_indices = @transform_4, window_bounds = array<i64: 2, 1, 128>}, {pipeline_mode = #tpu.pipeline_mode<synchronous>, transform_indices = @transform_5, window_bounds = array<i64: 2, 32, 96>}, {pipeline_mode = #tpu.pipeline_mode<synchronous>, transform_indices = @transform_6, window_bounds = array<i64: 2, 32, 32>}, {pipeline_mode = #tpu.pipeline_mode<synchronous>, transform_indices = @transform_7, window_bounds = array<i64: 2, 32, 128>}, {pipeline_mode = #tpu.pipeline_mode<synchronous>, transform_indices = @transform_8, window_bounds = array<i64: 2, 128, 32>}, {transform_indices = @transform_9, window_bounds = array<i64: 1, 8, 32>}, {transform_indices = @transform_10, window_bounds = array<i64: 1, 16, 32>}]} {
    %c0 = arith.constant 0 : index
    %c0_0 = arith.constant 0 : index
    %c0_1 = arith.constant 0 : index
    %0 = vector.load %arg1[%c0, %c0_0, %c0_1] : memref<1x8x32xf32, #tpu.memory_space<vmem>>, vector<1x8x32xf32>
    %1 = vector.shape_cast %0 : vector<1x8x32xf32> to vector<8x32xf32>
    %c0_2 = arith.constant 0 : index
    %c0_3 = arith.constant 0 : index
    %c0_4 = arith.constant 0 : index
    %2 = vector.load %arg2[%c0_2, %c0_3, %c0_4] : memref<1x16x32xf32, #tpu.memory_space<vmem>>, vector<1x16x32xf32>
    %3 = vector.shape_cast %2 : vector<1x16x32xf32> to vector<16x32xf32>
    %c0_5 = arith.constant 0 : index
    %c0_6 = arith.constant 0 : index
    %c0_7 = arith.constant 0 : index
    %4 = vector.load %arg3[%c0_5, %c0_6, %c0_7] : memref<1x12x32xf32, #tpu.memory_space<vmem>>, vector<1x12x32xf32>
    %5 = vector.shape_cast %4 : vector<1x12x32xf32> to vector<12x32xf32>
    %c0_8 = arith.constant 0 : index
    %c0_9 = arith.constant 0 : index
    %c0_10 = arith.constant 0 : index
    %6 = vector.load %arg4[%c0_8, %c0_9, %c0_10] : memref<2x13x32xf32, #tpu.memory_space<vmem>>, vector<1x13x32xf32>
    %7 = vector.shape_cast %6 : vector<1x13x32xf32> to vector<13x32xf32>
    %8 = vector.extract_strided_slice %5 {offsets = [0, 0], sizes = [1, 32], strides = [1, 1]} : vector<12x32xf32> to vector<1x32xf32>
    %9 = vector.extract_strided_slice %5 {offsets = [1, 0], sizes = [1, 32], strides = [1, 1]} : vector<12x32xf32> to vector<1x32xf32>
    %10 = vector.extract_strided_slice %7 {offsets = [0, 0], sizes = [1, 32], strides = [1, 1]} : vector<13x32xf32> to vector<1x32xf32>
    %11 = vector.extract_strided_slice %7 {offsets = [1, 0], sizes = [1, 32], strides = [1, 1]} : vector<13x32xf32> to vector<1x32xf32>
    %cst = arith.constant dense<0.000000e+00> : vector<8xf32>
    %12 = vector.multi_reduction <add>, %1, %cst [1] : vector<8x32xf32> to vector<8xf32>
    %13 = vector.shape_cast %12 : vector<8xf32> to vector<8x1xf32>
    %cst_11 = arith.constant 3.200000e+01 : f32
    %14 = vector.broadcast %cst_11 : f32 to vector<8x1xf32>
    %15 = arith.divf %13, %14 : vector<8x1xf32>
    %16 = vector.broadcast %15 : vector<8x1xf32> to vector<8x32xf32>
    %17 = arith.subf %1, %16 : vector<8x32xf32>
    %18 = arith.mulf %17, %17 : vector<8x32xf32>
    %cst_12 = arith.constant dense<0.000000e+00> : vector<8xf32>
    %19 = vector.multi_reduction <add>, %18, %cst_12 [1] : vector<8x32xf32> to vector<8xf32>
    %20 = vector.shape_cast %19 : vector<8xf32> to vector<8x1xf32>
    %cst_13 = arith.constant 3.200000e+01 : f32
    %21 = vector.broadcast %cst_13 : f32 to vector<8x1xf32>
    %22 = arith.divf %20, %21 : vector<8x1xf32>
    %cst_14 = arith.constant 9.99999997E-7 : f32
    %23 = vector.broadcast %cst_14 : f32 to vector<8x1xf32>
    %24 = arith.addf %22, %23 : vector<8x1xf32>
    %25 = math.rsqrt %24 : vector<8x1xf32>
    %26 = vector.broadcast %25 : vector<8x1xf32> to vector<8x32xf32>
    %27 = arith.mulf %17, %26 : vector<8x32xf32>
    %28 = vector.broadcast %10 : vector<1x32xf32> to vector<8x32xf32>
    %29 = arith.mulf %27, %28 : vector<8x32xf32>
    %30 = vector.broadcast %11 : vector<1x32xf32> to vector<8x32xf32>
    %31 = arith.addf %29, %30 : vector<8x32xf32>
    %cst_15 = arith.constant 1.000000e+00 : f32
    %32 = vector.broadcast %cst_15 : f32 to vector<1x32xf32>
    %33 = arith.addf %32, %9 : vector<1x32xf32>
    %34 = vector.broadcast %33 : vector<1x32xf32> to vector<8x32xf32>
    %35 = arith.mulf %31, %34 : vector<8x32xf32>
    %36 = vector.broadcast %8 : vector<1x32xf32> to vector<8x32xf32>
    %37 = arith.addf %35, %36 : vector<8x32xf32>
    %38 = arith.truncf %37 : vector<8x32xf32> to vector<8x32xbf16>
    %c0_16 = arith.constant 0 : index
    %c0_17 = arith.constant 0 : index
    %c0_18 = arith.constant 0 : index
    %39 = vector.load %arg6[%c0_16, %c0_17, %c0_18] : memref<2x32x96xbf16, #tpu.memory_space<vmem>>, vector<1x32x96xbf16>
    %40 = vector.shape_cast %39 : vector<1x32x96xbf16> to vector<32x96xbf16>
    %cst_19 = arith.constant dense<0.000000e+00> : vector<8x96xf32>
    %41 = tpu.matmul %38, %40, %cst_19 {dimension_numbers = #tpu.dot_dimension_numbers<[1], [0], [0], [1], [0, 0, 1, 1], [], []>} : vector<8x32xbf16>, vector<32x96xbf16>, vector<8x96xf32> -> vector<8x96xf32>
    %42 = vector.extract_strided_slice %41 {offsets = [0, 0], sizes = [8, 32], strides = [1, 1]} : vector<8x96xf32> to vector<8x32xf32>
    %43 = vector.extract_strided_slice %7 {offsets = [10, 0], sizes = [1, 32], strides = [1, 1]} : vector<13x32xf32> to vector<1x32xf32>
    %44 = vector.broadcast %43 : vector<1x32xf32> to vector<8x32xf32>
    %45 = arith.addf %42, %44 : vector<8x32xf32>
    %46 = vector.extract_strided_slice %7 {offsets = [2, 0], sizes = [1, 32], strides = [1, 1]} : vector<13x32xf32> to vector<1x32xf32>
    %47 = vector.extract_strided_slice %7 {offsets = [3, 0], sizes = [1, 32], strides = [1, 1]} : vector<13x32xf32> to vector<1x32xf32>
    %cst_20 = arith.constant dense<0.000000e+00> : vector<8xf32>
    %48 = vector.multi_reduction <add>, %45, %cst_20 [1] : vector<8x32xf32> to vector<8xf32>
    %49 = vector.shape_cast %48 : vector<8xf32> to vector<8x1xf32>
    %cst_21 = arith.constant 3.200000e+01 : f32
    %50 = vector.broadcast %cst_21 : f32 to vector<8x1xf32>
    %51 = arith.divf %49, %50 : vector<8x1xf32>
    %52 = vector.broadcast %51 : vector<8x1xf32> to vector<8x32xf32>
    %53 = arith.subf %45, %52 : vector<8x32xf32>
    %54 = arith.mulf %53, %53 : vector<8x32xf32>
    %cst_22 = arith.constant dense<0.000000e+00> : vector<8xf32>
    %55 = vector.multi_reduction <add>, %54, %cst_22 [1] : vector<8x32xf32> to vector<8xf32>
    %56 = vector.shape_cast %55 : vector<8xf32> to vector<8x1xf32>
    %cst_23 = arith.constant 3.200000e+01 : f32
    %57 = vector.broadcast %cst_23 : f32 to vector<8x1xf32>
    %58 = arith.divf %56, %57 : vector<8x1xf32>
    %cst_24 = arith.constant 9.99999997E-7 : f32
    %59 = vector.broadcast %cst_24 : f32 to vector<8x1xf32>
    %60 = arith.addf %58, %59 : vector<8x1xf32>
    %61 = math.rsqrt %60 : vector<8x1xf32>
    %62 = vector.broadcast %61 : vector<8x1xf32> to vector<8x32xf32>
    %63 = arith.mulf %53, %62 : vector<8x32xf32>
    %64 = vector.broadcast %46 : vector<1x32xf32> to vector<8x32xf32>
    %65 = arith.mulf %63, %64 : vector<8x32xf32>
    %66 = vector.broadcast %47 : vector<1x32xf32> to vector<8x32xf32>
    %67 = arith.addf %65, %66 : vector<8x32xf32>
    %68 = vector.extract_strided_slice %41 {offsets = [0, 32], sizes = [8, 32], strides = [1, 1]} : vector<8x96xf32> to vector<8x32xf32>
    %69 = vector.extract_strided_slice %7 {offsets = [11, 0], sizes = [1, 32], strides = [1, 1]} : vector<13x32xf32> to vector<1x32xf32>
    %70 = vector.broadcast %69 : vector<1x32xf32> to vector<8x32xf32>
    %71 = arith.addf %68, %70 : vector<8x32xf32>
    %72 = vector.extract_strided_slice %7 {offsets = [4, 0], sizes = [1, 32], strides = [1, 1]} : vector<13x32xf32> to vector<1x32xf32>
    %73 = vector.extract_strided_slice %7 {offsets = [5, 0], sizes = [1, 32], strides = [1, 1]} : vector<13x32xf32> to vector<1x32xf32>
    %cst_25 = arith.constant dense<0.000000e+00> : vector<8xf32>
    %74 = vector.multi_reduction <add>, %71, %cst_25 [1] : vector<8x32xf32> to vector<8xf32>
    %75 = vector.shape_cast %74 : vector<8xf32> to vector<8x1xf32>
    %cst_26 = arith.constant 3.200000e+01 : f32
    %76 = vector.broadcast %cst_26 : f32 to vector<8x1xf32>
    %77 = arith.divf %75, %76 : vector<8x1xf32>
    %78 = vector.broadcast %77 : vector<8x1xf32> to vector<8x32xf32>
    %79 = arith.subf %71, %78 : vector<8x32xf32>
    %80 = arith.mulf %79, %79 : vector<8x32xf32>
    %cst_27 = arith.constant dense<0.000000e+00> : vector<8xf32>
    %81 = vector.multi_reduction <add>, %80, %cst_27 [1] : vector<8x32xf32> to vector<8xf32>
    %82 = vector.shape_cast %81 : vector<8xf32> to vector<8x1xf32>
    %cst_28 = arith.constant 3.200000e+01 : f32
    %83 = vector.broadcast %cst_28 : f32 to vector<8x1xf32>
    %84 = arith.divf %82, %83 : vector<8x1xf32>
    %cst_29 = arith.constant 9.99999997E-7 : f32
    %85 = vector.broadcast %cst_29 : f32 to vector<8x1xf32>
    %86 = arith.addf %84, %85 : vector<8x1xf32>
    %87 = math.rsqrt %86 : vector<8x1xf32>
    %88 = vector.broadcast %87 : vector<8x1xf32> to vector<8x32xf32>
    %89 = arith.mulf %79, %88 : vector<8x32xf32>
    %90 = vector.broadcast %72 : vector<1x32xf32> to vector<8x32xf32>
    %91 = arith.mulf %89, %90 : vector<8x32xf32>
    %92 = vector.broadcast %73 : vector<1x32xf32> to vector<8x32xf32>
    %93 = arith.addf %91, %92 : vector<8x32xf32>
    %94 = vector.extract_strided_slice %41 {offsets = [0, 64], sizes = [8, 32], strides = [1, 1]} : vector<8x96xf32> to vector<8x32xf32>
    %95 = vector.extract_strided_slice %7 {offsets = [12, 0], sizes = [1, 32], strides = [1, 1]} : vector<13x32xf32> to vector<1x32xf32>
    %96 = vector.broadcast %95 : vector<1x32xf32> to vector<8x32xf32>
    %97 = arith.addf %94, %96 : vector<8x32xf32>
    %98 = arith.truncf %67 : vector<8x32xf32> to vector<8x32xbf16>
    %c0_30 = arith.constant 0 : index
    %c0_31 = arith.constant 0 : index
    %99 = vector.load %arg12[%c0_30, %c0_31] : memref<24x32xbf16, #tpu.memory_space<vmem>>, vector<8x32xbf16>
    tpu.vector_store %arg12[%c0_30, %c0_31], %98 {strides = array<i32>} : memref<24x32xbf16, #tpu.memory_space<vmem>>, vector<8x32xbf16>,
    %100 = arith.truncf %93 : vector<8x32xf32> to vector<8x32xbf16>
    %c0_32 = arith.constant 0 : index
    %c0_33 = arith.constant 0 : index
    %101 = vector.load %arg13[%c0_32, %c0_33] : memref<24x32xbf16, #tpu.memory_space<vmem>>, vector<8x32xbf16>
    tpu.vector_store %arg13[%c0_32, %c0_33], %100 {strides = array<i32>} : memref<24x32xbf16, #tpu.memory_space<vmem>>, vector<8x32xbf16>,
    %102 = arith.truncf %97 : vector<8x32xf32> to vector<8x32xbf16>
    %c0_34 = arith.constant 0 : index
    %c0_35 = arith.constant 0 : index
    %103 = vector.load %arg14[%c0_34, %c0_35] : memref<24x32xbf16, #tpu.memory_space<vmem>>, vector<8x32xbf16>
    tpu.vector_store %arg14[%c0_34, %c0_35], %102 {strides = array<i32>} : memref<24x32xbf16, #tpu.memory_space<vmem>>, vector<8x32xbf16>,
    %c1 = arith.constant 1 : index
    %c0_36 = arith.constant 0 : index
    %c0_37 = arith.constant 0 : index
    %104 = vector.load %arg4[%c1, %c0_36, %c0_37] : memref<2x13x32xf32, #tpu.memory_space<vmem>>, vector<1x13x32xf32>
    %105 = vector.shape_cast %104 : vector<1x13x32xf32> to vector<13x32xf32>
    %106 = vector.extract_strided_slice %5 {offsets = [2, 0], sizes = [1, 32], strides = [1, 1]} : vector<12x32xf32> to vector<1x32xf32>
    %107 = vector.extract_strided_slice %5 {offsets = [3, 0], sizes = [1, 32], strides = [1, 1]} : vector<12x32xf32> to vector<1x32xf32>
    %108 = vector.extract_strided_slice %105 {offsets = [0, 0], sizes = [1, 32], strides = [1, 1]} : vector<13x32xf32> to vector<1x32xf32>
    %109 = vector.extract_strided_slice %105 {offsets = [1, 0], sizes = [1, 32], strides = [1, 1]} : vector<13x32xf32> to vector<1x32xf32>
    %cst_38 = arith.constant dense<0.000000e+00> : vector<16xf32>
    %110 = vector.multi_reduction <add>, %3, %cst_38 [1] : vector<16x32xf32> to vector<16xf32>
    %111 = vector.shape_cast %110 : vector<16xf32> to vector<16x1xf32>
    %cst_39 = arith.constant 3.200000e+01 : f32
    %112 = vector.broadcast %cst_39 : f32 to vector<16x1xf32>
    %113 = arith.divf %111, %112 : vector<16x1xf32>
    %114 = vector.broadcast %113 : vector<16x1xf32> to vector<16x32xf32>
    %115 = arith.subf %3, %114 : vector<16x32xf32>
    %116 = arith.mulf %115, %115 : vector<16x32xf32>
    %cst_40 = arith.constant dense<0.000000e+00> : vector<16xf32>
    %117 = vector.multi_reduction <add>, %116, %cst_40 [1] : vector<16x32xf32> to vector<16xf32>
    %118 = vector.shape_cast %117 : vector<16xf32> to vector<16x1xf32>
    %cst_41 = arith.constant 3.200000e+01 : f32
    %119 = vector.broadcast %cst_41 : f32 to vector<16x1xf32>
    %120 = arith.divf %118, %119 : vector<16x1xf32>
    %cst_42 = arith.constant 9.99999997E-7 : f32
    %121 = vector.broadcast %cst_42 : f32 to vector<16x1xf32>
    %122 = arith.addf %120, %121 : vector<16x1xf32>
    %123 = math.rsqrt %122 : vector<16x1xf32>
    %124 = vector.broadcast %123 : vector<16x1xf32> to vector<16x32xf32>
    %125 = arith.mulf %115, %124 : vector<16x32xf32>
    %126 = vector.broadcast %108 : vector<1x32xf32> to vector<16x32xf32>
    %127 = arith.mulf %125, %126 : vector<16x32xf32>
    %128 = vector.broadcast %109 : vector<1x32xf32> to vector<16x32xf32>
    %129 = arith.addf %127, %128 : vector<16x32xf32>
    %cst_43 = arith.constant 1.000000e+00 : f32
    %130 = vector.broadcast %cst_43 : f32 to vector<1x32xf32>
    %131 = arith.addf %130, %107 : vector<1x32xf32>
    %132 = vector.broadcast %131 : vector<1x32xf32> to vector<16x32xf32>
    %133 = arith.mulf %129, %132 : vector<16x32xf32>
    %134 = vector.broadcast %106 : vector<1x32xf32> to vector<16x32xf32>
    %135 = arith.addf %133, %134 : vector<16x32xf32>
    %136 = arith.truncf %135 : vector<16x32xf32> to vector<16x32xbf16>
    %c1_44 = arith.constant 1 : index
    %c0_45 = arith.constant 0 : index
    %c0_46 = arith.constant 0 : index
    %137 = vector.load %arg6[%c1_44, %c0_45, %c0_46] : memref<2x32x96xbf16, #tpu.memory_space<vmem>>, vector<1x32x96xbf16>
    %138 = vector.shape_cast %137 : vector<1x32x96xbf16> to vector<32x96xbf16>
    %cst_47 = arith.constant dense<0.000000e+00> : vector<16x96xf32>
    %139 = tpu.matmul %136, %138, %cst_47 {dimension_numbers = #tpu.dot_dimension_numbers<[1], [0], [0], [1], [0, 0, 1, 1], [], []>} : vector<16x32xbf16>, vector<32x96xbf16>, vector<16x96xf32> -> vector<16x96xf32>
    %140 = vector.extract_strided_slice %139 {offsets = [0, 0], sizes = [16, 32], strides = [1, 1]} : vector<16x96xf32> to vector<16x32xf32>
    %141 = vector.extract_strided_slice %105 {offsets = [10, 0], sizes = [1, 32], strides = [1, 1]} : vector<13x32xf32> to vector<1x32xf32>
    %142 = vector.broadcast %141 : vector<1x32xf32> to vector<16x32xf32>
    %143 = arith.addf %140, %142 : vector<16x32xf32>
    %144 = vector.extract_strided_slice %105 {offsets = [2, 0], sizes = [1, 32], strides = [1, 1]} : vector<13x32xf32> to vector<1x32xf32>
    %145 = vector.extract_strided_slice %105 {offsets = [3, 0], sizes = [1, 32], strides = [1, 1]} : vector<13x32xf32> to vector<1x32xf32>
    %cst_48 = arith.constant dense<0.000000e+00> : vector<16xf32>
    %146 = vector.multi_reduction <add>, %143, %cst_48 [1] : vector<16x32xf32> to vector<16xf32>
    %147 = vector.shape_cast %146 : vector<16xf32> to vector<16x1xf32>
    %cst_49 = arith.constant 3.200000e+01 : f32
    %148 = vector.broadcast %cst_49 : f32 to vector<16x1xf32>
    %149 = arith.divf %147, %148 : vector<16x1xf32>
    %150 = vector.broadcast %149 : vector<16x1xf32> to vector<16x32xf32>
    %151 = arith.subf %143, %150 : vector<16x32xf32>
    %152 = arith.mulf %151, %151 : vector<16x32xf32>
    %cst_50 = arith.constant dense<0.000000e+00> : vector<16xf32>
    %153 = vector.multi_reduction <add>, %152, %cst_50 [1] : vector<16x32xf32> to vector<16xf32>
    %154 = vector.shape_cast %153 : vector<16xf32> to vector<16x1xf32>
    %cst_51 = arith.constant 3.200000e+01 : f32
    %155 = vector.broadcast %cst_51 : f32 to vector<16x1xf32>
    %156 = arith.divf %154, %155 : vector<16x1xf32>
    %cst_52 = arith.constant 9.99999997E-7 : f32
    %157 = vector.broadcast %cst_52 : f32 to vector<16x1xf32>
    %158 = arith.addf %156, %157 : vector<16x1xf32>
    %159 = math.rsqrt %158 : vector<16x1xf32>
    %160 = vector.broadcast %159 : vector<16x1xf32> to vector<16x32xf32>
    %161 = arith.mulf %151, %160 : vector<16x32xf32>
    %162 = vector.broadcast %144 : vector<1x32xf32> to vector<16x32xf32>
    %163 = arith.mulf %161, %162 : vector<16x32xf32>
    %164 = vector.broadcast %145 : vector<1x32xf32> to vector<16x32xf32>
    %165 = arith.addf %163, %164 : vector<16x32xf32>
    %166 = vector.extract_strided_slice %139 {offsets = [0, 32], sizes = [16, 32], strides = [1, 1]} : vector<16x96xf32> to vector<16x32xf32>
    %167 = vector.extract_strided_slice %105 {offsets = [11, 0], sizes = [1, 32], strides = [1, 1]} : vector<13x32xf32> to vector<1x32xf32>
    %168 = vector.broadcast %167 : vector<1x32xf32> to vector<16x32xf32>
    %169 = arith.addf %166, %168 : vector<16x32xf32>
    %170 = vector.extract_strided_slice %105 {offsets = [4, 0], sizes = [1, 32], strides = [1, 1]} : vector<13x32xf32> to vector<1x32xf32>
    %171 = vector.extract_strided_slice %105 {offsets = [5, 0], sizes = [1, 32], strides = [1, 1]} : vector<13x32xf32> to vector<1x32xf32>
    %cst_53 = arith.constant dense<0.000000e+00> : vector<16xf32>
    %172 = vector.multi_reduction <add>, %169, %cst_53 [1] : vector<16x32xf32> to vector<16xf32>
    %173 = vector.shape_cast %172 : vector<16xf32> to vector<16x1xf32>
    %cst_54 = arith.constant 3.200000e+01 : f32
    %174 = vector.broadcast %cst_54 : f32 to vector<16x1xf32>
    %175 = arith.divf %173, %174 : vector<16x1xf32>
    %176 = vector.broadcast %175 : vector<16x1xf32> to vector<16x32xf32>
    %177 = arith.subf %169, %176 : vector<16x32xf32>
    %178 = arith.mulf %177, %177 : vector<16x32xf32>
    %cst_55 = arith.constant dense<0.000000e+00> : vector<16xf32>
    %179 = vector.multi_reduction <add>, %178, %cst_55 [1] : vector<16x32xf32> to vector<16xf32>
    %180 = vector.shape_cast %179 : vector<16xf32> to vector<16x1xf32>
    %cst_56 = arith.constant 3.200000e+01 : f32
    %181 = vector.broadcast %cst_56 : f32 to vector<16x1xf32>
    %182 = arith.divf %180, %181 : vector<16x1xf32>
    %cst_57 = arith.constant 9.99999997E-7 : f32
    %183 = vector.broadcast %cst_57 : f32 to vector<16x1xf32>
    %184 = arith.addf %182, %183 : vector<16x1xf32>
    %185 = math.rsqrt %184 : vector<16x1xf32>
    %186 = vector.broadcast %185 : vector<16x1xf32> to vector<16x32xf32>
    %187 = arith.mulf %177, %186 : vector<16x32xf32>
    %188 = vector.broadcast %170 : vector<1x32xf32> to vector<16x32xf32>
    %189 = arith.mulf %187, %188 : vector<16x32xf32>
    %190 = vector.broadcast %171 : vector<1x32xf32> to vector<16x32xf32>
    %191 = arith.addf %189, %190 : vector<16x32xf32>
    %192 = vector.extract_strided_slice %139 {offsets = [0, 64], sizes = [16, 32], strides = [1, 1]} : vector<16x96xf32> to vector<16x32xf32>
    %193 = vector.extract_strided_slice %105 {offsets = [12, 0], sizes = [1, 32], strides = [1, 1]} : vector<13x32xf32> to vector<1x32xf32>
    %194 = vector.broadcast %193 : vector<1x32xf32> to vector<16x32xf32>
    %195 = arith.addf %192, %194 : vector<16x32xf32>
    %196 = arith.truncf %165 : vector<16x32xf32> to vector<16x32xbf16>
    %c8 = arith.constant 8 : index
    %c0_58 = arith.constant 0 : index
    %197 = vector.load %arg12[%c8, %c0_58] : memref<24x32xbf16, #tpu.memory_space<vmem>>, vector<16x32xbf16>
    tpu.vector_store %arg12[%c8, %c0_58], %196 {strides = array<i32>} : memref<24x32xbf16, #tpu.memory_space<vmem>>, vector<16x32xbf16>,
    %198 = arith.truncf %191 : vector<16x32xf32> to vector<16x32xbf16>
    %c8_59 = arith.constant 8 : index
    %c0_60 = arith.constant 0 : index
    %199 = vector.load %arg13[%c8_59, %c0_60] : memref<24x32xbf16, #tpu.memory_space<vmem>>, vector<16x32xbf16>
    tpu.vector_store %arg13[%c8_59, %c0_60], %198 {strides = array<i32>} : memref<24x32xbf16, #tpu.memory_space<vmem>>, vector<16x32xbf16>,
    %200 = arith.truncf %195 : vector<16x32xf32> to vector<16x32xbf16>
    %c8_61 = arith.constant 8 : index
    %c0_62 = arith.constant 0 : index
    %201 = vector.load %arg14[%c8_61, %c0_62] : memref<24x32xbf16, #tpu.memory_space<vmem>>, vector<16x32xbf16>
    tpu.vector_store %arg14[%c8_61, %c0_62], %200 {strides = array<i32>} : memref<24x32xbf16, #tpu.memory_space<vmem>>, vector<16x32xbf16>,
    %c0_63 = arith.constant 0 : index
    %c0_64 = arith.constant 0 : index
    %202 = vector.load %arg12[%c0_63, %c0_64] : memref<24x32xbf16, #tpu.memory_space<vmem>>, vector<24x32xbf16>
    %c0_65 = arith.constant 0 : index
    %c0_66 = arith.constant 0 : index
    %203 = vector.load %arg13[%c0_65, %c0_66] : memref<24x32xbf16, #tpu.memory_space<vmem>>, vector<24x32xbf16>
    %c0_67 = arith.constant 0 : index
    %c0_68 = arith.constant 0 : index
    %204 = vector.load %arg14[%c0_67, %c0_68] : memref<24x32xbf16, #tpu.memory_space<vmem>>, vector<24x32xbf16>
    %205 = vector.extract_strided_slice %202 {offsets = [0, 0], sizes = [24, 8], strides = [1, 1]} : vector<24x32xbf16> to vector<24x8xbf16>
    %206 = vector.extract_strided_slice %203 {offsets = [0, 0], sizes = [24, 8], strides = [1, 1]} : vector<24x32xbf16> to vector<24x8xbf16>
    %207 = vector.extract_strided_slice %204 {offsets = [0, 0], sizes = [24, 8], strides = [1, 1]} : vector<24x32xbf16> to vector<24x8xbf16>
    %cst_69 = arith.constant dense<0.000000e+00> : vector<24x24xf32>
    %208 = tpu.matmul %205, %206, %cst_69 {dimension_numbers = #tpu.dot_dimension_numbers<[1], [1], [0], [0], [0, 0, 1, 0], [], []>} : vector<24x8xbf16>, vector<24x8xbf16>, vector<24x24xf32> -> vector<24x24xf32>
    %cst_70 = arith.constant dense<0xFF800000> : vector<24xf32>
    %209 = vector.multi_reduction <maximumf>, %208, %cst_70 [1] : vector<24x24xf32> to vector<24xf32>
    %210 = vector.shape_cast %209 : vector<24xf32> to vector<24x1xf32>
    %211 = vector.broadcast %210 : vector<24x1xf32> to vector<24x24xf32>
    %212 = arith.subf %208, %211 : vector<24x24xf32>
    %213 = math.exp %212 : vector<24x24xf32>
    %cst_71 = arith.constant dense<0.000000e+00> : vector<24xf32>
    %214 = vector.multi_reduction <add>, %213, %cst_71 [1] : vector<24x24xf32> to vector<24xf32>
    %215 = vector.shape_cast %214 : vector<24xf32> to vector<24x1xf32>
    %216 = arith.truncf %213 : vector<24x24xf32> to vector<24x24xbf16>
    %cst_72 = arith.constant dense<0.000000e+00> : vector<24x8xf32>
    %217 = tpu.matmul %216, %207, %cst_72 {dimension_numbers = #tpu.dot_dimension_numbers<[1], [0], [0], [1], [0, 0, 1, 1], [], []>} : vector<24x24xbf16>, vector<24x8xbf16>, vector<24x8xf32> -> vector<24x8xf32>
    %218 = tpu.reciprocal %215 {approx = true} : vector<24x1xf32> -> vector<24x1xf32>
    %219 = vector.broadcast %218 : vector<24x1xf32> to vector<24x8xf32>
    %220 = arith.mulf %217, %219 : vector<24x8xf32>
    %221 = vector.extract_strided_slice %202 {offsets = [0, 8], sizes = [24, 8], strides = [1, 1]} : vector<24x32xbf16> to vector<24x8xbf16>
    %222 = vector.extract_strided_slice %203 {offsets = [0, 8], sizes = [24, 8], strides = [1, 1]} : vector<24x32xbf16> to vector<24x8xbf16>
    %223 = vector.extract_strided_slice %204 {offsets = [0, 8], sizes = [24, 8], strides = [1, 1]} : vector<24x32xbf16> to vector<24x8xbf16>
    %cst_73 = arith.constant dense<0.000000e+00> : vector<24x24xf32>
    %224 = tpu.matmul %221, %222, %cst_73 {dimension_numbers = #tpu.dot_dimension_numbers<[1], [1], [0], [0], [0, 0, 1, 0], [], []>} : vector<24x8xbf16>, vector<24x8xbf16>, vector<24x24xf32> -> vector<24x24xf32>
    %cst_74 = arith.constant dense<0xFF800000> : vector<24xf32>
    %225 = vector.multi_reduction <maximumf>, %224, %cst_74 [1] : vector<24x24xf32> to vector<24xf32>
    %226 = vector.shape_cast %225 : vector<24xf32> to vector<24x1xf32>
    %227 = vector.broadcast %226 : vector<24x1xf32> to vector<24x24xf32>
    %228 = arith.subf %224, %227 : vector<24x24xf32>
    %229 = math.exp %228 : vector<24x24xf32>
    %cst_75 = arith.constant dense<0.000000e+00> : vector<24xf32>
    %230 = vector.multi_reduction <add>, %229, %cst_75 [1] : vector<24x24xf32> to vector<24xf32>
    %231 = vector.shape_cast %230 : vector<24xf32> to vector<24x1xf32>
    %232 = arith.truncf %229 : vector<24x24xf32> to vector<24x24xbf16>
    %cst_76 = arith.constant dense<0.000000e+00> : vector<24x8xf32>
    %233 = tpu.matmul %232, %223, %cst_76 {dimension_numbers = #tpu.dot_dimension_numbers<[1], [0], [0], [1], [0, 0, 1, 1], [], []>} : vector<24x24xbf16>, vector<24x8xbf16>, vector<24x8xf32> -> vector<24x8xf32>
    %234 = tpu.reciprocal %231 {approx = true} : vector<24x1xf32> -> vector<24x1xf32>
    %235 = vector.broadcast %234 : vector<24x1xf32> to vector<24x8xf32>
    %236 = arith.mulf %233, %235 : vector<24x8xf32>
    %237 = vector.extract_strided_slice %202 {offsets = [0, 16], sizes = [24, 8], strides = [1, 1]} : vector<24x32xbf16> to vector<24x8xbf16>
    %238 = vector.extract_strided_slice %203 {offsets = [0, 16], sizes = [24, 8], strides = [1, 1]} : vector<24x32xbf16> to vector<24x8xbf16>
    %239 = vector.extract_strided_slice %204 {offsets = [0, 16], sizes = [24, 8], strides = [1, 1]} : vector<24x32xbf16> to vector<24x8xbf16>
    %cst_77 = arith.constant dense<0.000000e+00> : vector<24x24xf32>
    %240 = tpu.matmul %237, %238, %cst_77 {dimension_numbers = #tpu.dot_dimension_numbers<[1], [1], [0], [0], [0, 0, 1, 0], [], []>} : vector<24x8xbf16>, vector<24x8xbf16>, vector<24x24xf32> -> vector<24x24xf32>
    %cst_78 = arith.constant dense<0xFF800000> : vector<24xf32>
    %241 = vector.multi_reduction <maximumf>, %240, %cst_78 [1] : vector<24x24xf32> to vector<24xf32>
    %242 = vector.shape_cast %241 : vector<24xf32> to vector<24x1xf32>
    %243 = vector.broadcast %242 : vector<24x1xf32> to vector<24x24xf32>
    %244 = arith.subf %240, %243 : vector<24x24xf32>
    %245 = math.exp %244 : vector<24x24xf32>
    %cst_79 = arith.constant dense<0.000000e+00> : vector<24xf32>
    %246 = vector.multi_reduction <add>, %245, %cst_79 [1] : vector<24x24xf32> to vector<24xf32>
    %247 = vector.shape_cast %246 : vector<24xf32> to vector<24x1xf32>
    %248 = arith.truncf %245 : vector<24x24xf32> to vector<24x24xbf16>
    %cst_80 = arith.constant dense<0.000000e+00> : vector<24x8xf32>
    %249 = tpu.matmul %248, %239, %cst_80 {dimension_numbers = #tpu.dot_dimension_numbers<[1], [0], [0], [1], [0, 0, 1, 1], [], []>} : vector<24x24xbf16>, vector<24x8xbf16>, vector<24x8xf32> -> vector<24x8xf32>
    %250 = tpu.reciprocal %247 {approx = true} : vector<24x1xf32> -> vector<24x1xf32>
    %251 = vector.broadcast %250 : vector<24x1xf32> to vector<24x8xf32>
    %252 = arith.mulf %249, %251 : vector<24x8xf32>
    %253 = vector.extract_strided_slice %202 {offsets = [0, 24], sizes = [24, 8], strides = [1, 1]} : vector<24x32xbf16> to vector<24x8xbf16>
    %254 = vector.extract_strided_slice %203 {offsets = [0, 24], sizes = [24, 8], strides = [1, 1]} : vector<24x32xbf16> to vector<24x8xbf16>
    %255 = vector.extract_strided_slice %204 {offsets = [0, 24], sizes = [24, 8], strides = [1, 1]} : vector<24x32xbf16> to vector<24x8xbf16>
    %cst_81 = arith.constant dense<0.000000e+00> : vector<24x24xf32>
    %256 = tpu.matmul %253, %254, %cst_81 {dimension_numbers = #tpu.dot_dimension_numbers<[1], [1], [0], [0], [0, 0, 1, 0], [], []>} : vector<24x8xbf16>, vector<24x8xbf16>, vector<24x24xf32> -> vector<24x24xf32>
    %cst_82 = arith.constant dense<0xFF800000> : vector<24xf32>
    %257 = vector.multi_reduction <maximumf>, %256, %cst_82 [1] : vector<24x24xf32> to vector<24xf32>
    %258 = vector.shape_cast %257 : vector<24xf32> to vector<24x1xf32>
    %259 = vector.broadcast %258 : vector<24x1xf32> to vector<24x24xf32>
    %260 = arith.subf %256, %259 : vector<24x24xf32>
    %261 = math.exp %260 : vector<24x24xf32>
    %cst_83 = arith.constant dense<0.000000e+00> : vector<24xf32>
    %262 = vector.multi_reduction <add>, %261, %cst_83 [1] : vector<24x24xf32> to vector<24xf32>
    %263 = vector.shape_cast %262 : vector<24xf32> to vector<24x1xf32>
    %264 = arith.truncf %261 : vector<24x24xf32> to vector<24x24xbf16>
    %cst_84 = arith.constant dense<0.000000e+00> : vector<24x8xf32>
    %265 = tpu.matmul %264, %255, %cst_84 {dimension_numbers = #tpu.dot_dimension_numbers<[1], [0], [0], [1], [0, 0, 1, 1], [], []>} : vector<24x24xbf16>, vector<24x8xbf16>, vector<24x8xf32> -> vector<24x8xf32>
    %266 = tpu.reciprocal %263 {approx = true} : vector<24x1xf32> -> vector<24x1xf32>
    %267 = vector.broadcast %266 : vector<24x1xf32> to vector<24x8xf32>
    %268 = arith.mulf %265, %267 : vector<24x8xf32>
    %269 = tpu.concatenate %220, %236, %252, %268 in 1 : vector<24x8xf32>, vector<24x8xf32>, vector<24x8xf32>, vector<24x8xf32> -> vector<24x32xf32>
    %270 = vector.extract_strided_slice %269 {offsets = [0, 0], sizes = [8, 32], strides = [1, 1]} : vector<24x32xf32> to vector<8x32xf32>
    %c0_85 = arith.constant 0 : index
    %c0_86 = arith.constant 0 : index
    %c0_87 = arith.constant 0 : index
    %271 = vector.load %arg4[%c0_85, %c0_86, %c0_87] : memref<2x13x32xf32, #tpu.memory_space<vmem>>, vector<1x13x32xf32>
    %272 = vector.shape_cast %271 : vector<1x13x32xf32> to vector<13x32xf32>
    %273 = vector.extract_strided_slice %5 {offsets = [4, 0], sizes = [1, 32], strides = [1, 1]} : vector<12x32xf32> to vector<1x32xf32>
    %274 = vector.extract_strided_slice %5 {offsets = [5, 0], sizes = [1, 32], strides = [1, 1]} : vector<12x32xf32> to vector<1x32xf32>
    %275 = vector.extract_strided_slice %5 {offsets = [6, 0], sizes = [1, 32], strides = [1, 1]} : vector<12x32xf32> to vector<1x32xf32>
    %276 = vector.extract_strided_slice %5 {offsets = [7, 0], sizes = [1, 32], strides = [1, 1]} : vector<12x32xf32> to vector<1x32xf32>
    %277 = arith.truncf %270 : vector<8x32xf32> to vector<8x32xbf16>
    %c0_88 = arith.constant 0 : index
    %c0_89 = arith.constant 0 : index
    %c0_90 = arith.constant 0 : index
    %278 = vector.load %arg7[%c0_88, %c0_89, %c0_90] : memref<2x32x32xbf16, #tpu.memory_space<vmem>>, vector<1x32x32xbf16>
    %279 = vector.shape_cast %278 : vector<1x32x32xbf16> to vector<32x32xbf16>
    %cst_91 = arith.constant dense<0.000000e+00> : vector<8x32xf32>
    %280 = tpu.matmul %277, %279, %cst_91 {dimension_numbers = #tpu.dot_dimension_numbers<[1], [0], [0], [1], [0, 0, 1, 1], [], []>} : vector<8x32xbf16>, vector<32x32xbf16>, vector<8x32xf32> -> vector<8x32xf32>
    %281 = vector.extract_strided_slice %272 {offsets = [6, 0], sizes = [1, 32], strides = [1, 1]} : vector<13x32xf32> to vector<1x32xf32>
    %282 = vector.broadcast %281 : vector<1x32xf32> to vector<8x32xf32>
    %283 = arith.addf %280, %282 : vector<8x32xf32>
    %284 = vector.broadcast %273 : vector<1x32xf32> to vector<8x32xf32>
    %285 = arith.mulf %283, %284 : vector<8x32xf32>
    %286 = arith.addf %1, %285 : vector<8x32xf32>
    %287 = vector.extract_strided_slice %272 {offsets = [7, 0], sizes = [1, 32], strides = [1, 1]} : vector<13x32xf32> to vector<1x32xf32>
    %288 = vector.extract_strided_slice %272 {offsets = [8, 0], sizes = [1, 32], strides = [1, 1]} : vector<13x32xf32> to vector<1x32xf32>
    %cst_92 = arith.constant dense<0.000000e+00> : vector<8xf32>
    %289 = vector.multi_reduction <add>, %286, %cst_92 [1] : vector<8x32xf32> to vector<8xf32>
    %290 = vector.shape_cast %289 : vector<8xf32> to vector<8x1xf32>
    %cst_93 = arith.constant 3.200000e+01 : f32
    %291 = vector.broadcast %cst_93 : f32 to vector<8x1xf32>
    %292 = arith.divf %290, %291 : vector<8x1xf32>
    %293 = vector.broadcast %292 : vector<8x1xf32> to vector<8x32xf32>
    %294 = arith.subf %286, %293 : vector<8x32xf32>
    %295 = arith.mulf %294, %294 : vector<8x32xf32>
    %cst_94 = arith.constant dense<0.000000e+00> : vector<8xf32>
    %296 = vector.multi_reduction <add>, %295, %cst_94 [1] : vector<8x32xf32> to vector<8xf32>
    %297 = vector.shape_cast %296 : vector<8xf32> to vector<8x1xf32>
    %cst_95 = arith.constant 3.200000e+01 : f32
    %298 = vector.broadcast %cst_95 : f32 to vector<8x1xf32>
    %299 = arith.divf %297, %298 : vector<8x1xf32>
    %cst_96 = arith.constant 9.99999997E-7 : f32
    %300 = vector.broadcast %cst_96 : f32 to vector<8x1xf32>
    %301 = arith.addf %299, %300 : vector<8x1xf32>
    %302 = math.rsqrt %301 : vector<8x1xf32>
    %303 = vector.broadcast %302 : vector<8x1xf32> to vector<8x32xf32>
    %304 = arith.mulf %294, %303 : vector<8x32xf32>
    %305 = vector.broadcast %287 : vector<1x32xf32> to vector<8x32xf32>
    %306 = arith.mulf %304, %305 : vector<8x32xf32>
    %307 = vector.broadcast %288 : vector<1x32xf32> to vector<8x32xf32>
    %308 = arith.addf %306, %307 : vector<8x32xf32>
    %cst_97 = arith.constant 1.000000e+00 : f32
    %309 = vector.broadcast %cst_97 : f32 to vector<1x32xf32>
    %310 = arith.addf %309, %275 : vector<1x32xf32>
    %311 = vector.broadcast %310 : vector<1x32xf32> to vector<8x32xf32>
    %312 = arith.mulf %308, %311 : vector<8x32xf32>
    %313 = vector.broadcast %274 : vector<1x32xf32> to vector<8x32xf32>
    %314 = arith.addf %312, %313 : vector<8x32xf32>
    %315 = arith.truncf %314 : vector<8x32xf32> to vector<8x32xbf16>
    %c0_98 = arith.constant 0 : index
    %c0_99 = arith.constant 0 : index
    %c0_100 = arith.constant 0 : index
    %316 = vector.load %arg8[%c0_98, %c0_99, %c0_100] : memref<2x32x128xbf16, #tpu.memory_space<vmem>>, vector<1x32x128xbf16>
    %317 = vector.shape_cast %316 : vector<1x32x128xbf16> to vector<32x128xbf16>
    %cst_101 = arith.constant dense<0.000000e+00> : vector<8x128xf32>
    %318 = tpu.matmul %315, %317, %cst_101 {dimension_numbers = #tpu.dot_dimension_numbers<[1], [0], [0], [1], [0, 0, 1, 1], [], []>} : vector<8x32xbf16>, vector<32x128xbf16>, vector<8x128xf32> -> vector<8x128xf32>
    %c0_102 = arith.constant 0 : index
    %c0_103 = arith.constant 0 : index
    %c0_104 = arith.constant 0 : index
    %319 = vector.load %arg5[%c0_102, %c0_103, %c0_104] : memref<2x1x128xf32, #tpu.memory_space<vmem>>, vector<1x1x128xf32>
    %320 = vector.shape_cast %319 : vector<1x1x128xf32> to vector<1x128xf32>
    %321 = vector.broadcast %320 : vector<1x128xf32> to vector<8x128xf32>
    %322 = arith.addf %318, %321 : vector<8x128xf32>
    %cst_105 = arith.constant 5.000000e-01 : f32
    %323 = vector.broadcast %cst_105 : f32 to vector<8x128xf32>
    %324 = arith.mulf %323, %322 : vector<8x128xf32>
    %cst_106 = arith.constant 4.471500e-02 : f32
    %325 = vector.broadcast %cst_106 : f32 to vector<8x128xf32>
    %326 = arith.mulf %325, %322 : vector<8x128xf32>
    %327 = arith.mulf %326, %322 : vector<8x128xf32>
    %328 = arith.mulf %327, %322 : vector<8x128xf32>
    %329 = arith.addf %322, %328 : vector<8x128xf32>
    %cst_107 = arith.constant 0.797884583 : f32
    %330 = vector.broadcast %cst_107 : f32 to vector<8x128xf32>
    %331 = arith.mulf %330, %329 : vector<8x128xf32>
    %332 = math.tanh %331 : vector<8x128xf32>
    %cst_108 = arith.constant 1.000000e+00 : f32
    %333 = vector.broadcast %cst_108 : f32 to vector<8x128xf32>
    %334 = arith.addf %333, %332 : vector<8x128xf32>
    %335 = arith.mulf %324, %334 : vector<8x128xf32>
    %336 = arith.truncf %335 : vector<8x128xf32> to vector<8x128xbf16>
    %c0_109 = arith.constant 0 : index
    %c0_110 = arith.constant 0 : index
    %c0_111 = arith.constant 0 : index
    %337 = vector.load %arg9[%c0_109, %c0_110, %c0_111] : memref<2x128x32xbf16, #tpu.memory_space<vmem>>, vector<1x128x32xbf16>
    %338 = vector.shape_cast %337 : vector<1x128x32xbf16> to vector<128x32xbf16>
    %cst_112 = arith.constant dense<0.000000e+00> : vector<8x32xf32>
    %339 = tpu.matmul %336, %338, %cst_112 {dimension_numbers = #tpu.dot_dimension_numbers<[1], [0], [0], [1], [0, 0, 1, 1], [], []>} : vector<8x128xbf16>, vector<128x32xbf16>, vector<8x32xf32> -> vector<8x32xf32>
    %340 = vector.extract_strided_slice %272 {offsets = [9, 0], sizes = [1, 32], strides = [1, 1]} : vector<13x32xf32> to vector<1x32xf32>
    %341 = vector.broadcast %340 : vector<1x32xf32> to vector<8x32xf32>
    %342 = arith.addf %339, %341 : vector<8x32xf32>
    %343 = vector.broadcast %276 : vector<1x32xf32> to vector<8x32xf32>
    %344 = arith.mulf %342, %343 : vector<8x32xf32>
    %345 = arith.addf %1, %344 : vector<8x32xf32>
    %c0_113 = arith.constant 0 : index
    %c0_114 = arith.constant 0 : index
    %c0_115 = arith.constant 0 : index
    %346 = vector.load %arg10[%c0_113, %c0_114, %c0_115] : memref<1x8x32xf32, #tpu.memory_space<vmem>>, vector<1x8x32xf32>
    %347 = vector.shape_cast %346 : vector<1x8x32xf32> to vector<8x32xf32>
    %348 = vector.shape_cast %345 : vector<8x32xf32> to vector<1x8x32xf32>
    tpu.vector_store %arg10[%c0_113, %c0_114, %c0_115], %348 {strides = array<i32>} : memref<1x8x32xf32, #tpu.memory_space<vmem>>, vector<1x8x32xf32>,
    %349 = vector.extract_strided_slice %269 {offsets = [8, 0], sizes = [16, 32], strides = [1, 1]} : vector<24x32xf32> to vector<16x32xf32>
    %c1_116 = arith.constant 1 : index
    %c0_117 = arith.constant 0 : index
    %c0_118 = arith.constant 0 : index
    %350 = vector.load %arg4[%c1_116, %c0_117, %c0_118] : memref<2x13x32xf32, #tpu.memory_space<vmem>>, vector<1x13x32xf32>
    %351 = vector.shape_cast %350 : vector<1x13x32xf32> to vector<13x32xf32>
    %352 = vector.extract_strided_slice %5 {offsets = [8, 0], sizes = [1, 32], strides = [1, 1]} : vector<12x32xf32> to vector<1x32xf32>
    %353 = vector.extract_strided_slice %5 {offsets = [9, 0], sizes = [1, 32], strides = [1, 1]} : vector<12x32xf32> to vector<1x32xf32>
    %354 = vector.extract_strided_slice %5 {offsets = [10, 0], sizes = [1, 32], strides = [1, 1]} : vector<12x32xf32> to vector<1x32xf32>
    %355 = vector.extract_strided_slice %5 {offsets = [11, 0], sizes = [1, 32], strides = [1, 1]} : vector<12x32xf32> to vector<1x32xf32>
    %356 = arith.truncf %349 : vector<16x32xf32> to vector<16x32xbf16>
    %c1_119 = arith.constant 1 : index
    %c0_120 = arith.constant 0 : index
    %c0_121 = arith.constant 0 : index
    %357 = vector.load %arg7[%c1_119, %c0_120, %c0_121] : memref<2x32x32xbf16, #tpu.memory_space<vmem>>, vector<1x32x32xbf16>
    %358 = vector.shape_cast %357 : vector<1x32x32xbf16> to vector<32x32xbf16>
    %cst_122 = arith.constant dense<0.000000e+00> : vector<16x32xf32>
    %359 = tpu.matmul %356, %358, %cst_122 {dimension_numbers = #tpu.dot_dimension_numbers<[1], [0], [0], [1], [0, 0, 1, 1], [], []>} : vector<16x32xbf16>, vector<32x32xbf16>, vector<16x32xf32> -> vector<16x32xf32>
    %360 = vector.extract_strided_slice %351 {offsets = [6, 0], sizes = [1, 32], strides = [1, 1]} : vector<13x32xf32> to vector<1x32xf32>
    %361 = vector.broadcast %360 : vector<1x32xf32> to vector<16x32xf32>
    %362 = arith.addf %359, %361 : vector<16x32xf32>
    %363 = vector.broadcast %352 : vector<1x32xf32> to vector<16x32xf32>
    %364 = arith.mulf %362, %363 : vector<16x32xf32>
    %365 = arith.addf %3, %364 : vector<16x32xf32>
    %366 = vector.extract_strided_slice %351 {offsets = [7, 0], sizes = [1, 32], strides = [1, 1]} : vector<13x32xf32> to vector<1x32xf32>
    %367 = vector.extract_strided_slice %351 {offsets = [8, 0], sizes = [1, 32], strides = [1, 1]} : vector<13x32xf32> to vector<1x32xf32>
    %cst_123 = arith.constant dense<0.000000e+00> : vector<16xf32>
    %368 = vector.multi_reduction <add>, %365, %cst_123 [1] : vector<16x32xf32> to vector<16xf32>
    %369 = vector.shape_cast %368 : vector<16xf32> to vector<16x1xf32>
    %cst_124 = arith.constant 3.200000e+01 : f32
    %370 = vector.broadcast %cst_124 : f32 to vector<16x1xf32>
    %371 = arith.divf %369, %370 : vector<16x1xf32>
    %372 = vector.broadcast %371 : vector<16x1xf32> to vector<16x32xf32>
    %373 = arith.subf %365, %372 : vector<16x32xf32>
    %374 = arith.mulf %373, %373 : vector<16x32xf32>
    %cst_125 = arith.constant dense<0.000000e+00> : vector<16xf32>
    %375 = vector.multi_reduction <add>, %374, %cst_125 [1] : vector<16x32xf32> to vector<16xf32>
    %376 = vector.shape_cast %375 : vector<16xf32> to vector<16x1xf32>
    %cst_126 = arith.constant 3.200000e+01 : f32
    %377 = vector.broadcast %cst_126 : f32 to vector<16x1xf32>
    %378 = arith.divf %376, %377 : vector<16x1xf32>
    %cst_127 = arith.constant 9.99999997E-7 : f32
    %379 = vector.broadcast %cst_127 : f32 to vector<16x1xf32>
    %380 = arith.addf %378, %379 : vector<16x1xf32>
    %381 = math.rsqrt %380 : vector<16x1xf32>
    %382 = vector.broadcast %381 : vector<16x1xf32> to vector<16x32xf32>
    %383 = arith.mulf %373, %382 : vector<16x32xf32>
    %384 = vector.broadcast %366 : vector<1x32xf32> to vector<16x32xf32>
    %385 = arith.mulf %383, %384 : vector<16x32xf32>
    %386 = vector.broadcast %367 : vector<1x32xf32> to vector<16x32xf32>
    %387 = arith.addf %385, %386 : vector<16x32xf32>
    %cst_128 = arith.constant 1.000000e+00 : f32
    %388 = vector.broadcast %cst_128 : f32 to vector<1x32xf32>
    %389 = arith.addf %388, %354 : vector<1x32xf32>
    %390 = vector.broadcast %389 : vector<1x32xf32> to vector<16x32xf32>
    %391 = arith.mulf %387, %390 : vector<16x32xf32>
    %392 = vector.broadcast %353 : vector<1x32xf32> to vector<16x32xf32>
    %393 = arith.addf %391, %392 : vector<16x32xf32>
    %394 = arith.truncf %393 : vector<16x32xf32> to vector<16x32xbf16>
    %c1_129 = arith.constant 1 : index
    %c0_130 = arith.constant 0 : index
    %c0_131 = arith.constant 0 : index
    %395 = vector.load %arg8[%c1_129, %c0_130, %c0_131] : memref<2x32x128xbf16, #tpu.memory_space<vmem>>, vector<1x32x128xbf16>
    %396 = vector.shape_cast %395 : vector<1x32x128xbf16> to vector<32x128xbf16>
    %cst_132 = arith.constant dense<0.000000e+00> : vector<16x128xf32>
    %397 = tpu.matmul %394, %396, %cst_132 {dimension_numbers = #tpu.dot_dimension_numbers<[1], [0], [0], [1], [0, 0, 1, 1], [], []>} : vector<16x32xbf16>, vector<32x128xbf16>, vector<16x128xf32> -> vector<16x128xf32>
    %c1_133 = arith.constant 1 : index
    %c0_134 = arith.constant 0 : index
    %c0_135 = arith.constant 0 : index
    %398 = vector.load %arg5[%c1_133, %c0_134, %c0_135] : memref<2x1x128xf32, #tpu.memory_space<vmem>>, vector<1x1x128xf32>
    %399 = vector.shape_cast %398 : vector<1x1x128xf32> to vector<1x128xf32>
    %400 = vector.broadcast %399 : vector<1x128xf32> to vector<16x128xf32>
    %401 = arith.addf %397, %400 : vector<16x128xf32>
    %cst_136 = arith.constant 5.000000e-01 : f32
    %402 = vector.broadcast %cst_136 : f32 to vector<16x128xf32>
    %403 = arith.mulf %402, %401 : vector<16x128xf32>
    %cst_137 = arith.constant 4.471500e-02 : f32
    %404 = vector.broadcast %cst_137 : f32 to vector<16x128xf32>
    %405 = arith.mulf %404, %401 : vector<16x128xf32>
    %406 = arith.mulf %405, %401 : vector<16x128xf32>
    %407 = arith.mulf %406, %401 : vector<16x128xf32>
    %408 = arith.addf %401, %407 : vector<16x128xf32>
    %cst_138 = arith.constant 0.797884583 : f32
    %409 = vector.broadcast %cst_138 : f32 to vector<16x128xf32>
    %410 = arith.mulf %409, %408 : vector<16x128xf32>
    %411 = math.tanh %410 : vector<16x128xf32>
    %cst_139 = arith.constant 1.000000e+00 : f32
    %412 = vector.broadcast %cst_139 : f32 to vector<16x128xf32>
    %413 = arith.addf %412, %411 : vector<16x128xf32>
    %414 = arith.mulf %403, %413 : vector<16x128xf32>
    %415 = arith.truncf %414 : vector<16x128xf32> to vector<16x128xbf16>
    %c1_140 = arith.constant 1 : index
    %c0_141 = arith.constant 0 : index
    %c0_142 = arith.constant 0 : index
    %416 = vector.load %arg9[%c1_140, %c0_141, %c0_142] : memref<2x128x32xbf16, #tpu.memory_space<vmem>>, vector<1x128x32xbf16>
    %417 = vector.shape_cast %416 : vector<1x128x32xbf16> to vector<128x32xbf16>
    %cst_143 = arith.constant dense<0.000000e+00> : vector<16x32xf32>
    %418 = tpu.matmul %415, %417, %cst_143 {dimension_numbers = #tpu.dot_dimension_numbers<[1], [0], [0], [1], [0, 0, 1, 1], [], []>} : vector<16x128xbf16>, vector<128x32xbf16>, vector<16x32xf32> -> vector<16x32xf32>
    %419 = vector.extract_strided_slice %351 {offsets = [9, 0], sizes = [1, 32], strides = [1, 1]} : vector<13x32xf32> to vector<1x32xf32>
    %420 = vector.broadcast %419 : vector<1x32xf32> to vector<16x32xf32>
    %421 = arith.addf %418, %420 : vector<16x32xf32>
    %422 = vector.broadcast %355 : vector<1x32xf32> to vector<16x32xf32>
    %423 = arith.mulf %421, %422 : vector<16x32xf32>
    %424 = arith.addf %3, %423 : vector<16x32xf32>
    %c0_144 = arith.constant 0 : index
    %c0_145 = arith.constant 0 : index
    %c0_146 = arith.constant 0 : index
    %425 = vector.load %arg11[%c0_144, %c0_145, %c0_146] : memref<1x16x32xf32, #tpu.memory_space<vmem>>, vector<1x16x32xf32>
    %426 = vector.shape_cast %425 : vector<1x16x32xf32> to vector<16x32xf32>
    %427 = vector.shape_cast %424 : vector<16x32xf32> to vector<1x16x32xf32>
    tpu.vector_store %arg11[%c0_144, %c0_145, %c0_146], %427 {strides = array<i32>} : memref<1x16x32xf32, #tpu.memory_space<vmem>>, vector<1x16x32xf32>,
    return
  }
  func.func @transform_0(%arg0: i32) -> (i32, i32, i32) {
    %c0_i32 = arith.constant 0 : i32
    %c0_i32_0 = arith.constant 0 : i32
    %c0_i32_1 = arith.constant 0 : i32
    return %arg0, %c0_i32, %c0_i32_0 : i32, i32, i32
  }
  func.func @transform_1(%arg0: i32) -> (i32, i32, i32) {
    %c0_i32 = arith.constant 0 : i32
    %c0_i32_0 = arith.constant 0 : i32
    %c0_i32_1 = arith.constant 0 : i32
    return %arg0, %c0_i32, %c0_i32_0 : i32, i32, i32
  }
  func.func @transform_2(%arg0: i32) -> (i32, i32, i32) {
    %c0_i32 = arith.constant 0 : i32
    %c0_i32_0 = arith.constant 0 : i32
    %c0_i32_1 = arith.constant 0 : i32
    return %arg0, %c0_i32, %c0_i32_0 : i32, i32, i32
  }
  func.func @transform_3(%arg0: i32) -> (i32, i32, i32) {
    %c0_i32 = arith.constant 0 : i32
    %c0_i32_0 = arith.constant 0 : i32
    %c0_i32_1 = arith.constant 0 : i32
    %c0_i32_2 = arith.constant 0 : i32
    return %c0_i32, %c0_i32_0, %c0_i32_1 : i32, i32, i32
  }
  func.func @transform_4(%arg0: i32) -> (i32, i32, i32) {
    %c0_i32 = arith.constant 0 : i32
    %c0_i32_0 = arith.constant 0 : i32
    %c0_i32_1 = arith.constant 0 : i32
    %c0_i32_2 = arith.constant 0 : i32
    return %c0_i32, %c0_i32_0, %c0_i32_1 : i32, i32, i32
  }
  func.func @transform_5(%arg0: i32) -> (i32, i32, i32) {
    %c0_i32 = arith.constant 0 : i32
    %c0_i32_0 = arith.constant 0 : i32
    %c0_i32_1 = arith.constant 0 : i32
    %c0_i32_2 = arith.constant 0 : i32
    return %c0_i32, %c0_i32_0, %c0_i32_1 : i32, i32, i32
  }
  func.func @transform_6(%arg0: i32) -> (i32, i32, i32) {
    %c0_i32 = arith.constant 0 : i32
    %c0_i32_0 = arith.constant 0 : i32
    %c0_i32_1 = arith.constant 0 : i32
    %c0_i32_2 = arith.constant 0 : i32
    return %c0_i32, %c0_i32_0, %c0_i32_1 : i32, i32, i32
  }
  func.func @transform_7(%arg0: i32) -> (i32, i32, i32) {
    %c0_i32 = arith.constant 0 : i32
    %c0_i32_0 = arith.constant 0 : i32
    %c0_i32_1 = arith.constant 0 : i32
    %c0_i32_2 = arith.constant 0 : i32
    return %c0_i32, %c0_i32_0, %c0_i32_1 : i32, i32, i32
  }
  func.func @transform_8(%arg0: i32) -> (i32, i32, i32) {
    %c0_i32 = arith.constant 0 : i32
    %c0_i32_0 = arith.constant 0 : i32
    %c0_i32_1 = arith.constant 0 : i32
    %c0_i32_2 = arith.constant 0 : i32
    return %c0_i32, %c0_i32_0, %c0_i32_1 : i32, i32, i32
  }
  func.func @transform_9(%arg0: i32) -> (i32, i32, i32) {
    %c0_i32 = arith.constant 0 : i32
    %c0_i32_0 = arith.constant 0 : i32
    %c0_i32_1 = arith.constant 0 : i32
    return %arg0, %c0_i32, %c0_i32_0 : i32, i32, i32
  }
  func.func @transform_10(%arg0: i32) -> (i32, i32, i32) {
    %c0_i32 = arith.constant 0 : i32
    %c0_i32_0 = arith.constant 0 : i32
    %c0_i32_1 = arith.constant 0 : i32
    return %arg0, %c0_i32, %c0_i32_0 : i32, i32, i32
  }
}

module attributes {stable_mosaic.version = 11 : i64} {
  func.func @kernel(%arg0: i32, %arg1: memref<1x8x32xf32, #tpu.memory_space<vmem>>, %arg2: memref<1x16x32xf32, #tpu.memory_space<vmem>>, %arg3: memref<1x12x32xf32, #tpu.memory_space<vmem>>, %arg4: memref<2x13x32xf32, #tpu.memory_space<vmem>>, %arg5: memref<2x1x128xf32, #tpu.memory_space<vmem>>, %arg6: memref<2x32x96xbf16, #tpu.memory_space<vmem>>, %arg7: memref<2x32x32xbf16, #tpu.memory_space<vmem>>, %arg8: memref<2x32x128xbf16, #tpu.memory_space<vmem>>, %arg9: memref<2x128x32xbf16, #tpu.memory_space<vmem>>, %arg10: memref<1x8x32xf32, #tpu.memory_space<vmem>>, %arg11: memref<1x16x32xf32, #tpu.memory_space<vmem>>, %arg12: memref<24x32xbf16, #tpu.memory_space<vmem>>, %arg13: memref<24x32xbf16, #tpu.memory_space<vmem>>, %arg14: memref<24x32xbf16, #tpu.memory_space<vmem>>) attributes {dimension_semantics = [#tpu.dimension_semantics<parallel>], iteration_bounds = array<i64: 2>, scalar_prefetch = 0 : i64, scratch_operands = 3 : i64, tpu.core_type = #tpu.core_type<tc>, window_params = [{transform_indices = @transform_0, window_bounds = array<i64: 1, 8, 32>}, {transform_indices = @transform_1, window_bounds = array<i64: 1, 16, 32>}, {transform_indices = @transform_2, window_bounds = array<i64: 1, 12, 32>}, {pipeline_mode = #tpu.pipeline_mode<synchronous>, transform_indices = @transform_3, window_bounds = array<i64: 2, 13, 32>}, {pipeline_mode = #tpu.pipeline_mode<synchronous>, transform_indices = @transform_4, window_bounds = array<i64: 2, 1, 128>}, {pipeline_mode = #tpu.pipeline_mode<synchronous>, transform_indices = @transform_5, window_bounds = array<i64: 2, 32, 96>}, {pipeline_mode = #tpu.pipeline_mode<synchronous>, transform_indices = @transform_6, window_bounds = array<i64: 2, 32, 32>}, {pipeline_mode = #tpu.pipeline_mode<synchronous>, transform_indices = @transform_7, window_bounds = array<i64: 2, 32, 128>}, {pipeline_mode = #tpu.pipeline_mode<synchronous>, transform_indices = @transform_8, window_bounds = array<i64: 2, 128, 32>}, {transform_indices = @transform_9, window_bounds = array<i64: 1, 8, 32>}, {transform_indices = @transform_10, window_bounds = array<i64: 1, 16, 32>}]} {
    %c0 = arith.constant 0 : index
    %c0_0 = arith.constant 0 : index
    %c0_1 = arith.constant 0 : index
    %0 = vector.load %arg1[%c0, %c0_0, %c0_1] : memref<1x8x32xf32, #tpu.memory_space<vmem>>, vector<1x8x32xf32>
    %1 = vector.shape_cast %0 : vector<1x8x32xf32> to vector<8x32xf32>
    %c0_2 = arith.constant 0 : index
    %c0_3 = arith.constant 0 : index
    %c0_4 = arith.constant 0 : index
    %2 = vector.load %arg2[%c0_2, %c0_3, %c0_4] : memref<1x16x32xf32, #tpu.memory_space<vmem>>, vector<1x16x32xf32>
    %3 = vector.shape_cast %2 : vector<1x16x32xf32> to vector<16x32xf32>
    %c0_5 = arith.constant 0 : index
    %c0_6 = arith.constant 0 : index
    %c0_7 = arith.constant 0 : index
    %4 = vector.load %arg3[%c0_5, %c0_6, %c0_7] : memref<1x12x32xf32, #tpu.memory_space<vmem>>, vector<1x12x32xf32>
    %5 = vector.shape_cast %4 : vector<1x12x32xf32> to vector<12x32xf32>
    %c0_8 = arith.constant 0 : index
    %c0_9 = arith.constant 0 : index
    %c0_10 = arith.constant 0 : index
    %6 = vector.load %arg4[%c0_8, %c0_9, %c0_10] : memref<2x13x32xf32, #tpu.memory_space<vmem>>, vector<1x13x32xf32>
    %7 = vector.shape_cast %6 : vector<1x13x32xf32> to vector<13x32xf32>
    %8 = vector.extract_strided_slice %5 {offsets = [0, 0], sizes = [1, 32], strides = [1, 1]} : vector<12x32xf32> to vector<1x32xf32>
    %9 = vector.extract_strided_slice %5 {offsets = [1, 0], sizes = [1, 32], strides = [1, 1]} : vector<12x32xf32> to vector<1x32xf32>
    %10 = vector.extract_strided_slice %7 {offsets = [0, 0], sizes = [1, 32], strides = [1, 1]} : vector<13x32xf32> to vector<1x32xf32>
    %11 = vector.extract_strided_slice %7 {offsets = [1, 0], sizes = [1, 32], strides = [1, 1]} : vector<13x32xf32> to vector<1x32xf32>
    %cst = arith.constant dense<0.000000e+00> : vector<8xf32>
    %12 = vector.multi_reduction <add>, %1, %cst [1] : vector<8x32xf32> to vector<8xf32>
    %13 = vector.shape_cast %12 : vector<8xf32> to vector<8x1xf32>
    %cst_11 = arith.constant 3.200000e+01 : f32
    %14 = vector.broadcast %cst_11 : f32 to vector<8x1xf32>
    %15 = arith.divf %13, %14 : vector<8x1xf32>
    %16 = vector.broadcast %15 : vector<8x1xf32> to vector<8x32xf32>
    %17 = arith.subf %1, %16 : vector<8x32xf32>
    %18 = arith.mulf %17, %17 : vector<8x32xf32>
    %cst_12 = arith.constant dense<0.000000e+00> : vector<8xf32>
    %19 = vector.multi_reduction <add>, %18, %cst_12 [1] : vector<8x32xf32> to vector<8xf32>
    %20 = vector.shape_cast %19 : vector<8xf32> to vector<8x1xf32>
    %cst_13 = arith.constant 3.200000e+01 : f32
    %21 = vector.broadcast %cst_13 : f32 to vector<8x1xf32>
    %22 = arith.divf %20, %21 : vector<8x1xf32>
    %cst_14 = arith.constant 9.99999997E-7 : f32
    %23 = vector.broadcast %cst_14 : f32 to vector<8x1xf32>
    %24 = arith.addf %22, %23 : vector<8x1xf32>
    %25 = math.rsqrt %24 : vector<8x1xf32>
    %26 = vector.broadcast %25 : vector<8x1xf32> to vector<8x32xf32>
    %27 = arith.mulf %17, %26 : vector<8x32xf32>
    %28 = vector.broadcast %10 : vector<1x32xf32> to vector<8x32xf32>
    %29 = arith.mulf %27, %28 : vector<8x32xf32>
    %30 = vector.broadcast %11 : vector<1x32xf32> to vector<8x32xf32>
    %31 = arith.addf %29, %30 : vector<8x32xf32>
    %cst_15 = arith.constant 1.000000e+00 : f32
    %32 = vector.broadcast %cst_15 : f32 to vector<1x32xf32>
    %33 = arith.addf %32, %9 : vector<1x32xf32>
    %34 = vector.broadcast %33 : vector<1x32xf32> to vector<8x32xf32>
    %35 = arith.mulf %31, %34 : vector<8x32xf32>
    %36 = vector.broadcast %8 : vector<1x32xf32> to vector<8x32xf32>
    %37 = arith.addf %35, %36 : vector<8x32xf32>
    %38 = arith.truncf %37 : vector<8x32xf32> to vector<8x32xbf16>
    %c0_16 = arith.constant 0 : index
    %c0_17 = arith.constant 0 : index
    %c0_18 = arith.constant 0 : index
    %39 = vector.load %arg6[%c0_16, %c0_17, %c0_18] : memref<2x32x96xbf16, #tpu.memory_space<vmem>>, vector<1x32x96xbf16>
    %40 = vector.shape_cast %39 : vector<1x32x96xbf16> to vector<32x96xbf16>
    %cst_19 = arith.constant dense<0.000000e+00> : vector<8x96xf32>
    %41 = tpu.matmul %38, %40, %cst_19 {dimension_numbers = #tpu.dot_dimension_numbers<[1], [0], [0], [1], [0, 0, 1, 1], [], []>} : vector<8x32xbf16>, vector<32x96xbf16>, vector<8x96xf32> -> vector<8x96xf32>
    %42 = vector.extract_strided_slice %41 {offsets = [0, 0], sizes = [8, 32], strides = [1, 1]} : vector<8x96xf32> to vector<8x32xf32>
    %43 = vector.extract_strided_slice %7 {offsets = [10, 0], sizes = [1, 32], strides = [1, 1]} : vector<13x32xf32> to vector<1x32xf32>
    %44 = vector.broadcast %43 : vector<1x32xf32> to vector<8x32xf32>
    %45 = arith.addf %42, %44 : vector<8x32xf32>
    %46 = vector.extract_strided_slice %7 {offsets = [2, 0], sizes = [1, 32], strides = [1, 1]} : vector<13x32xf32> to vector<1x32xf32>
    %47 = vector.extract_strided_slice %7 {offsets = [3, 0], sizes = [1, 32], strides = [1, 1]} : vector<13x32xf32> to vector<1x32xf32>
    %cst_20 = arith.constant dense<0.000000e+00> : vector<8xf32>
    %48 = vector.multi_reduction <add>, %45, %cst_20 [1] : vector<8x32xf32> to vector<8xf32>
    %49 = vector.shape_cast %48 : vector<8xf32> to vector<8x1xf32>
    %cst_21 = arith.constant 3.200000e+01 : f32
    %50 = vector.broadcast %cst_21 : f32 to vector<8x1xf32>
    %51 = arith.divf %49, %50 : vector<8x1xf32>
    %52 = vector.broadcast %51 : vector<8x1xf32> to vector<8x32xf32>
    %53 = arith.subf %45, %52 : vector<8x32xf32>
    %54 = arith.mulf %53, %53 : vector<8x32xf32>
    %cst_22 = arith.constant dense<0.000000e+00> : vector<8xf32>
    %55 = vector.multi_reduction <add>, %54, %cst_22 [1] : vector<8x32xf32> to vector<8xf32>
    %56 = vector.shape_cast %55 : vector<8xf32> to vector<8x1xf32>
    %cst_23 = arith.constant 3.200000e+01 : f32
    %57 = vector.broadcast %cst_23 : f32 to vector<8x1xf32>
    %58 = arith.divf %56, %57 : vector<8x1xf32>
    %cst_24 = arith.constant 9.99999997E-7 : f32
    %59 = vector.broadcast %cst_24 : f32 to vector<8x1xf32>
    %60 = arith.addf %58, %59 : vector<8x1xf32>
    %61 = math.rsqrt %60 : vector<8x1xf32>
    %62 = vector.broadcast %61 : vector<8x1xf32> to vector<8x32xf32>
    %63 = arith.mulf %53, %62 : vector<8x32xf32>
    %64 = vector.broadcast %46 : vector<1x32xf32> to vector<8x32xf32>
    %65 = arith.mulf %63, %64 : vector<8x32xf32>
    %66 = vector.broadcast %47 : vector<1x32xf32> to vector<8x32xf32>
    %67 = arith.addf %65, %66 : vector<8x32xf32>
    %68 = vector.extract_strided_slice %41 {offsets = [0, 32], sizes = [8, 32], strides = [1, 1]} : vector<8x96xf32> to vector<8x32xf32>
    %69 = vector.extract_strided_slice %7 {offsets = [11, 0], sizes = [1, 32], strides = [1, 1]} : vector<13x32xf32> to vector<1x32xf32>
    %70 = vector.broadcast %69 : vector<1x32xf32> to vector<8x32xf32>
    %71 = arith.addf %68, %70 : vector<8x32xf32>
    %72 = vector.extract_strided_slice %7 {offsets = [4, 0], sizes = [1, 32], strides = [1, 1]} : vector<13x32xf32> to vector<1x32xf32>
    %73 = vector.extract_strided_slice %7 {offsets = [5, 0], sizes = [1, 32], strides = [1, 1]} : vector<13x32xf32> to vector<1x32xf32>
    %cst_25 = arith.constant dense<0.000000e+00> : vector<8xf32>
    %74 = vector.multi_reduction <add>, %71, %cst_25 [1] : vector<8x32xf32> to vector<8xf32>
    %75 = vector.shape_cast %74 : vector<8xf32> to vector<8x1xf32>
    %cst_26 = arith.constant 3.200000e+01 : f32
    %76 = vector.broadcast %cst_26 : f32 to vector<8x1xf32>
    %77 = arith.divf %75, %76 : vector<8x1xf32>
    %78 = vector.broadcast %77 : vector<8x1xf32> to vector<8x32xf32>
    %79 = arith.subf %71, %78 : vector<8x32xf32>
    %80 = arith.mulf %79, %79 : vector<8x32xf32>
    %cst_27 = arith.constant dense<0.000000e+00> : vector<8xf32>
    %81 = vector.multi_reduction <add>, %80, %cst_27 [1] : vector<8x32xf32> to vector<8xf32>
    %82 = vector.shape_cast %81 : vector<8xf32> to vector<8x1xf32>
    %cst_28 = arith.constant 3.200000e+01 : f32
    %83 = vector.broadcast %cst_28 : f32 to vector<8x1xf32>
    %84 = arith.divf %82, %83 : vector<8x1xf32>
    %cst_29 = arith.constant 9.99999997E-7 : f32
    %85 = vector.broadcast %cst_29 : f32 to vector<8x1xf32>
    %86 = arith.addf %84, %85 : vector<8x1xf32>
    %87 = math.rsqrt %86 : vector<8x1xf32>
    %88 = vector.broadcast %87 : vector<8x1xf32> to vector<8x32xf32>
    %89 = arith.mulf %79, %88 : vector<8x32xf32>
    %90 = vector.broadcast %72 : vector<1x32xf32> to vector<8x32xf32>
    %91 = arith.mulf %89, %90 : vector<8x32xf32>
    %92 = vector.broadcast %73 : vector<1x32xf32> to vector<8x32xf32>
    %93 = arith.addf %91, %92 : vector<8x32xf32>
    %94 = vector.extract_strided_slice %41 {offsets = [0, 64], sizes = [8, 32], strides = [1, 1]} : vector<8x96xf32> to vector<8x32xf32>
    %95 = vector.extract_strided_slice %7 {offsets = [12, 0], sizes = [1, 32], strides = [1, 1]} : vector<13x32xf32> to vector<1x32xf32>
    %96 = vector.broadcast %95 : vector<1x32xf32> to vector<8x32xf32>
    %97 = arith.addf %94, %96 : vector<8x32xf32>
    %98 = arith.truncf %67 : vector<8x32xf32> to vector<8x32xbf16>
    %c0_30 = arith.constant 0 : index
    %c0_31 = arith.constant 0 : index
    %99 = vector.load %arg12[%c0_30, %c0_31] : memref<24x32xbf16, #tpu.memory_space<vmem>>, vector<8x32xbf16>
    tpu.vector_store %arg12[%c0_30, %c0_31], %98 {strides = array<i32>} : memref<24x32xbf16, #tpu.memory_space<vmem>>, vector<8x32xbf16>,
    %100 = arith.truncf %93 : vector<8x32xf32> to vector<8x32xbf16>
    %c0_32 = arith.constant 0 : index
    %c0_33 = arith.constant 0 : index
    %101 = vector.load %arg13[%c0_32, %c0_33] : memref<24x32xbf16, #tpu.memory_space<vmem>>, vector<8x32xbf16>
    tpu.vector_store %arg13[%c0_32, %c0_33], %100 {strides = array<i32>} : memref<24x32xbf16, #tpu.memory_space<vmem>>, vector<8x32xbf16>,
    %102 = arith.truncf %97 : vector<8x32xf32> to vector<8x32xbf16>
    %c0_34 = arith.constant 0 : index
    %c0_35 = arith.constant 0 : index
    %103 = vector.load %arg14[%c0_34, %c0_35] : memref<24x32xbf16, #tpu.memory_space<vmem>>, vector<8x32xbf16>
    tpu.vector_store %arg14[%c0_34, %c0_35], %102 {strides = array<i32>} : memref<24x32xbf16, #tpu.memory_space<vmem>>, vector<8x32xbf16>,
    %c1 = arith.constant 1 : index
    %c0_36 = arith.constant 0 : index
    %c0_37 = arith.constant 0 : index
    %104 = vector.load %arg4[%c1, %c0_36, %c0_37] : memref<2x13x32xf32, #tpu.memory_space<vmem>>, vector<1x13x32xf32>
    %105 = vector.shape_cast %104 : vector<1x13x32xf32> to vector<13x32xf32>
    %106 = vector.extract_strided_slice %5 {offsets = [2, 0], sizes = [1, 32], strides = [1, 1]} : vector<12x32xf32> to vector<1x32xf32>
    %107 = vector.extract_strided_slice %5 {offsets = [3, 0], sizes = [1, 32], strides = [1, 1]} : vector<12x32xf32> to vector<1x32xf32>
    %108 = vector.extract_strided_slice %105 {offsets = [0, 0], sizes = [1, 32], strides = [1, 1]} : vector<13x32xf32> to vector<1x32xf32>
    %109 = vector.extract_strided_slice %105 {offsets = [1, 0], sizes = [1, 32], strides = [1, 1]} : vector<13x32xf32> to vector<1x32xf32>
    %cst_38 = arith.constant dense<0.000000e+00> : vector<16xf32>
    %110 = vector.multi_reduction <add>, %3, %cst_38 [1] : vector<16x32xf32> to vector<16xf32>
    %111 = vector.shape_cast %110 : vector<16xf32> to vector<16x1xf32>
    %cst_39 = arith.constant 3.200000e+01 : f32
    %112 = vector.broadcast %cst_39 : f32 to vector<16x1xf32>
    %113 = arith.divf %111, %112 : vector<16x1xf32>
    %114 = vector.broadcast %113 : vector<16x1xf32> to vector<16x32xf32>
    %115 = arith.subf %3, %114 : vector<16x32xf32>
    %116 = arith.mulf %115, %115 : vector<16x32xf32>
    %cst_40 = arith.constant dense<0.000000e+00> : vector<16xf32>
    %117 = vector.multi_reduction <add>, %116, %cst_40 [1] : vector<16x32xf32> to vector<16xf32>
    %118 = vector.shape_cast %117 : vector<16xf32> to vector<16x1xf32>
    %cst_41 = arith.constant 3.200000e+01 : f32
    %119 = vector.broadcast %cst_41 : f32 to vector<16x1xf32>
    %120 = arith.divf %118, %119 : vector<16x1xf32>
    %cst_42 = arith.constant 9.99999997E-7 : f32
    %121 = vector.broadcast %cst_42 : f32 to vector<16x1xf32>
    %122 = arith.addf %120, %121 : vector<16x1xf32>
    %123 = math.rsqrt %122 : vector<16x1xf32>
    %124 = vector.broadcast %123 : vector<16x1xf32> to vector<16x32xf32>
    %125 = arith.mulf %115, %124 : vector<16x32xf32>
    %126 = vector.broadcast %108 : vector<1x32xf32> to vector<16x32xf32>
    %127 = arith.mulf %125, %126 : vector<16x32xf32>
    %128 = vector.broadcast %109 : vector<1x32xf32> to vector<16x32xf32>
    %129 = arith.addf %127, %128 : vector<16x32xf32>
    %cst_43 = arith.constant 1.000000e+00 : f32
    %130 = vector.broadcast %cst_43 : f32 to vector<1x32xf32>
    %131 = arith.addf %130, %107 : vector<1x32xf32>
    %132 = vector.broadcast %131 : vector<1x32xf32> to vector<16x32xf32>
    %133 = arith.mulf %129, %132 : vector<16x32xf32>
    %134 = vector.broadcast %106 : vector<1x32xf32> to vector<16x32xf32>
    %135 = arith.addf %133, %134 : vector<16x32xf32>
    %136 = arith.truncf %135 : vector<16x32xf32> to vector<16x32xbf16>
    %c1_44 = arith.constant 1 : index
    %c0_45 = arith.constant 0 : index
    %c0_46 = arith.constant 0 : index
    %137 = vector.load %arg6[%c1_44, %c0_45, %c0_46] : memref<2x32x96xbf16, #tpu.memory_space<vmem>>, vector<1x32x96xbf16>
    %138 = vector.shape_cast %137 : vector<1x32x96xbf16> to vector<32x96xbf16>
    %cst_47 = arith.constant dense<0.000000e+00> : vector<16x96xf32>
    %139 = tpu.matmul %136, %138, %cst_47 {dimension_numbers = #tpu.dot_dimension_numbers<[1], [0], [0], [1], [0, 0, 1, 1], [], []>} : vector<16x32xbf16>, vector<32x96xbf16>, vector<16x96xf32> -> vector<16x96xf32>
    %140 = vector.extract_strided_slice %139 {offsets = [0, 0], sizes = [16, 32], strides = [1, 1]} : vector<16x96xf32> to vector<16x32xf32>
    %141 = vector.extract_strided_slice %105 {offsets = [10, 0], sizes = [1, 32], strides = [1, 1]} : vector<13x32xf32> to vector<1x32xf32>
    %142 = vector.broadcast %141 : vector<1x32xf32> to vector<16x32xf32>
    %143 = arith.addf %140, %142 : vector<16x32xf32>
    %144 = vector.extract_strided_slice %105 {offsets = [2, 0], sizes = [1, 32], strides = [1, 1]} : vector<13x32xf32> to vector<1x32xf32>
    %145 = vector.extract_strided_slice %105 {offsets = [3, 0], sizes = [1, 32], strides = [1, 1]} : vector<13x32xf32> to vector<1x32xf32>
    %cst_48 = arith.constant dense<0.000000e+00> : vector<16xf32>
    %146 = vector.multi_reduction <add>, %143, %cst_48 [1] : vector<16x32xf32> to vector<16xf32>
    %147 = vector.shape_cast %146 : vector<16xf32> to vector<16x1xf32>
    %cst_49 = arith.constant 3.200000e+01 : f32
    %148 = vector.broadcast %cst_49 : f32 to vector<16x1xf32>
    %149 = arith.divf %147, %148 : vector<16x1xf32>
    %150 = vector.broadcast %149 : vector<16x1xf32> to vector<16x32xf32>
    %151 = arith.subf %143, %150 : vector<16x32xf32>
    %152 = arith.mulf %151, %151 : vector<16x32xf32>
    %cst_50 = arith.constant dense<0.000000e+00> : vector<16xf32>
    %153 = vector.multi_reduction <add>, %152, %cst_50 [1] : vector<16x32xf32> to vector<16xf32>
    %154 = vector.shape_cast %153 : vector<16xf32> to vector<16x1xf32>
    %cst_51 = arith.constant 3.200000e+01 : f32
    %155 = vector.broadcast %cst_51 : f32 to vector<16x1xf32>
    %156 = arith.divf %154, %155 : vector<16x1xf32>
    %cst_52 = arith.constant 9.99999997E-7 : f32
    %157 = vector.broadcast %cst_52 : f32 to vector<16x1xf32>
    %158 = arith.addf %156, %157 : vector<16x1xf32>
    %159 = math.rsqrt %158 : vector<16x1xf32>
    %160 = vector.broadcast %159 : vector<16x1xf32> to vector<16x32xf32>
    %161 = arith.mulf %151, %160 : vector<16x32xf32>
    %162 = vector.broadcast %144 : vector<1x32xf32> to vector<16x32xf32>
    %163 = arith.mulf %161, %162 : vector<16x32xf32>
    %164 = vector.broadcast %145 : vector<1x32xf32> to vector<16x32xf32>
    %165 = arith.addf %163, %164 : vector<16x32xf32>
    %166 = vector.extract_strided_slice %139 {offsets = [0, 32], sizes = [16, 32], strides = [1, 1]} : vector<16x96xf32> to vector<16x32xf32>
    %167 = vector.extract_strided_slice %105 {offsets = [11, 0], sizes = [1, 32], strides = [1, 1]} : vector<13x32xf32> to vector<1x32xf32>
    %168 = vector.broadcast %167 : vector<1x32xf32> to vector<16x32xf32>
    %169 = arith.addf %166, %168 : vector<16x32xf32>
    %170 = vector.extract_strided_slice %105 {offsets = [4, 0], sizes = [1, 32], strides = [1, 1]} : vector<13x32xf32> to vector<1x32xf32>
    %171 = vector.extract_strided_slice %105 {offsets = [5, 0], sizes = [1, 32], strides = [1, 1]} : vector<13x32xf32> to vector<1x32xf32>
    %cst_53 = arith.constant dense<0.000000e+00> : vector<16xf32>
    %172 = vector.multi_reduction <add>, %169, %cst_53 [1] : vector<16x32xf32> to vector<16xf32>
    %173 = vector.shape_cast %172 : vector<16xf32> to vector<16x1xf32>
    %cst_54 = arith.constant 3.200000e+01 : f32
    %174 = vector.broadcast %cst_54 : f32 to vector<16x1xf32>
    %175 = arith.divf %173, %174 : vector<16x1xf32>
    %176 = vector.broadcast %175 : vector<16x1xf32> to vector<16x32xf32>
    %177 = arith.subf %169, %176 : vector<16x32xf32>
    %178 = arith.mulf %177, %177 : vector<16x32xf32>
    %cst_55 = arith.constant dense<0.000000e+00> : vector<16xf32>
    %179 = vector.multi_reduction <add>, %178, %cst_55 [1] : vector<16x32xf32> to vector<16xf32>
    %180 = vector.shape_cast %179 : vector<16xf32> to vector<16x1xf32>
    %cst_56 = arith.constant 3.200000e+01 : f32
    %181 = vector.broadcast %cst_56 : f32 to vector<16x1xf32>
    %182 = arith.divf %180, %181 : vector<16x1xf32>
    %cst_57 = arith.constant 9.99999997E-7 : f32
    %183 = vector.broadcast %cst_57 : f32 to vector<16x1xf32>
    %184 = arith.addf %182, %183 : vector<16x1xf32>
    %185 = math.rsqrt %184 : vector<16x1xf32>
    %186 = vector.broadcast %185 : vector<16x1xf32> to vector<16x32xf32>
    %187 = arith.mulf %177, %186 : vector<16x32xf32>
    %188 = vector.broadcast %170 : vector<1x32xf32> to vector<16x32xf32>
    %189 = arith.mulf %187, %188 : vector<16x32xf32>
    %190 = vector.broadcast %171 : vector<1x32xf32> to vector<16x32xf32>
    %191 = arith.addf %189, %190 : vector<16x32xf32>
    %192 = vector.extract_strided_slice %139 {offsets = [0, 64], sizes = [16, 32], strides = [1, 1]} : vector<16x96xf32> to vector<16x32xf32>
    %193 = vector.extract_strided_slice %105 {offsets = [12, 0], sizes = [1, 32], strides = [1, 1]} : vector<13x32xf32> to vector<1x32xf32>
    %194 = vector.broadcast %193 : vector<1x32xf32> to vector<16x32xf32>
    %195 = arith.addf %192, %194 : vector<16x32xf32>
    %196 = arith.truncf %165 : vector<16x32xf32> to vector<16x32xbf16>
    %c8 = arith.constant 8 : index
    %c0_58 = arith.constant 0 : index
    %197 = vector.load %arg12[%c8, %c0_58] : memref<24x32xbf16, #tpu.memory_space<vmem>>, vector<16x32xbf16>
    tpu.vector_store %arg12[%c8, %c0_58], %196 {strides = array<i32>} : memref<24x32xbf16, #tpu.memory_space<vmem>>, vector<16x32xbf16>,
    %198 = arith.truncf %191 : vector<16x32xf32> to vector<16x32xbf16>
    %c8_59 = arith.constant 8 : index
    %c0_60 = arith.constant 0 : index
    %199 = vector.load %arg13[%c8_59, %c0_60] : memref<24x32xbf16, #tpu.memory_space<vmem>>, vector<16x32xbf16>
    tpu.vector_store %arg13[%c8_59, %c0_60], %198 {strides = array<i32>} : memref<24x32xbf16, #tpu.memory_space<vmem>>, vector<16x32xbf16>,
    %200 = arith.truncf %195 : vector<16x32xf32> to vector<16x32xbf16>
    %c8_61 = arith.constant 8 : index
    %c0_62 = arith.constant 0 : index
    %201 = vector.load %arg14[%c8_61, %c0_62] : memref<24x32xbf16, #tpu.memory_space<vmem>>, vector<16x32xbf16>
    tpu.vector_store %arg14[%c8_61, %c0_62], %200 {strides = array<i32>} : memref<24x32xbf16, #tpu.memory_space<vmem>>, vector<16x32xbf16>,
    %c0_63 = arith.constant 0 : index
    %c0_64 = arith.constant 0 : index
    %202 = vector.load %arg12[%c0_63, %c0_64] : memref<24x32xbf16, #tpu.memory_space<vmem>>, vector<24x32xbf16>
    %c0_65 = arith.constant 0 : index
    %c0_66 = arith.constant 0 : index
    %203 = vector.load %arg13[%c0_65, %c0_66] : memref<24x32xbf16, #tpu.memory_space<vmem>>, vector<24x32xbf16>
    %c0_67 = arith.constant 0 : index
    %c0_68 = arith.constant 0 : index
    %204 = vector.load %arg14[%c0_67, %c0_68] : memref<24x32xbf16, #tpu.memory_space<vmem>>, vector<24x32xbf16>
    %205 = vector.extract_strided_slice %202 {offsets = [0, 0], sizes = [24, 8], strides = [1, 1]} : vector<24x32xbf16> to vector<24x8xbf16>
    %206 = vector.extract_strided_slice %203 {offsets = [0, 0], sizes = [24, 8], strides = [1, 1]} : vector<24x32xbf16> to vector<24x8xbf16>
    %207 = vector.extract_strided_slice %204 {offsets = [0, 0], sizes = [24, 8], strides = [1, 1]} : vector<24x32xbf16> to vector<24x8xbf16>
    %cst_69 = arith.constant dense<0.000000e+00> : vector<24x24xf32>
    %208 = tpu.matmul %205, %206, %cst_69 {dimension_numbers = #tpu.dot_dimension_numbers<[1], [1], [0], [0], [0, 0, 1, 0], [], []>} : vector<24x8xbf16>, vector<24x8xbf16>, vector<24x24xf32> -> vector<24x24xf32>
    %cst_70 = arith.constant dense<0xFF800000> : vector<24xf32>
    %209 = vector.multi_reduction <maximumf>, %208, %cst_70 [1] : vector<24x24xf32> to vector<24xf32>
    %210 = vector.shape_cast %209 : vector<24xf32> to vector<24x1xf32>
    %211 = vector.broadcast %210 : vector<24x1xf32> to vector<24x24xf32>
    %212 = arith.subf %208, %211 : vector<24x24xf32>
    %213 = math.exp %212 : vector<24x24xf32>
    %cst_71 = arith.constant dense<0.000000e+00> : vector<24xf32>
    %214 = vector.multi_reduction <add>, %213, %cst_71 [1] : vector<24x24xf32> to vector<24xf32>
    %215 = vector.shape_cast %214 : vector<24xf32> to vector<24x1xf32>
    %216 = arith.truncf %213 : vector<24x24xf32> to vector<24x24xbf16>
    %cst_72 = arith.constant dense<0.000000e+00> : vector<24x8xf32>
    %217 = tpu.matmul %216, %207, %cst_72 {dimension_numbers = #tpu.dot_dimension_numbers<[1], [0], [0], [1], [0, 0, 1, 1], [], []>} : vector<24x24xbf16>, vector<24x8xbf16>, vector<24x8xf32> -> vector<24x8xf32>
    %218 = tpu.reciprocal %215 {approx = true} : vector<24x1xf32> -> vector<24x1xf32>
    %219 = vector.broadcast %218 : vector<24x1xf32> to vector<24x8xf32>
    %220 = arith.mulf %217, %219 : vector<24x8xf32>
    %221 = vector.extract_strided_slice %202 {offsets = [0, 8], sizes = [24, 8], strides = [1, 1]} : vector<24x32xbf16> to vector<24x8xbf16>
    %222 = vector.extract_strided_slice %203 {offsets = [0, 8], sizes = [24, 8], strides = [1, 1]} : vector<24x32xbf16> to vector<24x8xbf16>
    %223 = vector.extract_strided_slice %204 {offsets = [0, 8], sizes = [24, 8], strides = [1, 1]} : vector<24x32xbf16> to vector<24x8xbf16>
    %cst_73 = arith.constant dense<0.000000e+00> : vector<24x24xf32>
    %224 = tpu.matmul %221, %222, %cst_73 {dimension_numbers = #tpu.dot_dimension_numbers<[1], [1], [0], [0], [0, 0, 1, 0], [], []>} : vector<24x8xbf16>, vector<24x8xbf16>, vector<24x24xf32> -> vector<24x24xf32>
    %cst_74 = arith.constant dense<0xFF800000> : vector<24xf32>
    %225 = vector.multi_reduction <maximumf>, %224, %cst_74 [1] : vector<24x24xf32> to vector<24xf32>
    %226 = vector.shape_cast %225 : vector<24xf32> to vector<24x1xf32>
    %227 = vector.broadcast %226 : vector<24x1xf32> to vector<24x24xf32>
    %228 = arith.subf %224, %227 : vector<24x24xf32>
    %229 = math.exp %228 : vector<24x24xf32>
    %cst_75 = arith.constant dense<0.000000e+00> : vector<24xf32>
    %230 = vector.multi_reduction <add>, %229, %cst_75 [1] : vector<24x24xf32> to vector<24xf32>
    %231 = vector.shape_cast %230 : vector<24xf32> to vector<24x1xf32>
    %232 = arith.truncf %229 : vector<24x24xf32> to vector<24x24xbf16>
    %cst_76 = arith.constant dense<0.000000e+00> : vector<24x8xf32>
    %233 = tpu.matmul %232, %223, %cst_76 {dimension_numbers = #tpu.dot_dimension_numbers<[1], [0], [0], [1], [0, 0, 1, 1], [], []>} : vector<24x24xbf16>, vector<24x8xbf16>, vector<24x8xf32> -> vector<24x8xf32>
    %234 = tpu.reciprocal %231 {approx = true} : vector<24x1xf32> -> vector<24x1xf32>
    %235 = vector.broadcast %234 : vector<24x1xf32> to vector<24x8xf32>
    %236 = arith.mulf %233, %235 : vector<24x8xf32>
    %237 = vector.extract_strided_slice %202 {offsets = [0, 16], sizes = [24, 8], strides = [1, 1]} : vector<24x32xbf16> to vector<24x8xbf16>
    %238 = vector.extract_strided_slice %203 {offsets = [0, 16], sizes = [24, 8], strides = [1, 1]} : vector<24x32xbf16> to vector<24x8xbf16>
    %239 = vector.extract_strided_slice %204 {offsets = [0, 16], sizes = [24, 8], strides = [1, 1]} : vector<24x32xbf16> to vector<24x8xbf16>
    %cst_77 = arith.constant dense<0.000000e+00> : vector<24x24xf32>
    %240 = tpu.matmul %237, %238, %cst_77 {dimension_numbers = #tpu.dot_dimension_numbers<[1], [1], [0], [0], [0, 0, 1, 0], [], []>} : vector<24x8xbf16>, vector<24x8xbf16>, vector<24x24xf32> -> vector<24x24xf32>
    %cst_78 = arith.constant dense<0xFF800000> : vector<24xf32>
    %241 = vector.multi_reduction <maximumf>, %240, %cst_78 [1] : vector<24x24xf32> to vector<24xf32>
    %242 = vector.shape_cast %241 : vector<24xf32> to vector<24x1xf32>
    %243 = vector.broadcast %242 : vector<24x1xf32> to vector<24x24xf32>
    %244 = arith.subf %240, %243 : vector<24x24xf32>
    %245 = math.exp %244 : vector<24x24xf32>
    %cst_79 = arith.constant dense<0.000000e+00> : vector<24xf32>
    %246 = vector.multi_reduction <add>, %245, %cst_79 [1] : vector<24x24xf32> to vector<24xf32>
    %247 = vector.shape_cast %246 : vector<24xf32> to vector<24x1xf32>
    %248 = arith.truncf %245 : vector<24x24xf32> to vector<24x24xbf16>
    %cst_80 = arith.constant dense<0.000000e+00> : vector<24x8xf32>
    %249 = tpu.matmul %248, %239, %cst_80 {dimension_numbers = #tpu.dot_dimension_numbers<[1], [0], [0], [1], [0, 0, 1, 1], [], []>} : vector<24x24xbf16>, vector<24x8xbf16>, vector<24x8xf32> -> vector<24x8xf32>
    %250 = tpu.reciprocal %247 {approx = true} : vector<24x1xf32> -> vector<24x1xf32>
    %251 = vector.broadcast %250 : vector<24x1xf32> to vector<24x8xf32>
    %252 = arith.mulf %249, %251 : vector<24x8xf32>
    %253 = vector.extract_strided_slice %202 {offsets = [0, 24], sizes = [24, 8], strides = [1, 1]} : vector<24x32xbf16> to vector<24x8xbf16>
    %254 = vector.extract_strided_slice %203 {offsets = [0, 24], sizes = [24, 8], strides = [1, 1]} : vector<24x32xbf16> to vector<24x8xbf16>
    %255 = vector.extract_strided_slice %204 {offsets = [0, 24], sizes = [24, 8], strides = [1, 1]} : vector<24x32xbf16> to vector<24x8xbf16>
    %cst_81 = arith.constant dense<0.000000e+00> : vector<24x24xf32>
    %256 = tpu.matmul %253, %254, %cst_81 {dimension_numbers = #tpu.dot_dimension_numbers<[1], [1], [0], [0], [0, 0, 1, 0], [], []>} : vector<24x8xbf16>, vector<24x8xbf16>, vector<24x24xf32> -> vector<24x24xf32>
    %cst_82 = arith.constant dense<0xFF800000> : vector<24xf32>
    %257 = vector.multi_reduction <maximumf>, %256, %cst_82 [1] : vector<24x24xf32> to vector<24xf32>
    %258 = vector.shape_cast %257 : vector<24xf32> to vector<24x1xf32>
    %259 = vector.broadcast %258 : vector<24x1xf32> to vector<24x24xf32>
    %260 = arith.subf %256, %259 : vector<24x24xf32>
    %261 = math.exp %260 : vector<24x24xf32>
    %cst_83 = arith.constant dense<0.000000e+00> : vector<24xf32>
    %262 = vector.multi_reduction <add>, %261, %cst_83 [1] : vector<24x24xf32> to vector<24xf32>
    %263 = vector.shape_cast %262 : vector<24xf32> to vector<24x1xf32>
    %264 = arith.truncf %261 : vector<24x24xf32> to vector<24x24xbf16>
    %cst_84 = arith.constant dense<0.000000e+00> : vector<24x8xf32>
    %265 = tpu.matmul %264, %255, %cst_84 {dimension_numbers = #tpu.dot_dimension_numbers<[1], [0], [0], [1], [0, 0, 1, 1], [], []>} : vector<24x24xbf16>, vector<24x8xbf16>, vector<24x8xf32> -> vector<24x8xf32>
    %266 = tpu.reciprocal %263 {approx = true} : vector<24x1xf32> -> vector<24x1xf32>
    %267 = vector.broadcast %266 : vector<24x1xf32> to vector<24x8xf32>
    %268 = arith.mulf %265, %267 : vector<24x8xf32>
    %269 = tpu.concatenate %220, %236, %252, %268 in 1 : vector<24x8xf32>, vector<24x8xf32>, vector<24x8xf32>, vector<24x8xf32> -> vector<24x32xf32>
    %270 = vector.extract_strided_slice %269 {offsets = [0, 0], sizes = [8, 32], strides = [1, 1]} : vector<24x32xf32> to vector<8x32xf32>
    %c0_85 = arith.constant 0 : index
    %c0_86 = arith.constant 0 : index
    %c0_87 = arith.constant 0 : index
    %271 = vector.load %arg4[%c0_85, %c0_86, %c0_87] : memref<2x13x32xf32, #tpu.memory_space<vmem>>, vector<1x13x32xf32>
    %272 = vector.shape_cast %271 : vector<1x13x32xf32> to vector<13x32xf32>
    %273 = vector.extract_strided_slice %5 {offsets = [4, 0], sizes = [1, 32], strides = [1, 1]} : vector<12x32xf32> to vector<1x32xf32>
    %274 = vector.extract_strided_slice %5 {offsets = [5, 0], sizes = [1, 32], strides = [1, 1]} : vector<12x32xf32> to vector<1x32xf32>
    %275 = vector.extract_strided_slice %5 {offsets = [6, 0], sizes = [1, 32], strides = [1, 1]} : vector<12x32xf32> to vector<1x32xf32>
    %276 = vector.extract_strided_slice %5 {offsets = [7, 0], sizes = [1, 32], strides = [1, 1]} : vector<12x32xf32> to vector<1x32xf32>
    %277 = arith.truncf %270 : vector<8x32xf32> to vector<8x32xbf16>
    %c0_88 = arith.constant 0 : index
    %c0_89 = arith.constant 0 : index
    %c0_90 = arith.constant 0 : index
    %278 = vector.load %arg7[%c0_88, %c0_89, %c0_90] : memref<2x32x32xbf16, #tpu.memory_space<vmem>>, vector<1x32x32xbf16>
    %279 = vector.shape_cast %278 : vector<1x32x32xbf16> to vector<32x32xbf16>
    %cst_91 = arith.constant dense<0.000000e+00> : vector<8x32xf32>
    %280 = tpu.matmul %277, %279, %cst_91 {dimension_numbers = #tpu.dot_dimension_numbers<[1], [0], [0], [1], [0, 0, 1, 1], [], []>} : vector<8x32xbf16>, vector<32x32xbf16>, vector<8x32xf32> -> vector<8x32xf32>
    %281 = vector.extract_strided_slice %272 {offsets = [6, 0], sizes = [1, 32], strides = [1, 1]} : vector<13x32xf32> to vector<1x32xf32>
    %282 = vector.broadcast %281 : vector<1x32xf32> to vector<8x32xf32>
    %283 = arith.addf %280, %282 : vector<8x32xf32>
    %284 = vector.broadcast %273 : vector<1x32xf32> to vector<8x32xf32>
    %285 = arith.mulf %283, %284 : vector<8x32xf32>
    %286 = arith.addf %1, %285 : vector<8x32xf32>
    %287 = vector.extract_strided_slice %272 {offsets = [7, 0], sizes = [1, 32], strides = [1, 1]} : vector<13x32xf32> to vector<1x32xf32>
    %288 = vector.extract_strided_slice %272 {offsets = [8, 0], sizes = [1, 32], strides = [1, 1]} : vector<13x32xf32> to vector<1x32xf32>
    %cst_92 = arith.constant dense<0.000000e+00> : vector<8xf32>
    %289 = vector.multi_reduction <add>, %286, %cst_92 [1] : vector<8x32xf32> to vector<8xf32>
    %290 = vector.shape_cast %289 : vector<8xf32> to vector<8x1xf32>
    %cst_93 = arith.constant 3.200000e+01 : f32
    %291 = vector.broadcast %cst_93 : f32 to vector<8x1xf32>
    %292 = arith.divf %290, %291 : vector<8x1xf32>
    %293 = vector.broadcast %292 : vector<8x1xf32> to vector<8x32xf32>
    %294 = arith.subf %286, %293 : vector<8x32xf32>
    %295 = arith.mulf %294, %294 : vector<8x32xf32>
    %cst_94 = arith.constant dense<0.000000e+00> : vector<8xf32>
    %296 = vector.multi_reduction <add>, %295, %cst_94 [1] : vector<8x32xf32> to vector<8xf32>
    %297 = vector.shape_cast %296 : vector<8xf32> to vector<8x1xf32>
    %cst_95 = arith.constant 3.200000e+01 : f32
    %298 = vector.broadcast %cst_95 : f32 to vector<8x1xf32>
    %299 = arith.divf %297, %298 : vector<8x1xf32>
    %cst_96 = arith.constant 9.99999997E-7 : f32
    %300 = vector.broadcast %cst_96 : f32 to vector<8x1xf32>
    %301 = arith.addf %299, %300 : vector<8x1xf32>
    %302 = math.rsqrt %301 : vector<8x1xf32>
    %303 = vector.broadcast %302 : vector<8x1xf32> to vector<8x32xf32>
    %304 = arith.mulf %294, %303 : vector<8x32xf32>
    %305 = vector.broadcast %287 : vector<1x32xf32> to vector<8x32xf32>
    %306 = arith.mulf %304, %305 : vector<8x32xf32>
    %307 = vector.broadcast %288 : vector<1x32xf32> to vector<8x32xf32>
    %308 = arith.addf %306, %307 : vector<8x32xf32>
    %cst_97 = arith.constant 1.000000e+00 : f32
    %309 = vector.broadcast %cst_97 : f32 to vector<1x32xf32>
    %310 = arith.addf %309, %275 : vector<1x32xf32>
    %311 = vector.broadcast %310 : vector<1x32xf32> to vector<8x32xf32>
    %312 = arith.mulf %308, %311 : vector<8x32xf32>
    %313 = vector.broadcast %274 : vector<1x32xf32> to vector<8x32xf32>
    %314 = arith.addf %312, %313 : vector<8x32xf32>
    %315 = arith.truncf %314 : vector<8x32xf32> to vector<8x32xbf16>
    %c0_98 = arith.constant 0 : index
    %c0_99 = arith.constant 0 : index
    %c0_100 = arith.constant 0 : index
    %316 = vector.load %arg8[%c0_98, %c0_99, %c0_100] : memref<2x32x128xbf16, #tpu.memory_space<vmem>>, vector<1x32x128xbf16>
    %317 = vector.shape_cast %316 : vector<1x32x128xbf16> to vector<32x128xbf16>
    %cst_101 = arith.constant dense<0.000000e+00> : vector<8x128xf32>
    %318 = tpu.matmul %315, %317, %cst_101 {dimension_numbers = #tpu.dot_dimension_numbers<[1], [0], [0], [1], [0, 0, 1, 1], [], []>} : vector<8x32xbf16>, vector<32x128xbf16>, vector<8x128xf32> -> vector<8x128xf32>
    %c0_102 = arith.constant 0 : index
    %c0_103 = arith.constant 0 : index
    %c0_104 = arith.constant 0 : index
    %319 = vector.load %arg5[%c0_102, %c0_103, %c0_104] : memref<2x1x128xf32, #tpu.memory_space<vmem>>, vector<1x1x128xf32>
    %320 = vector.shape_cast %319 : vector<1x1x128xf32> to vector<1x128xf32>
    %321 = vector.broadcast %320 : vector<1x128xf32> to vector<8x128xf32>
    %322 = arith.addf %318, %321 : vector<8x128xf32>
    %cst_105 = arith.constant 5.000000e-01 : f32
    %323 = vector.broadcast %cst_105 : f32 to vector<8x128xf32>
    %324 = arith.mulf %323, %322 : vector<8x128xf32>
    %cst_106 = arith.constant 4.471500e-02 : f32
    %325 = vector.broadcast %cst_106 : f32 to vector<8x128xf32>
    %326 = arith.mulf %325, %322 : vector<8x128xf32>
    %327 = arith.mulf %326, %322 : vector<8x128xf32>
    %328 = arith.mulf %327, %322 : vector<8x128xf32>
    %329 = arith.addf %322, %328 : vector<8x128xf32>
    %cst_107 = arith.constant 0.797884583 : f32
    %330 = vector.broadcast %cst_107 : f32 to vector<8x128xf32>
    %331 = arith.mulf %330, %329 : vector<8x128xf32>
    %332 = math.tanh %331 : vector<8x128xf32>
    %cst_108 = arith.constant 1.000000e+00 : f32
    %333 = vector.broadcast %cst_108 : f32 to vector<8x128xf32>
    %334 = arith.addf %333, %332 : vector<8x128xf32>
    %335 = arith.mulf %324, %334 : vector<8x128xf32>
    %336 = arith.truncf %335 : vector<8x128xf32> to vector<8x128xbf16>
    %c0_109 = arith.constant 0 : index
    %c0_110 = arith.constant 0 : index
    %c0_111 = arith.constant 0 : index
    %337 = vector.load %arg9[%c0_109, %c0_110, %c0_111] : memref<2x128x32xbf16, #tpu.memory_space<vmem>>, vector<1x128x32xbf16>
    %338 = vector.shape_cast %337 : vector<1x128x32xbf16> to vector<128x32xbf16>
    %cst_112 = arith.constant dense<0.000000e+00> : vector<8x32xf32>
    %339 = tpu.matmul %336, %338, %cst_112 {dimension_numbers = #tpu.dot_dimension_numbers<[1], [0], [0], [1], [0, 0, 1, 1], [], []>} : vector<8x128xbf16>, vector<128x32xbf16>, vector<8x32xf32> -> vector<8x32xf32>
    %340 = vector.extract_strided_slice %272 {offsets = [9, 0], sizes = [1, 32], strides = [1, 1]} : vector<13x32xf32> to vector<1x32xf32>
    %341 = vector.broadcast %340 : vector<1x32xf32> to vector<8x32xf32>
    %342 = arith.addf %339, %341 : vector<8x32xf32>
    %343 = vector.broadcast %276 : vector<1x32xf32> to vector<8x32xf32>
    %344 = arith.mulf %342, %343 : vector<8x32xf32>
    %345 = arith.addf %1, %344 : vector<8x32xf32>
    %c0_113 = arith.constant 0 : index
    %c0_114 = arith.constant 0 : index
    %c0_115 = arith.constant 0 : index
    %346 = vector.load %arg10[%c0_113, %c0_114, %c0_115] : memref<1x8x32xf32, #tpu.memory_space<vmem>>, vector<1x8x32xf32>
    %347 = vector.shape_cast %346 : vector<1x8x32xf32> to vector<8x32xf32>
    %348 = vector.shape_cast %345 : vector<8x32xf32> to vector<1x8x32xf32>
    tpu.vector_store %arg10[%c0_113, %c0_114, %c0_115], %348 {strides = array<i32>} : memref<1x8x32xf32, #tpu.memory_space<vmem>>, vector<1x8x32xf32>,
    %349 = vector.extract_strided_slice %269 {offsets = [8, 0], sizes = [16, 32], strides = [1, 1]} : vector<24x32xf32> to vector<16x32xf32>
    %c1_116 = arith.constant 1 : index
    %c0_117 = arith.constant 0 : index
    %c0_118 = arith.constant 0 : index
    %350 = vector.load %arg4[%c1_116, %c0_117, %c0_118] : memref<2x13x32xf32, #tpu.memory_space<vmem>>, vector<1x13x32xf32>
    %351 = vector.shape_cast %350 : vector<1x13x32xf32> to vector<13x32xf32>
    %352 = vector.extract_strided_slice %5 {offsets = [8, 0], sizes = [1, 32], strides = [1, 1]} : vector<12x32xf32> to vector<1x32xf32>
    %353 = vector.extract_strided_slice %5 {offsets = [9, 0], sizes = [1, 32], strides = [1, 1]} : vector<12x32xf32> to vector<1x32xf32>
    %354 = vector.extract_strided_slice %5 {offsets = [10, 0], sizes = [1, 32], strides = [1, 1]} : vector<12x32xf32> to vector<1x32xf32>
    %355 = vector.extract_strided_slice %5 {offsets = [11, 0], sizes = [1, 32], strides = [1, 1]} : vector<12x32xf32> to vector<1x32xf32>
    %356 = arith.truncf %349 : vector<16x32xf32> to vector<16x32xbf16>
    %c1_119 = arith.constant 1 : index
    %c0_120 = arith.constant 0 : index
    %c0_121 = arith.constant 0 : index
    %357 = vector.load %arg7[%c1_119, %c0_120, %c0_121] : memref<2x32x32xbf16, #tpu.memory_space<vmem>>, vector<1x32x32xbf16>
    %358 = vector.shape_cast %357 : vector<1x32x32xbf16> to vector<32x32xbf16>
    %cst_122 = arith.constant dense<0.000000e+00> : vector<16x32xf32>
    %359 = tpu.matmul %356, %358, %cst_122 {dimension_numbers = #tpu.dot_dimension_numbers<[1], [0], [0], [1], [0, 0, 1, 1], [], []>} : vector<16x32xbf16>, vector<32x32xbf16>, vector<16x32xf32> -> vector<16x32xf32>
    %360 = vector.extract_strided_slice %351 {offsets = [6, 0], sizes = [1, 32], strides = [1, 1]} : vector<13x32xf32> to vector<1x32xf32>
    %361 = vector.broadcast %360 : vector<1x32xf32> to vector<16x32xf32>
    %362 = arith.addf %359, %361 : vector<16x32xf32>
    %363 = vector.broadcast %352 : vector<1x32xf32> to vector<16x32xf32>
    %364 = arith.mulf %362, %363 : vector<16x32xf32>
    %365 = arith.addf %3, %364 : vector<16x32xf32>
    %366 = vector.extract_strided_slice %351 {offsets = [7, 0], sizes = [1, 32], strides = [1, 1]} : vector<13x32xf32> to vector<1x32xf32>
    %367 = vector.extract_strided_slice %351 {offsets = [8, 0], sizes = [1, 32], strides = [1, 1]} : vector<13x32xf32> to vector<1x32xf32>
    %cst_123 = arith.constant dense<0.000000e+00> : vector<16xf32>
    %368 = vector.multi_reduction <add>, %365, %cst_123 [1] : vector<16x32xf32> to vector<16xf32>
    %369 = vector.shape_cast %368 : vector<16xf32> to vector<16x1xf32>
    %cst_124 = arith.constant 3.200000e+01 : f32
    %370 = vector.broadcast %cst_124 : f32 to vector<16x1xf32>
    %371 = arith.divf %369, %370 : vector<16x1xf32>
    %372 = vector.broadcast %371 : vector<16x1xf32> to vector<16x32xf32>
    %373 = arith.subf %365, %372 : vector<16x32xf32>
    %374 = arith.mulf %373, %373 : vector<16x32xf32>
    %cst_125 = arith.constant dense<0.000000e+00> : vector<16xf32>
    %375 = vector.multi_reduction <add>, %374, %cst_125 [1] : vector<16x32xf32> to vector<16xf32>
    %376 = vector.shape_cast %375 : vector<16xf32> to vector<16x1xf32>
    %cst_126 = arith.constant 3.200000e+01 : f32
    %377 = vector.broadcast %cst_126 : f32 to vector<16x1xf32>
    %378 = arith.divf %376, %377 : vector<16x1xf32>
    %cst_127 = arith.constant 9.99999997E-7 : f32
    %379 = vector.broadcast %cst_127 : f32 to vector<16x1xf32>
    %380 = arith.addf %378, %379 : vector<16x1xf32>
    %381 = math.rsqrt %380 : vector<16x1xf32>
    %382 = vector.broadcast %381 : vector<16x1xf32> to vector<16x32xf32>
    %383 = arith.mulf %373, %382 : vector<16x32xf32>
    %384 = vector.broadcast %366 : vector<1x32xf32> to vector<16x32xf32>
    %385 = arith.mulf %383, %384 : vector<16x32xf32>
    %386 = vector.broadcast %367 : vector<1x32xf32> to vector<16x32xf32>
    %387 = arith.addf %385, %386 : vector<16x32xf32>
    %cst_128 = arith.constant 1.000000e+00 : f32
    %388 = vector.broadcast %cst_128 : f32 to vector<1x32xf32>
    %389 = arith.addf %388, %354 : vector<1x32xf32>
    %390 = vector.broadcast %389 : vector<1x32xf32> to vector<16x32xf32>
    %391 = arith.mulf %387, %390 : vector<16x32xf32>
    %392 = vector.broadcast %353 : vector<1x32xf32> to vector<16x32xf32>
    %393 = arith.addf %391, %392 : vector<16x32xf32>
    %394 = arith.truncf %393 : vector<16x32xf32> to vector<16x32xbf16>
    %c1_129 = arith.constant 1 : index
    %c0_130 = arith.constant 0 : index
    %c0_131 = arith.constant 0 : index
    %395 = vector.load %arg8[%c1_129, %c0_130, %c0_131] : memref<2x32x128xbf16, #tpu.memory_space<vmem>>, vector<1x32x128xbf16>
    %396 = vector.shape_cast %395 : vector<1x32x128xbf16> to vector<32x128xbf16>
    %cst_132 = arith.constant dense<0.000000e+00> : vector<16x128xf32>
    %397 = tpu.matmul %394, %396, %cst_132 {dimension_numbers = #tpu.dot_dimension_numbers<[1], [0], [0], [1], [0, 0, 1, 1], [], []>} : vector<16x32xbf16>, vector<32x128xbf16>, vector<16x128xf32> -> vector<16x128xf32>
    %c1_133 = arith.constant 1 : index
    %c0_134 = arith.constant 0 : index
    %c0_135 = arith.constant 0 : index
    %398 = vector.load %arg5[%c1_133, %c0_134, %c0_135] : memref<2x1x128xf32, #tpu.memory_space<vmem>>, vector<1x1x128xf32>
    %399 = vector.shape_cast %398 : vector<1x1x128xf32> to vector<1x128xf32>
    %400 = vector.broadcast %399 : vector<1x128xf32> to vector<16x128xf32>
    %401 = arith.addf %397, %400 : vector<16x128xf32>
    %cst_136 = arith.constant 5.000000e-01 : f32
    %402 = vector.broadcast %cst_136 : f32 to vector<16x128xf32>
    %403 = arith.mulf %402, %401 : vector<16x128xf32>
    %cst_137 = arith.constant 4.471500e-02 : f32
    %404 = vector.broadcast %cst_137 : f32 to vector<16x128xf32>
    %405 = arith.mulf %404, %401 : vector<16x128xf32>
    %406 = arith.mulf %405, %401 : vector<16x128xf32>
    %407 = arith.mulf %406, %401 : vector<16x128xf32>
    %408 = arith.addf %401, %407 : vector<16x128xf32>
    %cst_138 = arith.constant 0.797884583 : f32
    %409 = vector.broadcast %cst_138 : f32 to vector<16x128xf32>
    %410 = arith.mulf %409, %408 : vector<16x128xf32>
    %411 = math.tanh %410 : vector<16x128xf32>
    %cst_139 = arith.constant 1.000000e+00 : f32
    %412 = vector.broadcast %cst_139 : f32 to vector<16x128xf32>
    %413 = arith.addf %412, %411 : vector<16x128xf32>
    %414 = arith.mulf %403, %413 : vector<16x128xf32>
    %415 = arith.truncf %414 : vector<16x128xf32> to vector<16x128xbf16>
    %c1_140 = arith.constant 1 : index
    %c0_141 = arith.constant 0 : index
    %c0_142 = arith.constant 0 : index
    %416 = vector.load %arg9[%c1_140, %c0_141, %c0_142] : memref<2x128x32xbf16, #tpu.memory_space<vmem>>, vector<1x128x32xbf16>
    %417 = vector.shape_cast %416 : vector<1x128x32xbf16> to vector<128x32xbf16>
    %cst_143 = arith.constant dense<0.000000e+00> : vector<16x32xf32>
    %418 = tpu.matmul %415, %417, %cst_143 {dimension_numbers = #tpu.dot_dimension_numbers<[1], [0], [0], [1], [0, 0, 1, 1], [], []>} : vector<16x128xbf16>, vector<128x32xbf16>, vector<16x32xf32> -> vector<16x32xf32>
    %419 = vector.extract_strided_slice %351 {offsets = [9, 0], sizes = [1, 32], strides = [1, 1]} : vector<13x32xf32> to vector<1x32xf32>
    %420 = vector.broadcast %419 : vector<1x32xf32> to vector<16x32xf32>
    %421 = arith.addf %418, %420 : vector<16x32xf32>
    %422 = vector.broadcast %355 : vector<1x32xf32> to vector<16x32xf32>
    %423 = arith.mulf %421, %422 : vector<16x32xf32>
    %424 = arith.addf %3, %423 : vector<16x32xf32>
    %c0_144 = arith.constant 0 : index
    %c0_145 = arith.constant 0 : index
    %c0_146 = arith.constant 0 : index
    %425 = vector.load %arg11[%c0_144, %c0_145, %c0_146] : memref<1x16x32xf32, #tpu.memory_space<vmem>>, vector<1x16x32xf32>
    %426 = vector.shape_cast %425 : vector<1x16x32xf32> to vector<16x32xf32>
    %427 = vector.shape_cast %424 : vector<16x32xf32> to vector<1x16x32xf32>
    tpu.vector_store %arg11[%c0_144, %c0_145, %c0_146], %427 {strides = array<i32>} : memref<1x16x32xf32, #tpu.memory_space<vmem>>, vector<1x16x32xf32>,
    return
  }
  func.func @transform_0(%arg0: i32) -> (i32, i32, i32) {
    %c0_i32 = arith.constant 0 : i32
    %c0_i32_0 = arith.constant 0 : i32
    %c0_i32_1 = arith.constant 0 : i32
    return %arg0, %c0_i32, %c0_i32_0 : i32, i32, i32
  }
  func.func @transform_1(%arg0: i32) -> (i32, i32, i32) {
    %c0_i32 = arith.constant 0 : i32
    %c0_i32_0 = arith.constant 0 : i32
    %c0_i32_1 = arith.constant 0 : i32
    return %arg0, %c0_i32, %c0_i32_0 : i32, i32, i32
  }
  func.func @transform_2(%arg0: i32) -> (i32, i32, i32) {
    %c0_i32 = arith.constant 0 : i32
    %c0_i32_0 = arith.constant 0 : i32
    %c0_i32_1 = arith.constant 0 : i32
    return %arg0, %c0_i32, %c0_i32_0 : i32, i32, i32
  }
  func.func @transform_3(%arg0: i32) -> (i32, i32, i32) {
    %c0_i32 = arith.constant 0 : i32
    %c0_i32_0 = arith.constant 0 : i32
    %c0_i32_1 = arith.constant 0 : i32
    %c0_i32_2 = arith.constant 0 : i32
    return %c0_i32, %c0_i32_0, %c0_i32_1 : i32, i32, i32
  }
  func.func @transform_4(%arg0: i32) -> (i32, i32, i32) {
    %c0_i32 = arith.constant 0 : i32
    %c0_i32_0 = arith.constant 0 : i32
    %c0_i32_1 = arith.constant 0 : i32
    %c0_i32_2 = arith.constant 0 : i32
    return %c0_i32, %c0_i32_0, %c0_i32_1 : i32, i32, i32
  }
  func.func @transform_5(%arg0: i32) -> (i32, i32, i32) {
    %c0_i32 = arith.constant 0 : i32
    %c0_i32_0 = arith.constant 0 : i32
    %c0_i32_1 = arith.constant 0 : i32
    %c0_i32_2 = arith.constant 0 : i32
    return %c0_i32, %c0_i32_0, %c0_i32_1 : i32, i32, i32
  }
  func.func @transform_6(%arg0: i32) -> (i32, i32, i32) {
    %c0_i32 = arith.constant 0 : i32
    %c0_i32_0 = arith.constant 0 : i32
    %c0_i32_1 = arith.constant 0 : i32
    %c0_i32_2 = arith.constant 0 : i32
    return %c0_i32, %c0_i32_0, %c0_i32_1 : i32, i32, i32
  }
  func.func @transform_7(%arg0: i32) -> (i32, i32, i32) {
    %c0_i32 = arith.constant 0 : i32
    %c0_i32_0 = arith.constant 0 : i32
    %c0_i32_1 = arith.constant 0 : i32
    %c0_i32_2 = arith.constant 0 : i32
    return %c0_i32, %c0_i32_0, %c0_i32_1 : i32, i32, i32
  }
  func.func @transform_8(%arg0: i32) -> (i32, i32, i32) {
    %c0_i32 = arith.constant 0 : i32
    %c0_i32_0 = arith.constant 0 : i32
    %c0_i32_1 = arith.constant 0 : i32
    %c0_i32_2 = arith.constant 0 : i32
    return %c0_i32, %c0_i32_0, %c0_i32_1 : i32, i32, i32
  }
  func.func @transform_9(%arg0: i32) -> (i32, i32, i32) {
    %c0_i32 = arith.constant 0 : i32
    %c0_i32_0 = arith.constant 0 : i32
    %c0_i32_1 = arith.constant 0 : i32
    return %arg0, %c0_i32, %c0_i32_0 : i32, i32, i32
  }
  func.func @transform_10(%arg0: i32) -> (i32, i32, i32) {
    %c0_i32 = arith.constant 0 : i32
    %c0_i32_0 = arith.constant 0 : i32
    %c0_i32_1 = arith.constant 0 : i32
    return %arg0, %c0_i32, %c0_i32_0 : i32, i32, i32
  }
}

</mosaic_0001>

<llo_original>
// kernel: tpu_custom_call.1
$region0: #{tpu_custom_call.1}
  #allocation0 [shape = 'u32[]', space=smem, size = 0x4, offset = 0x4, fixed_abs, tag = 'smem constant byte address 0x4 - core index']
  #allocation1 [shape = 'u32[144,128]{1,0:T(1,128)}', space=vmem, size = 0x12000, scoped, tag = 'internal scratch']
  #allocation2 [shape = 'bf16[24,32]{1,0:T(8,128)(2,1)}', space=vmem, size = 0x1800, scoped, tag = 'scratch operand']
  #allocation3 [shape = 'bf16[24,32]{1,0:T(8,128)(2,1)}', space=vmem, size = 0x1800, scoped, tag = 'scratch operand']
  #allocation4 [shape = 'bf16[24,32]{1,0:T(8,128)(2,1)}', space=vmem, size = 0x1800, scoped, tag = 'scratch operand']
  %s0 = inlined_call_operand.vmem [shape: f32[2,8,32], index: 0, kind: input, shape index: {}]
  %s1 = inlined_call_operand.vmem [shape: f32[2,16,32], index: 1, kind: input, shape index: {}]
  %s2 = inlined_call_operand.vmem [shape: f32[2,12,32], index: 2, kind: input, shape index: {}]
  %s3 = inlined_call_operand.vmem [shape: f32[2,13,32], index: 3, kind: input, shape index: {}]
  %s4 = inlined_call_operand.vmem [shape: f32[2,1,128], index: 4, kind: input, shape index: {}]
  %s5 = inlined_call_operand.vmem [shape: bf16[2,32,96], index: 5, kind: input, shape index: {}]
  %s6 = inlined_call_operand.vmem [shape: bf16[2,32,32], index: 6, kind: input, shape index: {}]
  %s7 = inlined_call_operand.vmem [shape: bf16[2,32,128], index: 7, kind: input, shape index: {}]
  %s8 = inlined_call_operand.vmem [shape: bf16[2,128,32], index: 8, kind: input, shape index: {}]
  %s9 = inlined_call_operand.hbm [shape: f32[2,8,32], index: 9, kind: output, shape index: {0}]
  %s10 = inlined_call_operand.hbm [shape: f32[2,16,32], index: 10, kind: output, shape index: {1}]
  %11 = xla_tuple %s9, %s10
  %s12 = sld [smem:[#allocation0]]
  $region77: #{tpu_custom_call.1} parent=0
    _
  %s14 = ssub.s32 1, %s12
  %s15 = scalar_select 0, %s14, %s12
  $region1: #{tpu_custom_call.1} parent=0
    #allocation5 [shape = 'u8[8192]{0}', space=vmem, size = 0x2000, scoped, tag = 'output window, operand 0']
    #allocation6 [shape = 's32[2]{0}', space=sflag, size = 0x8, scoped, tag = 'scoped memory for tpu_custom_call.1']
    #allocation7 [shape = 'u8[16384]{0}', space=vmem, size = 0x4000, scoped, tag = 'output window, operand 1']
    #allocation8 [shape = 's32[2]{0}', space=sflag, size = 0x8, scoped, tag = 'scoped memory for tpu_custom_call.1']
    %16 = vsyncpa [#allocation6], 0
    %s17 = scalar_lea.sflag [#allocation6], 1
    %18 = vsyncpa %s17, 0
    %19 = vsyncpa [#allocation8], 0
    %s20 = scalar_lea.sflag [#allocation8], 1
    %21 = vsyncpa %s20, 0
    loop: start=0, step=1, limit=4
    $region2: #{tpu_custom_call.1} parent=1 // loop_pre_header
      _
    $region3: #{tpu_custom_call.1} parent=1 // loop_header
      %s23 = sphi 0, %s27
      %p24 = scmp.ge.s32.totalorder %s23, 4
      %s33 = sphi 0, %s35
      %s36 = sphi 0, %s33
      %s37 = sphi 0, %s36
      %s53 = sphi 0, %s37
      %s59 = sphi 0, %s61
      %s62 = sphi 0, %s59
      %s63 = sphi 0, %s62
      %s79 = sphi 0, %s63
      %s85 = sphi 0, %s87
      %s88 = sphi 0, %s85
      %s89 = sphi 0, %s88
      %s105 = sphi 0, %s89
      %s109 = sphi 0, %s109
      %s111 = sphi 0, %s109
      %s112 = sphi 0, %s111
      %s126 = sphi 0, %s112
      %s130 = sphi 0, %s130
      %s132 = sphi 0, %s130
      %s133 = sphi 0, %s132
      %s147 = sphi 0, %s133
      %s151 = sphi 0, %s151
      %s153 = sphi 0, %s151
      %s154 = sphi 0, %s153
      %s168 = sphi 0, %s154
      %s172 = sphi 0, %s172
      %s174 = sphi 0, %s172
      %s175 = sphi 0, %s174
      %s189 = sphi 0, %s175
      %s193 = sphi 0, %s193
      %s195 = sphi 0, %s193
      %s196 = sphi 0, %s195
      %s210 = sphi 0, %s196
      %s214 = sphi 0, %s214
      %s216 = sphi 0, %s214
      %s217 = sphi 0, %s216
      %s231 = sphi 0, %s217
      %s237 = sphi 0, %s239
      %s240 = sphi 0, %s237
      %s241 = sphi 0, %s240
      %s257 = sphi 0, %s241
      %s263 = sphi 0, %s265
      %s266 = sphi 0, %s263
      %s267 = sphi 0, %s266
      %s283 = sphi 0, %s267
    $region4: #{tpu_custom_call.1} parent=1 // loop_header_branch
      %26 = sbr.rel (%p24) target = $region8
    $region5: #{tpu_custom_call.1} parent=1 // loop_body
      %s28 = ssub.s32 %s23, 1
      %s29 = ssub.s32 %s23, 2
      %s30 = sadd.s32 %s23, 1
      %s31 = ssub.s32 %s23, %s30
      %p32 = scmp.eq.s32.totalorder %s31, 0
      %s34 = sadd.s32 %s33, 1
      %s35 = scalar_select %p32, %s33, %s34
      %p38 = pneg %p32
      %p39 = scmp.eq.s32.totalorder %s23, 1
      %p40 = por %p38, %p39
      %p41 = scmp.ne.s32.totalorder %s33, %s36
      %p42 = scmp.eq.s32.totalorder %s23, 0
      %p43 = por %p41, %p42
      %p44 = scmp.ne.s32.totalorder %s33, %s36
      %p45 = scmp.eq.s32.totalorder %s28, 1
      %p46 = por %p44, %p45
      %p47 = scmp.ne.s32.totalorder %s36, %s37
      %p48 = scmp.eq.s32.totalorder %s28, 0
      %p49 = por %p47, %p48
      %p50 = scmp.ne.s32.totalorder %s36, %s37
      %p51 = scmp.eq.s32.totalorder %s29, 1
      %p52 = por %p50, %p51
      %p54 = scmp.ne.s32.totalorder %s37, %s53
      %p55 = scmp.eq.s32.totalorder %s29, 0
      %p56 = por %p54, %p55
      %s57 = ssub.s32 %s23, %s30
      %p58 = scmp.eq.s32.totalorder %s57, 0
      %s60 = sadd.s32 %s59, 1
      %s61 = scalar_select %p58, %s59, %s60
      %p64 = pneg %p58
      %p65 = scmp.eq.s32.totalorder %s23, 1
      %p66 = por %p64, %p65
      %p67 = scmp.ne.s32.totalorder %s59, %s62
      %p68 = scmp.eq.s32.totalorder %s23, 0
      %p69 = por %p67, %p68
      %p70 = scmp.ne.s32.totalorder %s59, %s62
      %p71 = scmp.eq.s32.totalorder %s28, 1
      %p72 = por %p70, %p71
      %p73 = scmp.ne.s32.totalorder %s62, %s63
      %p74 = scmp.eq.s32.totalorder %s28, 0
      %p75 = por %p73, %p74
      %p76 = scmp.ne.s32.totalorder %s62, %s63
      %p77 = scmp.eq.s32.totalorder %s29, 1
      %p78 = por %p76, %p77
      %p80 = scmp.ne.s32.totalorder %s63, %s79
      %p81 = scmp.eq.s32.totalorder %s29, 0
      %p82 = por %p80, %p81
      %s83 = ssub.s32 %s23, %s30
      %p84 = scmp.eq.s32.totalorder %s83, 0
      %s86 = sadd.s32 %s85, 1
      %s87 = scalar_select %p84, %s85, %s86
      %p90 = pneg %p84
      %p91 = scmp.eq.s32.totalorder %s23, 1
      %p92 = por %p90, %p91
      %p93 = scmp.ne.s32.totalorder %s85, %s88
      %p94 = scmp.eq.s32.totalorder %s23, 0
      %p95 = por %p93, %p94
      %p96 = scmp.ne.s32.totalorder %s85, %s88
      %p97 = scmp.eq.s32.totalorder %s28, 1
      %p98 = por %p96, %p97
      %p99 = scmp.ne.s32.totalorder %s88, %s89
      %p100 = scmp.eq.s32.totalorder %s28, 0
      %p101 = por %p99, %p100
      %p102 = scmp.ne.s32.totalorder %s88, %s89
      %p103 = scmp.eq.s32.totalorder %s29, 1
      %p104 = por %p102, %p103
      %p106 = scmp.ne.s32.totalorder %s89, %s105
      %p107 = scmp.eq.s32.totalorder %s29, 0
      %p108 = por %p106, %p107
      %s110 = sadd.s32 %s109, 1
      %p113 = scmp.eq.s32.totalorder %s23, 1
      %p114 = scmp.ne.s32.totalorder %s109, %s111
      %p115 = scmp.eq.s32.totalorder %s23, 0
      %p116 = por %p114, %p115
      %p117 = scmp.ne.s32.totalorder %s109, %s111
      %p118 = scmp.eq.s32.totalorder %s28, 1
      %p119 = por %p117, %p118
      %p120 = scmp.ne.s32.totalorder %s111, %s112
      %p121 = scmp.eq.s32.totalorder %s28, 0
      %p122 = por %p120, %p121
      %p123 = scmp.ne.s32.totalorder %s111, %s112
      %p124 = scmp.eq.s32.totalorder %s29, 1
      %p125 = por %p123, %p124
      %p127 = scmp.ne.s32.totalorder %s112, %s126
      %p128 = scmp.eq.s32.totalorder %s29, 0
      %p129 = por %p127, %p128
      %s131 = sadd.s32 %s130, 1
      %p134 = scmp.eq.s32.totalorder %s23, 1
      %p135 = scmp.ne.s32.totalorder %s130, %s132
      %p136 = scmp.eq.s32.totalorder %s23, 0
      %p137 = por %p135, %p136
      %p138 = scmp.ne.s32.totalorder %s130, %s132
      %p139 = scmp.eq.s32.totalorder %s28, 1
      %p140 = por %p138, %p139
      %p141 = scmp.ne.s32.totalorder %s132, %s133
      %p142 = scmp.eq.s32.totalorder %s28, 0
      %p143 = por %p141, %p142
      %p144 = scmp.ne.s32.totalorder %s132, %s133
      %p145 = scmp.eq.s32.totalorder %s29, 1
      %p146 = por %p144, %p145
      %p148 = scmp.ne.s32.totalorder %s133, %s147
      %p149 = scmp.eq.s32.totalorder %s29, 0
      %p150 = por %p148, %p149
      %s152 = sadd.s32 %s151, 1
      %p155 = scmp.eq.s32.totalorder %s23, 1
      %p156 = scmp.ne.s32.totalorder %s151, %s153
      %p157 = scmp.eq.s32.totalorder %s23, 0
      %p158 = por %p156, %p157
      %p159 = scmp.ne.s32.totalorder %s151, %s153
      %p160 = scmp.eq.s32.totalorder %s28, 1
      %p161 = por %p159, %p160
      %p162 = scmp.ne.s32.totalorder %s153, %s154
      %p163 = scmp.eq.s32.totalorder %s28, 0
      %p164 = por %p162, %p163
      %p165 = scmp.ne.s32.totalorder %s153, %s154
      %p166 = scmp.eq.s32.totalorder %s29, 1
      %p167 = por %p165, %p166
      %p169 = scmp.ne.s32.totalorder %s154, %s168
      %p170 = scmp.eq.s32.totalorder %s29, 0
      %p171 = por %p169, %p170
      %s173 = sadd.s32 %s172, 1
      %p176 = scmp.eq.s32.totalorder %s23, 1
      %p177 = scmp.ne.s32.totalorder %s172, %s174
      %p178 = scmp.eq.s32.totalorder %s23, 0
      %p179 = por %p177, %p178
      %p180 = scmp.ne.s32.totalorder %s172, %s174
      %p181 = scmp.eq.s32.totalorder %s28, 1
      %p182 = por %p180, %p181
      %p183 = scmp.ne.s32.totalorder %s174, %s175
      %p184 = scmp.eq.s32.totalorder %s28, 0
      %p185 = por %p183, %p184
      %p186 = scmp.ne.s32.totalorder %s174, %s175
      %p187 = scmp.eq.s32.totalorder %s29, 1
      %p188 = por %p186, %p187
      %p190 = scmp.ne.s32.totalorder %s175, %s189
      %p191 = scmp.eq.s32.totalorder %s29, 0
      %p192 = por %p190, %p191
      %s194 = sadd.s32 %s193, 1
      %p197 = scmp.eq.s32.totalorder %s23, 1
      %p198 = scmp.ne.s32.totalorder %s193, %s195
      %p199 = scmp.eq.s32.totalorder %s23, 0
      %p200 = por %p198, %p199
      %p201 = scmp.ne.s32.totalorder %s193, %s195
      %p202 = scmp.eq.s32.totalorder %s28, 1
      %p203 = por %p201, %p202
      %p204 = scmp.ne.s32.totalorder %s195, %s196
      %p205 = scmp.eq.s32.totalorder %s28, 0
      %p206 = por %p204, %p205
      %p207 = scmp.ne.s32.totalorder %s195, %s196
      %p208 = scmp.eq.s32.totalorder %s29, 1
      %p209 = por %p207, %p208
      %p211 = scmp.ne.s32.totalorder %s196, %s210
      %p212 = scmp.eq.s32.totalorder %s29, 0
      %p213 = por %p211, %p212
      %s215 = sadd.s32 %s214, 1
      %p218 = scmp.eq.s32.totalorder %s23, 1
      %p219 = scmp.ne.s32.totalorder %s214, %s216
      %p220 = scmp.eq.s32.totalorder %s23, 0
      %p221 = por %p219, %p220
      %p222 = scmp.ne.s32.totalorder %s214, %s216
      %p223 = scmp.eq.s32.totalorder %s28, 1
      %p224 = por %p222, %p223
      %p225 = scmp.ne.s32.totalorder %s216, %s217
      %p226 = scmp.eq.s32.totalorder %s28, 0
      %p227 = por %p225, %p226
      %p228 = scmp.ne.s32.totalorder %s216, %s217
      %p229 = scmp.eq.s32.totalorder %s29, 1
      %p230 = por %p228, %p229
      %p232 = scmp.ne.s32.totalorder %s217, %s231
      %p233 = scmp.eq.s32.totalorder %s29, 0
      %p234 = por %p232, %p233
      %s235 = ssub.s32 %s23, %s30
      %p236 = scmp.eq.s32.totalorder %s235, 0
      %s238 = sadd.s32 %s237, 1
      %s239 = scalar_select %p236, %s237, %s238
      %p242 = pneg %p236
      %p243 = scmp.eq.s32.totalorder %s23, 1
      %p244 = por %p242, %p243
      %p245 = scmp.ne.s32.totalorder %s237, %s240
      %p246 = scmp.eq.s32.totalorder %s23, 0
      %p247 = por %p245, %p246
      %p248 = scmp.ne.s32.totalorder %s237, %s240
      %p249 = scmp.eq.s32.totalorder %s28, 1
      %p250 = por %p248, %p249
      %p251 = scmp.ne.s32.totalorder %s240, %s241
      %p252 = scmp.eq.s32.totalorder %s28, 0
      %p253 = por %p251, %p252
      %p254 = scmp.ne.s32.totalorder %s240, %s241
      %p255 = scmp.eq.s32.totalorder %s29, 1
      %p256 = por %p254, %p255
      %p258 = scmp.ne.s32.totalorder %s241, %s257
      %p259 = scmp.eq.s32.totalorder %s29, 0
      %p260 = por %p258, %p259
      %s261 = ssub.s32 %s23, %s30
      %p262 = scmp.eq.s32.totalorder %s261, 0
      %s264 = sadd.s32 %s263, 1
      %s265 = scalar_select %p262, %s263, %s264
      %p268 = pneg %p262
      %p269 = scmp.eq.s32.totalorder %s23, 1
      %p270 = por %p268, %p269
      %p271 = scmp.ne.s32.totalorder %s263, %s266
      %p272 = scmp.eq.s32.totalorder %s23, 0
      %p273 = por %p271, %p272
      %p274 = scmp.ne.s32.totalorder %s263, %s266
      %p275 = scmp.eq.s32.totalorder %s28, 1
      %p276 = por %p274, %p275
      %p277 = scmp.ne.s32.totalorder %s266, %s267
      %p278 = scmp.eq.s32.totalorder %s28, 0
      %p279 = por %p277, %p278
      %p280 = scmp.ne.s32.totalorder %s266, %s267
      %p281 = scmp.eq.s32.totalorder %s29, 1
      %p282 = por %p280, %p281
      %p284 = scmp.ne.s32.totalorder %s267, %s283
      %p285 = scmp.eq.s32.totalorder %s29, 0
      %p286 = por %p284, %p285
      %p287 = scmp.le.s32.totalorder 1, %s23
      %p288 = scmp.lt.s32.totalorder %s23, 3
      %p289 = pnand %p287, %p288
      %p290 = pneg %p289
      // Predicated region
      $region9: #{tpu_custom_call.1} parent=5 // pred_check
        _
      $region10: #{tpu_custom_call.1} parent=5 // pred_check_branch
        %292 = sbr.rel (%p289) target = $region12
      $region11: #{tpu_custom_call.1} parent=5 // pred_region
        %s293 = ssub.s32 %s23, 1
        // Predicated region
        $region13: #{tpu_custom_call.1} parent=11 // pred_check
          %p294 = pneg %p122
        $region14: #{tpu_custom_call.1} parent=11 // pred_check_branch
          %296 = sbr.rel (%p294) target = $region16
        $region15: #{tpu_custom_call.1} parent=11 // pred_region
          _
        $region16: #{tpu_custom_call.1} parent=11 // pred_fallthru
          _
        // Predicated region
        $region17: #{tpu_custom_call.1} parent=11 // pred_check
          %p297 = pneg %p143
        $region18: #{tpu_custom_call.1} parent=11 // pred_check_branch
          %299 = sbr.rel (%p297) target = $region20
        $region19: #{tpu_custom_call.1} parent=11 // pred_region
          _
        $region20: #{tpu_custom_call.1} parent=11 // pred_fallthru
          _
        // Predicated region
        $region21: #{tpu_custom_call.1} parent=11 // pred_check
          %p300 = pneg %p164
        $region22: #{tpu_custom_call.1} parent=11 // pred_check_branch
          %302 = sbr.rel (%p300) target = $region24
        $region23: #{tpu_custom_call.1} parent=11 // pred_region
          _
        $region24: #{tpu_custom_call.1} parent=11 // pred_fallthru
          _
        // Predicated region
        $region25: #{tpu_custom_call.1} parent=11 // pred_check
          %p303 = pneg %p185
        $region26: #{tpu_custom_call.1} parent=11 // pred_check_branch
          %305 = sbr.rel (%p303) target = $region28
        $region27: #{tpu_custom_call.1} parent=11 // pred_region
          _
        $region28: #{tpu_custom_call.1} parent=11 // pred_fallthru
          _
        // Predicated region
        $region29: #{tpu_custom_call.1} parent=11 // pred_check
          %p306 = pneg %p206
        $region30: #{tpu_custom_call.1} parent=11 // pred_check_branch
          %308 = sbr.rel (%p306) target = $region32
        $region31: #{tpu_custom_call.1} parent=11 // pred_region
          _
        $region32: #{tpu_custom_call.1} parent=11 // pred_fallthru
          _
        // Predicated region
        $region33: #{tpu_custom_call.1} parent=11 // pred_check
          %p309 = pneg %p227
        $region34: #{tpu_custom_call.1} parent=11 // pred_check_branch
          %311 = sbr.rel (%p309) target = $region36
        $region35: #{tpu_custom_call.1} parent=11 // pred_region
          _
        $region36: #{tpu_custom_call.1} parent=11 // pred_fallthru
          _
      $region12: #{tpu_custom_call.1} parent=5 // pred_fallthru
        _
      %p312 = scmp.lt.s32.totalorder %s23, 2
      // Predicated region
      $region37: #{tpu_custom_call.1} parent=5 // pred_check
        %p313 = pneg %p312
      $region38: #{tpu_custom_call.1} parent=5 // pred_check_branch
        %315 = sbr.rel (%p313) target = $region40
      $region39: #{tpu_custom_call.1} parent=5 // pred_region
        // Predicated region
        $region41: #{tpu_custom_call.1} parent=39 // pred_check
          %p316 = pneg %p43
        $region42: #{tpu_custom_call.1} parent=39 // pred_check_branch
          %318 = sbr.rel (%p316) target = $region44
        $region43: #{tpu_custom_call.1} parent=39 // pred_region
          %p319 = scmp.lt.s32.totalorder %s23, 1
          %s320 = scalar_select %p319, %s23, 1
          %s321 = smul.addr %s320, 8
          %s322 = scalar_lea.vmem %s0, %s321
        $region44: #{tpu_custom_call.1} parent=39 // pred_fallthru
          _
        // Predicated region
        $region45: #{tpu_custom_call.1} parent=39 // pred_check
          %p323 = pneg %p69
        $region46: #{tpu_custom_call.1} parent=39 // pred_check_branch
          %325 = sbr.rel (%p323) target = $region48
        $region47: #{tpu_custom_call.1} parent=39 // pred_region
          %p326 = scmp.lt.s32.totalorder %s23, 1
          %s327 = scalar_select %p326, %s23, 1
          %s328 = smul.addr %s327, 2
          %s329 = smul.addr %s328, 8
          %s330 = scalar_lea.vmem %s1, %s329
        $region48: #{tpu_custom_call.1} parent=39 // pred_fallthru
          _
        // Predicated region
        $region49: #{tpu_custom_call.1} parent=39 // pred_check
          %p331 = pneg %p95
        $region50: #{tpu_custom_call.1} parent=39 // pred_check_branch
          %333 = sbr.rel (%p331) target = $region52
        $region51: #{tpu_custom_call.1} parent=39 // pred_region
          %p334 = scmp.lt.s32.totalorder %s23, 1
          %s335 = scalar_select %p334, %s23, 1
          %s336 = smul.addr %s335, 2
          %s337 = smul.addr %s336, 8
          %s338 = scalar_lea.vmem %s2, %s337
        $region52: #{tpu_custom_call.1} parent=39 // pred_fallthru
          _
      $region40: #{tpu_custom_call.1} parent=5 // pred_fallthru
        _
      %p339 = scmp.le.s32.totalorder 1, %s23
      %p340 = scmp.lt.s32.totalorder %s23, 3
      %p341 = pnand %p339, %p340
      %p342 = pneg %p341
      // Predicated region
      $region53: #{tpu_custom_call.1} parent=5 // pred_check
        _
      $region54: #{tpu_custom_call.1} parent=5 // pred_check_branch
        %344 = sbr.rel (%p341) target = $region56
      $region55: #{tpu_custom_call.1} parent=5 // pred_region
        %s345 = ssub.s32 %s23, 1
        %p346 = scmp.lt.s32.totalorder %s28, 1
        %s347 = scalar_select %p346, %s28, 1
        %s348 = smul.addr %s347, 8
        %s349 = scalar_lea.vmem %s0, %s348
        %p350 = pneg %p49
        %p351 = pneg %p46
        %p352 = scmp.lt.s32.totalorder %s28, 1
        %s353 = scalar_select %p352, %s28, 1
        %s354 = smul.addr %s353, 2
        %s355 = smul.addr %s354, 8
        %s356 = scalar_lea.vmem %s1, %s355
        %p357 = pneg %p75
        %p358 = pneg %p72
        %p359 = scmp.lt.s32.totalorder %s28, 1
        %s360 = scalar_select %p359, %s28, 1
        %s361 = smul.addr %s360, 2
        %s362 = smul.addr %s361, 8
        %s363 = scalar_lea.vmem %s2, %s362
        %p364 = pneg %p101
        %p365 = pneg %p98
        %p366 = pneg %p122
        %p367 = pneg %p119
        %p368 = pneg %p143
        %p369 = pneg %p140
        %p370 = pneg %p164
        %p371 = pneg %p161
        %p372 = pneg %p185
        %p373 = pneg %p182
        %p374 = pneg %p206
        %p375 = pneg %p203
        %p376 = pneg %p227
        %p377 = pneg %p224
        %p378 = pneg %p253
        %p379 = pneg %p250
        %s380 = sand.u32 %s240, 1
        %s381 = scalar_lea.sflag [#allocation6], %s380
        %s382 = sand.u32 %s240, 1
        %s383 = smul.addr %s382, 8
        %s384 = scalar_lea.vmem [#allocation5], %s383
        %p385 = pneg %p279
        %p386 = pneg %p276
        %s387 = sand.u32 %s266, 1
        %s388 = scalar_lea.sflag [#allocation8], %s387
        %s389 = sand.u32 %s266, 1
        %s390 = smul.addr %s389, 16
        %s391 = scalar_lea.vmem [#allocation7], %s390
        %p392 = scmp.lt.s32.totalorder %s28, 1
        %s393 = scalar_select %p392, %s28, 1
        %s394 = smul.addr %s393, 8
        %s395 = scalar_lea.vmem %s0, %s394
        %p396 = scmp.lt.s32.totalorder %s28, 1
        %s397 = scalar_select %p396, %s28, 1
        %s398 = smul.addr %s397, 2
        %s399 = smul.addr %s398, 8
        %s400 = scalar_lea.vmem %s1, %s399
        %p401 = scmp.lt.s32.totalorder %s28, 1
        %s402 = scalar_select %p401, %s28, 1
        %s403 = smul.addr %s402, 2
        %s404 = smul.addr %s403, 8
        %s405 = scalar_lea.vmem %s2, %s404
        %v407 = vld [vmem:[%s395] sm:$0xff]
        %v408 = vld [vmem:[%s400] sm:$0xff]
        %v409 = vld [vmem:[%s400 + $0x8] sm:$0xff]
        %v410 = vld [vmem:[%s405] sm:$0xff]
        %v411 = vld [vmem:[%s405 + $0x8] sm:$0xf]
        %v412 = vld [vmem:[%s3] sm:$0xff]
        %v413 = vld [vmem:[%s3 + $0x8] sm:$0x1f]
        %vm414 = vcmask 261120
        %v415 = vsel %vm414, %v407, 0.0
        %416 = vadd.xlane.f32.xlu0 %v415
        %v417 = vpop.xlane.xlu0 %416
        %v418 = vrcp.pop 32.0
        %v419 = vmul.f32 %v417, %v418
        %v420 = vsub.f32 %v407, %v419
        %v421 = vmul.f32 %v420, %v420
        %v422 = vsel %vm414, %v421, 0.0
        %423 = vadd.xlane.f32.xlu0 %v422
        %v424 = vpop.xlane.xlu0 %423
        %v425 = vmul.f32 %v424, %v418
        %v426 = vadd.f32 %v425, 1e-06
        %v427 = vrsqrt.pop %v426
        %v428 = vmul.f32 %v420, %v427
        %v429 = vlaneseq
        %v430 = vshrl.u32 %v429, 7
        %v431 = vsub.s32 0, %v430
        %v432 = vrot.slane %v412, %v431
        %v433 = vmul.f32 %v428, %v432
        %v434 = vlaneseq
        %v435 = vshrl.u32 %v434, 7
        %v436 = vsub.s32 1, %v435
        %v437 = vrot.slane %v412, %v436
        %v438 = vadd.f32 %v433, %v437
        %v439 = vadd.f32 %v410, 1.0
        %v440 = vlaneseq
        %v441 = vshrl.u32 %v440, 7
        %v442 = vsub.s32 1, %v441
        %v443 = vrot.slane %v439, %v442
        %v444 = vmul.f32 %v438, %v443
        %v445 = vlaneseq
        %v446 = vshrl.u32 %v445, 7
        %v447 = vsub.s32 0, %v446
        %v448 = vrot.slane %v410, %v447
        %v449 = vadd.f32 %v444, %v448
        %v450 = vpack.c.bf16 %v449, %v449
        %v451 = vld [vmem:[%s5] sm:$0xf]
        %v452 = vld [vmem:[%s5 + $0x4] sm:$0xf]
        %v453 = vld [vmem:[%s5 + $0x8] sm:$0xf]
        %v454 = vld [vmem:[%s5 + $0xc] sm:$0xf]
        %v459 = vunpack.c.l.b16 %v451
        %v460 = vunpack.c.l.b16 %v452
        %v461 = vunpack.c.l.b16 %v453
        %v462 = vunpack.c.l.b16 %v454
        %v463 = vpack.c.b16 %v460, %v459
        %v464 = vpack.c.b16 %v462, %v461
        %v468 = vsel %vm414, %v450, 0
        %470 = vmatprep.subr.bf16.mxu0 0
        %471 = vmatpush1.bf16.msra.mxu0 %v463
        %472 = vmatprep.subr.bf16.mxu0 0
        %473 = vmatpush1.bf16.msra.mxu0 %v464
        %474 = vmatprep.subr.bf16.mxu0 0
        %475 = vmatpush1.bf16.msra.mxu0 0
        %476 = vmatprep.subr.bf16.mxu0 0
        %477 = vmatpush1.bf16.msra.mxu0 0
        %478 = vmatprep.subr.bf16.mxu0 0
        %479 = vmatpush1.bf16.msra.mxu0 0
        %480 = vmatprep.subr.bf16.mxu0 0
        %481 = vmatpush1.bf16.msra.mxu0 0
        %482 = vmatprep.subr.bf16.mxu0 0
        %483 = vmatpush1.bf16.msra.mxu0 0
        %484 = vmatprep.subr.bf16.mxu0 0
        %485 = vmatpush1.bf16.msra.mxu0 0
        %486 = vmatprep.subr.bf16.mxu0 0
        %487 = vmatpush1.bf16.msra.mxu0 0
        %488 = vmatprep.subr.bf16.mxu0 0
        %489 = vmatpush1.bf16.msra.mxu0 0
        %490 = vmatprep.subr.bf16.mxu0 0
        %491 = vmatpush1.bf16.msra.mxu0 0
        %492 = vmatprep.subr.bf16.mxu0 0
        %493 = vmatpush1.bf16.msra.mxu0 0
        %494 = vmatprep.subr.bf16.mxu0 0
        %495 = vmatpush1.bf16.msra.mxu0 0
        %496 = vmatprep.subr.bf16.mxu0 0
        %497 = vmatpush1.bf16.msra.mxu0 0
        %498 = vmatprep.subr.bf16.mxu0 0
        %499 = vmatpush1.bf16.msra.mxu0 0
        %500 = vmatprep.subr.bf16.mxu0 0
        %501 = vmatpush1.bf16.msra.mxu0 0
        %502 = vmatprep.mubr.bf16.mxu0 0
        %503 = vmatmul.mubr.bf16.gmra.mrb[0].mxu0 %v468
        %v504 = vpop.f32.mrb[0].mxu0
        %v505 = vadd.f32 0.0, %v504
        %v506 = vpop.f32.mrb[0].mxu0
        %v507 = vpop.f32.mrb[0].mxu0
        %v508 = vpop.f32.mrb[0].mxu0
        %509 = vdwg.mxu0
        %v510 = vlaneseq
        %v511 = vshrl.u32 %v510, 7
        %v512 = vsub.s32 2, %v511
        %v513 = vrot.slane %v413, %v512
        %v514 = vadd.f32 %v505, %v513
        %v515 = vsel %vm414, %v514, 0.0
        %516 = vadd.xlane.f32.xlu0 %v515
        %v517 = vpop.xlane.xlu0 %516
        %v518 = vmul.f32 %v517, %v418
        %v519 = vsub.f32 %v514, %v518
        %v520 = vmul.f32 %v519, %v519
        %v521 = vsel %vm414, %v520, 0.0
        %522 = vadd.xlane.f32.xlu0 %v521
        %v523 = vpop.xlane.xlu0 %522
        %v524 = vmul.f32 %v523, %v418
        %v525 = vadd.f32 %v524, 1e-06
        %v526 = vrsqrt.pop %v525
        %v527 = vmul.f32 %v519, %v526
        %v528 = vlaneseq
        %v529 = vshrl.u32 %v528, 7
        %v530 = vsub.s32 2, %v529
        %v531 = vrot.slane %v412, %v530
        %v532 = vmul.f32 %v527, %v531
        %v533 = vlaneseq
        %v534 = vshrl.u32 %v533, 7
        %v535 = vsub.s32 3, %v534
        %v536 = vrot.slane %v412, %v535
        %v537 = vadd.f32 %v532, %v536
        %v538 = vlaneseq
        %v539 = vshrl.u32 %v538, 7
        %v540 = vsub.s32 3, %v539
        %v541 = vrot.slane %v413, %v540
        %543 = vrot.lane.b32.xlu0 %v541, 32
        %v544 = vpop.permute.xlu0 %543
        %v546 = vadd.f32 %v505, %v544
        %548 = vrot.lane.b32.xlu0 %v546, 96
        %v549 = vpop.permute.xlu0 %548
        %v551 = vsel %vm414, %v549, 0.0
        %552 = vadd.xlane.f32.xlu0 %v551
        %v553 = vpop.xlane.xlu0 %552
        %v554 = vmul.f32 %v553, %v418
        %v555 = vsub.f32 %v546, %v554
        %v556 = vmul.f32 %v555, %v555
        %558 = vrot.lane.b32.xlu0 %v556, 96
        %v559 = vpop.permute.xlu0 %558
        %v561 = vsel %vm414, %v559, 0.0
        %562 = vadd.xlane.f32.xlu0 %v561
        %v563 = vpop.xlane.xlu0 %562
        %v564 = vmul.f32 %v563, %v418
        %v565 = vadd.f32 %v564, 1e-06
        %v566 = vrsqrt.pop %v565
        %v567 = vmul.f32 %v555, %v566
        %v568 = vlaneseq
        %v569 = vshrl.u32 %v568, 7
        %v570 = vsub.s32 4, %v569
        %v571 = vrot.slane %v412, %v570
        %573 = vrot.lane.b32.xlu0 %v571, 32
        %v574 = vpop.permute.xlu0 %573
        %v576 = vmul.f32 %v567, %v574
        %v577 = vlaneseq
        %v578 = vshrl.u32 %v577, 7
        %v579 = vsub.s32 5, %v578
        %v580 = vrot.slane %v412, %v579
        %582 = vrot.lane.b32.xlu0 %v580, 32
        %v583 = vpop.permute.xlu0 %582
        %v585 = vadd.f32 %v576, %v583
        %v586 = vlaneseq
        %v587 = vshrl.u32 %v586, 7
        %v588 = vsub.s32 4, %v587
        %v589 = vrot.slane %v413, %v588
        %591 = vrot.lane.b32.xlu0 %v589, 64
        %v592 = vpop.permute.xlu0 %591
        %v594 = vadd.f32 %v505, %v592
        %v595 = vpack.c.bf16 %v537, %v537
        %vm596 = vcmask 257024
        %597 = vst.msk [vmem:[#allocation2] sm:$0xf] %vm596, %v595
        %v598 = vpack.c.bf16 %v585, %v585
        %v600 = vunpack.c.l.b16 %v598
        %v601 = vpack.c.b16 %v600, %v600
        %602 = vrot.lane.b32.xlu0 %v601, 96
        %v603 = vpop.permute.xlu0 %602
        %605 = vst.msk [vmem:[#allocation3] sm:$0xf] %vm596, %v603
        %v606 = vpack.c.bf16 %v594, %v594
        %v608 = vunpack.c.l.b16 %v606
        %v609 = vpack.c.b16 %v608, %v608
        %610 = vrot.lane.b32.xlu0 %v609, 64
        %v611 = vpop.permute.xlu0 %610
        %613 = vst.msk [vmem:[#allocation4] sm:$0xf] %vm596, %v611
        %s614 = scalar_lea.vmem %s3, 16
        %v615 = vld [vmem:[%s614] sm:$0xff]
        %v616 = vld [vmem:[%s614 + $0x8] sm:$0x1f]
        %v617 = vsel %vm414, %v408, 0.0
        %618 = vadd.xlane.f32.xlu0 %v617
        %v619 = vpop.xlane.xlu0 %618
        %v620 = vsel %vm414, %v409, 0.0
        %621 = vadd.xlane.f32.xlu0 %v620
        %v622 = vpop.xlane.xlu0 %621
        %v623 = vmul.f32 %v619, %v418
        %v624 = vmul.f32 %v622, %v418
        %v625 = vsub.f32 %v408, %v623
        %v626 = vsub.f32 %v409, %v624
        %v627 = vmul.f32 %v625, %v625
        %v628 = vmul.f32 %v626, %v626
        %v629 = vsel %vm414, %v627, 0.0
        %630 = vadd.xlane.f32.xlu0 %v629
        %v631 = vpop.xlane.xlu0 %630
        %v632 = vsel %vm414, %v628, 0.0
        %633 = vadd.xlane.f32.xlu0 %v632
        %v634 = vpop.xlane.xlu0 %633
        %v635 = vmul.f32 %v631, %v418
        %v636 = vmul.f32 %v634, %v418
        %v637 = vadd.f32 %v635, 1e-06
        %v638 = vadd.f32 %v636, 1e-06
        %v639 = vrsqrt.pop %v637
        %v640 = vrsqrt.pop %v638
        %v641 = vmul.f32 %v625, %v639
        %v642 = vmul.f32 %v626, %v640
        %v643 = vlaneseq
        %v644 = vshrl.u32 %v643, 7
        %v645 = vsub.s32 0, %v644
        %v646 = vrot.slane %v615, %v645
        %v647 = vmul.f32 %v641, %v646
        %v648 = vmul.f32 %v642, %v646
        %v649 = vlaneseq
        %v650 = vshrl.u32 %v649, 7
        %v651 = vsub.s32 1, %v650
        %v652 = vrot.slane %v615, %v651
        %v653 = vadd.f32 %v647, %v652
        %v654 = vadd.f32 %v648, %v652
        %v655 = vlaneseq
        %v656 = vshrl.u32 %v655, 7
        %v657 = vsub.s32 3, %v656
        %v658 = vrot.slane %v439, %v657
        %v659 = vmul.f32 %v653, %v658
        %v660 = vmul.f32 %v654, %v658
        %v661 = vlaneseq
        %v662 = vshrl.u32 %v661, 7
        %v663 = vsub.s32 2, %v662
        %v664 = vrot.slane %v410, %v663
        %v665 = vadd.f32 %v659, %v664
        %v666 = vadd.f32 %v660, %v664
        %v667 = vpack.c.bf16 %v666, %v665
        %s668 = scalar_lea.vmem %s5, 16
        %v669 = vld [vmem:[%s668] sm:$0xf]
        %v670 = vld [vmem:[%s668 + $0x4] sm:$0xf]
        %v671 = vld [vmem:[%s668 + $0x8] sm:$0xf]
        %v672 = vld [vmem:[%s668 + $0xc] sm:$0xf]
        %v677 = vunpack.c.l.b16 %v669
        %v678 = vunpack.c.l.b16 %v670
        %v679 = vunpack.c.l.b16 %v671
        %v680 = vunpack.c.l.b16 %v672
        %v681 = vpack.c.b16 %v678, %v677
        %v682 = vpack.c.b16 %v680, %v679
        %v686 = vsel %vm414, %v667, 0
        %688 = vmatprep.subr.bf16.mxu0 0
        %689 = vmatpush1.bf16.msra.mxu0 %v681
        %690 = vmatprep.subr.bf16.mxu0 0
        %691 = vmatpush1.bf16.msra.mxu0 %v682
        %692 = vmatprep.subr.bf16.mxu0 0
        %693 = vmatpush1.bf16.msra.mxu0 0
        %694 = vmatprep.subr.bf16.mxu0 0
        %695 = vmatpush1.bf16.msra.mxu0 0
        %696 = vmatprep.subr.bf16.mxu0 0
        %697 = vmatpush1.bf16.msra.mxu0 0
        %698 = vmatprep.subr.bf16.mxu0 0
        %699 = vmatpush1.bf16.msra.mxu0 0
        %700 = vmatprep.subr.bf16.mxu0 0
        %701 = vmatpush1.bf16.msra.mxu0 0
        %702 = vmatprep.subr.bf16.mxu0 0
        %703 = vmatpush1.bf16.msra.mxu0 0
        %704 = vmatprep.subr.bf16.mxu0 0
        %705 = vmatpush1.bf16.msra.mxu0 0
        %706 = vmatprep.subr.bf16.mxu0 0
        %707 = vmatpush1.bf16.msra.mxu0 0
        %708 = vmatprep.subr.bf16.mxu0 0
        %709 = vmatpush1.bf16.msra.mxu0 0
        %710 = vmatprep.subr.bf16.mxu0 0
        %711 = vmatpush1.bf16.msra.mxu0 0
        %712 = vmatprep.subr.bf16.mxu0 0
        %713 = vmatpush1.bf16.msra.mxu0 0
        %714 = vmatprep.subr.bf16.mxu0 0
        %715 = vmatpush1.bf16.msra.mxu0 0
        %716 = vmatprep.subr.bf16.mxu0 0
        %717 = vmatpush1.bf16.msra.mxu0 0
        %718 = vmatprep.subr.bf16.mxu0 0
        %719 = vmatpush1.bf16.msra.mxu0 0
        %720 = vmatprep.mubr.bf16.mxu0 0
        %721 = vmatmul.mubr.bf16.gmra.mrb[0].mxu0 %v686
        %v722 = vpop.f32.mrb[0].mxu0
        %v723 = vadd.f32 0.0, %v722
        %v724 = vpop.f32.mrb[0].mxu0
        %v725 = vpop.f32.mrb[0].mxu0
        %v726 = vadd.f32 0.0, %v725
        %v727 = vpop.f32.mrb[0].mxu0
        %728 = vdwg.mxu0
        %v729 = vlaneseq
        %v730 = vshrl.u32 %v729, 7
        %v731 = vsub.s32 2, %v730
        %v732 = vrot.slane %v616, %v731
        %v733 = vadd.f32 %v723, %v732
        %v734 = vadd.f32 %v726, %v732
        %v735 = vsel %vm414, %v733, 0.0
        %736 = vadd.xlane.f32.xlu0 %v735
        %v737 = vpop.xlane.xlu0 %736
        %v738 = vsel %vm414, %v734, 0.0
        %739 = vadd.xlane.f32.xlu0 %v738
        %v740 = vpop.xlane.xlu0 %739
        %v741 = vmul.f32 %v737, %v418
        %v742 = vmul.f32 %v740, %v418
        %v743 = vsub.f32 %v733, %v741
        %v744 = vsub.f32 %v734, %v742
        %v745 = vmul.f32 %v743, %v743
        %v746 = vmul.f32 %v744, %v744
        %v747 = vsel %vm414, %v745, 0.0
        %748 = vadd.xlane.f32.xlu0 %v747
        %v749 = vpop.xlane.xlu0 %748
        %v750 = vsel %vm414, %v746, 0.0
        %751 = vadd.xlane.f32.xlu0 %v750
        %v752 = vpop.xlane.xlu0 %751
        %v753 = vmul.f32 %v749, %v418
        %v754 = vmul.f32 %v752, %v418
        %v755 = vadd.f32 %v753, 1e-06
        %v756 = vadd.f32 %v754, 1e-06
        %v757 = vrsqrt.pop %v755
        %v758 = vrsqrt.pop %v756
        %v759 = vmul.f32 %v743, %v757
        %v760 = vmul.f32 %v744, %v758
        %v761 = vlaneseq
        %v762 = vshrl.u32 %v761, 7
        %v763 = vsub.s32 2, %v762
        %v764 = vrot.slane %v615, %v763
        %v765 = vmul.f32 %v759, %v764
        %v766 = vmul.f32 %v760, %v764
        %v767 = vlaneseq
        %v768 = vshrl.u32 %v767, 7
        %v769 = vsub.s32 3, %v768
        %v770 = vrot.slane %v615, %v769
        %v771 = vadd.f32 %v765, %v770
        %v772 = vadd.f32 %v766, %v770
        %v773 = vlaneseq
        %v774 = vshrl.u32 %v773, 7
        %v775 = vsub.s32 3, %v774
        %v776 = vrot.slane %v616, %v775
        %778 = vrot.lane.b32.xlu0 %v776, 32
        %v779 = vpop.permute.xlu0 %778
        %v781 = vadd.f32 %v723, %v779
        %v782 = vadd.f32 %v726, %v779
        %785 = vrot.lane.b32.xlu0 %v781, 96
        %v786 = vpop.permute.xlu0 %785
        %787 = vrot.lane.b32.xlu0 %v782, 96
        %v788 = vpop.permute.xlu0 %787
        %v791 = vsel %vm414, %v786, 0.0
        %792 = vadd.xlane.f32.xlu0 %v791
        %v793 = vpop.xlane.xlu0 %792
        %v794 = vsel %vm414, %v788, 0.0
        %795 = vadd.xlane.f32.xlu0 %v794
        %v796 = vpop.xlane.xlu0 %795
        %v797 = vmul.f32 %v793, %v418
        %v798 = vmul.f32 %v796, %v418
        %v799 = vsub.f32 %v781, %v797
        %v800 = vsub.f32 %v782, %v798
        %v801 = vmul.f32 %v799, %v799
        %v802 = vmul.f32 %v800, %v800
        %805 = vrot.lane.b32.xlu0 %v801, 96
        %v806 = vpop.permute.xlu0 %805
        %807 = vrot.lane.b32.xlu0 %v802, 96
        %v808 = vpop.permute.xlu0 %807
        %v811 = vsel %vm414, %v806, 0.0
        %812 = vadd.xlane.f32.xlu0 %v811
        %v813 = vpop.xlane.xlu0 %812
        %v814 = vsel %vm414, %v808, 0.0
        %815 = vadd.xlane.f32.xlu0 %v814
        %v816 = vpop.xlane.xlu0 %815
        %v817 = vmul.f32 %v813, %v418
        %v818 = vmul.f32 %v816, %v418
        %v819 = vadd.f32 %v817, 1e-06
        %v820 = vadd.f32 %v818, 1e-06
        %v821 = vrsqrt.pop %v819
        %v822 = vrsqrt.pop %v820
        %v823 = vmul.f32 %v799, %v821
        %v824 = vmul.f32 %v800, %v822
        %v825 = vlaneseq
        %v826 = vshrl.u32 %v825, 7
        %v827 = vsub.s32 4, %v826
        %v828 = vrot.slane %v615, %v827
        %830 = vrot.lane.b32.xlu0 %v828, 32
        %v831 = vpop.permute.xlu0 %830
        %v833 = vmul.f32 %v823, %v831
        %v834 = vmul.f32 %v824, %v831
        %v835 = vlaneseq
        %v836 = vshrl.u32 %v835, 7
        %v837 = vsub.s32 5, %v836
        %v838 = vrot.slane %v615, %v837
        %840 = vrot.lane.b32.xlu0 %v838, 32
        %v841 = vpop.permute.xlu0 %840
        %v843 = vadd.f32 %v833, %v841
        %v844 = vadd.f32 %v834, %v841
        %v845 = vlaneseq
        %v846 = vshrl.u32 %v845, 7
        %v847 = vsub.s32 4, %v846
        %v848 = vrot.slane %v616, %v847
        %850 = vrot.lane.b32.xlu0 %v848, 64
        %v851 = vpop.permute.xlu0 %850
        %v853 = vadd.f32 %v723, %v851
        %v854 = vadd.f32 %v726, %v851
        %v855 = vpack.c.bf16 %v772, %v771
        %v857 = vunpack.c.l.b16 %v855
        %v858 = vunpack.c.h.b16 %v855
        %v859 = vpack.c.b16 %v857, %v857
        %v860 = vpack.c.b16 %v858, %v858
        %863 = vst.msk [vmem:[#allocation2 + $0x4] sm:$0xf] %vm596, %v859
        %864 = vst.msk [vmem:[#allocation2 + $0x8] sm:$0xf] %vm596, %v860
        %v865 = vpack.c.bf16 %v844, %v843
        %v867 = vunpack.c.l.b16 %v865
        %v868 = vunpack.c.h.b16 %v865
        %v869 = vpack.c.b16 %v867, %v867
        %v870 = vpack.c.b16 %v868, %v868
        %871 = vrot.lane.b32.xlu0 %v869, 96
        %v872 = vpop.permute.xlu0 %871
        %873 = vrot.lane.b32.xlu0 %v870, 96
        %v874 = vpop.permute.xlu0 %873
        %877 = vst.msk [vmem:[#allocation3 + $0x4] sm:$0xf] %vm596, %v872
        %878 = vst.msk [vmem:[#allocation3 + $0x8] sm:$0xf] %vm596, %v874
        %v879 = vpack.c.bf16 %v854, %v853
        %v881 = vunpack.c.l.b16 %v879
        %v882 = vunpack.c.h.b16 %v879
        %v883 = vpack.c.b16 %v881, %v881
        %v884 = vpack.c.b16 %v882, %v882
        %885 = vrot.lane.b32.xlu0 %v883, 64
        %v886 = vpop.permute.xlu0 %885
        %887 = vrot.lane.b32.xlu0 %v884, 64
        %v888 = vpop.permute.xlu0 %887
        %891 = vst.msk [vmem:[#allocation4 + $0x4] sm:$0xf] %vm596, %v886
        %892 = vst.msk [vmem:[#allocation4 + $0x8] sm:$0xf] %vm596, %v888
        %v893 = vld [vmem:[#allocation2] sm:$0xf]
        %v894 = vld [vmem:[#allocation2 + $0x4] sm:$0xf]
        %v895 = vld [vmem:[#allocation2 + $0x8] sm:$0xf]
        %v896 = vld [vmem:[#allocation3] sm:$0xf]
        %v897 = vld [vmem:[#allocation3 + $0x4] sm:$0xf]
        %v898 = vld [vmem:[#allocation3 + $0x8] sm:$0xf]
        %v899 = vld [vmem:[#allocation4] sm:$0xf]
        %v900 = vld [vmem:[#allocation4 + $0x4] sm:$0xf]
        %v901 = vld [vmem:[#allocation4 + $0x8] sm:$0xf]
        %v905 = vunpack.c.l.b16 %v893
        %v906 = vunpack.c.l.b16 %v894
        %v907 = vunpack.c.l.b16 %v895
        %v908 = vpack.c.b16 %v906, %v905
        %v909 = vpack.c.b16 %v907, %v907
        %v913 = vunpack.c.l.b16 %v896
        %v914 = vunpack.c.l.b16 %v897
        %v915 = vunpack.c.l.b16 %v898
        %v916 = vpack.c.b16 %v914, %v913
        %v917 = vpack.c.b16 %v915, %v915
        %vm918 = vcmask 64512
        %v920 = vsel %vm918, %v908, 0
        %v923 = vsel %vm918, %v909, 0
        %v926 = vsel %vm918, %v916, 0
        %v929 = vsel %vm918, %v917, 0
        %931 = vmatprep.subr.bf16.mxu0 0
        %932 = vmatpush1.bf16.xpose.msra.mxu0 %v926
        %933 = vmatprep.subr.bf16.mxu0 0
        %934 = vmatpush1.bf16.xpose.msra.mxu0 %v929
        %935 = vmatprep.subr.bf16.mxu0 0
        %936 = vmatpush1.bf16.xpose.msra.mxu0 0
        %937 = vmatprep.subr.bf16.mxu0 0
        %938 = vmatpush1.bf16.xpose.msra.mxu0 0
        %939 = vmatprep.subr.bf16.mxu0 0
        %940 = vmatpush1.bf16.xpose.msra.mxu0 0
        %941 = vmatprep.subr.bf16.mxu0 0
        %942 = vmatpush1.bf16.xpose.msra.mxu0 0
        %943 = vmatprep.subr.bf16.mxu0 0
        %944 = vmatpush1.bf16.xpose.msra.mxu0 0
        %945 = vmatprep.subr.bf16.mxu0 0
        %946 = vmatpush1.bf16.xpose.msra.mxu0 0
        %947 = vmatprep.subr.bf16.mxu0 0
        %948 = vmatpush1.bf16.xpose.msra.mxu0 0
        %949 = vmatprep.subr.bf16.mxu0 0
        %950 = vmatpush1.bf16.xpose.msra.mxu0 0
        %951 = vmatprep.subr.bf16.mxu0 0
        %952 = vmatpush1.bf16.xpose.msra.mxu0 0
        %953 = vmatprep.subr.bf16.mxu0 0
        %954 = vmatpush1.bf16.xpose.msra.mxu0 0
        %955 = vmatprep.subr.bf16.mxu0 0
        %956 = vmatpush1.bf16.xpose.msra.mxu0 0
        %957 = vmatprep.subr.bf16.mxu0 0
        %958 = vmatpush1.bf16.xpose.msra.mxu0 0
        %959 = vmatprep.subr.bf16.mxu0 0
        %960 = vmatpush1.bf16.xpose.msra.mxu0 0
        %961 = vmatprep.subr.bf16.mxu0 0
        %962 = vmatpush1.bf16.xpose.msra.mxu0 0
        %963 = vmatprep.mubr.bf16.mxu0 0
        %964 = vmatmul.mubr.bf16.gmra.mrb[0].mxu0 %v920
        %v965 = vpop.f32.mrb[0].mxu0
        %v966 = vadd.f32 0.0, %v965
        %v967 = vpop.f32.mrb[0].mxu0
        %v968 = vpop.f32.mrb[0].mxu0
        %v969 = vadd.f32 0.0, %v968
        %v970 = vpop.f32.mrb[0].mxu0
        %971 = vmatprep.mubr.bf16.mxu0 0
        %972 = vmatmul.mubr.bf16.gmra.mrb[0].mxu0 %v923
        %v973 = vpop.f32.mrb[0].mxu0
        %v974 = vadd.f32 0.0, %v973
        %v975 = vpop.f32.mrb[0].mxu0
        %v976 = vpop.f32.mrb[0].mxu0
        %v977 = vpop.f32.mrb[0].mxu0
        %978 = vdwg.mxu0
        %vm979 = vcmask 195584
        %v980 = vsel %vm979, %v966, -inf
        %981 = vmax.xlane.f32.xlu0 %v980
        %v982 = vpop.xlane.xlu0 %981
        %v983 = vsel %vm979, %v969, -inf
        %984 = vmax.xlane.f32.xlu0 %v983
        %v985 = vpop.xlane.xlu0 %984
        %v986 = vsel %vm979, %v974, -inf
        %987 = vmax.xlane.f32.xlu0 %v986
        %v988 = vpop.xlane.xlu0 %987
        %v989 = vsub.f32 %v966, %v982
        %v990 = vsub.f32 %v969, %v985
        %v991 = vsub.f32 %v974, %v988
        %v992 = vmul.f32 %v989, 1.442695
        %v993 = vpow.pop %v992
        %v994 = vmul.f32 %v990, 1.442695
        %v995 = vpow.pop %v994
        %v996 = vmul.f32 %v991, 1.442695
        %v997 = vpow.pop %v996
        %v998 = vsel %vm979, %v993, 0.0
        %999 = vadd.xlane.f32.xlu0 %v998
        %v1000 = vpop.xlane.xlu0 %999
        %v1001 = vsel %vm979, %v995, 0.0
        %1002 = vadd.xlane.f32.xlu0 %v1001
        %v1003 = vpop.xlane.xlu0 %1002
        %v1004 = vsel %vm979, %v997, 0.0
        %1005 = vadd.xlane.f32.xlu0 %v1004
        %v1006 = vpop.xlane.xlu0 %1005
        %v1007 = vpack.c.bf16 %v995, %v993
        %v1008 = vpack.c.bf16 %v997, %v997
        %v1012 = vunpack.c.l.b16 %v899
        %v1013 = vunpack.c.l.b16 %v900
        %v1014 = vunpack.c.l.b16 %v901
        %v1015 = vpack.c.b16 %v1013, %v1012
        %v1016 = vpack.c.b16 %v1014, %v1014
        %v1019 = vsel %vm979, %v1007, 0
        %v1022 = vsel %vm979, %v1008, 0
        %vm1024 = vcmask 1043456
        %v1026 = vsel %vm1024, %v1016, 0
        %1028 = vmatprep.subr.bf16.mxu0 0
        %1029 = vmatpush1.bf16.msra.mxu0 %v1015
        %1030 = vmatprep.subr.bf16.mxu0 0
        %1031 = vmatpush1.bf16.msra.mxu0 %v1026
        %1032 = vmatprep.subr.bf16.mxu0 0
        %1033 = vmatpush1.bf16.msra.mxu0 0
        %1034 = vmatprep.subr.bf16.mxu0 0
        %1035 = vmatpush1.bf16.msra.mxu0 0
        %1036 = vmatprep.subr.bf16.mxu0 0
        %1037 = vmatpush1.bf16.msra.mxu0 0
        %1038 = vmatprep.subr.bf16.mxu0 0
        %1039 = vmatpush1.bf16.msra.mxu0 0
        %1040 = vmatprep.subr.bf16.mxu0 0
        %1041 = vmatpush1.bf16.msra.mxu0 0
        %1042 = vmatprep.subr.bf16.mxu0 0
        %1043 = vmatpush1.bf16.msra.mxu0 0
        %1044 = vmatprep.subr.bf16.mxu0 0
        %1045 = vmatpush1.bf16.msra.mxu0 0
        %1046 = vmatprep.subr.bf16.mxu0 0
        %1047 = vmatpush1.bf16.msra.mxu0 0
        %1048 = vmatprep.subr.bf16.mxu0 0
        %1049 = vmatpush1.bf16.msra.mxu0 0
        %1050 = vmatprep.subr.bf16.mxu0 0
        %1051 = vmatpush1.bf16.msra.mxu0 0
        %1052 = vmatprep.subr.bf16.mxu0 0
        %1053 = vmatpush1.bf16.msra.mxu0 0
        %1054 = vmatprep.subr.bf16.mxu0 0
        %1055 = vmatpush1.bf16.msra.mxu0 0
        %1056 = vmatprep.subr.bf16.mxu0 0
        %1057 = vmatpush1.bf16.msra.mxu0 0
        %1058 = vmatprep.subr.bf16.mxu0 0
        %1059 = vmatpush1.bf16.msra.mxu0 0
        %1060 = vmatprep.mubr.bf16.mxu0 0
        %1061 = vmatmul.mubr.bf16.gmra.mrb[0].mxu0 %v1019
        %v1062 = vpop.f32.mrb[0].mxu0
        %v1063 = vadd.f32 0.0, %v1062
        %v1064 = vpop.f32.mrb[0].mxu0
        %v1065 = vpop.f32.mrb[0].mxu0
        %v1066 = vadd.f32 0.0, %v1065
        %v1067 = vpop.f32.mrb[0].mxu0
        %1068 = vmatprep.mubr.bf16.mxu0 0
        %1069 = vmatmul.mubr.bf16.gmra.mrb[0].mxu0 %v1022
        %v1070 = vpop.f32.mrb[0].mxu0
        %v1071 = vadd.f32 0.0, %v1070
        %v1072 = vpop.f32.mrb[0].mxu0
        %v1073 = vpop.f32.mrb[0].mxu0
        %v1074 = vpop.f32.mrb[0].mxu0
        %1075 = vdwg.mxu0
        %v1076 = vrcp.pop %v1000
        %v1077 = vrcp.pop %v1003
        %v1078 = vrcp.pop %v1006
        %v1079 = vmul.f32 %v1063, %v1076
        %v1080 = vmul.f32 %v1066, %v1077
        %v1081 = vmul.f32 %v1071, %v1078
        %1082 = vrot.lane.b32.xlu0 %v908, 120
        %v1083 = vpop.permute.xlu0 %1082
        %1084 = vrot.lane.b32.xlu0 %v909, 120
        %v1085 = vpop.permute.xlu0 %1084
        %1086 = vrot.lane.b32.xlu0 %v916, 120
        %v1087 = vpop.permute.xlu0 %1086
        %1088 = vrot.lane.b32.xlu0 %v917, 120
        %v1089 = vpop.permute.xlu0 %1088
        %v1091 = vsel %vm918, %v1083, 0
        %v1094 = vsel %vm918, %v1085, 0
        %v1097 = vsel %vm918, %v1087, 0
        %v1100 = vsel %vm918, %v1089, 0
        %1102 = vmatprep.subr.bf16.mxu0 0
        %1103 = vmatpush1.bf16.xpose.msra.mxu0 %v1097
        %1104 = vmatprep.subr.bf16.mxu0 0
        %1105 = vmatpush1.bf16.xpose.msra.mxu0 %v1100
        %1106 = vmatprep.subr.bf16.mxu0 0
        %1107 = vmatpush1.bf16.xpose.msra.mxu0 0
        %1108 = vmatprep.subr.bf16.mxu0 0
        %1109 = vmatpush1.bf16.xpose.msra.mxu0 0
        %1110 = vmatprep.subr.bf16.mxu0 0
        %1111 = vmatpush1.bf16.xpose.msra.mxu0 0
        %1112 = vmatprep.subr.bf16.mxu0 0
        %1113 = vmatpush1.bf16.xpose.msra.mxu0 0
        %1114 = vmatprep.subr.bf16.mxu0 0
        %1115 = vmatpush1.bf16.xpose.msra.mxu0 0
        %1116 = vmatprep.subr.bf16.mxu0 0
        %1117 = vmatpush1.bf16.xpose.msra.mxu0 0
        %1118 = vmatprep.subr.bf16.mxu0 0
        %1119 = vmatpush1.bf16.xpose.msra.mxu0 0
        %1120 = vmatprep.subr.bf16.mxu0 0
        %1121 = vmatpush1.bf16.xpose.msra.mxu0 0
        %1122 = vmatprep.subr.bf16.mxu0 0
        %1123 = vmatpush1.bf16.xpose.msra.mxu0 0
        %1124 = vmatprep.subr.bf16.mxu0 0
        %1125 = vmatpush1.bf16.xpose.msra.mxu0 0
        %1126 = vmatprep.subr.bf16.mxu0 0
        %1127 = vmatpush1.bf16.xpose.msra.mxu0 0
        %1128 = vmatprep.subr.bf16.mxu0 0
        %1129 = vmatpush1.bf16.xpose.msra.mxu0 0
        %1130 = vmatprep.subr.bf16.mxu0 0
        %1131 = vmatpush1.bf16.xpose.msra.mxu0 0
        %1132 = vmatprep.subr.bf16.mxu0 0
        %1133 = vmatpush1.bf16.xpose.msra.mxu0 0
        %1134 = vmatprep.mubr.bf16.mxu0 0
        %1135 = vmatmul.mubr.bf16.gmra.mrb[0].mxu0 %v1091
        %v1136 = vpop.f32.mrb[0].mxu0
        %v1137 = vadd.f32 0.0, %v1136
        %v1138 = vpop.f32.mrb[0].mxu0
        %v1139 = vpop.f32.mrb[0].mxu0
        %v1140 = vadd.f32 0.0, %v1139
        %v1141 = vpop.f32.mrb[0].mxu0
        %1142 = vmatprep.mubr.bf16.mxu0 0
        %1143 = vmatmul.mubr.bf16.gmra.mrb[0].mxu0 %v1094
        %v1144 = vpop.f32.mrb[0].mxu0
        %v1145 = vadd.f32 0.0, %v1144
        %v1146 = vpop.f32.mrb[0].mxu0
        %v1147 = vpop.f32.mrb[0].mxu0
        %v1148 = vpop.f32.mrb[0].mxu0
        %1149 = vdwg.mxu0
        %v1150 = vsel %vm979, %v1137, -inf
        %1151 = vmax.xlane.f32.xlu0 %v1150
        %v1152 = vpop.xlane.xlu0 %1151
        %v1153 = vsel %vm979, %v1140, -inf
        %1154 = vmax.xlane.f32.xlu0 %v1153
        %v1155 = vpop.xlane.xlu0 %1154
        %v1156 = vsel %vm979, %v1145, -inf
        %1157 = vmax.xlane.f32.xlu0 %v1156
        %v1158 = vpop.xlane.xlu0 %1157
        %v1159 = vsub.f32 %v1137, %v1152
        %v1160 = vsub.f32 %v1140, %v1155
        %v1161 = vsub.f32 %v1145, %v1158
        %v1162 = vmul.f32 %v1159, 1.442695
        %v1163 = vpow.pop %v1162
        %v1164 = vmul.f32 %v1160, 1.442695
        %v1165 = vpow.pop %v1164
        %v1166 = vmul.f32 %v1161, 1.442695
        %v1167 = vpow.pop %v1166
        %v1168 = vsel %vm979, %v1163, 0.0
        %1169 = vadd.xlane.f32.xlu0 %v1168
        %v1170 = vpop.xlane.xlu0 %1169
        %v1171 = vsel %vm979, %v1165, 0.0
        %1172 = vadd.xlane.f32.xlu0 %v1171
        %v1173 = vpop.xlane.xlu0 %1172
        %v1174 = vsel %vm979, %v1167, 0.0
        %1175 = vadd.xlane.f32.xlu0 %v1174
        %v1176 = vpop.xlane.xlu0 %1175
        %v1177 = vpack.c.bf16 %v1165, %v1163
        %v1178 = vpack.c.bf16 %v1167, %v1167
        %1179 = vrot.lane.b32.xlu0 %v1015, 120
        %v1180 = vpop.permute.xlu0 %1179
        %1181 = vrot.lane.b32.xlu0 %v1016, 120
        %v1182 = vpop.permute.xlu0 %1181
        %v1185 = vsel %vm979, %v1177, 0
        %v1188 = vsel %vm979, %v1178, 0
        %v1191 = vsel %vm1024, %v1182, 0
        %1193 = vmatprep.subr.bf16.mxu0 0
        %1194 = vmatpush1.bf16.msra.mxu0 %v1180
        %1195 = vmatprep.subr.bf16.mxu0 0
        %1196 = vmatpush1.bf16.msra.mxu0 %v1191
        %1197 = vmatprep.subr.bf16.mxu0 0
        %1198 = vmatpush1.bf16.msra.mxu0 0
        %1199 = vmatprep.subr.bf16.mxu0 0
        %1200 = vmatpush1.bf16.msra.mxu0 0
        %1201 = vmatprep.subr.bf16.mxu0 0
        %1202 = vmatpush1.bf16.msra.mxu0 0
        %1203 = vmatprep.subr.bf16.mxu0 0
        %1204 = vmatpush1.bf16.msra.mxu0 0
        %1205 = vmatprep.subr.bf16.mxu0 0
        %1206 = vmatpush1.bf16.msra.mxu0 0
        %1207 = vmatprep.subr.bf16.mxu0 0
        %1208 = vmatpush1.bf16.msra.mxu0 0
        %1209 = vmatprep.subr.bf16.mxu0 0
        %1210 = vmatpush1.bf16.msra.mxu0 0
        %1211 = vmatprep.subr.bf16.mxu0 0
        %1212 = vmatpush1.bf16.msra.mxu0 0
        %1213 = vmatprep.subr.bf16.mxu0 0
        %1214 = vmatpush1.bf16.msra.mxu0 0
        %1215 = vmatprep.subr.bf16.mxu0 0
        %1216 = vmatpush1.bf16.msra.mxu0 0
        %1217 = vmatprep.subr.bf16.mxu0 0
        %1218 = vmatpush1.bf16.msra.mxu0 0
        %1219 = vmatprep.subr.bf16.mxu0 0
        %1220 = vmatpush1.bf16.msra.mxu0 0
        %1221 = vmatprep.subr.bf16.mxu0 0
        %1222 = vmatpush1.bf16.msra.mxu0 0
        %1223 = vmatprep.subr.bf16.mxu0 0
        %1224 = vmatpush1.bf16.msra.mxu0 0
        %1225 = vmatprep.mubr.bf16.mxu0 0
        %1226 = vmatmul.mubr.bf16.gmra.mrb[0].mxu0 %v1185
        %v1227 = vpop.f32.mrb[0].mxu0
        %v1228 = vadd.f32 0.0, %v1227
        %v1229 = vpop.f32.mrb[0].mxu0
        %v1230 = vpop.f32.mrb[0].mxu0
        %v1231 = vadd.f32 0.0, %v1230
        %v1232 = vpop.f32.mrb[0].mxu0
        %1233 = vmatprep.mubr.bf16.mxu0 0
        %1234 = vmatmul.mubr.bf16.gmra.mrb[0].mxu0 %v1188
        %v1235 = vpop.f32.mrb[0].mxu0
        %v1236 = vadd.f32 0.0, %v1235
        %v1237 = vpop.f32.mrb[0].mxu0
        %v1238 = vpop.f32.mrb[0].mxu0
        %v1239 = vpop.f32.mrb[0].mxu0
        %1240 = vdwg.mxu0
        %v1241 = vrcp.pop %v1170
        %v1242 = vrcp.pop %v1173
        %v1243 = vrcp.pop %v1176
        %v1244 = vmul.f32 %v1228, %v1241
        %v1245 = vmul.f32 %v1231, %v1242
        %v1246 = vmul.f32 %v1236, %v1243
        %1247 = vrot.lane.b32.xlu0 %v908, 112
        %v1248 = vpop.permute.xlu0 %1247
        %1249 = vrot.lane.b32.xlu0 %v909, 112
        %v1250 = vpop.permute.xlu0 %1249
        %1251 = vrot.lane.b32.xlu0 %v916, 112
        %v1252 = vpop.permute.xlu0 %1251
        %1253 = vrot.lane.b32.xlu0 %v917, 112
        %v1254 = vpop.permute.xlu0 %1253
        %v1256 = vsel %vm918, %v1248, 0
        %v1259 = vsel %vm918, %v1250, 0
        %v1262 = vsel %vm918, %v1252, 0
        %v1265 = vsel %vm918, %v1254, 0
        %1267 = vmatprep.subr.bf16.mxu0 0
        %1268 = vmatpush1.bf16.xpose.msra.mxu0 %v1262
        %1269 = vmatprep.subr.bf16.mxu0 0
        %1270 = vmatpush1.bf16.xpose.msra.mxu0 %v1265
        %1271 = vmatprep.subr.bf16.mxu0 0
        %1272 = vmatpush1.bf16.xpose.msra.mxu0 0
        %1273 = vmatprep.subr.bf16.mxu0 0
        %1274 = vmatpush1.bf16.xpose.msra.mxu0 0
        %1275 = vmatprep.subr.bf16.mxu0 0
        %1276 = vmatpush1.bf16.xpose.msra.mxu0 0
        %1277 = vmatprep.subr.bf16.mxu0 0
        %1278 = vmatpush1.bf16.xpose.msra.mxu0 0
        %1279 = vmatprep.subr.bf16.mxu0 0
        %1280 = vmatpush1.bf16.xpose.msra.mxu0 0
        %1281 = vmatprep.subr.bf16.mxu0 0
        %1282 = vmatpush1.bf16.xpose.msra.mxu0 0
        %1283 = vmatprep.subr.bf16.mxu0 0
        %1284 = vmatpush1.bf16.xpose.msra.mxu0 0
        %1285 = vmatprep.subr.bf16.mxu0 0
        %1286 = vmatpush1.bf16.xpose.msra.mxu0 0
        %1287 = vmatprep.subr.bf16.mxu0 0
        %1288 = vmatpush1.bf16.xpose.msra.mxu0 0
        %1289 = vmatprep.subr.bf16.mxu0 0
        %1290 = vmatpush1.bf16.xpose.msra.mxu0 0
        %1291 = vmatprep.subr.bf16.mxu0 0
        %1292 = vmatpush1.bf16.xpose.msra.mxu0 0
        %1293 = vmatprep.subr.bf16.mxu0 0
        %1294 = vmatpush1.bf16.xpose.msra.mxu0 0
        %1295 = vmatprep.subr.bf16.mxu0 0
        %1296 = vmatpush1.bf16.xpose.msra.mxu0 0
        %1297 = vmatprep.subr.bf16.mxu0 0
        %1298 = vmatpush1.bf16.xpose.msra.mxu0 0
        %1299 = vmatprep.mubr.bf16.mxu0 0
        %1300 = vmatmul.mubr.bf16.gmra.mrb[0].mxu0 %v1256
        %v1301 = vpop.f32.mrb[0].mxu0
        %v1302 = vadd.f32 0.0, %v1301
        %v1303 = vpop.f32.mrb[0].mxu0
        %v1304 = vpop.f32.mrb[0].mxu0
        %v1305 = vadd.f32 0.0, %v1304
        %v1306 = vpop.f32.mrb[0].mxu0
        %1307 = vmatprep.mubr.bf16.mxu0 0
        %1308 = vmatmul.mubr.bf16.gmra.mrb[0].mxu0 %v1259
        %v1309 = vpop.f32.mrb[0].mxu0
        %v1310 = vadd.f32 0.0, %v1309
        %v1311 = vpop.f32.mrb[0].mxu0
        %v1312 = vpop.f32.mrb[0].mxu0
        %v1313 = vpop.f32.mrb[0].mxu0
        %1314 = vdwg.mxu0
        %v1315 = vsel %vm979, %v1302, -inf
        %1316 = vmax.xlane.f32.xlu0 %v1315
        %v1317 = vpop.xlane.xlu0 %1316
        %v1318 = vsel %vm979, %v1305, -inf
        %1319 = vmax.xlane.f32.xlu0 %v1318
        %v1320 = vpop.xlane.xlu0 %1319
        %v1321 = vsel %vm979, %v1310, -inf
        %1322 = vmax.xlane.f32.xlu0 %v1321
        %v1323 = vpop.xlane.xlu0 %1322
        %v1324 = vsub.f32 %v1302, %v1317
        %v1325 = vsub.f32 %v1305, %v1320
        %v1326 = vsub.f32 %v1310, %v1323
        %v1327 = vmul.f32 %v1324, 1.442695
        %v1328 = vpow.pop %v1327
        %v1329 = vmul.f32 %v1325, 1.442695
        %v1330 = vpow.pop %v1329
        %v1331 = vmul.f32 %v1326, 1.442695
        %v1332 = vpow.pop %v1331
        %v1333 = vsel %vm979, %v1328, 0.0
        %1334 = vadd.xlane.f32.xlu0 %v1333
        %v1335 = vpop.xlane.xlu0 %1334
        %v1336 = vsel %vm979, %v1330, 0.0
        %1337 = vadd.xlane.f32.xlu0 %v1336
        %v1338 = vpop.xlane.xlu0 %1337
        %v1339 = vsel %vm979, %v1332, 0.0
        %1340 = vadd.xlane.f32.xlu0 %v1339
        %v1341 = vpop.xlane.xlu0 %1340
        %v1342 = vpack.c.bf16 %v1330, %v1328
        %v1343 = vpack.c.bf16 %v1332, %v1332
        %1344 = vrot.lane.b32.xlu0 %v1015, 112
        %v1345 = vpop.permute.xlu0 %1344
        %1346 = vrot.lane.b32.xlu0 %v1016, 112
        %v1347 = vpop.permute.xlu0 %1346
        %v1350 = vsel %vm979, %v1342, 0
        %v1353 = vsel %vm979, %v1343, 0
        %v1356 = vsel %vm1024, %v1347, 0
        %1358 = vmatprep.subr.bf16.mxu0 0
        %1359 = vmatpush1.bf16.msra.mxu0 %v1345
        %1360 = vmatprep.subr.bf16.mxu0 0
        %1361 = vmatpush1.bf16.msra.mxu0 %v1356
        %1362 = vmatprep.subr.bf16.mxu0 0
        %1363 = vmatpush1.bf16.msra.mxu0 0
        %1364 = vmatprep.subr.bf16.mxu0 0
        %1365 = vmatpush1.bf16.msra.mxu0 0
        %1366 = vmatprep.subr.bf16.mxu0 0
        %1367 = vmatpush1.bf16.msra.mxu0 0
        %1368 = vmatprep.subr.bf16.mxu0 0
        %1369 = vmatpush1.bf16.msra.mxu0 0
        %1370 = vmatprep.subr.bf16.mxu0 0
        %1371 = vmatpush1.bf16.msra.mxu0 0
        %1372 = vmatprep.subr.bf16.mxu0 0
        %1373 = vmatpush1.bf16.msra.mxu0 0
        %1374 = vmatprep.subr.bf16.mxu0 0
        %1375 = vmatpush1.bf16.msra.mxu0 0
        %1376 = vmatprep.subr.bf16.mxu0 0
        %1377 = vmatpush1.bf16.msra.mxu0 0
        %1378 = vmatprep.subr.bf16.mxu0 0
        %1379 = vmatpush1.bf16.msra.mxu0 0
        %1380 = vmatprep.subr.bf16.mxu0 0
        %1381 = vmatpush1.bf16.msra.mxu0 0
        %1382 = vmatprep.subr.bf16.mxu0 0
        %1383 = vmatpush1.bf16.msra.mxu0 0
        %1384 = vmatprep.subr.bf16.mxu0 0
        %1385 = vmatpush1.bf16.msra.mxu0 0
        %1386 = vmatprep.subr.bf16.mxu0 0
        %1387 = vmatpush1.bf16.msra.mxu0 0
        %1388 = vmatprep.subr.bf16.mxu0 0
        %1389 = vmatpush1.bf16.msra.mxu0 0
        %1390 = vmatprep.mubr.bf16.mxu0 0
        %1391 = vmatmul.mubr.bf16.gmra.mrb[0].mxu0 %v1350
        %v1392 = vpop.f32.mrb[0].mxu0
        %v1393 = vadd.f32 0.0, %v1392
        %v1394 = vpop.f32.mrb[0].mxu0
        %v1395 = vpop.f32.mrb[0].mxu0
        %v1396 = vadd.f32 0.0, %v1395
        %v1397 = vpop.f32.mrb[0].mxu0
        %1398 = vmatprep.mubr.bf16.mxu0 0
        %1399 = vmatmul.mubr.bf16.gmra.mrb[0].mxu0 %v1353
        %v1400 = vpop.f32.mrb[0].mxu0
        %v1401 = vadd.f32 0.0, %v1400
        %v1402 = vpop.f32.mrb[0].mxu0
        %v1403 = vpop.f32.mrb[0].mxu0
        %v1404 = vpop.f32.mrb[0].mxu0
        %1405 = vdwg.mxu0
        %v1406 = vrcp.pop %v1335
        %v1407 = vrcp.pop %v1338
        %v1408 = vrcp.pop %v1341
        %v1409 = vmul.f32 %v1393, %v1406
        %v1410 = vmul.f32 %v1396, %v1407
        %v1411 = vmul.f32 %v1401, %v1408
        %1412 = vrot.lane.b32.xlu0 %v908, 104
        %v1413 = vpop.permute.xlu0 %1412
        %1414 = vrot.lane.b32.xlu0 %v909, 104
        %v1415 = vpop.permute.xlu0 %1414
        %1416 = vrot.lane.b32.xlu0 %v916, 104
        %v1417 = vpop.permute.xlu0 %1416
        %1418 = vrot.lane.b32.xlu0 %v917, 104
        %v1419 = vpop.permute.xlu0 %1418
        %v1421 = vsel %vm918, %v1413, 0
        %v1424 = vsel %vm918, %v1415, 0
        %v1427 = vsel %vm918, %v1417, 0
        %v1430 = vsel %vm918, %v1419, 0
        %1432 = vmatprep.subr.bf16.mxu0 0
        %1433 = vmatpush1.bf16.xpose.msra.mxu0 %v1427
        %1434 = vmatprep.subr.bf16.mxu0 0
        %1435 = vmatpush1.bf16.xpose.msra.mxu0 %v1430
        %1436 = vmatprep.subr.bf16.mxu0 0
        %1437 = vmatpush1.bf16.xpose.msra.mxu0 0
        %1438 = vmatprep.subr.bf16.mxu0 0
        %1439 = vmatpush1.bf16.xpose.msra.mxu0 0
        %1440 = vmatprep.subr.bf16.mxu0 0
        %1441 = vmatpush1.bf16.xpose.msra.mxu0 0
        %1442 = vmatprep.subr.bf16.mxu0 0
        %1443 = vmatpush1.bf16.xpose.msra.mxu0 0
        %1444 = vmatprep.subr.bf16.mxu0 0
        %1445 = vmatpush1.bf16.xpose.msra.mxu0 0
        %1446 = vmatprep.subr.bf16.mxu0 0
        %1447 = vmatpush1.bf16.xpose.msra.mxu0 0
        %1448 = vmatprep.subr.bf16.mxu0 0
        %1449 = vmatpush1.bf16.xpose.msra.mxu0 0
        %1450 = vmatprep.subr.bf16.mxu0 0
        %1451 = vmatpush1.bf16.xpose.msra.mxu0 0
        %1452 = vmatprep.subr.bf16.mxu0 0
        %1453 = vmatpush1.bf16.xpose.msra.mxu0 0
        %1454 = vmatprep.subr.bf16.mxu0 0
        %1455 = vmatpush1.bf16.xpose.msra.mxu0 0
        %1456 = vmatprep.subr.bf16.mxu0 0
        %1457 = vmatpush1.bf16.xpose.msra.mxu0 0
        %1458 = vmatprep.subr.bf16.mxu0 0
        %1459 = vmatpush1.bf16.xpose.msra.mxu0 0
        %1460 = vmatprep.subr.bf16.mxu0 0
        %1461 = vmatpush1.bf16.xpose.msra.mxu0 0
        %1462 = vmatprep.subr.bf16.mxu0 0
        %1463 = vmatpush1.bf16.xpose.msra.mxu0 0
        %1464 = vmatprep.mubr.bf16.mxu0 0
        %1465 = vmatmul.mubr.bf16.gmra.mrb[0].mxu0 %v1421
        %v1466 = vpop.f32.mrb[0].mxu0
        %v1467 = vadd.f32 0.0, %v1466
        %v1468 = vpop.f32.mrb[0].mxu0
        %v1469 = vpop.f32.mrb[0].mxu0
        %v1470 = vadd.f32 0.0, %v1469
        %v1471 = vpop.f32.mrb[0].mxu0
        %1472 = vmatprep.mubr.bf16.mxu0 0
        %1473 = vmatmul.mubr.bf16.gmra.mrb[0].mxu0 %v1424
        %v1474 = vpop.f32.mrb[0].mxu0
        %v1475 = vadd.f32 0.0, %v1474
        %v1476 = vpop.f32.mrb[0].mxu0
        %v1477 = vpop.f32.mrb[0].mxu0
        %v1478 = vpop.f32.mrb[0].mxu0
        %1479 = vdwg.mxu0
        %v1480 = vsel %vm979, %v1467, -inf
        %1481 = vmax.xlane.f32.xlu0 %v1480
        %v1482 = vpop.xlane.xlu0 %1481
        %v1483 = vsel %vm979, %v1470, -inf
        %1484 = vmax.xlane.f32.xlu0 %v1483
        %v1485 = vpop.xlane.xlu0 %1484
        %v1486 = vsel %vm979, %v1475, -inf
        %1487 = vmax.xlane.f32.xlu0 %v1486
        %v1488 = vpop.xlane.xlu0 %1487
        %v1489 = vsub.f32 %v1467, %v1482
        %v1490 = vsub.f32 %v1470, %v1485
        %v1491 = vsub.f32 %v1475, %v1488
        %v1492 = vmul.f32 %v1489, 1.442695
        %v1493 = vpow.pop %v1492
        %v1494 = vmul.f32 %v1490, 1.442695
        %v1495 = vpow.pop %v1494
        %v1496 = vmul.f32 %v1491, 1.442695
        %v1497 = vpow.pop %v1496
        %v1498 = vsel %vm979, %v1493, 0.0
        %1499 = vadd.xlane.f32.xlu0 %v1498
        %v1500 = vpop.xlane.xlu0 %1499
        %v1501 = vsel %vm979, %v1495, 0.0
        %1502 = vadd.xlane.f32.xlu0 %v1501
        %v1503 = vpop.xlane.xlu0 %1502
        %v1504 = vsel %vm979, %v1497, 0.0
        %1505 = vadd.xlane.f32.xlu0 %v1504
        %v1506 = vpop.xlane.xlu0 %1505
        %v1507 = vpack.c.bf16 %v1495, %v1493
        %v1508 = vpack.c.bf16 %v1497, %v1497
        %1509 = vrot.lane.b32.xlu0 %v1015, 104
        %v1510 = vpop.permute.xlu0 %1509
        %1511 = vrot.lane.b32.xlu0 %v1016, 104
        %v1512 = vpop.permute.xlu0 %1511
        %v1515 = vsel %vm979, %v1507, 0
        %v1518 = vsel %vm979, %v1508, 0
        %v1521 = vsel %vm1024, %v1512, 0
        %1523 = vmatprep.subr.bf16.mxu0 0
        %1524 = vmatpush1.bf16.msra.mxu0 %v1510
        %1525 = vmatprep.subr.bf16.mxu0 0
        %1526 = vmatpush1.bf16.msra.mxu0 %v1521
        %1527 = vmatprep.subr.bf16.mxu0 0
        %1528 = vmatpush1.bf16.msra.mxu0 0
        %1529 = vmatprep.subr.bf16.mxu0 0
        %1530 = vmatpush1.bf16.msra.mxu0 0
        %1531 = vmatprep.subr.bf16.mxu0 0
        %1532 = vmatpush1.bf16.msra.mxu0 0
        %1533 = vmatprep.subr.bf16.mxu0 0
        %1534 = vmatpush1.bf16.msra.mxu0 0
        %1535 = vmatprep.subr.bf16.mxu0 0
        %1536 = vmatpush1.bf16.msra.mxu0 0
        %1537 = vmatprep.subr.bf16.mxu0 0
        %1538 = vmatpush1.bf16.msra.mxu0 0
        %1539 = vmatprep.subr.bf16.mxu0 0
        %1540 = vmatpush1.bf16.msra.mxu0 0
        %1541 = vmatprep.subr.bf16.mxu0 0
        %1542 = vmatpush1.bf16.msra.mxu0 0
        %1543 = vmatprep.subr.bf16.mxu0 0
        %1544 = vmatpush1.bf16.msra.mxu0 0
        %1545 = vmatprep.subr.bf16.mxu0 0
        %1546 = vmatpush1.bf16.msra.mxu0 0
        %1547 = vmatprep.subr.bf16.mxu0 0
        %1548 = vmatpush1.bf16.msra.mxu0 0
        %1549 = vmatprep.subr.bf16.mxu0 0
        %1550 = vmatpush1.bf16.msra.mxu0 0
        %1551 = vmatprep.subr.bf16.mxu0 0
        %1552 = vmatpush1.bf16.msra.mxu0 0
        %1553 = vmatprep.subr.bf16.mxu0 0
        %1554 = vmatpush1.bf16.msra.mxu0 0
        %1555 = vmatprep.mubr.bf16.mxu0 0
        %1556 = vmatmul.mubr.bf16.gmra.mrb[0].mxu0 %v1515
        %v1557 = vpop.f32.mrb[0].mxu0
        %v1558 = vadd.f32 0.0, %v1557
        %v1559 = vpop.f32.mrb[0].mxu0
        %v1560 = vpop.f32.mrb[0].mxu0
        %v1561 = vadd.f32 0.0, %v1560
        %v1562 = vpop.f32.mrb[0].mxu0
        %1563 = vmatprep.mubr.bf16.mxu0 0
        %1564 = vmatmul.mubr.bf16.gmra.mrb[0].mxu0 %v1518
        %v1565 = vpop.f32.mrb[0].mxu0
        %v1566 = vadd.f32 0.0, %v1565
        %v1567 = vpop.f32.mrb[0].mxu0
        %v1568 = vpop.f32.mrb[0].mxu0
        %v1569 = vpop.f32.mrb[0].mxu0
        %1570 = vdwg.mxu0
        %v1571 = vrcp.pop %v1500
        %v1572 = vrcp.pop %v1503
        %v1573 = vrcp.pop %v1506
        %v1574 = vmul.f32 %v1558, %v1571
        %v1575 = vmul.f32 %v1561, %v1572
        %v1576 = vmul.f32 %v1566, %v1573
        %1580 = vrot.lane.b32.xlu0 %v1244, 8
        %v1581 = vpop.permute.xlu0 %1580
        %1582 = vrot.lane.b32.xlu0 %v1245, 8
        %v1583 = vpop.permute.xlu0 %1582
        %1584 = vrot.lane.b32.xlu0 %v1246, 8
        %v1585 = vpop.permute.xlu0 %1584
        %1592 = vrot.lane.b32.xlu0 %v1409, 16
        %v1593 = vpop.permute.xlu0 %1592
        %1594 = vrot.lane.b32.xlu0 %v1410, 16
        %v1595 = vpop.permute.xlu0 %1594
        %1596 = vrot.lane.b32.xlu0 %v1411, 16
        %v1597 = vpop.permute.xlu0 %1596
        %1604 = vrot.lane.b32.xlu0 %v1574, 24
        %v1605 = vpop.permute.xlu0 %1604
        %1606 = vrot.lane.b32.xlu0 %v1575, 24
        %v1607 = vpop.permute.xlu0 %1606
        %1608 = vrot.lane.b32.xlu0 %v1576, 24
        %v1609 = vpop.permute.xlu0 %1608
        %v1613 = vsel %vm918, %v1079, %v1581
        %v1614 = vsel %vm918, %v1080, %v1583
        %v1615 = vsel %vm918, %v1081, %v1585
        %vm1616 = vcmask 130048
        %v1617 = vsel %vm1616, %v1613, %v1593
        %v1618 = vsel %vm1616, %v1614, %v1595
        %v1619 = vsel %vm1616, %v1615, %v1597
        %v1620 = vsel %vm979, %v1617, %v1605
        %v1621 = vsel %vm979, %v1618, %v1607
        %v1622 = vsel %vm979, %v1619, %v1609
        %v1623 = vld [vmem:[%s3] sm:$0xff]
        %v1624 = vld [vmem:[%s3 + $0x8] sm:$0x1f]
        %v1625 = vpack.c.bf16 %v1620, %v1620
        %v1626 = vld [vmem:[%s6] sm:$0xf]
        %v1627 = vld [vmem:[%s6 + $0x4] sm:$0xf]
        %v1628 = vld [vmem:[%s6 + $0x8] sm:$0xf]
        %v1629 = vld [vmem:[%s6 + $0xc] sm:$0xf]
        %v1630 = vlaneseq
        %v1631 = vshrl.u32 %v1630, 7
        %v1632 = vsub.s32 6, %v1631
        %v1633 = vrot.slane %v1623, %v1632
        %v1638 = vunpack.c.l.b16 %v1626
        %v1639 = vunpack.c.l.b16 %v1627
        %v1640 = vunpack.c.l.b16 %v1628
        %v1641 = vunpack.c.l.b16 %v1629
        %v1642 = vpack.c.b16 %v1639, %v1638
        %v1643 = vpack.c.b16 %v1641, %v1640
        %v1647 = vsel %vm414, %v1625, 0
        %1649 = vmatprep.subr.bf16.mxu0 0
        %1650 = vmatpush1.bf16.msra.mxu0 %v1642
        %1651 = vmatprep.subr.bf16.mxu0 0
        %1652 = vmatpush1.bf16.msra.mxu0 %v1643
        %1653 = vmatprep.subr.bf16.mxu0 0
        %1654 = vmatpush1.bf16.msra.mxu0 0
        %1655 = vmatprep.subr.bf16.mxu0 0
        %1656 = vmatpush1.bf16.msra.mxu0 0
        %1657 = vmatprep.subr.bf16.mxu0 0
        %1658 = vmatpush1.bf16.msra.mxu0 0
        %1659 = vmatprep.subr.bf16.mxu0 0
        %1660 = vmatpush1.bf16.msra.mxu0 0
        %1661 = vmatprep.subr.bf16.mxu0 0
        %1662 = vmatpush1.bf16.msra.mxu0 0
        %1663 = vmatprep.subr.bf16.mxu0 0
        %1664 = vmatpush1.bf16.msra.mxu0 0
        %1665 = vmatprep.subr.bf16.mxu0 0
        %1666 = vmatpush1.bf16.msra.mxu0 0
        %1667 = vmatprep.subr.bf16.mxu0 0
        %1668 = vmatpush1.bf16.msra.mxu0 0
        %1669 = vmatprep.subr.bf16.mxu0 0
        %1670 = vmatpush1.bf16.msra.mxu0 0
        %1671 = vmatprep.subr.bf16.mxu0 0
        %1672 = vmatpush1.bf16.msra.mxu0 0
        %1673 = vmatprep.subr.bf16.mxu0 0
        %1674 = vmatpush1.bf16.msra.mxu0 0
        %1675 = vmatprep.subr.bf16.mxu0 0
        %1676 = vmatpush1.bf16.msra.mxu0 0
        %1677 = vmatprep.subr.bf16.mxu0 0
        %1678 = vmatpush1.bf16.msra.mxu0 0
        %1679 = vmatprep.subr.bf16.mxu0 0
        %1680 = vmatpush1.bf16.msra.mxu0 0
        %1681 = vmatprep.mubr.bf16.mxu0 0
        %1682 = vmatmul.mubr.bf16.gmra.mrb[0].mxu0 %v1647
        %v1683 = vpop.f32.mrb[0].mxu0
        %v1684 = vadd.f32 %v1633, %v1683
        %v1685 = vpop.f32.mrb[0].mxu0
        %v1686 = vpop.f32.mrb[0].mxu0
        %v1687 = vpop.f32.mrb[0].mxu0
        %1688 = vdwg.mxu0
        %v1689 = vlaneseq
        %v1690 = vshrl.u32 %v1689, 7
        %v1691 = vsub.s32 4, %v1690
        %v1692 = vrot.slane %v410, %v1691
        %v1693 = vmul.f32 %v1684, %v1692
        %v1694 = vadd.f32 %v407, %v1693
        %v1695 = vsel %vm414, %v1694, 0.0
        %1696 = vadd.xlane.f32.xlu0 %v1695
        %v1697 = vpop.xlane.xlu0 %1696
        %v1698 = vmul.f32 %v1697, %v418
        %v1699 = vsub.f32 %v1694, %v1698
        %v1700 = vmul.f32 %v1699, %v1699
        %v1701 = vsel %vm414, %v1700, 0.0
        %1702 = vadd.xlane.f32.xlu0 %v1701
        %v1703 = vpop.xlane.xlu0 %1702
        %v1704 = vmul.f32 %v1703, %v418
        %v1705 = vadd.f32 %v1704, 1e-06
        %v1706 = vrsqrt.pop %v1705
        %v1707 = vmul.f32 %v1699, %v1706
        %v1708 = vlaneseq
        %v1709 = vshrl.u32 %v1708, 7
        %v1710 = vsub.s32 7, %v1709
        %v1711 = vrot.slane %v1623, %v1710
        %v1712 = vmul.f32 %v1707, %v1711
        %v1713 = vlaneseq
        %v1714 = vshrl.u32 %v1713, 7
        %v1715 = vsub.s32 0, %v1714
        %v1716 = vrot.slane %v1624, %v1715
        %v1717 = vadd.f32 %v1712, %v1716
        %v1718 = vlaneseq
        %v1719 = vshrl.u32 %v1718, 7
        %v1720 = vsub.s32 6, %v1719
        %v1721 = vrot.slane %v439, %v1720
        %v1722 = vmul.f32 %v1717, %v1721
        %v1723 = vlaneseq
        %v1724 = vshrl.u32 %v1723, 7
        %v1725 = vsub.s32 5, %v1724
        %v1726 = vrot.slane %v410, %v1725
        %v1727 = vadd.f32 %v1722, %v1726
        %v1728 = vpack.c.bf16 %v1727, %v1727
        %v1729 = vld [vmem:[%s7] sm:$0xf]
        %v1730 = vld [vmem:[%s7 + $0x4] sm:$0xf]
        %v1731 = vld [vmem:[%s7 + $0x8] sm:$0xf]
        %v1732 = vld [vmem:[%s7 + $0xc] sm:$0xf]
        %v1733 = vld [vmem:[%s4] sm:$0x1]
        %v1735 = vlaneseq
        %v1736 = vshrl.u32 %v1735, 7
        %v1737 = vsub.s32 0, %v1736
        %v1738 = vrot.slane %v1733, %v1737
        %v1744 = vunpack.c.l.b16 %v1729
        %v1745 = vunpack.c.l.b16 %v1730
        %v1746 = vunpack.c.l.b16 %v1731
        %v1747 = vunpack.c.l.b16 %v1732
        %v1748 = vpack.c.b16 %v1745, %v1744
        %v1749 = vpack.c.b16 %v1747, %v1746
        %v1753 = vsel %vm414, %v1728, 0
        %1755 = vmatprep.subr.bf16.mxu0 0
        %1756 = vmatpush1.bf16.msra.mxu0 %v1748
        %1757 = vmatprep.subr.bf16.mxu0 0
        %1758 = vmatpush1.bf16.msra.mxu0 %v1749
        %1759 = vmatprep.subr.bf16.mxu0 0
        %1760 = vmatpush1.bf16.msra.mxu0 0
        %1761 = vmatprep.subr.bf16.mxu0 0
        %1762 = vmatpush1.bf16.msra.mxu0 0
        %1763 = vmatprep.subr.bf16.mxu0 0
        %1764 = vmatpush1.bf16.msra.mxu0 0
        %1765 = vmatprep.subr.bf16.mxu0 0
        %1766 = vmatpush1.bf16.msra.mxu0 0
        %1767 = vmatprep.subr.bf16.mxu0 0
        %1768 = vmatpush1.bf16.msra.mxu0 0
        %1769 = vmatprep.subr.bf16.mxu0 0
        %1770 = vmatpush1.bf16.msra.mxu0 0
        %1771 = vmatprep.subr.bf16.mxu0 0
        %1772 = vmatpush1.bf16.msra.mxu0 0
        %1773 = vmatprep.subr.bf16.mxu0 0
        %1774 = vmatpush1.bf16.msra.mxu0 0
        %1775 = vmatprep.subr.bf16.mxu0 0
        %1776 = vmatpush1.bf16.msra.mxu0 0
        %1777 = vmatprep.subr.bf16.mxu0 0
        %1778 = vmatpush1.bf16.msra.mxu0 0
        %1779 = vmatprep.subr.bf16.mxu0 0
        %1780 = vmatpush1.bf16.msra.mxu0 0
        %1781 = vmatprep.subr.bf16.mxu0 0
        %1782 = vmatpush1.bf16.msra.mxu0 0
        %1783 = vmatprep.subr.bf16.mxu0 0
        %1784 = vmatpush1.bf16.msra.mxu0 0
        %1785 = vmatprep.subr.bf16.mxu0 0
        %1786 = vmatpush1.bf16.msra.mxu0 0
        %1787 = vmatprep.mubr.bf16.mxu0 0
        %1788 = vmatmul.mubr.bf16.gmra.mrb[0].mxu0 %v1753
        %v1789 = vpop.f32.mrb[0].mxu0
        %v1790 = vadd.f32 %v1738, %v1789
        %v1791 = vpop.f32.mrb[0].mxu0
        %v1792 = vpop.f32.mrb[0].mxu0
        %v1793 = vpop.f32.mrb[0].mxu0
        %1794 = vdwg.mxu0
        %v1795 = vmul.f32 %v1790, 0.5
        %v1796 = vmul.f32 %v1790, 0.044715
        %v1797 = vmul.f32 %v1796, %v1790
        %v1798 = vmul.f32 %v1797, %v1790
        %v1799 = vadd.f32 %v1790, %v1798
        %v1800 = vmul.f32 %v1799, 0.7978846
        %v1801 = vtanh.pop %v1800
        %v1802 = vadd.f32 %v1801, 1.0
        %v1803 = vmul.f32 %v1795, %v1802
        %v1804 = vpack.c.bf16 %v1803, %v1803
        %v1805 = vld [vmem:[%s8] sm:$0xf]
        %v1806 = vld [vmem:[%s8 + $0x4] sm:$0xf]
        %v1807 = vld [vmem:[%s8 + $0x8] sm:$0xf]
        %v1808 = vld [vmem:[%s8 + $0xc] sm:$0xf]
        %v1809 = vld [vmem:[%s8 + $0x10] sm:$0xf]
        %v1810 = vld [vmem:[%s8 + $0x14] sm:$0xf]
        %v1811 = vld [vmem:[%s8 + $0x18] sm:$0xf]
        %v1812 = vld [vmem:[%s8 + $0x1c] sm:$0xf]
        %v1813 = vld [vmem:[%s8 + $0x20] sm:$0xf]
        %v1814 = vld [vmem:[%s8 + $0x24] sm:$0xf]
        %v1815 = vld [vmem:[%s8 + $0x28] sm:$0xf]
        %v1816 = vld [vmem:[%s8 + $0x2c] sm:$0xf]
        %v1817 = vld [vmem:[%s8 + $0x30] sm:$0xf]
        %v1818 = vld [vmem:[%s8 + $0x34] sm:$0xf]
        %v1819 = vld [vmem:[%s8 + $0x38] sm:$0xf]
        %v1820 = vld [vmem:[%s8 + $0x3c] sm:$0xf]
        %v1821 = vlaneseq
        %v1822 = vshrl.u32 %v1821, 7
        %v1823 = vsub.s32 1, %v1822
        %v1824 = vrot.slane %v1624, %v1823
        %v1841 = vunpack.c.l.b16 %v1805
        %v1842 = vunpack.c.l.b16 %v1806
        %v1843 = vunpack.c.l.b16 %v1807
        %v1844 = vunpack.c.l.b16 %v1808
        %v1845 = vunpack.c.l.b16 %v1809
        %v1846 = vunpack.c.l.b16 %v1810
        %v1847 = vunpack.c.l.b16 %v1811
        %v1848 = vunpack.c.l.b16 %v1812
        %v1849 = vunpack.c.l.b16 %v1813
        %v1850 = vunpack.c.l.b16 %v1814
        %v1851 = vunpack.c.l.b16 %v1815
        %v1852 = vunpack.c.l.b16 %v1816
        %v1853 = vunpack.c.l.b16 %v1817
        %v1854 = vunpack.c.l.b16 %v1818
        %v1855 = vunpack.c.l.b16 %v1819
        %v1856 = vunpack.c.l.b16 %v1820
        %v1857 = vpack.c.b16 %v1842, %v1841
        %v1858 = vpack.c.b16 %v1844, %v1843
        %v1859 = vpack.c.b16 %v1846, %v1845
        %v1860 = vpack.c.b16 %v1848, %v1847
        %v1861 = vpack.c.b16 %v1850, %v1849
        %v1862 = vpack.c.b16 %v1852, %v1851
        %v1863 = vpack.c.b16 %v1854, %v1853
        %v1864 = vpack.c.b16 %v1856, %v1855
        %1873 = vmatprep.subr.bf16.mxu0 0
        %1874 = vmatpush1.bf16.msra.mxu0 %v1857
        %1875 = vmatprep.subr.bf16.mxu0 0
        %1876 = vmatpush1.bf16.msra.mxu0 %v1858
        %1877 = vmatprep.subr.bf16.mxu0 0
        %1878 = vmatpush1.bf16.msra.mxu0 %v1859
        %1879 = vmatprep.subr.bf16.mxu0 0
        %1880 = vmatpush1.bf16.msra.mxu0 %v1860
        %1881 = vmatprep.subr.bf16.mxu0 0
        %1882 = vmatpush1.bf16.msra.mxu0 %v1861
        %1883 = vmatprep.subr.bf16.mxu0 0
        %1884 = vmatpush1.bf16.msra.mxu0 %v1862
        %1885 = vmatprep.subr.bf16.mxu0 0
        %1886 = vmatpush1.bf16.msra.mxu0 %v1863
        %1887 = vmatprep.subr.bf16.mxu0 0
        %1888 = vmatpush1.bf16.msra.mxu0 %v1864
        %1889 = vmatprep.subr.bf16.mxu0 0
        %1890 = vmatpush1.bf16.msra.mxu0 0
        %1891 = vmatprep.subr.bf16.mxu0 0
        %1892 = vmatpush1.bf16.msra.mxu0 0
        %1893 = vmatprep.subr.bf16.mxu0 0
        %1894 = vmatpush1.bf16.msra.mxu0 0
        %1895 = vmatprep.subr.bf16.mxu0 0
        %1896 = vmatpush1.bf16.msra.mxu0 0
        %1897 = vmatprep.subr.bf16.mxu0 0
        %1898 = vmatpush1.bf16.msra.mxu0 0
        %1899 = vmatprep.subr.bf16.mxu0 0
        %1900 = vmatpush1.bf16.msra.mxu0 0
        %1901 = vmatprep.subr.bf16.mxu0 0
        %1902 = vmatpush1.bf16.msra.mxu0 0
        %1903 = vmatprep.subr.bf16.mxu0 0
        %1904 = vmatpush1.bf16.msra.mxu0 0
        %1905 = vmatprep.mubr.bf16.mxu0 0
        %1906 = vmatmul.mubr.bf16.gmra.mrb[0].mxu0 %v1804
        %v1907 = vpop.f32.mrb[0].mxu0
        %v1908 = vadd.f32 %v1824, %v1907
        %v1909 = vpop.f32.mrb[0].mxu0
        %v1910 = vpop.f32.mrb[0].mxu0
        %v1911 = vpop.f32.mrb[0].mxu0
        %1912 = vdwg.mxu0
        %v1913 = vlaneseq
        %v1914 = vshrl.u32 %v1913, 7
        %v1915 = vsub.s32 7, %v1914
        %v1916 = vrot.slane %v410, %v1915
        %v1917 = vmul.f32 %v1908, %v1916
        %v1918 = vadd.f32 %v407, %v1917
        %1919 = vst.msk [vmem:[%s384] sm:$0xff] %vm414, %v1918
        %v1920 = vld [vmem:[%s614] sm:$0xff]
        %v1921 = vld [vmem:[%s614 + $0x8] sm:$0x1f]
        %v1922 = vpack.c.bf16 %v1622, %v1621
        %s1923 = scalar_lea.vmem %s6, 16
        %v1924 = vld [vmem:[%s1923] sm:$0xf]
        %v1925 = vld [vmem:[%s1923 + $0x4] sm:$0xf]
        %v1926 = vld [vmem:[%s1923 + $0x8] sm:$0xf]
        %v1927 = vld [vmem:[%s1923 + $0xc] sm:$0xf]
        %v1928 = vlaneseq
        %v1929 = vshrl.u32 %v1928, 7
        %v1930 = vsub.s32 6, %v1929
        %v1931 = vrot.slane %v1920, %v1930
        %v1936 = vunpack.c.l.b16 %v1924
        %v1937 = vunpack.c.l.b16 %v1925
        %v1938 = vunpack.c.l.b16 %v1926
        %v1939 = vunpack.c.l.b16 %v1927
        %v1940 = vpack.c.b16 %v1937, %v1936
        %v1941 = vpack.c.b16 %v1939, %v1938
        %v1945 = vsel %vm414, %v1922, 0
        %1947 = vmatprep.subr.bf16.mxu0 0
        %1948 = vmatpush1.bf16.msra.mxu0 %v1940
        %1949 = vmatprep.subr.bf16.mxu0 0
        %1950 = vmatpush1.bf16.msra.mxu0 %v1941
        %1951 = vmatprep.subr.bf16.mxu0 0
        %1952 = vmatpush1.bf16.msra.mxu0 0
        %1953 = vmatprep.subr.bf16.mxu0 0
        %1954 = vmatpush1.bf16.msra.mxu0 0
        %1955 = vmatprep.subr.bf16.mxu0 0
        %1956 = vmatpush1.bf16.msra.mxu0 0
        %1957 = vmatprep.subr.bf16.mxu0 0
        %1958 = vmatpush1.bf16.msra.mxu0 0
        %1959 = vmatprep.subr.bf16.mxu0 0
        %1960 = vmatpush1.bf16.msra.mxu0 0
        %1961 = vmatprep.subr.bf16.mxu0 0
        %1962 = vmatpush1.bf16.msra.mxu0 0
        %1963 = vmatprep.subr.bf16.mxu0 0
        %1964 = vmatpush1.bf16.msra.mxu0 0
        %1965 = vmatprep.subr.bf16.mxu0 0
        %1966 = vmatpush1.bf16.msra.mxu0 0
        %1967 = vmatprep.subr.bf16.mxu0 0
        %1968 = vmatpush1.bf16.msra.mxu0 0
        %1969 = vmatprep.subr.bf16.mxu0 0
        %1970 = vmatpush1.bf16.msra.mxu0 0
        %1971 = vmatprep.subr.bf16.mxu0 0
        %1972 = vmatpush1.bf16.msra.mxu0 0
        %1973 = vmatprep.subr.bf16.mxu0 0
        %1974 = vmatpush1.bf16.msra.mxu0 0
        %1975 = vmatprep.subr.bf16.mxu0 0
        %1976 = vmatpush1.bf16.msra.mxu0 0
        %1977 = vmatprep.subr.bf16.mxu0 0
        %1978 = vmatpush1.bf16.msra.mxu0 0
        %1979 = vmatprep.mubr.bf16.mxu0 0
        %1980 = vmatmul.mubr.bf16.gmra.mrb[0].mxu0 %v1945
        %v1981 = vpop.f32.mrb[0].mxu0
        %v1982 = vadd.f32 %v1931, %v1981
        %v1983 = vpop.f32.mrb[0].mxu0
        %v1984 = vpop.f32.mrb[0].mxu0
        %v1985 = vadd.f32 %v1931, %v1984
        %v1986 = vpop.f32.mrb[0].mxu0
        %1987 = vdwg.mxu0
        %v1988 = vlaneseq
        %v1989 = vshrl.u32 %v1988, 7
        %v1990 = vsub.s32 0, %v1989
        %v1991 = vrot.slane %v411, %v1990
        %v1992 = vmul.f32 %v1982, %v1991
        %v1993 = vmul.f32 %v1985, %v1991
        %v1994 = vadd.f32 %v408, %v1992
        %v1995 = vadd.f32 %v409, %v1993
        %v1996 = vsel %vm414, %v1994, 0.0
        %1997 = vadd.xlane.f32.xlu0 %v1996
        %v1998 = vpop.xlane.xlu0 %1997
        %v1999 = vsel %vm414, %v1995, 0.0
        %2000 = vadd.xlane.f32.xlu0 %v1999
        %v2001 = vpop.xlane.xlu0 %2000
        %v2002 = vmul.f32 %v1998, %v418
        %v2003 = vmul.f32 %v2001, %v418
        %v2004 = vsub.f32 %v1994, %v2002
        %v2005 = vsub.f32 %v1995, %v2003
        %v2006 = vmul.f32 %v2004, %v2004
        %v2007 = vmul.f32 %v2005, %v2005
        %v2008 = vsel %vm414, %v2006, 0.0
        %2009 = vadd.xlane.f32.xlu0 %v2008
        %v2010 = vpop.xlane.xlu0 %2009
        %v2011 = vsel %vm414, %v2007, 0.0
        %2012 = vadd.xlane.f32.xlu0 %v2011
        %v2013 = vpop.xlane.xlu0 %2012
        %v2014 = vmul.f32 %v2010, %v418
        %v2015 = vmul.f32 %v2013, %v418
        %v2016 = vadd.f32 %v2014, 1e-06
        %v2017 = vadd.f32 %v2015, 1e-06
        %v2018 = vrsqrt.pop %v2016
        %v2019 = vrsqrt.pop %v2017
        %v2020 = vmul.f32 %v2004, %v2018
        %v2021 = vmul.f32 %v2005, %v2019
        %v2022 = vlaneseq
        %v2023 = vshrl.u32 %v2022, 7
        %v2024 = vsub.s32 7, %v2023
        %v2025 = vrot.slane %v1920, %v2024
        %v2026 = vmul.f32 %v2020, %v2025
        %v2027 = vmul.f32 %v2021, %v2025
        %v2028 = vlaneseq
        %v2029 = vshrl.u32 %v2028, 7
        %v2030 = vsub.s32 0, %v2029
        %v2031 = vrot.slane %v1921, %v2030
        %v2032 = vadd.f32 %v2026, %v2031
        %v2033 = vadd.f32 %v2027, %v2031
        %v2034 = vadd.f32 %v411, 1.0
        %v2035 = vlaneseq
        %v2036 = vshrl.u32 %v2035, 7
        %v2037 = vsub.s32 2, %v2036
        %v2038 = vrot.slane %v2034, %v2037
        %v2039 = vmul.f32 %v2032, %v2038
        %v2040 = vmul.f32 %v2033, %v2038
        %v2041 = vlaneseq
        %v2042 = vshrl.u32 %v2041, 7
        %v2043 = vsub.s32 1, %v2042
        %v2044 = vrot.slane %v411, %v2043
        %v2045 = vadd.f32 %v2039, %v2044
        %v2046 = vadd.f32 %v2040, %v2044
        %v2047 = vpack.c.bf16 %v2046, %v2045
        %s2048 = scalar_lea.vmem %s7, 16
        %v2049 = vld [vmem:[%s2048] sm:$0xf]
        %v2050 = vld [vmem:[%s2048 + $0x4] sm:$0xf]
        %v2051 = vld [vmem:[%s2048 + $0x8] sm:$0xf]
        %v2052 = vld [vmem:[%s2048 + $0xc] sm:$0xf]
        %s2053 = scalar_lea.vmem %s4, 1
        %v2054 = vld [vmem:[%s2053] sm:$0x1]
        %v2056 = vlaneseq
        %v2057 = vshrl.u32 %v2056, 7
        %v2058 = vsub.s32 0, %v2057
        %v2059 = vrot.slane %v2054, %v2058
        %v2065 = vunpack.c.l.b16 %v2049
        %v2066 = vunpack.c.l.b16 %v2050
        %v2067 = vunpack.c.l.b16 %v2051
        %v2068 = vunpack.c.l.b16 %v2052
        %v2069 = vpack.c.b16 %v2066, %v2065
        %v2070 = vpack.c.b16 %v2068, %v2067
        %v2074 = vsel %vm414, %v2047, 0
        %2076 = vmatprep.subr.bf16.mxu0 0
        %2077 = vmatpush1.bf16.msra.mxu0 %v2069
        %2078 = vmatprep.subr.bf16.mxu0 0
        %2079 = vmatpush1.bf16.msra.mxu0 %v2070
        %2080 = vmatprep.subr.bf16.mxu0 0
        %2081 = vmatpush1.bf16.msra.mxu0 0
        %2082 = vmatprep.subr.bf16.mxu0 0
        %2083 = vmatpush1.bf16.msra.mxu0 0
        %2084 = vmatprep.subr.bf16.mxu0 0
        %2085 = vmatpush1.bf16.msra.mxu0 0
        %2086 = vmatprep.subr.bf16.mxu0 0
        %2087 = vmatpush1.bf16.msra.mxu0 0
        %2088 = vmatprep.subr.bf16.mxu0 0
        %2089 = vmatpush1.bf16.msra.mxu0 0
        %2090 = vmatprep.subr.bf16.mxu0 0
        %2091 = vmatpush1.bf16.msra.mxu0 0
        %2092 = vmatprep.subr.bf16.mxu0 0
        %2093 = vmatpush1.bf16.msra.mxu0 0
        %2094 = vmatprep.subr.bf16.mxu0 0
        %2095 = vmatpush1.bf16.msra.mxu0 0
        %2096 = vmatprep.subr.bf16.mxu0 0
        %2097 = vmatpush1.bf16.msra.mxu0 0
        %2098 = vmatprep.subr.bf16.mxu0 0
        %2099 = vmatpush1.bf16.msra.mxu0 0
        %2100 = vmatprep.subr.bf16.mxu0 0
        %2101 = vmatpush1.bf16.msra.mxu0 0
        %2102 = vmatprep.subr.bf16.mxu0 0
        %2103 = vmatpush1.bf16.msra.mxu0 0
        %2104 = vmatprep.subr.bf16.mxu0 0
        %2105 = vmatpush1.bf16.msra.mxu0 0
        %2106 = vmatprep.subr.bf16.mxu0 0
        %2107 = vmatpush1.bf16.msra.mxu0 0
        %2108 = vmatprep.mubr.bf16.mxu0 0
        %2109 = vmatmul.mubr.bf16.gmra.mrb[0].mxu0 %v2074
        %v2110 = vpop.f32.mrb[0].mxu0
        %v2111 = vadd.f32 %v2059, %v2110
        %v2112 = vpop.f32.mrb[0].mxu0
        %v2113 = vpop.f32.mrb[0].mxu0
        %v2114 = vadd.f32 %v2059, %v2113
        %v2115 = vpop.f32.mrb[0].mxu0
        %2116 = vdwg.mxu0
        %v2117 = vmul.f32 %v2111, 0.5
        %v2118 = vmul.f32 %v2114, 0.5
        %v2119 = vmul.f32 %v2111, 0.044715
        %v2120 = vmul.f32 %v2114, 0.044715
        %v2121 = vmul.f32 %v2119, %v2111
        %v2122 = vmul.f32 %v2120, %v2114
        %v2123 = vmul.f32 %v2121, %v2111
        %v2124 = vmul.f32 %v2122, %v2114
        %v2125 = vadd.f32 %v2111, %v2123
        %v2126 = vadd.f32 %v2114, %v2124
        %v2127 = vmul.f32 %v2125, 0.7978846
        %v2128 = vmul.f32 %v2126, 0.7978846
        %v2129 = vtanh.pop %v2127
        %v2130 = vtanh.pop %v2128
        %v2131 = vadd.f32 %v2129, 1.0
        %v2132 = vadd.f32 %v2130, 1.0
        %v2133 = vmul.f32 %v2117, %v2131
        %v2134 = vmul.f32 %v2118, %v2132
        %v2135 = vpack.c.bf16 %v2134, %v2133
        %s2136 = scalar_lea.vmem %s8, 64
        %v2137 = vld [vmem:[%s2136] sm:$0xf]
        %v2138 = vld [vmem:[%s2136 + $0x4] sm:$0xf]
        %v2139 = vld [vmem:[%s2136 + $0x8] sm:$0xf]
        %v2140 = vld [vmem:[%s2136 + $0xc] sm:$0xf]
        %v2141 = vld [vmem:[%s2136 + $0x10] sm:$0xf]
        %v2142 = vld [vmem:[%s2136 + $0x14] sm:$0xf]
        %v2143 = vld [vmem:[%s2136 + $0x18] sm:$0xf]
        %v2144 = vld [vmem:[%s2136 + $0x1c] sm:$0xf]
        %v2145 = vld [vmem:[%s2136 + $0x20] sm:$0xf]
        %v2146 = vld [vmem:[%s2136 + $0x24] sm:$0xf]
        %v2147 = vld [vmem:[%s2136 + $0x28] sm:$0xf]
        %v2148 = vld [vmem:[%s2136 + $0x2c] sm:$0xf]
        %v2149 = vld [vmem:[%s2136 + $0x30] sm:$0xf]
        %v2150 = vld [vmem:[%s2136 + $0x34] sm:$0xf]
        %v2151 = vld [vmem:[%s2136 + $0x38] sm:$0xf]
        %v2152 = vld [vmem:[%s2136 + $0x3c] sm:$0xf]
        %v2153 = vlaneseq
        %v2154 = vshrl.u32 %v2153, 7
        %v2155 = vsub.s32 1, %v2154
        %v2156 = vrot.slane %v1921, %v2155
        %v2173 = vunpack.c.l.b16 %v2137
        %v2174 = vunpack.c.l.b16 %v2138
        %v2175 = vunpack.c.l.b16 %v2139
        %v2176 = vunpack.c.l.b16 %v2140
        %v2177 = vunpack.c.l.b16 %v2141
        %v2178 = vunpack.c.l.b16 %v2142
        %v2179 = vunpack.c.l.b16 %v2143
        %v2180 = vunpack.c.l.b16 %v2144
        %v2181 = vunpack.c.l.b16 %v2145
        %v2182 = vunpack.c.l.b16 %v2146
        %v2183 = vunpack.c.l.b16 %v2147
        %v2184 = vunpack.c.l.b16 %v2148
        %v2185 = vunpack.c.l.b16 %v2149
        %v2186 = vunpack.c.l.b16 %v2150
        %v2187 = vunpack.c.l.b16 %v2151
        %v2188 = vunpack.c.l.b16 %v2152
        %v2189 = vpack.c.b16 %v2174, %v2173
        %v2190 = vpack.c.b16 %v2176, %v2175
        %v2191 = vpack.c.b16 %v2178, %v2177
        %v2192 = vpack.c.b16 %v2180, %v2179
        %v2193 = vpack.c.b16 %v2182, %v2181
        %v2194 = vpack.c.b16 %v2184, %v2183
        %v2195 = vpack.c.b16 %v2186, %v2185
        %v2196 = vpack.c.b16 %v2188, %v2187
        %2205 = vmatprep.subr.bf16.mxu0 0
        %2206 = vmatpush1.bf16.msra.mxu0 %v2189
        %2207 = vmatprep.subr.bf16.mxu0 0
        %2208 = vmatpush1.bf16.msra.mxu0 %v2190
        %2209 = vmatprep.subr.bf16.mxu0 0
        %2210 = vmatpush1.bf16.msra.mxu0 %v2191
        %2211 = vmatprep.subr.bf16.mxu0 0
        %2212 = vmatpush1.bf16.msra.mxu0 %v2192
        %2213 = vmatprep.subr.bf16.mxu0 0
        %2214 = vmatpush1.bf16.msra.mxu0 %v2193
        %2215 = vmatprep.subr.bf16.mxu0 0
        %2216 = vmatpush1.bf16.msra.mxu0 %v2194
        %2217 = vmatprep.subr.bf16.mxu0 0
        %2218 = vmatpush1.bf16.msra.mxu0 %v2195
        %2219 = vmatprep.subr.bf16.mxu0 0
        %2220 = vmatpush1.bf16.msra.mxu0 %v2196
        %2221 = vmatprep.subr.bf16.mxu0 0
        %2222 = vmatpush1.bf16.msra.mxu0 0
        %2223 = vmatprep.subr.bf16.mxu0 0
        %2224 = vmatpush1.bf16.msra.mxu0 0
        %2225 = vmatprep.subr.bf16.mxu0 0
        %2226 = vmatpush1.bf16.msra.mxu0 0
        %2227 = vmatprep.subr.bf16.mxu0 0
        %2228 = vmatpush1.bf16.msra.mxu0 0
        %2229 = vmatprep.subr.bf16.mxu0 0
        %2230 = vmatpush1.bf16.msra.mxu0 0
        %2231 = vmatprep.subr.bf16.mxu0 0
        %2232 = vmatpush1.bf16.msra.mxu0 0
        %2233 = vmatprep.subr.bf16.mxu0 0
        %2234 = vmatpush1.bf16.msra.mxu0 0
        %2235 = vmatprep.subr.bf16.mxu0 0
        %2236 = vmatpush1.bf16.msra.mxu0 0
        %2237 = vmatprep.mubr.bf16.mxu0 0
        %2238 = vmatmul.mubr.bf16.gmra.mrb[0].mxu0 %v2135
        %v2239 = vpop.f32.mrb[0].mxu0
        %v2240 = vadd.f32 %v2156, %v2239
        %v2241 = vpop.f32.mrb[0].mxu0
        %v2242 = vpop.f32.mrb[0].mxu0
        %v2243 = vadd.f32 %v2156, %v2242
        %v2244 = vpop.f32.mrb[0].mxu0
        %2245 = vdwg.mxu0
        %v2246 = vlaneseq
        %v2247 = vshrl.u32 %v2246, 7
        %v2248 = vsub.s32 3, %v2247
        %v2249 = vrot.slane %v411, %v2248
        %v2250 = vmul.f32 %v2240, %v2249
        %v2251 = vmul.f32 %v2243, %v2249
        %v2252 = vadd.f32 %v408, %v2250
        %v2253 = vadd.f32 %v409, %v2251
        %2254 = vst.msk [vmem:[%s391] sm:$0xff] %vm414, %v2252
        %2255 = vst.msk [vmem:[%s391 + $0x8] sm:$0xff] %vm414, %v2253
        %s2256 = sand.u32 %s240, 1
        %s2257 = scalar_lea.sflag [#allocation6], %s2256
        %s2258 = sand.u32 %s240, 1
        %s2259 = smul.addr %s2258, 8
        %s2260 = scalar_lea.vmem [#allocation5], %s2259
        %s2261 = sand.u32 %s266, 1
        %s2262 = scalar_lea.sflag [#allocation8], %s2261
        %s2263 = sand.u32 %s266, 1
        %s2264 = smul.addr %s2263, 16
        %s2265 = scalar_lea.vmem [#allocation7], %s2264
        // Predicated region
        $region57: #{tpu_custom_call.1} parent=55 // pred_check
          %p2266 = pneg %p250
        $region58: #{tpu_custom_call.1} parent=55 // pred_check_branch
          %2268 = sbr.rel (%p2266) target = $region60
        $region59: #{tpu_custom_call.1} parent=55 // pred_region
          %s2270 = ssub.s32 128, 128
          %2271 = vsyncadd %s2257, %s2270
          %s2272 = smul.addr %s28, 128
          %s2273 = scalar_lea.hbm %s9, %s2272
          %s2275 = sshll.u32 %s2260, 4
          %s2276 = int_to_ptr.vmem [resolvable:$true] %s2275
          %2278 = dma.vmem_to_hbm [thread:$0]  %s2276, 128, %s2273, %s2257
        $region60: #{tpu_custom_call.1} parent=55 // pred_fallthru
          _
        // Predicated region
        $region61: #{tpu_custom_call.1} parent=55 // pred_check
          %p2279 = pneg %p276
        $region62: #{tpu_custom_call.1} parent=55 // pred_check_branch
          %2281 = sbr.rel (%p2279) target = $region64
        $region63: #{tpu_custom_call.1} parent=55 // pred_region
          %s2283 = ssub.s32 256, 256
          %2284 = vsyncadd %s2262, %s2283
          %s2285 = smul.addr %s28, 2
          %s2286 = smul.addr %s2285, 128
          %s2287 = scalar_lea.hbm %s10, %s2286
          %s2288 = sshll.u32 %s2265, 4
          %s2289 = int_to_ptr.vmem [resolvable:$true] %s2288
          %2294 = dma.vmem_to_hbm [thread:$0]  %s2289, 256, %s2287, %s2262, 128, 128, 8
        $region64: #{tpu_custom_call.1} parent=55 // pred_fallthru
          _
      $region56: #{tpu_custom_call.1} parent=5 // pred_fallthru
        _
      %p2295 = scmp.le.s32.totalorder 2, %s23
      // Predicated region
      $region65: #{tpu_custom_call.1} parent=5 // pred_check
        %p2296 = pneg %p2295
      $region66: #{tpu_custom_call.1} parent=5 // pred_check_branch
        %2298 = sbr.rel (%p2296) target = $region68
      $region67: #{tpu_custom_call.1} parent=5 // pred_region
        %s2299 = ssub.s32 %s23, 2
        // Predicated region
        $region69: #{tpu_custom_call.1} parent=67 // pred_check
          %p2300 = pneg %p256
        $region70: #{tpu_custom_call.1} parent=67 // pred_check_branch
          %2302 = sbr.rel (%p2300) target = $region72
        $region71: #{tpu_custom_call.1} parent=67 // pred_region
          %s2303 = sand.u32 %s241, 1
          %s2304 = scalar_lea.sflag [#allocation6], %s2303
          %s2305 = sand.u32 %s241, 1
          %s2306 = smul.addr %s2305, 8
          %s2307 = scalar_lea.vmem [#allocation5], %s2306
          %2308 = dma.done %s2304, 128
        $region72: #{tpu_custom_call.1} parent=67 // pred_fallthru
          _
        // Predicated region
        $region73: #{tpu_custom_call.1} parent=67 // pred_check
          %p2309 = pneg %p282
        $region74: #{tpu_custom_call.1} parent=67 // pred_check_branch
          %2311 = sbr.rel (%p2309) target = $region76
        $region75: #{tpu_custom_call.1} parent=67 // pred_region
          %s2312 = sand.u32 %s267, 1
          %s2313 = scalar_lea.sflag [#allocation8], %s2312
          %s2314 = sand.u32 %s267, 1
          %s2315 = smul.addr %s2314, 16
          %s2316 = scalar_lea.vmem [#allocation7], %s2315
          %2317 = dma.done %s2313, 256
        $region76: #{tpu_custom_call.1} parent=67 // pred_fallthru
          _
      $region68: #{tpu_custom_call.1} parent=5 // pred_fallthru
        _
    $region6: #{tpu_custom_call.1} parent=1 // loop_footer
      %s27 = sadd.s32 1, %s23
    $region7: #{tpu_custom_call.1} parent=1 // loop_footer_branch
      %22 = sbr.rel target = $region3
    $region8: #{tpu_custom_call.1} parent=1 // loop_exit
      _
    %2318 = vsyncpa [#allocation6], 1
    %s2319 = scalar_lea.sflag [#allocation6], 1
    %2320 = vsyncpa %s2319, 1
    %2321 = vsyncpa [#allocation8], 1
    %s2322 = scalar_lea.sflag [#allocation8], 1
    %2323 = vsyncpa %s2322, 1

// kernel: tpu_custom_call.1
$region0: #{tpu_custom_call.1}
  #allocation0 [shape = 'u32[]', space=smem, size = 0x4, offset = 0x4, fixed_abs, tag = 'smem constant byte address 0x4 - core index']
  #allocation1 [shape = 'u32[144,128]{1,0:T(1,128)}', space=vmem, size = 0x12000, scoped, tag = 'internal scratch']
  #allocation2 [shape = 'bf16[24,32]{1,0:T(8,128)(2,1)}', space=vmem, size = 0x1800, scoped, tag = 'scratch operand']
  #allocation3 [shape = 'bf16[24,32]{1,0:T(8,128)(2,1)}', space=vmem, size = 0x1800, scoped, tag = 'scratch operand']
  #allocation4 [shape = 'bf16[24,32]{1,0:T(8,128)(2,1)}', space=vmem, size = 0x1800, scoped, tag = 'scratch operand']
  %s0 = inlined_call_operand.vmem [shape: f32[2,8,32], index: 0, kind: input, shape index: {}]
  %s1 = inlined_call_operand.vmem [shape: f32[2,16,32], index: 1, kind: input, shape index: {}]
  %s2 = inlined_call_operand.vmem [shape: f32[2,12,32], index: 2, kind: input, shape index: {}]
  %s3 = inlined_call_operand.vmem [shape: f32[2,13,32], index: 3, kind: input, shape index: {}]
  %s4 = inlined_call_operand.vmem [shape: f32[2,1,128], index: 4, kind: input, shape index: {}]
  %s5 = inlined_call_operand.vmem [shape: bf16[2,32,96], index: 5, kind: input, shape index: {}]
  %s6 = inlined_call_operand.vmem [shape: bf16[2,32,32], index: 6, kind: input, shape index: {}]
  %s7 = inlined_call_operand.vmem [shape: bf16[2,32,128], index: 7, kind: input, shape index: {}]
  %s8 = inlined_call_operand.vmem [shape: bf16[2,128,32], index: 8, kind: input, shape index: {}]
  %s9 = inlined_call_operand.hbm [shape: f32[2,8,32], index: 9, kind: output, shape index: {0}]
  %s10 = inlined_call_operand.hbm [shape: f32[2,16,32], index: 10, kind: output, shape index: {1}]
  %11 = xla_tuple %s9, %s10
  %s12 = sld [smem:[#allocation0]]
  $region77: #{tpu_custom_call.1} parent=0
    _
  %s14 = ssub.s32 1, %s12
  %s15 = scalar_select 0, %s14, %s12
  $region1: #{tpu_custom_call.1} parent=0
    #allocation5 [shape = 'u8[8192]{0}', space=vmem, size = 0x2000, scoped, tag = 'output window, operand 0']
    #allocation6 [shape = 's32[2]{0}', space=sflag, size = 0x8, scoped, tag = 'scoped memory for tpu_custom_call.1']
    #allocation7 [shape = 'u8[16384]{0}', space=vmem, size = 0x4000, scoped, tag = 'output window, operand 1']
    #allocation8 [shape = 's32[2]{0}', space=sflag, size = 0x8, scoped, tag = 'scoped memory for tpu_custom_call.1']
    %16 = vsyncpa [#allocation6], 0
    %s17 = scalar_lea.sflag [#allocation6], 1
    %18 = vsyncpa %s17, 0
    %19 = vsyncpa [#allocation8], 0
    %s20 = scalar_lea.sflag [#allocation8], 1
    %21 = vsyncpa %s20, 0
    loop: start=0, step=1, limit=4
    $region2: #{tpu_custom_call.1} parent=1 // loop_pre_header
      _
    $region3: #{tpu_custom_call.1} parent=1 // loop_header
      %s23 = sphi 0, %s27
      %p24 = scmp.ge.s32.totalorder %s23, 4
      %s33 = sphi 0, %s35
      %s36 = sphi 0, %s33
      %s37 = sphi 0, %s36
      %s53 = sphi 0, %s37
      %s59 = sphi 0, %s61
      %s62 = sphi 0, %s59
      %s63 = sphi 0, %s62
      %s79 = sphi 0, %s63
      %s85 = sphi 0, %s87
      %s88 = sphi 0, %s85
      %s89 = sphi 0, %s88
      %s105 = sphi 0, %s89
      %s109 = sphi 0, %s109
      %s111 = sphi 0, %s109
      %s112 = sphi 0, %s111
      %s126 = sphi 0, %s112
      %s130 = sphi 0, %s130
      %s132 = sphi 0, %s130
      %s133 = sphi 0, %s132
      %s147 = sphi 0, %s133
      %s151 = sphi 0, %s151
      %s153 = sphi 0, %s151
      %s154 = sphi 0, %s153
      %s168 = sphi 0, %s154
      %s172 = sphi 0, %s172
      %s174 = sphi 0, %s172
      %s175 = sphi 0, %s174
      %s189 = sphi 0, %s175
      %s193 = sphi 0, %s193
      %s195 = sphi 0, %s193
      %s196 = sphi 0, %s195
      %s210 = sphi 0, %s196
      %s214 = sphi 0, %s214
      %s216 = sphi 0, %s214
      %s217 = sphi 0, %s216
      %s231 = sphi 0, %s217
      %s237 = sphi 0, %s239
      %s240 = sphi 0, %s237
      %s241 = sphi 0, %s240
      %s257 = sphi 0, %s241
      %s263 = sphi 0, %s265
      %s266 = sphi 0, %s263
      %s267 = sphi 0, %s266
      %s283 = sphi 0, %s267
    $region4: #{tpu_custom_call.1} parent=1 // loop_header_branch
      %26 = sbr.rel (%p24) target = $region8
    $region5: #{tpu_custom_call.1} parent=1 // loop_body
      %s28 = ssub.s32 %s23, 1
      %s29 = ssub.s32 %s23, 2
      %s30 = sadd.s32 %s23, 1
      %s31 = ssub.s32 %s23, %s30
      %p32 = scmp.eq.s32.totalorder %s31, 0
      %s34 = sadd.s32 %s33, 1
      %s35 = scalar_select %p32, %s33, %s34
      %p38 = pneg %p32
      %p39 = scmp.eq.s32.totalorder %s23, 1
      %p40 = por %p38, %p39
      %p41 = scmp.ne.s32.totalorder %s33, %s36
      %p42 = scmp.eq.s32.totalorder %s23, 0
      %p43 = por %p41, %p42
      %p44 = scmp.ne.s32.totalorder %s33, %s36
      %p45 = scmp.eq.s32.totalorder %s28, 1
      %p46 = por %p44, %p45
      %p47 = scmp.ne.s32.totalorder %s36, %s37
      %p48 = scmp.eq.s32.totalorder %s28, 0
      %p49 = por %p47, %p48
      %p50 = scmp.ne.s32.totalorder %s36, %s37
      %p51 = scmp.eq.s32.totalorder %s29, 1
      %p52 = por %p50, %p51
      %p54 = scmp.ne.s32.totalorder %s37, %s53
      %p55 = scmp.eq.s32.totalorder %s29, 0
      %p56 = por %p54, %p55
      %s57 = ssub.s32 %s23, %s30
      %p58 = scmp.eq.s32.totalorder %s57, 0
      %s60 = sadd.s32 %s59, 1
      %s61 = scalar_select %p58, %s59, %s60
      %p64 = pneg %p58
      %p65 = scmp.eq.s32.totalorder %s23, 1
      %p66 = por %p64, %p65
      %p67 = scmp.ne.s32.totalorder %s59, %s62
      %p68 = scmp.eq.s32.totalorder %s23, 0
      %p69 = por %p67, %p68
      %p70 = scmp.ne.s32.totalorder %s59, %s62
      %p71 = scmp.eq.s32.totalorder %s28, 1
      %p72 = por %p70, %p71
      %p73 = scmp.ne.s32.totalorder %s62, %s63
      %p74 = scmp.eq.s32.totalorder %s28, 0
      %p75 = por %p73, %p74
      %p76 = scmp.ne.s32.totalorder %s62, %s63
      %p77 = scmp.eq.s32.totalorder %s29, 1
      %p78 = por %p76, %p77
      %p80 = scmp.ne.s32.totalorder %s63, %s79
      %p81 = scmp.eq.s32.totalorder %s29, 0
      %p82 = por %p80, %p81
      %s83 = ssub.s32 %s23, %s30
      %p84 = scmp.eq.s32.totalorder %s83, 0
      %s86 = sadd.s32 %s85, 1
      %s87 = scalar_select %p84, %s85, %s86
      %p90 = pneg %p84
      %p91 = scmp.eq.s32.totalorder %s23, 1
      %p92 = por %p90, %p91
      %p93 = scmp.ne.s32.totalorder %s85, %s88
      %p94 = scmp.eq.s32.totalorder %s23, 0
      %p95 = por %p93, %p94
      %p96 = scmp.ne.s32.totalorder %s85, %s88
      %p97 = scmp.eq.s32.totalorder %s28, 1
      %p98 = por %p96, %p97
      %p99 = scmp.ne.s32.totalorder %s88, %s89
      %p100 = scmp.eq.s32.totalorder %s28, 0
      %p101 = por %p99, %p100
      %p102 = scmp.ne.s32.totalorder %s88, %s89
      %p103 = scmp.eq.s32.totalorder %s29, 1
      %p104 = por %p102, %p103
      %p106 = scmp.ne.s32.totalorder %s89, %s105
      %p107 = scmp.eq.s32.totalorder %s29, 0
      %p108 = por %p106, %p107
      %s110 = sadd.s32 %s109, 1
      %p113 = scmp.eq.s32.totalorder %s23, 1
      %p114 = scmp.ne.s32.totalorder %s109, %s111
      %p115 = scmp.eq.s32.totalorder %s23, 0
      %p116 = por %p114, %p115
      %p117 = scmp.ne.s32.totalorder %s109, %s111
      %p118 = scmp.eq.s32.totalorder %s28, 1
      %p119 = por %p117, %p118
      %p120 = scmp.ne.s32.totalorder %s111, %s112
      %p121 = scmp.eq.s32.totalorder %s28, 0
      %p122 = por %p120, %p121
      %p123 = scmp.ne.s32.totalorder %s111, %s112
      %p124 = scmp.eq.s32.totalorder %s29, 1
      %p125 = por %p123, %p124
      %p127 = scmp.ne.s32.totalorder %s112, %s126
      %p128 = scmp.eq.s32.totalorder %s29, 0
      %p129 = por %p127, %p128
      %s131 = sadd.s32 %s130, 1
      %p134 = scmp.eq.s32.totalorder %s23, 1
      %p135 = scmp.ne.s32.totalorder %s130, %s132
      %p136 = scmp.eq.s32.totalorder %s23, 0
      %p137 = por %p135, %p136
      %p138 = scmp.ne.s32.totalorder %s130, %s132
      %p139 = scmp.eq.s32.totalorder %s28, 1
      %p140 = por %p138, %p139
      %p141 = scmp.ne.s32.totalorder %s132, %s133
      %p142 = scmp.eq.s32.totalorder %s28, 0
      %p143 = por %p141, %p142
      %p144 = scmp.ne.s32.totalorder %s132, %s133
      %p145 = scmp.eq.s32.totalorder %s29, 1
      %p146 = por %p144, %p145
      %p148 = scmp.ne.s32.totalorder %s133, %s147
      %p149 = scmp.eq.s32.totalorder %s29, 0
      %p150 = por %p148, %p149
      %s152 = sadd.s32 %s151, 1
      %p155 = scmp.eq.s32.totalorder %s23, 1
      %p156 = scmp.ne.s32.totalorder %s151, %s153
      %p157 = scmp.eq.s32.totalorder %s23, 0
      %p158 = por %p156, %p157
      %p159 = scmp.ne.s32.totalorder %s151, %s153
      %p160 = scmp.eq.s32.totalorder %s28, 1
      %p161 = por %p159, %p160
      %p162 = scmp.ne.s32.totalorder %s153, %s154
      %p163 = scmp.eq.s32.totalorder %s28, 0
      %p164 = por %p162, %p163
      %p165 = scmp.ne.s32.totalorder %s153, %s154
      %p166 = scmp.eq.s32.totalorder %s29, 1
      %p167 = por %p165, %p166
      %p169 = scmp.ne.s32.totalorder %s154, %s168
      %p170 = scmp.eq.s32.totalorder %s29, 0
      %p171 = por %p169, %p170
      %s173 = sadd.s32 %s172, 1
      %p176 = scmp.eq.s32.totalorder %s23, 1
      %p177 = scmp.ne.s32.totalorder %s172, %s174
      %p178 = scmp.eq.s32.totalorder %s23, 0
      %p179 = por %p177, %p178
      %p180 = scmp.ne.s32.totalorder %s172, %s174
      %p181 = scmp.eq.s32.totalorder %s28, 1
      %p182 = por %p180, %p181
      %p183 = scmp.ne.s32.totalorder %s174, %s175
      %p184 = scmp.eq.s32.totalorder %s28, 0
      %p185 = por %p183, %p184
      %p186 = scmp.ne.s32.totalorder %s174, %s175
      %p187 = scmp.eq.s32.totalorder %s29, 1
      %p188 = por %p186, %p187
      %p190 = scmp.ne.s32.totalorder %s175, %s189
      %p191 = scmp.eq.s32.totalorder %s29, 0
      %p192 = por %p190, %p191
      %s194 = sadd.s32 %s193, 1
      %p197 = scmp.eq.s32.totalorder %s23, 1
      %p198 = scmp.ne.s32.totalorder %s193, %s195
      %p199 = scmp.eq.s32.totalorder %s23, 0
      %p200 = por %p198, %p199
      %p201 = scmp.ne.s32.totalorder %s193, %s195
      %p202 = scmp.eq.s32.totalorder %s28, 1
      %p203 = por %p201, %p202
      %p204 = scmp.ne.s32.totalorder %s195, %s196
      %p205 = scmp.eq.s32.totalorder %s28, 0
      %p206 = por %p204, %p205
      %p207 = scmp.ne.s32.totalorder %s195, %s196
      %p208 = scmp.eq.s32.totalorder %s29, 1
      %p209 = por %p207, %p208
      %p211 = scmp.ne.s32.totalorder %s196, %s210
      %p212 = scmp.eq.s32.totalorder %s29, 0
      %p213 = por %p211, %p212
      %s215 = sadd.s32 %s214, 1
      %p218 = scmp.eq.s32.totalorder %s23, 1
      %p219 = scmp.ne.s32.totalorder %s214, %s216
      %p220 = scmp.eq.s32.totalorder %s23, 0
      %p221 = por %p219, %p220
      %p222 = scmp.ne.s32.totalorder %s214, %s216
      %p223 = scmp.eq.s32.totalorder %s28, 1
      %p224 = por %p222, %p223
      %p225 = scmp.ne.s32.totalorder %s216, %s217
      %p226 = scmp.eq.s32.totalorder %s28, 0
      %p227 = por %p225, %p226
      %p228 = scmp.ne.s32.totalorder %s216, %s217
      %p229 = scmp.eq.s32.totalorder %s29, 1
      %p230 = por %p228, %p229
      %p232 = scmp.ne.s32.totalorder %s217, %s231
      %p233 = scmp.eq.s32.totalorder %s29, 0
      %p234 = por %p232, %p233
      %s235 = ssub.s32 %s23, %s30
      %p236 = scmp.eq.s32.totalorder %s235, 0
      %s238 = sadd.s32 %s237, 1
      %s239 = scalar_select %p236, %s237, %s238
      %p242 = pneg %p236
      %p243 = scmp.eq.s32.totalorder %s23, 1
      %p244 = por %p242, %p243
      %p245 = scmp.ne.s32.totalorder %s237, %s240
      %p246 = scmp.eq.s32.totalorder %s23, 0
      %p247 = por %p245, %p246
      %p248 = scmp.ne.s32.totalorder %s237, %s240
      %p249 = scmp.eq.s32.totalorder %s28, 1
      %p250 = por %p248, %p249
      %p251 = scmp.ne.s32.totalorder %s240, %s241
      %p252 = scmp.eq.s32.totalorder %s28, 0
      %p253 = por %p251, %p252
      %p254 = scmp.ne.s32.totalorder %s240, %s241
      %p255 = scmp.eq.s32.totalorder %s29, 1
      %p256 = por %p254, %p255
      %p258 = scmp.ne.s32.totalorder %s241, %s257
      %p259 = scmp.eq.s32.totalorder %s29, 0
      %p260 = por %p258, %p259
      %s261 = ssub.s32 %s23, %s30
      %p262 = scmp.eq.s32.totalorder %s261, 0
      %s264 = sadd.s32 %s263, 1
      %s265 = scalar_select %p262, %s263, %s264
      %p268 = pneg %p262
      %p269 = scmp.eq.s32.totalorder %s23, 1
      %p270 = por %p268, %p269
      %p271 = scmp.ne.s32.totalorder %s263, %s266
      %p272 = scmp.eq.s32.totalorder %s23, 0
      %p273 = por %p271, %p272
      %p274 = scmp.ne.s32.totalorder %s263, %s266
      %p275 = scmp.eq.s32.totalorder %s28, 1
      %p276 = por %p274, %p275
      %p277 = scmp.ne.s32.totalorder %s266, %s267
      %p278 = scmp.eq.s32.totalorder %s28, 0
      %p279 = por %p277, %p278
      %p280 = scmp.ne.s32.totalorder %s266, %s267
      %p281 = scmp.eq.s32.totalorder %s29, 1
      %p282 = por %p280, %p281
      %p284 = scmp.ne.s32.totalorder %s267, %s283
      %p285 = scmp.eq.s32.totalorder %s29, 0
      %p286 = por %p284, %p285
      %p287 = scmp.le.s32.totalorder 1, %s23
      %p288 = scmp.lt.s32.totalorder %s23, 3
      %p289 = pnand %p287, %p288
      %p290 = pneg %p289
      // Predicated region
      $region9: #{tpu_custom_call.1} parent=5 // pred_check
        _
      $region10: #{tpu_custom_call.1} parent=5 // pred_check_branch
        %292 = sbr.rel (%p289) target = $region12
      $region11: #{tpu_custom_call.1} parent=5 // pred_region
        %s293 = ssub.s32 %s23, 1
        // Predicated region
        $region13: #{tpu_custom_call.1} parent=11 // pred_check
          %p294 = pneg %p122
        $region14: #{tpu_custom_call.1} parent=11 // pred_check_branch
          %296 = sbr.rel (%p294) target = $region16
        $region15: #{tpu_custom_call.1} parent=11 // pred_region
          _
        $region16: #{tpu_custom_call.1} parent=11 // pred_fallthru
          _
        // Predicated region
        $region17: #{tpu_custom_call.1} parent=11 // pred_check
          %p297 = pneg %p143
        $region18: #{tpu_custom_call.1} parent=11 // pred_check_branch
          %299 = sbr.rel (%p297) target = $region20
        $region19: #{tpu_custom_call.1} parent=11 // pred_region
          _
        $region20: #{tpu_custom_call.1} parent=11 // pred_fallthru
          _
        // Predicated region
        $region21: #{tpu_custom_call.1} parent=11 // pred_check
          %p300 = pneg %p164
        $region22: #{tpu_custom_call.1} parent=11 // pred_check_branch
          %302 = sbr.rel (%p300) target = $region24
        $region23: #{tpu_custom_call.1} parent=11 // pred_region
          _
        $region24: #{tpu_custom_call.1} parent=11 // pred_fallthru
          _
        // Predicated region
        $region25: #{tpu_custom_call.1} parent=11 // pred_check
          %p303 = pneg %p185
        $region26: #{tpu_custom_call.1} parent=11 // pred_check_branch
          %305 = sbr.rel (%p303) target = $region28
        $region27: #{tpu_custom_call.1} parent=11 // pred_region
          _
        $region28: #{tpu_custom_call.1} parent=11 // pred_fallthru
          _
        // Predicated region
        $region29: #{tpu_custom_call.1} parent=11 // pred_check
          %p306 = pneg %p206
        $region30: #{tpu_custom_call.1} parent=11 // pred_check_branch
          %308 = sbr.rel (%p306) target = $region32
        $region31: #{tpu_custom_call.1} parent=11 // pred_region
          _
        $region32: #{tpu_custom_call.1} parent=11 // pred_fallthru
          _
        // Predicated region
        $region33: #{tpu_custom_call.1} parent=11 // pred_check
          %p309 = pneg %p227
        $region34: #{tpu_custom_call.1} parent=11 // pred_check_branch
          %311 = sbr.rel (%p309) target = $region36
        $region35: #{tpu_custom_call.1} parent=11 // pred_region
          _
        $region36: #{tpu_custom_call.1} parent=11 // pred_fallthru
          _
      $region12: #{tpu_custom_call.1} parent=5 // pred_fallthru
        _
      %p312 = scmp.lt.s32.totalorder %s23, 2
      // Predicated region
      $region37: #{tpu_custom_call.1} parent=5 // pred_check
        %p313 = pneg %p312
      $region38: #{tpu_custom_call.1} parent=5 // pred_check_branch
        %315 = sbr.rel (%p313) target = $region40
      $region39: #{tpu_custom_call.1} parent=5 // pred_region
        // Predicated region
        $region41: #{tpu_custom_call.1} parent=39 // pred_check
          %p316 = pneg %p43
        $region42: #{tpu_custom_call.1} parent=39 // pred_check_branch
          %318 = sbr.rel (%p316) target = $region44
        $region43: #{tpu_custom_call.1} parent=39 // pred_region
          %p319 = scmp.lt.s32.totalorder %s23, 1
          %s320 = scalar_select %p319, %s23, 1
          %s321 = smul.addr %s320, 8
          %s322 = scalar_lea.vmem %s0, %s321
        $region44: #{tpu_custom_call.1} parent=39 // pred_fallthru
          _
        // Predicated region
        $region45: #{tpu_custom_call.1} parent=39 // pred_check
          %p323 = pneg %p69
        $region46: #{tpu_custom_call.1} parent=39 // pred_check_branch
          %325 = sbr.rel (%p323) target = $region48
        $region47: #{tpu_custom_call.1} parent=39 // pred_region
          %p326 = scmp.lt.s32.totalorder %s23, 1
          %s327 = scalar_select %p326, %s23, 1
          %s328 = smul.addr %s327, 2
          %s329 = smul.addr %s328, 8
          %s330 = scalar_lea.vmem %s1, %s329
        $region48: #{tpu_custom_call.1} parent=39 // pred_fallthru
          _
        // Predicated region
        $region49: #{tpu_custom_call.1} parent=39 // pred_check
          %p331 = pneg %p95
        $region50: #{tpu_custom_call.1} parent=39 // pred_check_branch
          %333 = sbr.rel (%p331) target = $region52
        $region51: #{tpu_custom_call.1} parent=39 // pred_region
          %p334 = scmp.lt.s32.totalorder %s23, 1
          %s335 = scalar_select %p334, %s23, 1
          %s336 = smul.addr %s335, 2
          %s337 = smul.addr %s336, 8
          %s338 = scalar_lea.vmem %s2, %s337
        $region52: #{tpu_custom_call.1} parent=39 // pred_fallthru
          _
      $region40: #{tpu_custom_call.1} parent=5 // pred_fallthru
        _
      %p339 = scmp.le.s32.totalorder 1, %s23
      %p340 = scmp.lt.s32.totalorder %s23, 3
      %p341 = pnand %p339, %p340
      %p342 = pneg %p341
      // Predicated region
      $region53: #{tpu_custom_call.1} parent=5 // pred_check
        _
      $region54: #{tpu_custom_call.1} parent=5 // pred_check_branch
        %344 = sbr.rel (%p341) target = $region56
      $region55: #{tpu_custom_call.1} parent=5 // pred_region
        %s345 = ssub.s32 %s23, 1
        %p346 = scmp.lt.s32.totalorder %s28, 1
        %s347 = scalar_select %p346, %s28, 1
        %s348 = smul.addr %s347, 8
        %s349 = scalar_lea.vmem %s0, %s348
        %p350 = pneg %p49
        %p351 = pneg %p46
        %p352 = scmp.lt.s32.totalorder %s28, 1
        %s353 = scalar_select %p352, %s28, 1
        %s354 = smul.addr %s353, 2
        %s355 = smul.addr %s354, 8
        %s356 = scalar_lea.vmem %s1, %s355
        %p357 = pneg %p75
        %p358 = pneg %p72
        %p359 = scmp.lt.s32.totalorder %s28, 1
        %s360 = scalar_select %p359, %s28, 1
        %s361 = smul.addr %s360, 2
        %s362 = smul.addr %s361, 8
        %s363 = scalar_lea.vmem %s2, %s362
        %p364 = pneg %p101
        %p365 = pneg %p98
        %p366 = pneg %p122
        %p367 = pneg %p119
        %p368 = pneg %p143
        %p369 = pneg %p140
        %p370 = pneg %p164
        %p371 = pneg %p161
        %p372 = pneg %p185
        %p373 = pneg %p182
        %p374 = pneg %p206
        %p375 = pneg %p203
        %p376 = pneg %p227
        %p377 = pneg %p224
        %p378 = pneg %p253
        %p379 = pneg %p250
        %s380 = sand.u32 %s240, 1
        %s381 = scalar_lea.sflag [#allocation6], %s380
        %s382 = sand.u32 %s240, 1
        %s383 = smul.addr %s382, 8
        %s384 = scalar_lea.vmem [#allocation5], %s383
        %p385 = pneg %p279
        %p386 = pneg %p276
        %s387 = sand.u32 %s266, 1
        %s388 = scalar_lea.sflag [#allocation8], %s387
        %s389 = sand.u32 %s266, 1
        %s390 = smul.addr %s389, 16
        %s391 = scalar_lea.vmem [#allocation7], %s390
        %p392 = scmp.lt.s32.totalorder %s28, 1
        %s393 = scalar_select %p392, %s28, 1
        %s394 = smul.addr %s393, 8
        %s395 = scalar_lea.vmem %s0, %s394
        %p396 = scmp.lt.s32.totalorder %s28, 1
        %s397 = scalar_select %p396, %s28, 1
        %s398 = smul.addr %s397, 2
        %s399 = smul.addr %s398, 8
        %s400 = scalar_lea.vmem %s1, %s399
        %p401 = scmp.lt.s32.totalorder %s28, 1
        %s402 = scalar_select %p401, %s28, 1
        %s403 = smul.addr %s402, 2
        %s404 = smul.addr %s403, 8
        %s405 = scalar_lea.vmem %s2, %s404
        %v407 = vld [vmem:[%s395] sm:$0xff]
        %v408 = vld [vmem:[%s400] sm:$0xff]
        %v409 = vld [vmem:[%s400 + $0x8] sm:$0xff]
        %v410 = vld [vmem:[%s405] sm:$0xff]
        %v411 = vld [vmem:[%s405 + $0x8] sm:$0xf]
        %v412 = vld [vmem:[%s3] sm:$0xff]
        %v413 = vld [vmem:[%s3 + $0x8] sm:$0x1f]
        %vm414 = vcmask 261120
        %v415 = vsel %vm414, %v407, 0.0
        %416 = vadd.xlane.f32.xlu0 %v415
        %v417 = vpop.xlane.xlu0 %416
        %v418 = vrcp.pop 32.0
        %v419 = vmul.f32 %v417, %v418
        %v420 = vsub.f32 %v407, %v419
        %v421 = vmul.f32 %v420, %v420
        %v422 = vsel %vm414, %v421, 0.0
        %423 = vadd.xlane.f32.xlu0 %v422
        %v424 = vpop.xlane.xlu0 %423
        %v425 = vmul.f32 %v424, %v418
        %v426 = vadd.f32 %v425, 1e-06
        %v427 = vrsqrt.pop %v426
        %v428 = vmul.f32 %v420, %v427
        %v429 = vlaneseq
        %v430 = vshrl.u32 %v429, 7
        %v431 = vsub.s32 0, %v430
        %v432 = vrot.slane %v412, %v431
        %v433 = vmul.f32 %v428, %v432
        %v434 = vlaneseq
        %v435 = vshrl.u32 %v434, 7
        %v436 = vsub.s32 1, %v435
        %v437 = vrot.slane %v412, %v436
        %v438 = vadd.f32 %v433, %v437
        %v439 = vadd.f32 %v410, 1.0
        %v440 = vlaneseq
        %v441 = vshrl.u32 %v440, 7
        %v442 = vsub.s32 1, %v441
        %v443 = vrot.slane %v439, %v442
        %v444 = vmul.f32 %v438, %v443
        %v445 = vlaneseq
        %v446 = vshrl.u32 %v445, 7
        %v447 = vsub.s32 0, %v446
        %v448 = vrot.slane %v410, %v447
        %v449 = vadd.f32 %v444, %v448
        %v450 = vpack.c.bf16 %v449, %v449
        %v451 = vld [vmem:[%s5] sm:$0xf]
        %v452 = vld [vmem:[%s5 + $0x4] sm:$0xf]
        %v453 = vld [vmem:[%s5 + $0x8] sm:$0xf]
        %v454 = vld [vmem:[%s5 + $0xc] sm:$0xf]
        %v459 = vunpack.c.l.b16 %v451
        %v460 = vunpack.c.l.b16 %v452
        %v461 = vunpack.c.l.b16 %v453
        %v462 = vunpack.c.l.b16 %v454
        %v463 = vpack.c.b16 %v460, %v459
        %v464 = vpack.c.b16 %v462, %v461
        %v468 = vsel %vm414, %v450, 0
        %470 = vmatprep.subr.bf16.mxu0 0
        %471 = vmatpush1.bf16.msra.mxu0 %v463
        %472 = vmatprep.subr.bf16.mxu0 0
        %473 = vmatpush1.bf16.msra.mxu0 %v464
        %474 = vmatprep.subr.bf16.mxu0 0
        %475 = vmatpush1.bf16.msra.mxu0 0
        %476 = vmatprep.subr.bf16.mxu0 0
        %477 = vmatpush1.bf16.msra.mxu0 0
        %478 = vmatprep.subr.bf16.mxu0 0
        %479 = vmatpush1.bf16.msra.mxu0 0
        %480 = vmatprep.subr.bf16.mxu0 0
        %481 = vmatpush1.bf16.msra.mxu0 0
        %482 = vmatprep.subr.bf16.mxu0 0
        %483 = vmatpush1.bf16.msra.mxu0 0
        %484 = vmatprep.subr.bf16.mxu0 0
        %485 = vmatpush1.bf16.msra.mxu0 0
        %486 = vmatprep.subr.bf16.mxu0 0
        %487 = vmatpush1.bf16.msra.mxu0 0
        %488 = vmatprep.subr.bf16.mxu0 0
        %489 = vmatpush1.bf16.msra.mxu0 0
        %490 = vmatprep.subr.bf16.mxu0 0
        %491 = vmatpush1.bf16.msra.mxu0 0
        %492 = vmatprep.subr.bf16.mxu0 0
        %493 = vmatpush1.bf16.msra.mxu0 0
        %494 = vmatprep.subr.bf16.mxu0 0
        %495 = vmatpush1.bf16.msra.mxu0 0
        %496 = vmatprep.subr.bf16.mxu0 0
        %497 = vmatpush1.bf16.msra.mxu0 0
        %498 = vmatprep.subr.bf16.mxu0 0
        %499 = vmatpush1.bf16.msra.mxu0 0
        %500 = vmatprep.subr.bf16.mxu0 0
        %501 = vmatpush1.bf16.msra.mxu0 0
        %502 = vmatprep.mubr.bf16.mxu0 0
        %503 = vmatmul.mubr.bf16.gmra.mrb[0].mxu0 %v468
        %v504 = vpop.f32.mrb[0].mxu0
        %v505 = vadd.f32 0.0, %v504
        %v506 = vpop.f32.mrb[0].mxu0
        %v507 = vpop.f32.mrb[0].mxu0
        %v508 = vpop.f32.mrb[0].mxu0
        %509 = vdwg.mxu0
        %v510 = vlaneseq
        %v511 = vshrl.u32 %v510, 7
        %v512 = vsub.s32 2, %v511
        %v513 = vrot.slane %v413, %v512
        %v514 = vadd.f32 %v505, %v513
        %v515 = vsel %vm414, %v514, 0.0
        %516 = vadd.xlane.f32.xlu0 %v515
        %v517 = vpop.xlane.xlu0 %516
        %v518 = vmul.f32 %v517, %v418
        %v519 = vsub.f32 %v514, %v518
        %v520 = vmul.f32 %v519, %v519
        %v521 = vsel %vm414, %v520, 0.0
        %522 = vadd.xlane.f32.xlu0 %v521
        %v523 = vpop.xlane.xlu0 %522
        %v524 = vmul.f32 %v523, %v418
        %v525 = vadd.f32 %v524, 1e-06
        %v526 = vrsqrt.pop %v525
        %v527 = vmul.f32 %v519, %v526
        %v528 = vlaneseq
        %v529 = vshrl.u32 %v528, 7
        %v530 = vsub.s32 2, %v529
        %v531 = vrot.slane %v412, %v530
        %v532 = vmul.f32 %v527, %v531
        %v533 = vlaneseq
        %v534 = vshrl.u32 %v533, 7
        %v535 = vsub.s32 3, %v534
        %v536 = vrot.slane %v412, %v535
        %v537 = vadd.f32 %v532, %v536
        %v538 = vlaneseq
        %v539 = vshrl.u32 %v538, 7
        %v540 = vsub.s32 3, %v539
        %v541 = vrot.slane %v413, %v540
        %543 = vrot.lane.b32.xlu0 %v541, 32
        %v544 = vpop.permute.xlu0 %543
        %v546 = vadd.f32 %v505, %v544
        %548 = vrot.lane.b32.xlu0 %v546, 96
        %v549 = vpop.permute.xlu0 %548
        %v551 = vsel %vm414, %v549, 0.0
        %552 = vadd.xlane.f32.xlu0 %v551
        %v553 = vpop.xlane.xlu0 %552
        %v554 = vmul.f32 %v553, %v418
        %v555 = vsub.f32 %v546, %v554
        %v556 = vmul.f32 %v555, %v555
        %558 = vrot.lane.b32.xlu0 %v556, 96
        %v559 = vpop.permute.xlu0 %558
        %v561 = vsel %vm414, %v559, 0.0
        %562 = vadd.xlane.f32.xlu0 %v561
        %v563 = vpop.xlane.xlu0 %562
        %v564 = vmul.f32 %v563, %v418
        %v565 = vadd.f32 %v564, 1e-06
        %v566 = vrsqrt.pop %v565
        %v567 = vmul.f32 %v555, %v566
        %v568 = vlaneseq
        %v569 = vshrl.u32 %v568, 7
        %v570 = vsub.s32 4, %v569
        %v571 = vrot.slane %v412, %v570
        %573 = vrot.lane.b32.xlu0 %v571, 32
        %v574 = vpop.permute.xlu0 %573
        %v576 = vmul.f32 %v567, %v574
        %v577 = vlaneseq
        %v578 = vshrl.u32 %v577, 7
        %v579 = vsub.s32 5, %v578
        %v580 = vrot.slane %v412, %v579
        %582 = vrot.lane.b32.xlu0 %v580, 32
        %v583 = vpop.permute.xlu0 %582
        %v585 = vadd.f32 %v576, %v583
        %v586 = vlaneseq
        %v587 = vshrl.u32 %v586, 7
        %v588 = vsub.s32 4, %v587
        %v589 = vrot.slane %v413, %v588
        %591 = vrot.lane.b32.xlu0 %v589, 64
        %v592 = vpop.permute.xlu0 %591
        %v594 = vadd.f32 %v505, %v592
        %v595 = vpack.c.bf16 %v537, %v537
        %vm596 = vcmask 257024
        %597 = vst.msk [vmem:[#allocation2] sm:$0xf] %vm596, %v595
        %v598 = vpack.c.bf16 %v585, %v585
        %v600 = vunpack.c.l.b16 %v598
        %v601 = vpack.c.b16 %v600, %v600
        %602 = vrot.lane.b32.xlu0 %v601, 96
        %v603 = vpop.permute.xlu0 %602
        %605 = vst.msk [vmem:[#allocation3] sm:$0xf] %vm596, %v603
        %v606 = vpack.c.bf16 %v594, %v594
        %v608 = vunpack.c.l.b16 %v606
        %v609 = vpack.c.b16 %v608, %v608
        %610 = vrot.lane.b32.xlu0 %v609, 64
        %v611 = vpop.permute.xlu0 %610
        %613 = vst.msk [vmem:[#allocation4] sm:$0xf] %vm596, %v611
        %s614 = scalar_lea.vmem %s3, 16
        %v615 = vld [vmem:[%s614] sm:$0xff]
        %v616 = vld [vmem:[%s614 + $0x8] sm:$0x1f]
        %v617 = vsel %vm414, %v408, 0.0
        %618 = vadd.xlane.f32.xlu0 %v617
        %v619 = vpop.xlane.xlu0 %618
        %v620 = vsel %vm414, %v409, 0.0
        %621 = vadd.xlane.f32.xlu0 %v620
        %v622 = vpop.xlane.xlu0 %621
        %v623 = vmul.f32 %v619, %v418
        %v624 = vmul.f32 %v622, %v418
        %v625 = vsub.f32 %v408, %v623
        %v626 = vsub.f32 %v409, %v624
        %v627 = vmul.f32 %v625, %v625
        %v628 = vmul.f32 %v626, %v626
        %v629 = vsel %vm414, %v627, 0.0
        %630 = vadd.xlane.f32.xlu0 %v629
        %v631 = vpop.xlane.xlu0 %630
        %v632 = vsel %vm414, %v628, 0.0
        %633 = vadd.xlane.f32.xlu0 %v632
        %v634 = vpop.xlane.xlu0 %633
        %v635 = vmul.f32 %v631, %v418
        %v636 = vmul.f32 %v634, %v418
        %v637 = vadd.f32 %v635, 1e-06
        %v638 = vadd.f32 %v636, 1e-06
        %v639 = vrsqrt.pop %v637
        %v640 = vrsqrt.pop %v638
        %v641 = vmul.f32 %v625, %v639
        %v642 = vmul.f32 %v626, %v640
        %v643 = vlaneseq
        %v644 = vshrl.u32 %v643, 7
        %v645 = vsub.s32 0, %v644
        %v646 = vrot.slane %v615, %v645
        %v647 = vmul.f32 %v641, %v646
        %v648 = vmul.f32 %v642, %v646
        %v649 = vlaneseq
        %v650 = vshrl.u32 %v649, 7
        %v651 = vsub.s32 1, %v650
        %v652 = vrot.slane %v615, %v651
        %v653 = vadd.f32 %v647, %v652
        %v654 = vadd.f32 %v648, %v652
        %v655 = vlaneseq
        %v656 = vshrl.u32 %v655, 7
        %v657 = vsub.s32 3, %v656
        %v658 = vrot.slane %v439, %v657
        %v659 = vmul.f32 %v653, %v658
        %v660 = vmul.f32 %v654, %v658
        %v661 = vlaneseq
        %v662 = vshrl.u32 %v661, 7
        %v663 = vsub.s32 2, %v662
        %v664 = vrot.slane %v410, %v663
        %v665 = vadd.f32 %v659, %v664
        %v666 = vadd.f32 %v660, %v664
        %v667 = vpack.c.bf16 %v666, %v665
        %s668 = scalar_lea.vmem %s5, 16
        %v669 = vld [vmem:[%s668] sm:$0xf]
        %v670 = vld [vmem:[%s668 + $0x4] sm:$0xf]
        %v671 = vld [vmem:[%s668 + $0x8] sm:$0xf]
        %v672 = vld [vmem:[%s668 + $0xc] sm:$0xf]
        %v677 = vunpack.c.l.b16 %v669
        %v678 = vunpack.c.l.b16 %v670
        %v679 = vunpack.c.l.b16 %v671
        %v680 = vunpack.c.l.b16 %v672
        %v681 = vpack.c.b16 %v678, %v677
        %v682 = vpack.c.b16 %v680, %v679
        %v686 = vsel %vm414, %v667, 0
        %688 = vmatprep.subr.bf16.mxu0 0
        %689 = vmatpush1.bf16.msra.mxu0 %v681
        %690 = vmatprep.subr.bf16.mxu0 0
        %691 = vmatpush1.bf16.msra.mxu0 %v682
        %692 = vmatprep.subr.bf16.mxu0 0
        %693 = vmatpush1.bf16.msra.mxu0 0
        %694 = vmatprep.subr.bf16.mxu0 0
        %695 = vmatpush1.bf16.msra.mxu0 0
        %696 = vmatprep.subr.bf16.mxu0 0
        %697 = vmatpush1.bf16.msra.mxu0 0
        %698 = vmatprep.subr.bf16.mxu0 0
        %699 = vmatpush1.bf16.msra.mxu0 0
        %700 = vmatprep.subr.bf16.mxu0 0
        %701 = vmatpush1.bf16.msra.mxu0 0
        %702 = vmatprep.subr.bf16.mxu0 0
        %703 = vmatpush1.bf16.msra.mxu0 0
        %704 = vmatprep.subr.bf16.mxu0 0
        %705 = vmatpush1.bf16.msra.mxu0 0
        %706 = vmatprep.subr.bf16.mxu0 0
        %707 = vmatpush1.bf16.msra.mxu0 0
        %708 = vmatprep.subr.bf16.mxu0 0
        %709 = vmatpush1.bf16.msra.mxu0 0
        %710 = vmatprep.subr.bf16.mxu0 0
        %711 = vmatpush1.bf16.msra.mxu0 0
        %712 = vmatprep.subr.bf16.mxu0 0
        %713 = vmatpush1.bf16.msra.mxu0 0
        %714 = vmatprep.subr.bf16.mxu0 0
        %715 = vmatpush1.bf16.msra.mxu0 0
        %716 = vmatprep.subr.bf16.mxu0 0
        %717 = vmatpush1.bf16.msra.mxu0 0
        %718 = vmatprep.subr.bf16.mxu0 0
        %719 = vmatpush1.bf16.msra.mxu0 0
        %720 = vmatprep.mubr.bf16.mxu0 0
        %721 = vmatmul.mubr.bf16.gmra.mrb[0].mxu0 %v686
        %v722 = vpop.f32.mrb[0].mxu0
        %v723 = vadd.f32 0.0, %v722
        %v724 = vpop.f32.mrb[0].mxu0
        %v725 = vpop.f32.mrb[0].mxu0
        %v726 = vadd.f32 0.0, %v725
        %v727 = vpop.f32.mrb[0].mxu0
        %728 = vdwg.mxu0
        %v729 = vlaneseq
        %v730 = vshrl.u32 %v729, 7
        %v731 = vsub.s32 2, %v730
        %v732 = vrot.slane %v616, %v731
        %v733 = vadd.f32 %v723, %v732
        %v734 = vadd.f32 %v726, %v732
        %v735 = vsel %vm414, %v733, 0.0
        %736 = vadd.xlane.f32.xlu0 %v735
        %v737 = vpop.xlane.xlu0 %736
        %v738 = vsel %vm414, %v734, 0.0
        %739 = vadd.xlane.f32.xlu0 %v738
        %v740 = vpop.xlane.xlu0 %739
        %v741 = vmul.f32 %v737, %v418
        %v742 = vmul.f32 %v740, %v418
        %v743 = vsub.f32 %v733, %v741
        %v744 = vsub.f32 %v734, %v742
        %v745 = vmul.f32 %v743, %v743
        %v746 = vmul.f32 %v744, %v744
        %v747 = vsel %vm414, %v745, 0.0
        %748 = vadd.xlane.f32.xlu0 %v747
        %v749 = vpop.xlane.xlu0 %748
        %v750 = vsel %vm414, %v746, 0.0
        %751 = vadd.xlane.f32.xlu0 %v750
        %v752 = vpop.xlane.xlu0 %751
        %v753 = vmul.f32 %v749, %v418
        %v754 = vmul.f32 %v752, %v418
        %v755 = vadd.f32 %v753, 1e-06
        %v756 = vadd.f32 %v754, 1e-06
        %v757 = vrsqrt.pop %v755
        %v758 = vrsqrt.pop %v756
        %v759 = vmul.f32 %v743, %v757
        %v760 = vmul.f32 %v744, %v758
        %v761 = vlaneseq
        %v762 = vshrl.u32 %v761, 7
        %v763 = vsub.s32 2, %v762
        %v764 = vrot.slane %v615, %v763
        %v765 = vmul.f32 %v759, %v764
        %v766 = vmul.f32 %v760, %v764
        %v767 = vlaneseq
        %v768 = vshrl.u32 %v767, 7
        %v769 = vsub.s32 3, %v768
        %v770 = vrot.slane %v615, %v769
        %v771 = vadd.f32 %v765, %v770
        %v772 = vadd.f32 %v766, %v770
        %v773 = vlaneseq
        %v774 = vshrl.u32 %v773, 7
        %v775 = vsub.s32 3, %v774
        %v776 = vrot.slane %v616, %v775
        %778 = vrot.lane.b32.xlu0 %v776, 32
        %v779 = vpop.permute.xlu0 %778
        %v781 = vadd.f32 %v723, %v779
        %v782 = vadd.f32 %v726, %v779
        %785 = vrot.lane.b32.xlu0 %v781, 96
        %v786 = vpop.permute.xlu0 %785
        %787 = vrot.lane.b32.xlu0 %v782, 96
        %v788 = vpop.permute.xlu0 %787
        %v791 = vsel %vm414, %v786, 0.0
        %792 = vadd.xlane.f32.xlu0 %v791
        %v793 = vpop.xlane.xlu0 %792
        %v794 = vsel %vm414, %v788, 0.0
        %795 = vadd.xlane.f32.xlu0 %v794
        %v796 = vpop.xlane.xlu0 %795
        %v797 = vmul.f32 %v793, %v418
        %v798 = vmul.f32 %v796, %v418
        %v799 = vsub.f32 %v781, %v797
        %v800 = vsub.f32 %v782, %v798
        %v801 = vmul.f32 %v799, %v799
        %v802 = vmul.f32 %v800, %v800
        %805 = vrot.lane.b32.xlu0 %v801, 96
        %v806 = vpop.permute.xlu0 %805
        %807 = vrot.lane.b32.xlu0 %v802, 96
        %v808 = vpop.permute.xlu0 %807
        %v811 = vsel %vm414, %v806, 0.0
        %812 = vadd.xlane.f32.xlu0 %v811
        %v813 = vpop.xlane.xlu0 %812
        %v814 = vsel %vm414, %v808, 0.0
        %815 = vadd.xlane.f32.xlu0 %v814
        %v816 = vpop.xlane.xlu0 %815
        %v817 = vmul.f32 %v813, %v418
        %v818 = vmul.f32 %v816, %v418
        %v819 = vadd.f32 %v817, 1e-06
        %v820 = vadd.f32 %v818, 1e-06
        %v821 = vrsqrt.pop %v819
        %v822 = vrsqrt.pop %v820
        %v823 = vmul.f32 %v799, %v821
        %v824 = vmul.f32 %v800, %v822
        %v825 = vlaneseq
        %v826 = vshrl.u32 %v825, 7
        %v827 = vsub.s32 4, %v826
        %v828 = vrot.slane %v615, %v827
        %830 = vrot.lane.b32.xlu0 %v828, 32
        %v831 = vpop.permute.xlu0 %830
        %v833 = vmul.f32 %v823, %v831
        %v834 = vmul.f32 %v824, %v831
        %v835 = vlaneseq
        %v836 = vshrl.u32 %v835, 7
        %v837 = vsub.s32 5, %v836
        %v838 = vrot.slane %v615, %v837
        %840 = vrot.lane.b32.xlu0 %v838, 32
        %v841 = vpop.permute.xlu0 %840
        %v843 = vadd.f32 %v833, %v841
        %v844 = vadd.f32 %v834, %v841
        %v845 = vlaneseq
        %v846 = vshrl.u32 %v845, 7
        %v847 = vsub.s32 4, %v846
        %v848 = vrot.slane %v616, %v847
        %850 = vrot.lane.b32.xlu0 %v848, 64
        %v851 = vpop.permute.xlu0 %850
        %v853 = vadd.f32 %v723, %v851
        %v854 = vadd.f32 %v726, %v851
        %v855 = vpack.c.bf16 %v772, %v771
        %v857 = vunpack.c.l.b16 %v855
        %v858 = vunpack.c.h.b16 %v855
        %v859 = vpack.c.b16 %v857, %v857
        %v860 = vpack.c.b16 %v858, %v858
        %863 = vst.msk [vmem:[#allocation2 + $0x4] sm:$0xf] %vm596, %v859
        %864 = vst.msk [vmem:[#allocation2 + $0x8] sm:$0xf] %vm596, %v860
        %v865 = vpack.c.bf16 %v844, %v843
        %v867 = vunpack.c.l.b16 %v865
        %v868 = vunpack.c.h.b16 %v865
        %v869 = vpack.c.b16 %v867, %v867
        %v870 = vpack.c.b16 %v868, %v868
        %871 = vrot.lane.b32.xlu0 %v869, 96
        %v872 = vpop.permute.xlu0 %871
        %873 = vrot.lane.b32.xlu0 %v870, 96
        %v874 = vpop.permute.xlu0 %873
        %877 = vst.msk [vmem:[#allocation3 + $0x4] sm:$0xf] %vm596, %v872
        %878 = vst.msk [vmem:[#allocation3 + $0x8] sm:$0xf] %vm596, %v874
        %v879 = vpack.c.bf16 %v854, %v853
        %v881 = vunpack.c.l.b16 %v879
        %v882 = vunpack.c.h.b16 %v879
        %v883 = vpack.c.b16 %v881, %v881
        %v884 = vpack.c.b16 %v882, %v882
        %885 = vrot.lane.b32.xlu0 %v883, 64
        %v886 = vpop.permute.xlu0 %885
        %887 = vrot.lane.b32.xlu0 %v884, 64
        %v888 = vpop.permute.xlu0 %887
        %891 = vst.msk [vmem:[#allocation4 + $0x4] sm:$0xf] %vm596, %v886
        %892 = vst.msk [vmem:[#allocation4 + $0x8] sm:$0xf] %vm596, %v888
        %v893 = vld [vmem:[#allocation2] sm:$0xf]
        %v894 = vld [vmem:[#allocation2 + $0x4] sm:$0xf]
        %v895 = vld [vmem:[#allocation2 + $0x8] sm:$0xf]
        %v896 = vld [vmem:[#allocation3] sm:$0xf]
        %v897 = vld [vmem:[#allocation3 + $0x4] sm:$0xf]
        %v898 = vld [vmem:[#allocation3 + $0x8] sm:$0xf]
        %v899 = vld [vmem:[#allocation4] sm:$0xf]
        %v900 = vld [vmem:[#allocation4 + $0x4] sm:$0xf]
        %v901 = vld [vmem:[#allocation4 + $0x8] sm:$0xf]
        %v905 = vunpack.c.l.b16 %v893
        %v906 = vunpack.c.l.b16 %v894
        %v907 = vunpack.c.l.b16 %v895
        %v908 = vpack.c.b16 %v906, %v905
        %v909 = vpack.c.b16 %v907, %v907
        %v913 = vunpack.c.l.b16 %v896
        %v914 = vunpack.c.l.b16 %v897
        %v915 = vunpack.c.l.b16 %v898
        %v916 = vpack.c.b16 %v914, %v913
        %v917 = vpack.c.b16 %v915, %v915
        %vm918 = vcmask 64512
        %v920 = vsel %vm918, %v908, 0
        %v923 = vsel %vm918, %v909, 0
        %v926 = vsel %vm918, %v916, 0
        %v929 = vsel %vm918, %v917, 0
        %931 = vmatprep.subr.bf16.mxu0 0
        %932 = vmatpush1.bf16.xpose.msra.mxu0 %v926
        %933 = vmatprep.subr.bf16.mxu0 0
        %934 = vmatpush1.bf16.xpose.msra.mxu0 %v929
        %935 = vmatprep.subr.bf16.mxu0 0
        %936 = vmatpush1.bf16.xpose.msra.mxu0 0
        %937 = vmatprep.subr.bf16.mxu0 0
        %938 = vmatpush1.bf16.xpose.msra.mxu0 0
        %939 = vmatprep.subr.bf16.mxu0 0
        %940 = vmatpush1.bf16.xpose.msra.mxu0 0
        %941 = vmatprep.subr.bf16.mxu0 0
        %942 = vmatpush1.bf16.xpose.msra.mxu0 0
        %943 = vmatprep.subr.bf16.mxu0 0
        %944 = vmatpush1.bf16.xpose.msra.mxu0 0
        %945 = vmatprep.subr.bf16.mxu0 0
        %946 = vmatpush1.bf16.xpose.msra.mxu0 0
        %947 = vmatprep.subr.bf16.mxu0 0
        %948 = vmatpush1.bf16.xpose.msra.mxu0 0
        %949 = vmatprep.subr.bf16.mxu0 0
        %950 = vmatpush1.bf16.xpose.msra.mxu0 0
        %951 = vmatprep.subr.bf16.mxu0 0
        %952 = vmatpush1.bf16.xpose.msra.mxu0 0
        %953 = vmatprep.subr.bf16.mxu0 0
        %954 = vmatpush1.bf16.xpose.msra.mxu0 0
        %955 = vmatprep.subr.bf16.mxu0 0
        %956 = vmatpush1.bf16.xpose.msra.mxu0 0
        %957 = vmatprep.subr.bf16.mxu0 0
        %958 = vmatpush1.bf16.xpose.msra.mxu0 0
        %959 = vmatprep.subr.bf16.mxu0 0
        %960 = vmatpush1.bf16.xpose.msra.mxu0 0
        %961 = vmatprep.subr.bf16.mxu0 0
        %962 = vmatpush1.bf16.xpose.msra.mxu0 0
        %963 = vmatprep.mubr.bf16.mxu0 0
        %964 = vmatmul.mubr.bf16.gmra.mrb[0].mxu0 %v920
        %v965 = vpop.f32.mrb[0].mxu0
        %v966 = vadd.f32 0.0, %v965
        %v967 = vpop.f32.mrb[0].mxu0
        %v968 = vpop.f32.mrb[0].mxu0
        %v969 = vadd.f32 0.0, %v968
        %v970 = vpop.f32.mrb[0].mxu0
        %971 = vmatprep.mubr.bf16.mxu0 0
        %972 = vmatmul.mubr.bf16.gmra.mrb[0].mxu0 %v923
        %v973 = vpop.f32.mrb[0].mxu0
        %v974 = vadd.f32 0.0, %v973
        %v975 = vpop.f32.mrb[0].mxu0
        %v976 = vpop.f32.mrb[0].mxu0
        %v977 = vpop.f32.mrb[0].mxu0
        %978 = vdwg.mxu0
        %vm979 = vcmask 195584
        %v980 = vsel %vm979, %v966, -inf
        %981 = vmax.xlane.f32.xlu0 %v980
        %v982 = vpop.xlane.xlu0 %981
        %v983 = vsel %vm979, %v969, -inf
        %984 = vmax.xlane.f32.xlu0 %v983
        %v985 = vpop.xlane.xlu0 %984
        %v986 = vsel %vm979, %v974, -inf
        %987 = vmax.xlane.f32.xlu0 %v986
        %v988 = vpop.xlane.xlu0 %987
        %v989 = vsub.f32 %v966, %v982
        %v990 = vsub.f32 %v969, %v985
        %v991 = vsub.f32 %v974, %v988
        %v992 = vmul.f32 %v989, 1.442695
        %v993 = vpow.pop %v992
        %v994 = vmul.f32 %v990, 1.442695
        %v995 = vpow.pop %v994
        %v996 = vmul.f32 %v991, 1.442695
        %v997 = vpow.pop %v996
        %v998 = vsel %vm979, %v993, 0.0
        %999 = vadd.xlane.f32.xlu0 %v998
        %v1000 = vpop.xlane.xlu0 %999
        %v1001 = vsel %vm979, %v995, 0.0
        %1002 = vadd.xlane.f32.xlu0 %v1001
        %v1003 = vpop.xlane.xlu0 %1002
        %v1004 = vsel %vm979, %v997, 0.0
        %1005 = vadd.xlane.f32.xlu0 %v1004
        %v1006 = vpop.xlane.xlu0 %1005
        %v1007 = vpack.c.bf16 %v995, %v993
        %v1008 = vpack.c.bf16 %v997, %v997
        %v1012 = vunpack.c.l.b16 %v899
        %v1013 = vunpack.c.l.b16 %v900
        %v1014 = vunpack.c.l.b16 %v901
        %v1015 = vpack.c.b16 %v1013, %v1012
        %v1016 = vpack.c.b16 %v1014, %v1014
        %v1019 = vsel %vm979, %v1007, 0
        %v1022 = vsel %vm979, %v1008, 0
        %vm1024 = vcmask 1043456
        %v1026 = vsel %vm1024, %v1016, 0
        %1028 = vmatprep.subr.bf16.mxu0 0
        %1029 = vmatpush1.bf16.msra.mxu0 %v1015
        %1030 = vmatprep.subr.bf16.mxu0 0
        %1031 = vmatpush1.bf16.msra.mxu0 %v1026
        %1032 = vmatprep.subr.bf16.mxu0 0
        %1033 = vmatpush1.bf16.msra.mxu0 0
        %1034 = vmatprep.subr.bf16.mxu0 0
        %1035 = vmatpush1.bf16.msra.mxu0 0
        %1036 = vmatprep.subr.bf16.mxu0 0
        %1037 = vmatpush1.bf16.msra.mxu0 0
        %1038 = vmatprep.subr.bf16.mxu0 0
        %1039 = vmatpush1.bf16.msra.mxu0 0
        %1040 = vmatprep.subr.bf16.mxu0 0
        %1041 = vmatpush1.bf16.msra.mxu0 0
        %1042 = vmatprep.subr.bf16.mxu0 0
        %1043 = vmatpush1.bf16.msra.mxu0 0
        %1044 = vmatprep.subr.bf16.mxu0 0
        %1045 = vmatpush1.bf16.msra.mxu0 0
        %1046 = vmatprep.subr.bf16.mxu0 0
        %1047 = vmatpush1.bf16.msra.mxu0 0
        %1048 = vmatprep.subr.bf16.mxu0 0
        %1049 = vmatpush1.bf16.msra.mxu0 0
        %1050 = vmatprep.subr.bf16.mxu0 0
        %1051 = vmatpush1.bf16.msra.mxu0 0
        %1052 = vmatprep.subr.bf16.mxu0 0
        %1053 = vmatpush1.bf16.msra.mxu0 0
        %1054 = vmatprep.subr.bf16.mxu0 0
        %1055 = vmatpush1.bf16.msra.mxu0 0
        %1056 = vmatprep.subr.bf16.mxu0 0
        %1057 = vmatpush1.bf16.msra.mxu0 0
        %1058 = vmatprep.subr.bf16.mxu0 0
        %1059 = vmatpush1.bf16.msra.mxu0 0
        %1060 = vmatprep.mubr.bf16.mxu0 0
        %1061 = vmatmul.mubr.bf16.gmra.mrb[0].mxu0 %v1019
        %v1062 = vpop.f32.mrb[0].mxu0
        %v1063 = vadd.f32 0.0, %v1062
        %v1064 = vpop.f32.mrb[0].mxu0
        %v1065 = vpop.f32.mrb[0].mxu0
        %v1066 = vadd.f32 0.0, %v1065
        %v1067 = vpop.f32.mrb[0].mxu0
        %1068 = vmatprep.mubr.bf16.mxu0 0
        %1069 = vmatmul.mubr.bf16.gmra.mrb[0].mxu0 %v1022
        %v1070 = vpop.f32.mrb[0].mxu0
        %v1071 = vadd.f32 0.0, %v1070
        %v1072 = vpop.f32.mrb[0].mxu0
        %v1073 = vpop.f32.mrb[0].mxu0
        %v1074 = vpop.f32.mrb[0].mxu0
        %1075 = vdwg.mxu0
        %v1076 = vrcp.pop %v1000
        %v1077 = vrcp.pop %v1003
        %v1078 = vrcp.pop %v1006
        %v1079 = vmul.f32 %v1063, %v1076
        %v1080 = vmul.f32 %v1066, %v1077
        %v1081 = vmul.f32 %v1071, %v1078
        %1082 = vrot.lane.b32.xlu0 %v908, 120
        %v1083 = vpop.permute.xlu0 %1082
        %1084 = vrot.lane.b32.xlu0 %v909, 120
        %v1085 = vpop.permute.xlu0 %1084
        %1086 = vrot.lane.b32.xlu0 %v916, 120
        %v1087 = vpop.permute.xlu0 %1086
        %1088 = vrot.lane.b32.xlu0 %v917, 120
        %v1089 = vpop.permute.xlu0 %1088
        %v1091 = vsel %vm918, %v1083, 0
        %v1094 = vsel %vm918, %v1085, 0
        %v1097 = vsel %vm918, %v1087, 0
        %v1100 = vsel %vm918, %v1089, 0
        %1102 = vmatprep.subr.bf16.mxu0 0
        %1103 = vmatpush1.bf16.xpose.msra.mxu0 %v1097
        %1104 = vmatprep.subr.bf16.mxu0 0
        %1105 = vmatpush1.bf16.xpose.msra.mxu0 %v1100
        %1106 = vmatprep.subr.bf16.mxu0 0
        %1107 = vmatpush1.bf16.xpose.msra.mxu0 0
        %1108 = vmatprep.subr.bf16.mxu0 0
        %1109 = vmatpush1.bf16.xpose.msra.mxu0 0
        %1110 = vmatprep.subr.bf16.mxu0 0
        %1111 = vmatpush1.bf16.xpose.msra.mxu0 0
        %1112 = vmatprep.subr.bf16.mxu0 0
        %1113 = vmatpush1.bf16.xpose.msra.mxu0 0
        %1114 = vmatprep.subr.bf16.mxu0 0
        %1115 = vmatpush1.bf16.xpose.msra.mxu0 0
        %1116 = vmatprep.subr.bf16.mxu0 0
        %1117 = vmatpush1.bf16.xpose.msra.mxu0 0
        %1118 = vmatprep.subr.bf16.mxu0 0
        %1119 = vmatpush1.bf16.xpose.msra.mxu0 0
        %1120 = vmatprep.subr.bf16.mxu0 0
        %1121 = vmatpush1.bf16.xpose.msra.mxu0 0
        %1122 = vmatprep.subr.bf16.mxu0 0
        %1123 = vmatpush1.bf16.xpose.msra.mxu0 0
        %1124 = vmatprep.subr.bf16.mxu0 0
        %1125 = vmatpush1.bf16.xpose.msra.mxu0 0
        %1126 = vmatprep.subr.bf16.mxu0 0
        %1127 = vmatpush1.bf16.xpose.msra.mxu0 0
        %1128 = vmatprep.subr.bf16.mxu0 0
        %1129 = vmatpush1.bf16.xpose.msra.mxu0 0
        %1130 = vmatprep.subr.bf16.mxu0 0
        %1131 = vmatpush1.bf16.xpose.msra.mxu0 0
        %1132 = vmatprep.subr.bf16.mxu0 0
        %1133 = vmatpush1.bf16.xpose.msra.mxu0 0
        %1134 = vmatprep.mubr.bf16.mxu0 0
        %1135 = vmatmul.mubr.bf16.gmra.mrb[0].mxu0 %v1091
        %v1136 = vpop.f32.mrb[0].mxu0
        %v1137 = vadd.f32 0.0, %v1136
        %v1138 = vpop.f32.mrb[0].mxu0
        %v1139 = vpop.f32.mrb[0].mxu0
        %v1140 = vadd.f32 0.0, %v1139
        %v1141 = vpop.f32.mrb[0].mxu0
        %1142 = vmatprep.mubr.bf16.mxu0 0
        %1143 = vmatmul.mubr.bf16.gmra.mrb[0].mxu0 %v1094
        %v1144 = vpop.f32.mrb[0].mxu0
        %v1145 = vadd.f32 0.0, %v1144
        %v1146 = vpop.f32.mrb[0].mxu0
        %v1147 = vpop.f32.mrb[0].mxu0
        %v1148 = vpop.f32.mrb[0].mxu0
        %1149 = vdwg.mxu0
        %v1150 = vsel %vm979, %v1137, -inf
        %1151 = vmax.xlane.f32.xlu0 %v1150
        %v1152 = vpop.xlane.xlu0 %1151
        %v1153 = vsel %vm979, %v1140, -inf
        %1154 = vmax.xlane.f32.xlu0 %v1153
        %v1155 = vpop.xlane.xlu0 %1154
        %v1156 = vsel %vm979, %v1145, -inf
        %1157 = vmax.xlane.f32.xlu0 %v1156
        %v1158 = vpop.xlane.xlu0 %1157
        %v1159 = vsub.f32 %v1137, %v1152
        %v1160 = vsub.f32 %v1140, %v1155
        %v1161 = vsub.f32 %v1145, %v1158
        %v1162 = vmul.f32 %v1159, 1.442695
        %v1163 = vpow.pop %v1162
        %v1164 = vmul.f32 %v1160, 1.442695
        %v1165 = vpow.pop %v1164
        %v1166 = vmul.f32 %v1161, 1.442695
        %v1167 = vpow.pop %v1166
        %v1168 = vsel %vm979, %v1163, 0.0
        %1169 = vadd.xlane.f32.xlu0 %v1168
        %v1170 = vpop.xlane.xlu0 %1169
        %v1171 = vsel %vm979, %v1165, 0.0
        %1172 = vadd.xlane.f32.xlu0 %v1171
        %v1173 = vpop.xlane.xlu0 %1172
        %v1174 = vsel %vm979, %v1167, 0.0
        %1175 = vadd.xlane.f32.xlu0 %v1174
        %v1176 = vpop.xlane.xlu0 %1175
        %v1177 = vpack.c.bf16 %v1165, %v1163
        %v1178 = vpack.c.bf16 %v1167, %v1167
        %1179 = vrot.lane.b32.xlu0 %v1015, 120
        %v1180 = vpop.permute.xlu0 %1179
        %1181 = vrot.lane.b32.xlu0 %v1016, 120
        %v1182 = vpop.permute.xlu0 %1181
        %v1185 = vsel %vm979, %v1177, 0
        %v1188 = vsel %vm979, %v1178, 0
        %v1191 = vsel %vm1024, %v1182, 0
        %1193 = vmatprep.subr.bf16.mxu0 0
        %1194 = vmatpush1.bf16.msra.mxu0 %v1180
        %1195 = vmatprep.subr.bf16.mxu0 0
        %1196 = vmatpush1.bf16.msra.mxu0 %v1191
        %1197 = vmatprep.subr.bf16.mxu0 0
        %1198 = vmatpush1.bf16.msra.mxu0 0
        %1199 = vmatprep.subr.bf16.mxu0 0
        %1200 = vmatpush1.bf16.msra.mxu0 0
        %1201 = vmatprep.subr.bf16.mxu0 0
        %1202 = vmatpush1.bf16.msra.mxu0 0
        %1203 = vmatprep.subr.bf16.mxu0 0
        %1204 = vmatpush1.bf16.msra.mxu0 0
        %1205 = vmatprep.subr.bf16.mxu0 0
        %1206 = vmatpush1.bf16.msra.mxu0 0
        %1207 = vmatprep.subr.bf16.mxu0 0
        %1208 = vmatpush1.bf16.msra.mxu0 0
        %1209 = vmatprep.subr.bf16.mxu0 0
        %1210 = vmatpush1.bf16.msra.mxu0 0
        %1211 = vmatprep.subr.bf16.mxu0 0
        %1212 = vmatpush1.bf16.msra.mxu0 0
        %1213 = vmatprep.subr.bf16.mxu0 0
        %1214 = vmatpush1.bf16.msra.mxu0 0
        %1215 = vmatprep.subr.bf16.mxu0 0
        %1216 = vmatpush1.bf16.msra.mxu0 0
        %1217 = vmatprep.subr.bf16.mxu0 0
        %1218 = vmatpush1.bf16.msra.mxu0 0
        %1219 = vmatprep.subr.bf16.mxu0 0
        %1220 = vmatpush1.bf16.msra.mxu0 0
        %1221 = vmatprep.subr.bf16.mxu0 0
        %1222 = vmatpush1.bf16.msra.mxu0 0
        %1223 = vmatprep.subr.bf16.mxu0 0
        %1224 = vmatpush1.bf16.msra.mxu0 0
        %1225 = vmatprep.mubr.bf16.mxu0 0
        %1226 = vmatmul.mubr.bf16.gmra.mrb[0].mxu0 %v1185
        %v1227 = vpop.f32.mrb[0].mxu0
        %v1228 = vadd.f32 0.0, %v1227
        %v1229 = vpop.f32.mrb[0].mxu0
        %v1230 = vpop.f32.mrb[0].mxu0
        %v1231 = vadd.f32 0.0, %v1230
        %v1232 = vpop.f32.mrb[0].mxu0
        %1233 = vmatprep.mubr.bf16.mxu0 0
        %1234 = vmatmul.mubr.bf16.gmra.mrb[0].mxu0 %v1188
        %v1235 = vpop.f32.mrb[0].mxu0
        %v1236 = vadd.f32 0.0, %v1235
        %v1237 = vpop.f32.mrb[0].mxu0
        %v1238 = vpop.f32.mrb[0].mxu0
        %v1239 = vpop.f32.mrb[0].mxu0
        %1240 = vdwg.mxu0
        %v1241 = vrcp.pop %v1170
        %v1242 = vrcp.pop %v1173
        %v1243 = vrcp.pop %v1176
        %v1244 = vmul.f32 %v1228, %v1241
        %v1245 = vmul.f32 %v1231, %v1242
        %v1246 = vmul.f32 %v1236, %v1243
        %1247 = vrot.lane.b32.xlu0 %v908, 112
        %v1248 = vpop.permute.xlu0 %1247
        %1249 = vrot.lane.b32.xlu0 %v909, 112
        %v1250 = vpop.permute.xlu0 %1249
        %1251 = vrot.lane.b32.xlu0 %v916, 112
        %v1252 = vpop.permute.xlu0 %1251
        %1253 = vrot.lane.b32.xlu0 %v917, 112
        %v1254 = vpop.permute.xlu0 %1253
        %v1256 = vsel %vm918, %v1248, 0
        %v1259 = vsel %vm918, %v1250, 0
        %v1262 = vsel %vm918, %v1252, 0
        %v1265 = vsel %vm918, %v1254, 0
        %1267 = vmatprep.subr.bf16.mxu0 0
        %1268 = vmatpush1.bf16.xpose.msra.mxu0 %v1262
        %1269 = vmatprep.subr.bf16.mxu0 0
        %1270 = vmatpush1.bf16.xpose.msra.mxu0 %v1265
        %1271 = vmatprep.subr.bf16.mxu0 0
        %1272 = vmatpush1.bf16.xpose.msra.mxu0 0
        %1273 = vmatprep.subr.bf16.mxu0 0
        %1274 = vmatpush1.bf16.xpose.msra.mxu0 0
        %1275 = vmatprep.subr.bf16.mxu0 0
        %1276 = vmatpush1.bf16.xpose.msra.mxu0 0
        %1277 = vmatprep.subr.bf16.mxu0 0
        %1278 = vmatpush1.bf16.xpose.msra.mxu0 0
        %1279 = vmatprep.subr.bf16.mxu0 0
        %1280 = vmatpush1.bf16.xpose.msra.mxu0 0
        %1281 = vmatprep.subr.bf16.mxu0 0
        %1282 = vmatpush1.bf16.xpose.msra.mxu0 0
        %1283 = vmatprep.subr.bf16.mxu0 0
        %1284 = vmatpush1.bf16.xpose.msra.mxu0 0
        %1285 = vmatprep.subr.bf16.mxu0 0
        %1286 = vmatpush1.bf16.xpose.msra.mxu0 0
        %1287 = vmatprep.subr.bf16.mxu0 0
        %1288 = vmatpush1.bf16.xpose.msra.mxu0 0
        %1289 = vmatprep.subr.bf16.mxu0 0
        %1290 = vmatpush1.bf16.xpose.msra.mxu0 0
        %1291 = vmatprep.subr.bf16.mxu0 0
        %1292 = vmatpush1.bf16.xpose.msra.mxu0 0
        %1293 = vmatprep.subr.bf16.mxu0 0
        %1294 = vmatpush1.bf16.xpose.msra.mxu0 0
        %1295 = vmatprep.subr.bf16.mxu0 0
        %1296 = vmatpush1.bf16.xpose.msra.mxu0 0
        %1297 = vmatprep.subr.bf16.mxu0 0
        %1298 = vmatpush1.bf16.xpose.msra.mxu0 0
        %1299 = vmatprep.mubr.bf16.mxu0 0
        %1300 = vmatmul.mubr.bf16.gmra.mrb[0].mxu0 %v1256
        %v1301 = vpop.f32.mrb[0].mxu0
        %v1302 = vadd.f32 0.0, %v1301
        %v1303 = vpop.f32.mrb[0].mxu0
        %v1304 = vpop.f32.mrb[0].mxu0
        %v1305 = vadd.f32 0.0, %v1304
        %v1306 = vpop.f32.mrb[0].mxu0
        %1307 = vmatprep.mubr.bf16.mxu0 0
        %1308 = vmatmul.mubr.bf16.gmra.mrb[0].mxu0 %v1259
        %v1309 = vpop.f32.mrb[0].mxu0
        %v1310 = vadd.f32 0.0, %v1309
        %v1311 = vpop.f32.mrb[0].mxu0
        %v1312 = vpop.f32.mrb[0].mxu0
        %v1313 = vpop.f32.mrb[0].mxu0
        %1314 = vdwg.mxu0
        %v1315 = vsel %vm979, %v1302, -inf
        %1316 = vmax.xlane.f32.xlu0 %v1315
        %v1317 = vpop.xlane.xlu0 %1316
        %v1318 = vsel %vm979, %v1305, -inf
        %1319 = vmax.xlane.f32.xlu0 %v1318
        %v1320 = vpop.xlane.xlu0 %1319
        %v1321 = vsel %vm979, %v1310, -inf
        %1322 = vmax.xlane.f32.xlu0 %v1321
        %v1323 = vpop.xlane.xlu0 %1322
        %v1324 = vsub.f32 %v1302, %v1317
        %v1325 = vsub.f32 %v1305, %v1320
        %v1326 = vsub.f32 %v1310, %v1323
        %v1327 = vmul.f32 %v1324, 1.442695
        %v1328 = vpow.pop %v1327
        %v1329 = vmul.f32 %v1325, 1.442695
        %v1330 = vpow.pop %v1329
        %v1331 = vmul.f32 %v1326, 1.442695
        %v1332 = vpow.pop %v1331
        %v1333 = vsel %vm979, %v1328, 0.0
        %1334 = vadd.xlane.f32.xlu0 %v1333
        %v1335 = vpop.xlane.xlu0 %1334
        %v1336 = vsel %vm979, %v1330, 0.0
        %1337 = vadd.xlane.f32.xlu0 %v1336
        %v1338 = vpop.xlane.xlu0 %1337
        %v1339 = vsel %vm979, %v1332, 0.0
        %1340 = vadd.xlane.f32.xlu0 %v1339
        %v1341 = vpop.xlane.xlu0 %1340
        %v1342 = vpack.c.bf16 %v1330, %v1328
        %v1343 = vpack.c.bf16 %v1332, %v1332
        %1344 = vrot.lane.b32.xlu0 %v1015, 112
        %v1345 = vpop.permute.xlu0 %1344
        %1346 = vrot.lane.b32.xlu0 %v1016, 112
        %v1347 = vpop.permute.xlu0 %1346
        %v1350 = vsel %vm979, %v1342, 0
        %v1353 = vsel %vm979, %v1343, 0
        %v1356 = vsel %vm1024, %v1347, 0
        %1358 = vmatprep.subr.bf16.mxu0 0
        %1359 = vmatpush1.bf16.msra.mxu0 %v1345
        %1360 = vmatprep.subr.bf16.mxu0 0
        %1361 = vmatpush1.bf16.msra.mxu0 %v1356
        %1362 = vmatprep.subr.bf16.mxu0 0
        %1363 = vmatpush1.bf16.msra.mxu0 0
        %1364 = vmatprep.subr.bf16.mxu0 0
        %1365 = vmatpush1.bf16.msra.mxu0 0
        %1366 = vmatprep.subr.bf16.mxu0 0
        %1367 = vmatpush1.bf16.msra.mxu0 0
        %1368 = vmatprep.subr.bf16.mxu0 0
        %1369 = vmatpush1.bf16.msra.mxu0 0
        %1370 = vmatprep.subr.bf16.mxu0 0
        %1371 = vmatpush1.bf16.msra.mxu0 0
        %1372 = vmatprep.subr.bf16.mxu0 0
        %1373 = vmatpush1.bf16.msra.mxu0 0
        %1374 = vmatprep.subr.bf16.mxu0 0
        %1375 = vmatpush1.bf16.msra.mxu0 0
        %1376 = vmatprep.subr.bf16.mxu0 0
        %1377 = vmatpush1.bf16.msra.mxu0 0
        %1378 = vmatprep.subr.bf16.mxu0 0
        %1379 = vmatpush1.bf16.msra.mxu0 0
        %1380 = vmatprep.subr.bf16.mxu0 0
        %1381 = vmatpush1.bf16.msra.mxu0 0
        %1382 = vmatprep.subr.bf16.mxu0 0
        %1383 = vmatpush1.bf16.msra.mxu0 0
        %1384 = vmatprep.subr.bf16.mxu0 0
        %1385 = vmatpush1.bf16.msra.mxu0 0
        %1386 = vmatprep.subr.bf16.mxu0 0
        %1387 = vmatpush1.bf16.msra.mxu0 0
        %1388 = vmatprep.subr.bf16.mxu0 0
        %1389 = vmatpush1.bf16.msra.mxu0 0
        %1390 = vmatprep.mubr.bf16.mxu0 0
        %1391 = vmatmul.mubr.bf16.gmra.mrb[0].mxu0 %v1350
        %v1392 = vpop.f32.mrb[0].mxu0
        %v1393 = vadd.f32 0.0, %v1392
        %v1394 = vpop.f32.mrb[0].mxu0
        %v1395 = vpop.f32.mrb[0].mxu0
        %v1396 = vadd.f32 0.0, %v1395
        %v1397 = vpop.f32.mrb[0].mxu0
        %1398 = vmatprep.mubr.bf16.mxu0 0
        %1399 = vmatmul.mubr.bf16.gmra.mrb[0].mxu0 %v1353
        %v1400 = vpop.f32.mrb[0].mxu0
        %v1401 = vadd.f32 0.0, %v1400
        %v1402 = vpop.f32.mrb[0].mxu0
        %v1403 = vpop.f32.mrb[0].mxu0
        %v1404 = vpop.f32.mrb[0].mxu0
        %1405 = vdwg.mxu0
        %v1406 = vrcp.pop %v1335
        %v1407 = vrcp.pop %v1338
        %v1408 = vrcp.pop %v1341
        %v1409 = vmul.f32 %v1393, %v1406
        %v1410 = vmul.f32 %v1396, %v1407
        %v1411 = vmul.f32 %v1401, %v1408
        %1412 = vrot.lane.b32.xlu0 %v908, 104
        %v1413 = vpop.permute.xlu0 %1412
        %1414 = vrot.lane.b32.xlu0 %v909, 104
        %v1415 = vpop.permute.xlu0 %1414
        %1416 = vrot.lane.b32.xlu0 %v916, 104
        %v1417 = vpop.permute.xlu0 %1416
        %1418 = vrot.lane.b32.xlu0 %v917, 104
        %v1419 = vpop.permute.xlu0 %1418
        %v1421 = vsel %vm918, %v1413, 0
        %v1424 = vsel %vm918, %v1415, 0
        %v1427 = vsel %vm918, %v1417, 0
        %v1430 = vsel %vm918, %v1419, 0
        %1432 = vmatprep.subr.bf16.mxu0 0
        %1433 = vmatpush1.bf16.xpose.msra.mxu0 %v1427
        %1434 = vmatprep.subr.bf16.mxu0 0
        %1435 = vmatpush1.bf16.xpose.msra.mxu0 %v1430
        %1436 = vmatprep.subr.bf16.mxu0 0
        %1437 = vmatpush1.bf16.xpose.msra.mxu0 0
        %1438 = vmatprep.subr.bf16.mxu0 0
        %1439 = vmatpush1.bf16.xpose.msra.mxu0 0
        %1440 = vmatprep.subr.bf16.mxu0 0
        %1441 = vmatpush1.bf16.xpose.msra.mxu0 0
        %1442 = vmatprep.subr.bf16.mxu0 0
        %1443 = vmatpush1.bf16.xpose.msra.mxu0 0
        %1444 = vmatprep.subr.bf16.mxu0 0
        %1445 = vmatpush1.bf16.xpose.msra.mxu0 0
        %1446 = vmatprep.subr.bf16.mxu0 0
        %1447 = vmatpush1.bf16.xpose.msra.mxu0 0
        %1448 = vmatprep.subr.bf16.mxu0 0
        %1449 = vmatpush1.bf16.xpose.msra.mxu0 0
        %1450 = vmatprep.subr.bf16.mxu0 0
        %1451 = vmatpush1.bf16.xpose.msra.mxu0 0
        %1452 = vmatprep.subr.bf16.mxu0 0
        %1453 = vmatpush1.bf16.xpose.msra.mxu0 0
        %1454 = vmatprep.subr.bf16.mxu0 0
        %1455 = vmatpush1.bf16.xpose.msra.mxu0 0
        %1456 = vmatprep.subr.bf16.mxu0 0
        %1457 = vmatpush1.bf16.xpose.msra.mxu0 0
        %1458 = vmatprep.subr.bf16.mxu0 0
        %1459 = vmatpush1.bf16.xpose.msra.mxu0 0
        %1460 = vmatprep.subr.bf16.mxu0 0
        %1461 = vmatpush1.bf16.xpose.msra.mxu0 0
        %1462 = vmatprep.subr.bf16.mxu0 0
        %1463 = vmatpush1.bf16.xpose.msra.mxu0 0
        %1464 = vmatprep.mubr.bf16.mxu0 0
        %1465 = vmatmul.mubr.bf16.gmra.mrb[0].mxu0 %v1421
        %v1466 = vpop.f32.mrb[0].mxu0
        %v1467 = vadd.f32 0.0, %v1466
        %v1468 = vpop.f32.mrb[0].mxu0
        %v1469 = vpop.f32.mrb[0].mxu0
        %v1470 = vadd.f32 0.0, %v1469
        %v1471 = vpop.f32.mrb[0].mxu0
        %1472 = vmatprep.mubr.bf16.mxu0 0
        %1473 = vmatmul.mubr.bf16.gmra.mrb[0].mxu0 %v1424
        %v1474 = vpop.f32.mrb[0].mxu0
        %v1475 = vadd.f32 0.0, %v1474
        %v1476 = vpop.f32.mrb[0].mxu0
        %v1477 = vpop.f32.mrb[0].mxu0
        %v1478 = vpop.f32.mrb[0].mxu0
        %1479 = vdwg.mxu0
        %v1480 = vsel %vm979, %v1467, -inf
        %1481 = vmax.xlane.f32.xlu0 %v1480
        %v1482 = vpop.xlane.xlu0 %1481
        %v1483 = vsel %vm979, %v1470, -inf
        %1484 = vmax.xlane.f32.xlu0 %v1483
        %v1485 = vpop.xlane.xlu0 %1484
        %v1486 = vsel %vm979, %v1475, -inf
        %1487 = vmax.xlane.f32.xlu0 %v1486
        %v1488 = vpop.xlane.xlu0 %1487
        %v1489 = vsub.f32 %v1467, %v1482
        %v1490 = vsub.f32 %v1470, %v1485
        %v1491 = vsub.f32 %v1475, %v1488
        %v1492 = vmul.f32 %v1489, 1.442695
        %v1493 = vpow.pop %v1492
        %v1494 = vmul.f32 %v1490, 1.442695
        %v1495 = vpow.pop %v1494
        %v1496 = vmul.f32 %v1491, 1.442695
        %v1497 = vpow.pop %v1496
        %v1498 = vsel %vm979, %v1493, 0.0
        %1499 = vadd.xlane.f32.xlu0 %v1498
        %v1500 = vpop.xlane.xlu0 %1499
        %v1501 = vsel %vm979, %v1495, 0.0
        %1502 = vadd.xlane.f32.xlu0 %v1501
        %v1503 = vpop.xlane.xlu0 %1502
        %v1504 = vsel %vm979, %v1497, 0.0
        %1505 = vadd.xlane.f32.xlu0 %v1504
        %v1506 = vpop.xlane.xlu0 %1505
        %v1507 = vpack.c.bf16 %v1495, %v1493
        %v1508 = vpack.c.bf16 %v1497, %v1497
        %1509 = vrot.lane.b32.xlu0 %v1015, 104
        %v1510 = vpop.permute.xlu0 %1509
        %1511 = vrot.lane.b32.xlu0 %v1016, 104
        %v1512 = vpop.permute.xlu0 %1511
        %v1515 = vsel %vm979, %v1507, 0
        %v1518 = vsel %vm979, %v1508, 0
        %v1521 = vsel %vm1024, %v1512, 0
        %1523 = vmatprep.subr.bf16.mxu0 0
        %1524 = vmatpush1.bf16.msra.mxu0 %v1510
        %1525 = vmatprep.subr.bf16.mxu0 0
        %1526 = vmatpush1.bf16.msra.mxu0 %v1521
        %1527 = vmatprep.subr.bf16.mxu0 0
        %1528 = vmatpush1.bf16.msra.mxu0 0
        %1529 = vmatprep.subr.bf16.mxu0 0
        %1530 = vmatpush1.bf16.msra.mxu0 0
        %1531 = vmatprep.subr.bf16.mxu0 0
        %1532 = vmatpush1.bf16.msra.mxu0 0
        %1533 = vmatprep.subr.bf16.mxu0 0
        %1534 = vmatpush1.bf16.msra.mxu0 0
        %1535 = vmatprep.subr.bf16.mxu0 0
        %1536 = vmatpush1.bf16.msra.mxu0 0
        %1537 = vmatprep.subr.bf16.mxu0 0
        %1538 = vmatpush1.bf16.msra.mxu0 0
        %1539 = vmatprep.subr.bf16.mxu0 0
        %1540 = vmatpush1.bf16.msra.mxu0 0
        %1541 = vmatprep.subr.bf16.mxu0 0
        %1542 = vmatpush1.bf16.msra.mxu0 0
        %1543 = vmatprep.subr.bf16.mxu0 0
        %1544 = vmatpush1.bf16.msra.mxu0 0
        %1545 = vmatprep.subr.bf16.mxu0 0
        %1546 = vmatpush1.bf16.msra.mxu0 0
        %1547 = vmatprep.subr.bf16.mxu0 0
        %1548 = vmatpush1.bf16.msra.mxu0 0
        %1549 = vmatprep.subr.bf16.mxu0 0
        %1550 = vmatpush1.bf16.msra.mxu0 0
        %1551 = vmatprep.subr.bf16.mxu0 0
        %1552 = vmatpush1.bf16.msra.mxu0 0
        %1553 = vmatprep.subr.bf16.mxu0 0
        %1554 = vmatpush1.bf16.msra.mxu0 0
        %1555 = vmatprep.mubr.bf16.mxu0 0
        %1556 = vmatmul.mubr.bf16.gmra.mrb[0].mxu0 %v1515
        %v1557 = vpop.f32.mrb[0].mxu0
        %v1558 = vadd.f32 0.0, %v1557
        %v1559 = vpop.f32.mrb[0].mxu0
        %v1560 = vpop.f32.mrb[0].mxu0
        %v1561 = vadd.f32 0.0, %v1560
        %v1562 = vpop.f32.mrb[0].mxu0
        %1563 = vmatprep.mubr.bf16.mxu0 0
        %1564 = vmatmul.mubr.bf16.gmra.mrb[0].mxu0 %v1518
        %v1565 = vpop.f32.mrb[0].mxu0
        %v1566 = vadd.f32 0.0, %v1565
        %v1567 = vpop.f32.mrb[0].mxu0
        %v1568 = vpop.f32.mrb[0].mxu0
        %v1569 = vpop.f32.mrb[0].mxu0
        %1570 = vdwg.mxu0
        %v1571 = vrcp.pop %v1500
        %v1572 = vrcp.pop %v1503
        %v1573 = vrcp.pop %v1506
        %v1574 = vmul.f32 %v1558, %v1571
        %v1575 = vmul.f32 %v1561, %v1572
        %v1576 = vmul.f32 %v1566, %v1573
        %1580 = vrot.lane.b32.xlu0 %v1244, 8
        %v1581 = vpop.permute.xlu0 %1580
        %1582 = vrot.lane.b32.xlu0 %v1245, 8
        %v1583 = vpop.permute.xlu0 %1582
        %1584 = vrot.lane.b32.xlu0 %v1246, 8
        %v1585 = vpop.permute.xlu0 %1584
        %1592 = vrot.lane.b32.xlu0 %v1409, 16
        %v1593 = vpop.permute.xlu0 %1592
        %1594 = vrot.lane.b32.xlu0 %v1410, 16
        %v1595 = vpop.permute.xlu0 %1594
        %1596 = vrot.lane.b32.xlu0 %v1411, 16
        %v1597 = vpop.permute.xlu0 %1596
        %1604 = vrot.lane.b32.xlu0 %v1574, 24
        %v1605 = vpop.permute.xlu0 %1604
        %1606 = vrot.lane.b32.xlu0 %v1575, 24
        %v1607 = vpop.permute.xlu0 %1606
        %1608 = vrot.lane.b32.xlu0 %v1576, 24
        %v1609 = vpop.permute.xlu0 %1608
        %v1613 = vsel %vm918, %v1079, %v1581
        %v1614 = vsel %vm918, %v1080, %v1583
        %v1615 = vsel %vm918, %v1081, %v1585
        %vm1616 = vcmask 130048
        %v1617 = vsel %vm1616, %v1613, %v1593
        %v1618 = vsel %vm1616, %v1614, %v1595
        %v1619 = vsel %vm1616, %v1615, %v1597
        %v1620 = vsel %vm979, %v1617, %v1605
        %v1621 = vsel %vm979, %v1618, %v1607
        %v1622 = vsel %vm979, %v1619, %v1609
        %v1623 = vld [vmem:[%s3] sm:$0xff]
        %v1624 = vld [vmem:[%s3 + $0x8] sm:$0x1f]
        %v1625 = vpack.c.bf16 %v1620, %v1620
        %v1626 = vld [vmem:[%s6] sm:$0xf]
        %v1627 = vld [vmem:[%s6 + $0x4] sm:$0xf]
        %v1628 = vld [vmem:[%s6 + $0x8] sm:$0xf]
        %v1629 = vld [vmem:[%s6 + $0xc] sm:$0xf]
        %v1630 = vlaneseq
        %v1631 = vshrl.u32 %v1630, 7
        %v1632 = vsub.s32 6, %v1631
        %v1633 = vrot.slane %v1623, %v1632
        %v1638 = vunpack.c.l.b16 %v1626
        %v1639 = vunpack.c.l.b16 %v1627
        %v1640 = vunpack.c.l.b16 %v1628
        %v1641 = vunpack.c.l.b16 %v1629
        %v1642 = vpack.c.b16 %v1639, %v1638
        %v1643 = vpack.c.b16 %v1641, %v1640
        %v1647 = vsel %vm414, %v1625, 0
        %1649 = vmatprep.subr.bf16.mxu0 0
        %1650 = vmatpush1.bf16.msra.mxu0 %v1642
        %1651 = vmatprep.subr.bf16.mxu0 0
        %1652 = vmatpush1.bf16.msra.mxu0 %v1643
        %1653 = vmatprep.subr.bf16.mxu0 0
        %1654 = vmatpush1.bf16.msra.mxu0 0
        %1655 = vmatprep.subr.bf16.mxu0 0
        %1656 = vmatpush1.bf16.msra.mxu0 0
        %1657 = vmatprep.subr.bf16.mxu0 0
        %1658 = vmatpush1.bf16.msra.mxu0 0
        %1659 = vmatprep.subr.bf16.mxu0 0
        %1660 = vmatpush1.bf16.msra.mxu0 0
        %1661 = vmatprep.subr.bf16.mxu0 0
        %1662 = vmatpush1.bf16.msra.mxu0 0
        %1663 = vmatprep.subr.bf16.mxu0 0
        %1664 = vmatpush1.bf16.msra.mxu0 0
        %1665 = vmatprep.subr.bf16.mxu0 0
        %1666 = vmatpush1.bf16.msra.mxu0 0
        %1667 = vmatprep.subr.bf16.mxu0 0
        %1668 = vmatpush1.bf16.msra.mxu0 0
        %1669 = vmatprep.subr.bf16.mxu0 0
        %1670 = vmatpush1.bf16.msra.mxu0 0
        %1671 = vmatprep.subr.bf16.mxu0 0
        %1672 = vmatpush1.bf16.msra.mxu0 0
        %1673 = vmatprep.subr.bf16.mxu0 0
        %1674 = vmatpush1.bf16.msra.mxu0 0
        %1675 = vmatprep.subr.bf16.mxu0 0
        %1676 = vmatpush1.bf16.msra.mxu0 0
        %1677 = vmatprep.subr.bf16.mxu0 0
        %1678 = vmatpush1.bf16.msra.mxu0 0
        %1679 = vmatprep.subr.bf16.mxu0 0
        %1680 = vmatpush1.bf16.msra.mxu0 0
        %1681 = vmatprep.mubr.bf16.mxu0 0
        %1682 = vmatmul.mubr.bf16.gmra.mrb[0].mxu0 %v1647
        %v1683 = vpop.f32.mrb[0].mxu0
        %v1684 = vadd.f32 %v1633, %v1683
        %v1685 = vpop.f32.mrb[0].mxu0
        %v1686 = vpop.f32.mrb[0].mxu0
        %v1687 = vpop.f32.mrb[0].mxu0
        %1688 = vdwg.mxu0
        %v1689 = vlaneseq
        %v1690 = vshrl.u32 %v1689, 7
        %v1691 = vsub.s32 4, %v1690
        %v1692 = vrot.slane %v410, %v1691
        %v1693 = vmul.f32 %v1684, %v1692
        %v1694 = vadd.f32 %v407, %v1693
        %v1695 = vsel %vm414, %v1694, 0.0
        %1696 = vadd.xlane.f32.xlu0 %v1695
        %v1697 = vpop.xlane.xlu0 %1696
        %v1698 = vmul.f32 %v1697, %v418
        %v1699 = vsub.f32 %v1694, %v1698
        %v1700 = vmul.f32 %v1699, %v1699
        %v1701 = vsel %vm414, %v1700, 0.0
        %1702 = vadd.xlane.f32.xlu0 %v1701
        %v1703 = vpop.xlane.xlu0 %1702
        %v1704 = vmul.f32 %v1703, %v418
        %v1705 = vadd.f32 %v1704, 1e-06
        %v1706 = vrsqrt.pop %v1705
        %v1707 = vmul.f32 %v1699, %v1706
        %v1708 = vlaneseq
        %v1709 = vshrl.u32 %v1708, 7
        %v1710 = vsub.s32 7, %v1709
        %v1711 = vrot.slane %v1623, %v1710
        %v1712 = vmul.f32 %v1707, %v1711
        %v1713 = vlaneseq
        %v1714 = vshrl.u32 %v1713, 7
        %v1715 = vsub.s32 0, %v1714
        %v1716 = vrot.slane %v1624, %v1715
        %v1717 = vadd.f32 %v1712, %v1716
        %v1718 = vlaneseq
        %v1719 = vshrl.u32 %v1718, 7
        %v1720 = vsub.s32 6, %v1719
        %v1721 = vrot.slane %v439, %v1720
        %v1722 = vmul.f32 %v1717, %v1721
        %v1723 = vlaneseq
        %v1724 = vshrl.u32 %v1723, 7
        %v1725 = vsub.s32 5, %v1724
        %v1726 = vrot.slane %v410, %v1725
        %v1727 = vadd.f32 %v1722, %v1726
        %v1728 = vpack.c.bf16 %v1727, %v1727
        %v1729 = vld [vmem:[%s7] sm:$0xf]
        %v1730 = vld [vmem:[%s7 + $0x4] sm:$0xf]
        %v1731 = vld [vmem:[%s7 + $0x8] sm:$0xf]
        %v1732 = vld [vmem:[%s7 + $0xc] sm:$0xf]
        %v1733 = vld [vmem:[%s4] sm:$0x1]
        %v1735 = vlaneseq
        %v1736 = vshrl.u32 %v1735, 7
        %v1737 = vsub.s32 0, %v1736
        %v1738 = vrot.slane %v1733, %v1737
        %v1744 = vunpack.c.l.b16 %v1729
        %v1745 = vunpack.c.l.b16 %v1730
        %v1746 = vunpack.c.l.b16 %v1731
        %v1747 = vunpack.c.l.b16 %v1732
        %v1748 = vpack.c.b16 %v1745, %v1744
        %v1749 = vpack.c.b16 %v1747, %v1746
        %v1753 = vsel %vm414, %v1728, 0
        %1755 = vmatprep.subr.bf16.mxu0 0
        %1756 = vmatpush1.bf16.msra.mxu0 %v1748
        %1757 = vmatprep.subr.bf16.mxu0 0
        %1758 = vmatpush1.bf16.msra.mxu0 %v1749
        %1759 = vmatprep.subr.bf16.mxu0 0
        %1760 = vmatpush1.bf16.msra.mxu0 0
        %1761 = vmatprep.subr.bf16.mxu0 0
        %1762 = vmatpush1.bf16.msra.mxu0 0
        %1763 = vmatprep.subr.bf16.mxu0 0
        %1764 = vmatpush1.bf16.msra.mxu0 0
        %1765 = vmatprep.subr.bf16.mxu0 0
        %1766 = vmatpush1.bf16.msra.mxu0 0
        %1767 = vmatprep.subr.bf16.mxu0 0
        %1768 = vmatpush1.bf16.msra.mxu0 0
        %1769 = vmatprep.subr.bf16.mxu0 0
        %1770 = vmatpush1.bf16.msra.mxu0 0
        %1771 = vmatprep.subr.bf16.mxu0 0
        %1772 = vmatpush1.bf16.msra.mxu0 0
        %1773 = vmatprep.subr.bf16.mxu0 0
        %1774 = vmatpush1.bf16.msra.mxu0 0
        %1775 = vmatprep.subr.bf16.mxu0 0
        %1776 = vmatpush1.bf16.msra.mxu0 0
        %1777 = vmatprep.subr.bf16.mxu0 0
        %1778 = vmatpush1.bf16.msra.mxu0 0
        %1779 = vmatprep.subr.bf16.mxu0 0
        %1780 = vmatpush1.bf16.msra.mxu0 0
        %1781 = vmatprep.subr.bf16.mxu0 0
        %1782 = vmatpush1.bf16.msra.mxu0 0
        %1783 = vmatprep.subr.bf16.mxu0 0
        %1784 = vmatpush1.bf16.msra.mxu0 0
        %1785 = vmatprep.subr.bf16.mxu0 0
        %1786 = vmatpush1.bf16.msra.mxu0 0
        %1787 = vmatprep.mubr.bf16.mxu0 0
        %1788 = vmatmul.mubr.bf16.gmra.mrb[0].mxu0 %v1753
        %v1789 = vpop.f32.mrb[0].mxu0
        %v1790 = vadd.f32 %v1738, %v1789
        %v1791 = vpop.f32.mrb[0].mxu0
        %v1792 = vpop.f32.mrb[0].mxu0
        %v1793 = vpop.f32.mrb[0].mxu0
        %1794 = vdwg.mxu0
        %v1795 = vmul.f32 %v1790, 0.5
        %v1796 = vmul.f32 %v1790, 0.044715
        %v1797 = vmul.f32 %v1796, %v1790
        %v1798 = vmul.f32 %v1797, %v1790
        %v1799 = vadd.f32 %v1790, %v1798
        %v1800 = vmul.f32 %v1799, 0.7978846
        %v1801 = vtanh.pop %v1800
        %v1802 = vadd.f32 %v1801, 1.0
        %v1803 = vmul.f32 %v1795, %v1802
        %v1804 = vpack.c.bf16 %v1803, %v1803
        %v1805 = vld [vmem:[%s8] sm:$0xf]
        %v1806 = vld [vmem:[%s8 + $0x4] sm:$0xf]
        %v1807 = vld [vmem:[%s8 + $0x8] sm:$0xf]
        %v1808 = vld [vmem:[%s8 + $0xc] sm:$0xf]
        %v1809 = vld [vmem:[%s8 + $0x10] sm:$0xf]
        %v1810 = vld [vmem:[%s8 + $0x14] sm:$0xf]
        %v1811 = vld [vmem:[%s8 + $0x18] sm:$0xf]
        %v1812 = vld [vmem:[%s8 + $0x1c] sm:$0xf]
        %v1813 = vld [vmem:[%s8 + $0x20] sm:$0xf]
        %v1814 = vld [vmem:[%s8 + $0x24] sm:$0xf]
        %v1815 = vld [vmem:[%s8 + $0x28] sm:$0xf]
        %v1816 = vld [vmem:[%s8 + $0x2c] sm:$0xf]
        %v1817 = vld [vmem:[%s8 + $0x30] sm:$0xf]
        %v1818 = vld [vmem:[%s8 + $0x34] sm:$0xf]
        %v1819 = vld [vmem:[%s8 + $0x38] sm:$0xf]
        %v1820 = vld [vmem:[%s8 + $0x3c] sm:$0xf]
        %v1821 = vlaneseq
        %v1822 = vshrl.u32 %v1821, 7
        %v1823 = vsub.s32 1, %v1822
        %v1824 = vrot.slane %v1624, %v1823
        %v1841 = vunpack.c.l.b16 %v1805
        %v1842 = vunpack.c.l.b16 %v1806
        %v1843 = vunpack.c.l.b16 %v1807
        %v1844 = vunpack.c.l.b16 %v1808
        %v1845 = vunpack.c.l.b16 %v1809
        %v1846 = vunpack.c.l.b16 %v1810
        %v1847 = vunpack.c.l.b16 %v1811
        %v1848 = vunpack.c.l.b16 %v1812
        %v1849 = vunpack.c.l.b16 %v1813
        %v1850 = vunpack.c.l.b16 %v1814
        %v1851 = vunpack.c.l.b16 %v1815
        %v1852 = vunpack.c.l.b16 %v1816
        %v1853 = vunpack.c.l.b16 %v1817
        %v1854 = vunpack.c.l.b16 %v1818
        %v1855 = vunpack.c.l.b16 %v1819
        %v1856 = vunpack.c.l.b16 %v1820
        %v1857 = vpack.c.b16 %v1842, %v1841
        %v1858 = vpack.c.b16 %v1844, %v1843
        %v1859 = vpack.c.b16 %v1846, %v1845
        %v1860 = vpack.c.b16 %v1848, %v1847
        %v1861 = vpack.c.b16 %v1850, %v1849
        %v1862 = vpack.c.b16 %v1852, %v1851
        %v1863 = vpack.c.b16 %v1854, %v1853
        %v1864 = vpack.c.b16 %v1856, %v1855
        %1873 = vmatprep.subr.bf16.mxu0 0
        %1874 = vmatpush1.bf16.msra.mxu0 %v1857
        %1875 = vmatprep.subr.bf16.mxu0 0
        %1876 = vmatpush1.bf16.msra.mxu0 %v1858
        %1877 = vmatprep.subr.bf16.mxu0 0
        %1878 = vmatpush1.bf16.msra.mxu0 %v1859
        %1879 = vmatprep.subr.bf16.mxu0 0
        %1880 = vmatpush1.bf16.msra.mxu0 %v1860
        %1881 = vmatprep.subr.bf16.mxu0 0
        %1882 = vmatpush1.bf16.msra.mxu0 %v1861
        %1883 = vmatprep.subr.bf16.mxu0 0
        %1884 = vmatpush1.bf16.msra.mxu0 %v1862
        %1885 = vmatprep.subr.bf16.mxu0 0
        %1886 = vmatpush1.bf16.msra.mxu0 %v1863
        %1887 = vmatprep.subr.bf16.mxu0 0
        %1888 = vmatpush1.bf16.msra.mxu0 %v1864
        %1889 = vmatprep.subr.bf16.mxu0 0
        %1890 = vmatpush1.bf16.msra.mxu0 0
        %1891 = vmatprep.subr.bf16.mxu0 0
        %1892 = vmatpush1.bf16.msra.mxu0 0
        %1893 = vmatprep.subr.bf16.mxu0 0
        %1894 = vmatpush1.bf16.msra.mxu0 0
        %1895 = vmatprep.subr.bf16.mxu0 0
        %1896 = vmatpush1.bf16.msra.mxu0 0
        %1897 = vmatprep.subr.bf16.mxu0 0
        %1898 = vmatpush1.bf16.msra.mxu0 0
        %1899 = vmatprep.subr.bf16.mxu0 0
        %1900 = vmatpush1.bf16.msra.mxu0 0
        %1901 = vmatprep.subr.bf16.mxu0 0
        %1902 = vmatpush1.bf16.msra.mxu0 0
        %1903 = vmatprep.subr.bf16.mxu0 0
        %1904 = vmatpush1.bf16.msra.mxu0 0
        %1905 = vmatprep.mubr.bf16.mxu0 0
        %1906 = vmatmul.mubr.bf16.gmra.mrb[0].mxu0 %v1804
        %v1907 = vpop.f32.mrb[0].mxu0
        %v1908 = vadd.f32 %v1824, %v1907
        %v1909 = vpop.f32.mrb[0].mxu0
        %v1910 = vpop.f32.mrb[0].mxu0
        %v1911 = vpop.f32.mrb[0].mxu0
        %1912 = vdwg.mxu0
        %v1913 = vlaneseq
        %v1914 = vshrl.u32 %v1913, 7
        %v1915 = vsub.s32 7, %v1914
        %v1916 = vrot.slane %v410, %v1915
        %v1917 = vmul.f32 %v1908, %v1916
        %v1918 = vadd.f32 %v407, %v1917
        %1919 = vst.msk [vmem:[%s384] sm:$0xff] %vm414, %v1918
        %v1920 = vld [vmem:[%s614] sm:$0xff]
        %v1921 = vld [vmem:[%s614 + $0x8] sm:$0x1f]
        %v1922 = vpack.c.bf16 %v1622, %v1621
        %s1923 = scalar_lea.vmem %s6, 16
        %v1924 = vld [vmem:[%s1923] sm:$0xf]
        %v1925 = vld [vmem:[%s1923 + $0x4] sm:$0xf]
        %v1926 = vld [vmem:[%s1923 + $0x8] sm:$0xf]
        %v1927 = vld [vmem:[%s1923 + $0xc] sm:$0xf]
        %v1928 = vlaneseq
        %v1929 = vshrl.u32 %v1928, 7
        %v1930 = vsub.s32 6, %v1929
        %v1931 = vrot.slane %v1920, %v1930
        %v1936 = vunpack.c.l.b16 %v1924
        %v1937 = vunpack.c.l.b16 %v1925
        %v1938 = vunpack.c.l.b16 %v1926
        %v1939 = vunpack.c.l.b16 %v1927
        %v1940 = vpack.c.b16 %v1937, %v1936
        %v1941 = vpack.c.b16 %v1939, %v1938
        %v1945 = vsel %vm414, %v1922, 0
        %1947 = vmatprep.subr.bf16.mxu0 0
        %1948 = vmatpush1.bf16.msra.mxu0 %v1940
        %1949 = vmatprep.subr.bf16.mxu0 0
        %1950 = vmatpush1.bf16.msra.mxu0 %v1941
        %1951 = vmatprep.subr.bf16.mxu0 0
        %1952 = vmatpush1.bf16.msra.mxu0 0
        %1953 = vmatprep.subr.bf16.mxu0 0
        %1954 = vmatpush1.bf16.msra.mxu0 0
        %1955 = vmatprep.subr.bf16.mxu0 0
        %1956 = vmatpush1.bf16.msra.mxu0 0
        %1957 = vmatprep.subr.bf16.mxu0 0
        %1958 = vmatpush1.bf16.msra.mxu0 0
        %1959 = vmatprep.subr.bf16.mxu0 0
        %1960 = vmatpush1.bf16.msra.mxu0 0
        %1961 = vmatprep.subr.bf16.mxu0 0
        %1962 = vmatpush1.bf16.msra.mxu0 0
        %1963 = vmatprep.subr.bf16.mxu0 0
        %1964 = vmatpush1.bf16.msra.mxu0 0
        %1965 = vmatprep.subr.bf16.mxu0 0
        %1966 = vmatpush1.bf16.msra.mxu0 0
        %1967 = vmatprep.subr.bf16.mxu0 0
        %1968 = vmatpush1.bf16.msra.mxu0 0
        %1969 = vmatprep.subr.bf16.mxu0 0
        %1970 = vmatpush1.bf16.msra.mxu0 0
        %1971 = vmatprep.subr.bf16.mxu0 0
        %1972 = vmatpush1.bf16.msra.mxu0 0
        %1973 = vmatprep.subr.bf16.mxu0 0
        %1974 = vmatpush1.bf16.msra.mxu0 0
        %1975 = vmatprep.subr.bf16.mxu0 0
        %1976 = vmatpush1.bf16.msra.mxu0 0
        %1977 = vmatprep.subr.bf16.mxu0 0
        %1978 = vmatpush1.bf16.msra.mxu0 0
        %1979 = vmatprep.mubr.bf16.mxu0 0
        %1980 = vmatmul.mubr.bf16.gmra.mrb[0].mxu0 %v1945
        %v1981 = vpop.f32.mrb[0].mxu0
        %v1982 = vadd.f32 %v1931, %v1981
        %v1983 = vpop.f32.mrb[0].mxu0
        %v1984 = vpop.f32.mrb[0].mxu0
        %v1985 = vadd.f32 %v1931, %v1984
        %v1986 = vpop.f32.mrb[0].mxu0
        %1987 = vdwg.mxu0
        %v1988 = vlaneseq
        %v1989 = vshrl.u32 %v1988, 7
        %v1990 = vsub.s32 0, %v1989
        %v1991 = vrot.slane %v411, %v1990
        %v1992 = vmul.f32 %v1982, %v1991
        %v1993 = vmul.f32 %v1985, %v1991
        %v1994 = vadd.f32 %v408, %v1992
        %v1995 = vadd.f32 %v409, %v1993
        %v1996 = vsel %vm414, %v1994, 0.0
        %1997 = vadd.xlane.f32.xlu0 %v1996
        %v1998 = vpop.xlane.xlu0 %1997
        %v1999 = vsel %vm414, %v1995, 0.0
        %2000 = vadd.xlane.f32.xlu0 %v1999
        %v2001 = vpop.xlane.xlu0 %2000
        %v2002 = vmul.f32 %v1998, %v418
        %v2003 = vmul.f32 %v2001, %v418
        %v2004 = vsub.f32 %v1994, %v2002
        %v2005 = vsub.f32 %v1995, %v2003
        %v2006 = vmul.f32 %v2004, %v2004
        %v2007 = vmul.f32 %v2005, %v2005
        %v2008 = vsel %vm414, %v2006, 0.0
        %2009 = vadd.xlane.f32.xlu0 %v2008
        %v2010 = vpop.xlane.xlu0 %2009
        %v2011 = vsel %vm414, %v2007, 0.0
        %2012 = vadd.xlane.f32.xlu0 %v2011
        %v2013 = vpop.xlane.xlu0 %2012
        %v2014 = vmul.f32 %v2010, %v418
        %v2015 = vmul.f32 %v2013, %v418
        %v2016 = vadd.f32 %v2014, 1e-06
        %v2017 = vadd.f32 %v2015, 1e-06
        %v2018 = vrsqrt.pop %v2016
        %v2019 = vrsqrt.pop %v2017
        %v2020 = vmul.f32 %v2004, %v2018
        %v2021 = vmul.f32 %v2005, %v2019
        %v2022 = vlaneseq
        %v2023 = vshrl.u32 %v2022, 7
        %v2024 = vsub.s32 7, %v2023
        %v2025 = vrot.slane %v1920, %v2024
        %v2026 = vmul.f32 %v2020, %v2025
        %v2027 = vmul.f32 %v2021, %v2025
        %v2028 = vlaneseq
        %v2029 = vshrl.u32 %v2028, 7
        %v2030 = vsub.s32 0, %v2029
        %v2031 = vrot.slane %v1921, %v2030
        %v2032 = vadd.f32 %v2026, %v2031
        %v2033 = vadd.f32 %v2027, %v2031
        %v2034 = vadd.f32 %v411, 1.0
        %v2035 = vlaneseq
        %v2036 = vshrl.u32 %v2035, 7
        %v2037 = vsub.s32 2, %v2036
        %v2038 = vrot.slane %v2034, %v2037
        %v2039 = vmul.f32 %v2032, %v2038
        %v2040 = vmul.f32 %v2033, %v2038
        %v2041 = vlaneseq
        %v2042 = vshrl.u32 %v2041, 7
        %v2043 = vsub.s32 1, %v2042
        %v2044 = vrot.slane %v411, %v2043
        %v2045 = vadd.f32 %v2039, %v2044
        %v2046 = vadd.f32 %v2040, %v2044
        %v2047 = vpack.c.bf16 %v2046, %v2045
        %s2048 = scalar_lea.vmem %s7, 16
        %v2049 = vld [vmem:[%s2048] sm:$0xf]
        %v2050 = vld [vmem:[%s2048 + $0x4] sm:$0xf]
        %v2051 = vld [vmem:[%s2048 + $0x8] sm:$0xf]
        %v2052 = vld [vmem:[%s2048 + $0xc] sm:$0xf]
        %s2053 = scalar_lea.vmem %s4, 1
        %v2054 = vld [vmem:[%s2053] sm:$0x1]
        %v2056 = vlaneseq
        %v2057 = vshrl.u32 %v2056, 7
        %v2058 = vsub.s32 0, %v2057
        %v2059 = vrot.slane %v2054, %v2058
        %v2065 = vunpack.c.l.b16 %v2049
        %v2066 = vunpack.c.l.b16 %v2050
        %v2067 = vunpack.c.l.b16 %v2051
        %v2068 = vunpack.c.l.b16 %v2052
        %v2069 = vpack.c.b16 %v2066, %v2065
        %v2070 = vpack.c.b16 %v2068, %v2067
        %v2074 = vsel %vm414, %v2047, 0
        %2076 = vmatprep.subr.bf16.mxu0 0
        %2077 = vmatpush1.bf16.msra.mxu0 %v2069
        %2078 = vmatprep.subr.bf16.mxu0 0
        %2079 = vmatpush1.bf16.msra.mxu0 %v2070
        %2080 = vmatprep.subr.bf16.mxu0 0
        %2081 = vmatpush1.bf16.msra.mxu0 0
        %2082 = vmatprep.subr.bf16.mxu0 0
        %2083 = vmatpush1.bf16.msra.mxu0 0
        %2084 = vmatprep.subr.bf16.mxu0 0
        %2085 = vmatpush1.bf16.msra.mxu0 0
        %2086 = vmatprep.subr.bf16.mxu0 0
        %2087 = vmatpush1.bf16.msra.mxu0 0
        %2088 = vmatprep.subr.bf16.mxu0 0
        %2089 = vmatpush1.bf16.msra.mxu0 0
        %2090 = vmatprep.subr.bf16.mxu0 0
        %2091 = vmatpush1.bf16.msra.mxu0 0
        %2092 = vmatprep.subr.bf16.mxu0 0
        %2093 = vmatpush1.bf16.msra.mxu0 0
        %2094 = vmatprep.subr.bf16.mxu0 0
        %2095 = vmatpush1.bf16.msra.mxu0 0
        %2096 = vmatprep.subr.bf16.mxu0 0
        %2097 = vmatpush1.bf16.msra.mxu0 0
        %2098 = vmatprep.subr.bf16.mxu0 0
        %2099 = vmatpush1.bf16.msra.mxu0 0
        %2100 = vmatprep.subr.bf16.mxu0 0
        %2101 = vmatpush1.bf16.msra.mxu0 0
        %2102 = vmatprep.subr.bf16.mxu0 0
        %2103 = vmatpush1.bf16.msra.mxu0 0
        %2104 = vmatprep.subr.bf16.mxu0 0
        %2105 = vmatpush1.bf16.msra.mxu0 0
        %2106 = vmatprep.subr.bf16.mxu0 0
        %2107 = vmatpush1.bf16.msra.mxu0 0
        %2108 = vmatprep.mubr.bf16.mxu0 0
        %2109 = vmatmul.mubr.bf16.gmra.mrb[0].mxu0 %v2074
        %v2110 = vpop.f32.mrb[0].mxu0
        %v2111 = vadd.f32 %v2059, %v2110
        %v2112 = vpop.f32.mrb[0].mxu0
        %v2113 = vpop.f32.mrb[0].mxu0
        %v2114 = vadd.f32 %v2059, %v2113
        %v2115 = vpop.f32.mrb[0].mxu0
        %2116 = vdwg.mxu0
        %v2117 = vmul.f32 %v2111, 0.5
        %v2118 = vmul.f32 %v2114, 0.5
        %v2119 = vmul.f32 %v2111, 0.044715
        %v2120 = vmul.f32 %v2114, 0.044715
        %v2121 = vmul.f32 %v2119, %v2111
        %v2122 = vmul.f32 %v2120, %v2114
        %v2123 = vmul.f32 %v2121, %v2111
        %v2124 = vmul.f32 %v2122, %v2114
        %v2125 = vadd.f32 %v2111, %v2123
        %v2126 = vadd.f32 %v2114, %v2124
        %v2127 = vmul.f32 %v2125, 0.7978846
        %v2128 = vmul.f32 %v2126, 0.7978846
        %v2129 = vtanh.pop %v2127
        %v2130 = vtanh.pop %v2128
        %v2131 = vadd.f32 %v2129, 1.0
        %v2132 = vadd.f32 %v2130, 1.0
        %v2133 = vmul.f32 %v2117, %v2131
        %v2134 = vmul.f32 %v2118, %v2132
        %v2135 = vpack.c.bf16 %v2134, %v2133
        %s2136 = scalar_lea.vmem %s8, 64
        %v2137 = vld [vmem:[%s2136] sm:$0xf]
        %v2138 = vld [vmem:[%s2136 + $0x4] sm:$0xf]
        %v2139 = vld [vmem:[%s2136 + $0x8] sm:$0xf]
        %v2140 = vld [vmem:[%s2136 + $0xc] sm:$0xf]
        %v2141 = vld [vmem:[%s2136 + $0x10] sm:$0xf]
        %v2142 = vld [vmem:[%s2136 + $0x14] sm:$0xf]
        %v2143 = vld [vmem:[%s2136 + $0x18] sm:$0xf]
        %v2144 = vld [vmem:[%s2136 + $0x1c] sm:$0xf]
        %v2145 = vld [vmem:[%s2136 + $0x20] sm:$0xf]
        %v2146 = vld [vmem:[%s2136 + $0x24] sm:$0xf]
        %v2147 = vld [vmem:[%s2136 + $0x28] sm:$0xf]
        %v2148 = vld [vmem:[%s2136 + $0x2c] sm:$0xf]
        %v2149 = vld [vmem:[%s2136 + $0x30] sm:$0xf]
        %v2150 = vld [vmem:[%s2136 + $0x34] sm:$0xf]
        %v2151 = vld [vmem:[%s2136 + $0x38] sm:$0xf]
        %v2152 = vld [vmem:[%s2136 + $0x3c] sm:$0xf]
        %v2153 = vlaneseq
        %v2154 = vshrl.u32 %v2153, 7
        %v2155 = vsub.s32 1, %v2154
        %v2156 = vrot.slane %v1921, %v2155
        %v2173 = vunpack.c.l.b16 %v2137
        %v2174 = vunpack.c.l.b16 %v2138
        %v2175 = vunpack.c.l.b16 %v2139
        %v2176 = vunpack.c.l.b16 %v2140
        %v2177 = vunpack.c.l.b16 %v2141
        %v2178 = vunpack.c.l.b16 %v2142
        %v2179 = vunpack.c.l.b16 %v2143
        %v2180 = vunpack.c.l.b16 %v2144
        %v2181 = vunpack.c.l.b16 %v2145
        %v2182 = vunpack.c.l.b16 %v2146
        %v2183 = vunpack.c.l.b16 %v2147
        %v2184 = vunpack.c.l.b16 %v2148
        %v2185 = vunpack.c.l.b16 %v2149
        %v2186 = vunpack.c.l.b16 %v2150
        %v2187 = vunpack.c.l.b16 %v2151
        %v2188 = vunpack.c.l.b16 %v2152
        %v2189 = vpack.c.b16 %v2174, %v2173
        %v2190 = vpack.c.b16 %v2176, %v2175
        %v2191 = vpack.c.b16 %v2178, %v2177
        %v2192 = vpack.c.b16 %v2180, %v2179
        %v2193 = vpack.c.b16 %v2182, %v2181
        %v2194 = vpack.c.b16 %v2184, %v2183
        %v2195 = vpack.c.b16 %v2186, %v2185
        %v2196 = vpack.c.b16 %v2188, %v2187
        %2205 = vmatprep.subr.bf16.mxu0 0
        %2206 = vmatpush1.bf16.msra.mxu0 %v2189
        %2207 = vmatprep.subr.bf16.mxu0 0
        %2208 = vmatpush1.bf16.msra.mxu0 %v2190
        %2209 = vmatprep.subr.bf16.mxu0 0
        %2210 = vmatpush1.bf16.msra.mxu0 %v2191
        %2211 = vmatprep.subr.bf16.mxu0 0
        %2212 = vmatpush1.bf16.msra.mxu0 %v2192
        %2213 = vmatprep.subr.bf16.mxu0 0
        %2214 = vmatpush1.bf16.msra.mxu0 %v2193
        %2215 = vmatprep.subr.bf16.mxu0 0
        %2216 = vmatpush1.bf16.msra.mxu0 %v2194
        %2217 = vmatprep.subr.bf16.mxu0 0
        %2218 = vmatpush1.bf16.msra.mxu0 %v2195
        %2219 = vmatprep.subr.bf16.mxu0 0
        %2220 = vmatpush1.bf16.msra.mxu0 %v2196
        %2221 = vmatprep.subr.bf16.mxu0 0
        %2222 = vmatpush1.bf16.msra.mxu0 0
        %2223 = vmatprep.subr.bf16.mxu0 0
        %2224 = vmatpush1.bf16.msra.mxu0 0
        %2225 = vmatprep.subr.bf16.mxu0 0
        %2226 = vmatpush1.bf16.msra.mxu0 0
        %2227 = vmatprep.subr.bf16.mxu0 0
        %2228 = vmatpush1.bf16.msra.mxu0 0
        %2229 = vmatprep.subr.bf16.mxu0 0
        %2230 = vmatpush1.bf16.msra.mxu0 0
        %2231 = vmatprep.subr.bf16.mxu0 0
        %2232 = vmatpush1.bf16.msra.mxu0 0
        %2233 = vmatprep.subr.bf16.mxu0 0
        %2234 = vmatpush1.bf16.msra.mxu0 0
        %2235 = vmatprep.subr.bf16.mxu0 0
        %2236 = vmatpush1.bf16.msra.mxu0 0
        %2237 = vmatprep.mubr.bf16.mxu0 0
        %2238 = vmatmul.mubr.bf16.gmra.mrb[0].mxu0 %v2135
        %v2239 = vpop.f32.mrb[0].mxu0
        %v2240 = vadd.f32 %v2156, %v2239
        %v2241 = vpop.f32.mrb[0].mxu0
        %v2242 = vpop.f32.mrb[0].mxu0
        %v2243 = vadd.f32 %v2156, %v2242
        %v2244 = vpop.f32.mrb[0].mxu0
        %2245 = vdwg.mxu0
        %v2246 = vlaneseq
        %v2247 = vshrl.u32 %v2246, 7
        %v2248 = vsub.s32 3, %v2247
        %v2249 = vrot.slane %v411, %v2248
        %v2250 = vmul.f32 %v2240, %v2249
        %v2251 = vmul.f32 %v2243, %v2249
        %v2252 = vadd.f32 %v408, %v2250
        %v2253 = vadd.f32 %v409, %v2251
        %2254 = vst.msk [vmem:[%s391] sm:$0xff] %vm414, %v2252
        %2255 = vst.msk [vmem:[%s391 + $0x8] sm:$0xff] %vm414, %v2253
        %s2256 = sand.u32 %s240, 1
        %s2257 = scalar_lea.sflag [#allocation6], %s2256
        %s2258 = sand.u32 %s240, 1
        %s2259 = smul.addr %s2258, 8
        %s2260 = scalar_lea.vmem [#allocation5], %s2259
        %s2261 = sand.u32 %s266, 1
        %s2262 = scalar_lea.sflag [#allocation8], %s2261
        %s2263 = sand.u32 %s266, 1
        %s2264 = smul.addr %s2263, 16
        %s2265 = scalar_lea.vmem [#allocation7], %s2264
        // Predicated region
        $region57: #{tpu_custom_call.1} parent=55 // pred_check
          %p2266 = pneg %p250
        $region58: #{tpu_custom_call.1} parent=55 // pred_check_branch
          %2268 = sbr.rel (%p2266) target = $region60
        $region59: #{tpu_custom_call.1} parent=55 // pred_region
          %s2270 = ssub.s32 128, 128
          %2271 = vsyncadd %s2257, %s2270
          %s2272 = smul.addr %s28, 128
          %s2273 = scalar_lea.hbm %s9, %s2272
          %s2275 = sshll.u32 %s2260, 4
          %s2276 = int_to_ptr.vmem [resolvable:$true] %s2275
          %2278 = dma.vmem_to_hbm [thread:$0]  %s2276, 128, %s2273, %s2257
        $region60: #{tpu_custom_call.1} parent=55 // pred_fallthru
          _
        // Predicated region
        $region61: #{tpu_custom_call.1} parent=55 // pred_check
          %p2279 = pneg %p276
        $region62: #{tpu_custom_call.1} parent=55 // pred_check_branch
          %2281 = sbr.rel (%p2279) target = $region64
        $region63: #{tpu_custom_call.1} parent=55 // pred_region
          %s2283 = ssub.s32 256, 256
          %2284 = vsyncadd %s2262, %s2283
          %s2285 = smul.addr %s28, 2
          %s2286 = smul.addr %s2285, 128
          %s2287 = scalar_lea.hbm %s10, %s2286
          %s2288 = sshll.u32 %s2265, 4
          %s2289 = int_to_ptr.vmem [resolvable:$true] %s2288
          %2294 = dma.vmem_to_hbm [thread:$0]  %s2289, 256, %s2287, %s2262, 128, 128, 8
        $region64: #{tpu_custom_call.1} parent=55 // pred_fallthru
          _
      $region56: #{tpu_custom_call.1} parent=5 // pred_fallthru
        _
      %p2295 = scmp.le.s32.totalorder 2, %s23
      // Predicated region
      $region65: #{tpu_custom_call.1} parent=5 // pred_check
        %p2296 = pneg %p2295
      $region66: #{tpu_custom_call.1} parent=5 // pred_check_branch
        %2298 = sbr.rel (%p2296) target = $region68
      $region67: #{tpu_custom_call.1} parent=5 // pred_region
        %s2299 = ssub.s32 %s23, 2
        // Predicated region
        $region69: #{tpu_custom_call.1} parent=67 // pred_check
          %p2300 = pneg %p256
        $region70: #{tpu_custom_call.1} parent=67 // pred_check_branch
          %2302 = sbr.rel (%p2300) target = $region72
        $region71: #{tpu_custom_call.1} parent=67 // pred_region
          %s2303 = sand.u32 %s241, 1
          %s2304 = scalar_lea.sflag [#allocation6], %s2303
          %s2305 = sand.u32 %s241, 1
          %s2306 = smul.addr %s2305, 8
          %s2307 = scalar_lea.vmem [#allocation5], %s2306
          %2308 = dma.done %s2304, 128
        $region72: #{tpu_custom_call.1} parent=67 // pred_fallthru
          _
        // Predicated region
        $region73: #{tpu_custom_call.1} parent=67 // pred_check
          %p2309 = pneg %p282
        $region74: #{tpu_custom_call.1} parent=67 // pred_check_branch
          %2311 = sbr.rel (%p2309) target = $region76
        $region75: #{tpu_custom_call.1} parent=67 // pred_region
          %s2312 = sand.u32 %s267, 1
          %s2313 = scalar_lea.sflag [#allocation8], %s2312
          %s2314 = sand.u32 %s267, 1
          %s2315 = smul.addr %s2314, 16
          %s2316 = scalar_lea.vmem [#allocation7], %s2315
          %2317 = dma.done %s2313, 256
        $region76: #{tpu_custom_call.1} parent=67 // pred_fallthru
          _
      $region68: #{tpu_custom_call.1} parent=5 // pred_fallthru
        _
    $region6: #{tpu_custom_call.1} parent=1 // loop_footer
      %s27 = sadd.s32 1, %s23
    $region7: #{tpu_custom_call.1} parent=1 // loop_footer_branch
      %22 = sbr.rel target = $region3
    $region8: #{tpu_custom_call.1} parent=1 // loop_exit
      _
    %2318 = vsyncpa [#allocation6], 1
    %s2319 = scalar_lea.sflag [#allocation6], 1
    %2320 = vsyncpa %s2319, 1
    %2321 = vsyncpa [#allocation8], 1
    %s2322 = scalar_lea.sflag [#allocation8], 1
    %2323 = vsyncpa %s2322, 1

</llo_original>
